<compile_context>
chip_gen: v6e
topology: v6e:2x2x1
jax: 0.10.0
libtpu: 0.0.40
codegen_flags: <defaults>
</compile_context>

<pallas_src>
import functools

import jax
import jax.numpy as jnp
from jax.experimental import pallas as pl
from jax.experimental.pallas import tpu as pltpu

# ----------------------------- model config (small stand-in for GPT-2) ------------------
BATCH = 2
SEQ = 8            # stands for n_positions
D_MODEL = 128      # stands for 768 (lane-dense)
N_HEAD = 4         # stands for 12
D_HEAD = D_MODEL // N_HEAD
D_FF = 4 * D_MODEL
N_LAYER = 2        # stands for 12
VOCAB = 512        # stands for n_token=50259
N_CLASS = 16       # stands for n_class=281
LN_EPS = 1e-5
NEG_INF = -1e9


def _ln(x, g, b):
    # LayerNorm over the last dim, f32 math.
    mu = jnp.mean(x, axis=-1, keepdims=True)
    var = jnp.mean((x - mu) * (x - mu), axis=-1, keepdims=True)
    return (x - mu) * jax.lax.rsqrt(var + LN_EPS) * g + b


def _gelu_new(x):
    return 0.5 * x * (1.0 + jnp.tanh(0.7978845608028654 * (x + 0.044715 * x * x * x)))


# ----------------------------- one fused whole-model kernel -----------------------------
def _gpt_kernel(G, B,
                emb_ref, mask_ref,
                ln1_g_ref, ln1_b_ref, w_qkv_ref, b_qkv_ref, w_o_ref, b_o_ref,
                ln2_g_ref, ln2_b_ref, w_fc_ref, b_fc_ref, w_proj_ref, b_proj_ref,
                lnf_g_ref, lnf_b_ref, w1_ref, b1_ref, w2_ref, b2_ref,
                out_h_ref, out_t_ref,
                h_ref):
    S, D, H, Dh = SEQ, D_MODEL, N_HEAD, D_HEAD
    M = G * S
    scale = 1.0 / (Dh ** 0.5)
    l = pl.program_id(0)

    # Layer 0: load token+position embeddings into the resident VMEM carry.
    @pl.when(l == 0)
    def _():
        h_ref[...] = emb_ref[...].reshape(M, D)

    h = h_ref[...]                                                     # (M, D) f32

    # Additive attention bias (causal + key padding), built in-register, stacked for all
    # heads along sublanes so the softmax runs once over every (g, head) pair.
    row = jax.lax.broadcasted_iota(jnp.int32, (S, S), 0)
    col = jax.lax.broadcasted_iota(jnp.int32, (S, S), 1)
    key_ok = mask_ref[...] > 0.5                                       # (G, 1, S)
    bias = jnp.where((col <= row)[None, :, :] & key_ok, 0.0, NEG_INF)  # (G, S, S)
    bias = jnp.concatenate([bias] * H, axis=1)                         # (G, H*S, S)

    # ---- attention: LN1 -> QKV (one M=G*S dot) -> heads -> out-proj (one K=D dot) ----
    x = _ln(h, ln1_g_ref[0], ln1_b_ref[0]).astype(jnp.bfloat16)
    qkv = jnp.dot(x, w_qkv_ref[0],
                  preferred_element_type=jnp.float32) + b_qkv_ref[0]   # (M, 3D) f32
    qkv3 = qkv.reshape(G, S, 3 * D)

    # TODO(synk): for real GPT-2 sizes (H=12, S=1024) use a fori_loop / fully batched
    # dot_general here instead of an unrolled Python loop to bound vreg live ranges.
    scores = []
    for hd in range(H):
        qh = qkv3[:, :, hd * Dh:(hd + 1) * Dh].astype(jnp.bfloat16)
        kh = qkv3[:, :, D + hd * Dh:D + (hd + 1) * Dh].astype(jnp.bfloat16)
        s = jax.lax.dot_general(qh, kh, (((2,), (2,)), ((0,), (0,))),
                                preferred_element_type=jnp.float32)    # (G, S, S)
        scores.append(s)
    s_all = jnp.concatenate(scores, axis=1) * scale + bias             # (G, H*S, S)

    m = jnp.max(s_all, axis=-1, keepdims=True)
    p = jnp.exp(s_all - m)
    p = p * pl.reciprocal(jnp.sum(p, axis=-1, keepdims=True), approx=False)

    parts = []
    for hd in range(H):
        ph = p[:, hd * S:(hd + 1) * S, :].astype(jnp.bfloat16)         # (G, S, S)
        vh = qkv3[:, :, 2 * D + hd * Dh:2 * D + (hd + 1) * Dh].astype(jnp.bfloat16)
        parts.append(jax.lax.dot_general(ph, vh, (((2,), (1,)), ((0,), (0,))),
                                         preferred_element_type=jnp.float32))
    attn = jnp.concatenate(parts, axis=2).reshape(M, D).astype(jnp.bfloat16)
    h = h + jnp.dot(attn, w_o_ref[0],
                    preferred_element_type=jnp.float32) + b_o_ref[0]   # residual 1

    # ---- MLP: LN2 -> fc -> gelu_new -> proj -> residual --------------------------------
    x2 = _ln(h, ln2_g_ref[0], ln2_b_ref[0]).astype(jnp.bfloat16)
    mid = jnp.dot(x2, w_fc_ref[0],
                  preferred_element_type=jnp.float32) + b_fc_ref[0]    # (M, Dff) f32
    mid = _gelu_new(mid)
    h = h + jnp.dot(mid.astype(jnp.bfloat16), w_proj_ref[0],
                    preferred_element_type=jnp.float32) + b_proj_ref[0]  # residual 2
    h_ref[...] = h                                                      # carry to next layer

    # ---- fused final LN + last-position pooling + twin classifier heads + ReLU --------
    @pl.when(l == pl.num_programs(0) - 1)
    def _():
        pooled = h.reshape(G, S, D)[:, S - 1, :]                        # (G, D) last position
        y = _ln(pooled, lnf_g_ref[...], lnf_b_ref[...]).astype(jnp.bfloat16)
        p_t = y[0 * B:1 * B]        # stacked order is [t, h, c]
        p_h = y[1 * B:2 * B]
        p_c = y[2 * B:3 * B]
        w1 = w1_ref[...]            # (2D, N_CLASS) bf16
        w2 = w2_ref[...]
        # concat(pooled, pooled_c) @ W == pooled @ W[:D] + pooled_c @ W[D:]
        zh = (jnp.dot(p_h, w1[:D], preferred_element_type=jnp.float32)
              + jnp.dot(p_c, w1[D:], preferred_element_type=jnp.float32) + b1_ref[...])
        zt = (jnp.dot(p_t, w2[:D], preferred_element_type=jnp.float32)
              + jnp.dot(p_c, w2[D:], preferred_element_type=jnp.float32) + b2_ref[...])
        out_h_ref[...] = jnp.maximum(zh, 0.0)
        out_t_ref[...] = jnp.maximum(zt, 0.0)


def pallas_gpt_classifier(params, ids, masks):
    G, S = ids.shape
    B = G // 3
    D = D_MODEL

    # Embedding gather + position embeddings (plain-JAX glue).
    emb = (params['wte'][ids] + params['wpe'][None, :S, :]).astype(jnp.float32)  # (G,S,D)
    mask_f = masks.astype(jnp.float32).reshape(G, 1, S)

    layer_spec = lambda r, c: pl.BlockSpec((1, r, c), lambda l: (l, 0, 0))  # layer-indexed
    const_spec = lambda r, c: pl.BlockSpec((r, c), lambda l: (0, 0))        # DMA'd once

    return pl.pallas_call(
        functools.partial(_gpt_kernel, G, B),
        out_shape=(jax.ShapeDtypeStruct((B, N_CLASS), jnp.float32),
                   jax.ShapeDtypeStruct((B, N_CLASS), jnp.float32)),
        grid=(N_LAYER,),
        in_specs=[
            pl.BlockSpec((G, S, D), lambda l: (0, 0, 0)),   # embeddings (constant index)
            pl.BlockSpec((G, 1, S), lambda l: (0, 0, 0)),   # padding mask (constant index)
            layer_spec(1, D), layer_spec(1, D),             # ln1 g/b
            layer_spec(D, 3 * D), layer_spec(1, 3 * D),     # qkv
            layer_spec(D, D), layer_spec(1, D),             # attn out proj
            layer_spec(1, D), layer_spec(1, D),             # ln2 g/b
            layer_spec(D, D_FF), layer_spec(1, D_FF),       # mlp fc
            layer_spec(D_FF, D), layer_spec(1, D),          # mlp proj
            const_spec(1, D), const_spec(1, D),             # final LN g/b
            const_spec(2 * D, N_CLASS), const_spec(1, N_CLASS),   # linear  (h head)
            const_spec(2 * D, N_CLASS), const_spec(1, N_CLASS),   # linear2 (t head)
        ],
        out_specs=(pl.BlockSpec((B, N_CLASS), lambda l: (0, 0)),
                   pl.BlockSpec((B, N_CLASS), lambda l: (0, 0))),
        scratch_shapes=[pltpu.VMEM((G * S, D), jnp.float32)],   # resident hidden-state carry
        compiler_params=pltpu.CompilerParams(
            dimension_semantics=("arbitrary",)),   # layer axis carries state (reduction-like)
    )(emb, mask_f,
      params['ln1_g'], params['ln1_b'], params['w_qkv'], params['b_qkv'],
      params['w_o'], params['b_o'], params['ln2_g'], params['ln2_b'],
      params['w_fc'], params['b_fc'], params['w_proj'], params['b_proj'],
      params['lnf_g'], params['lnf_b'],
      params['cls1_w'], params['cls1_b'], params['cls2_w'], params['cls2_b'])


# ----------------------------- GPTClassifier forward ------------------------------------
def gpt_classifier_forward(params, input_id_h, input_id_t, mask_h, mask_t,
                           context, mask_context):
    # One backbone pass over the stacked [t, h, c] batch (weights streamed once per layer).
    ids = jnp.concatenate([input_id_t, input_id_h, context], axis=0)        # (3B, S)
    masks = jnp.concatenate([mask_t, mask_h, mask_context], axis=0)
    # nn.Dropout is identity in eval mode.
    # TODO(synk): training-mode stochastic dropout (p=0.5) not implemented.
    # Note: pooling uses position -1 (matches the PyTorch reference h[:, -1, :] exactly).
    return pallas_gpt_classifier(params, ids, masks)


# ----------------------------- deterministic parameter init -----------------------------
def init_params(key):
    keys = iter(jax.random.split(key, 64))
    std = 0.02

    def nrm(shape, dtype=jnp.float32):
        return (jax.random.normal(next(keys), shape, jnp.float32) * std).astype(dtype)

    D, Dff, L = D_MODEL, D_FF, N_LAYER
    return {
        'wte': nrm((VOCAB, D)),
        'wpe': nrm((SEQ, D)),
        # per-layer weights stacked along a leading N_LAYER axis for the layer grid
        'ln1_g': jnp.ones((L, 1, D), jnp.float32),
        'ln1_b': jnp.zeros((L, 1, D), jnp.float32),
        'w_qkv': nrm((L, D, 3 * D), jnp.bfloat16),
        'b_qkv': jnp.zeros((L, 1, 3 * D), jnp.float32),
        'w_o':   nrm((L, D, D), jnp.bfloat16),
        'b_o':   jnp.zeros((L, 1, D), jnp.float32),
        'ln2_g': jnp.ones((L, 1, D), jnp.float32),
        'ln2_b': jnp.zeros((L, 1, D), jnp.float32),
        'w_fc':   nrm((L, D, Dff), jnp.bfloat16),
        'b_fc':   jnp.zeros((L, 1, Dff), jnp.float32),
        'w_proj': nrm((L, Dff, D), jnp.bfloat16),
        'b_proj': jnp.zeros((L, 1, D), jnp.float32),
        # final LN + twin classifier heads
        'lnf_g': jnp.ones((1, D), jnp.float32),
        'lnf_b': jnp.zeros((1, D), jnp.float32),
        'cls1_w': nrm((2 * D, N_CLASS), jnp.bfloat16),
        'cls1_b': jnp.zeros((1, N_CLASS), jnp.float32),
        'cls2_w': nrm((2 * D, N_CLASS), jnp.bfloat16),
        'cls2_b': jnp.zeros((1, N_CLASS), jnp.float32),
    }


if __name__ == "__main__":
    key = jax.random.PRNGKey(0)
    kp, kh, kt, kc = jax.random.split(key, 4)

    params = init_params(kp)

    input_id_h = jax.random.randint(kh, (BATCH, SEQ), 0, VOCAB, dtype=jnp.int32)
    input_id_t = jax.random.randint(kt, (BATCH, SEQ), 0, VOCAB, dtype=jnp.int32)
    context    = jax.random.randint(kc, (BATCH, SEQ), 0, VOCAB, dtype=jnp.int32)
    mask_h = jnp.ones((BATCH, SEQ), jnp.int32)
    mask_t = jnp.ones((BATCH, SEQ), jnp.int32)
    mask_context = jnp.ones((BATCH, SEQ), jnp.int32)

    fwd = jax.jit(gpt_classifier_forward)
    out_h, out_t = fwd(params, input_id_h, input_id_t, mask_h, mask_t,
                       context, mask_context)
    jax.block_until_ready((out_h, out_t))

    assert out_h.shape == (BATCH, N_CLASS) and out_t.shape == (BATCH, N_CLASS)
    assert bool(jnp.all(out_h >= 0.0)) and bool(jnp.all(out_t >= 0.0))   # ReLU outputs
    assert bool(jnp.all(jnp.isfinite(out_h))) and bool(jnp.all(jnp.isfinite(out_t)))
    print("KERNEL_OK")
</pallas_src>

<mosaic_0001>
module attributes {stable_mosaic.version = 11 : i64} {
  func.func @_gpt_kernel(%arg0: i32, %arg1: memref<6x8x128xf32, #tpu.memory_space<vmem>>, %arg2: memref<6x1x8xf32, #tpu.memory_space<vmem>>, %arg3: memref<1x1x128xf32, #tpu.memory_space<vmem>>, %arg4: memref<1x1x128xf32, #tpu.memory_space<vmem>>, %arg5: memref<1x128x384xbf16, #tpu.memory_space<vmem>>, %arg6: memref<1x1x384xf32, #tpu.memory_space<vmem>>, %arg7: memref<1x128x128xbf16, #tpu.memory_space<vmem>>, %arg8: memref<1x1x128xf32, #tpu.memory_space<vmem>>, %arg9: memref<1x1x128xf32, #tpu.memory_space<vmem>>, %arg10: memref<1x1x128xf32, #tpu.memory_space<vmem>>, %arg11: memref<1x128x512xbf16, #tpu.memory_space<vmem>>, %arg12: memref<1x1x512xf32, #tpu.memory_space<vmem>>, %arg13: memref<1x512x128xbf16, #tpu.memory_space<vmem>>, %arg14: memref<1x1x128xf32, #tpu.memory_space<vmem>>, %arg15: memref<1x128xf32, #tpu.memory_space<vmem>>, %arg16: memref<1x128xf32, #tpu.memory_space<vmem>>, %arg17: memref<256x16xbf16, #tpu.memory_space<vmem>>, %arg18: memref<1x16xf32, #tpu.memory_space<vmem>>, %arg19: memref<256x16xbf16, #tpu.memory_space<vmem>>, %arg20: memref<1x16xf32, #tpu.memory_space<vmem>>, %arg21: memref<2x16xf32, #tpu.memory_space<vmem>>, %arg22: memref<2x16xf32, #tpu.memory_space<vmem>>, %arg23: memref<48x128xf32, #tpu.memory_space<vmem>>) attributes {dimension_semantics = [#tpu.dimension_semantics<arbitrary>], iteration_bounds = array<i64: 2>, scalar_prefetch = 0 : i64, scratch_operands = 1 : i64, tpu.core_type = #tpu.core_type<tc>, window_params = [{pipeline_mode = #tpu.pipeline_mode<synchronous>, transform_indices = @transform_0, window_bounds = array<i64: 6, 8, 128>}, {pipeline_mode = #tpu.pipeline_mode<synchronous>, transform_indices = @transform_1, window_bounds = array<i64: 6, 1, 8>}, {transform_indices = @transform_2, window_bounds = array<i64: 1, 1, 128>}, {transform_indices = @transform_3, window_bounds = array<i64: 1, 1, 128>}, {transform_indices = @transform_4, window_bounds = array<i64: 1, 128, 384>}, {transform_indices = @transform_5, window_bounds = array<i64: 1, 1, 384>}, {transform_indices = @transform_6, window_bounds = array<i64: 1, 128, 128>}, {transform_indices = @transform_7, window_bounds = array<i64: 1, 1, 128>}, {transform_indices = @transform_8, window_bounds = array<i64: 1, 1, 128>}, {transform_indices = @transform_9, window_bounds = array<i64: 1, 1, 128>}, {transform_indices = @transform_10, window_bounds = array<i64: 1, 128, 512>}, {transform_indices = @transform_11, window_bounds = array<i64: 1, 1, 512>}, {transform_indices = @transform_12, window_bounds = array<i64: 1, 512, 128>}, {transform_indices = @transform_13, window_bounds = array<i64: 1, 1, 128>}, {pipeline_mode = #tpu.pipeline_mode<synchronous>, transform_indices = @transform_14, window_bounds = array<i64: 1, 128>}, {pipeline_mode = #tpu.pipeline_mode<synchronous>, transform_indices = @transform_15, window_bounds = array<i64: 1, 128>}, {pipeline_mode = #tpu.pipeline_mode<synchronous>, transform_indices = @transform_16, window_bounds = array<i64: 256, 16>}, {pipeline_mode = #tpu.pipeline_mode<synchronous>, transform_indices = @transform_17, window_bounds = array<i64: 1, 16>}, {pipeline_mode = #tpu.pipeline_mode<synchronous>, transform_indices = @transform_18, window_bounds = array<i64: 256, 16>}, {pipeline_mode = #tpu.pipeline_mode<synchronous>, transform_indices = @transform_19, window_bounds = array<i64: 1, 16>}, {pipeline_mode = #tpu.pipeline_mode<synchronous>, transform_indices = @transform_20, window_bounds = array<i64: 2, 16>}, {pipeline_mode = #tpu.pipeline_mode<synchronous>, transform_indices = @transform_21, window_bounds = array<i64: 2, 16>}]} {
    %c0_i32 = arith.constant 0 : i32
    %0 = arith.cmpi eq, %arg0, %c0_i32 : i32
    %1 = arith.extui %0 : i1 to i32
    %c0_i32_0 = arith.constant 0 : i32
    %2 = arith.cmpi ne, %1, %c0_i32_0 : i32
    scf.if %2 {
      %c0_75 = arith.constant 0 : index
      %c0_76 = arith.constant 0 : index
      %c0_77 = arith.constant 0 : index
      %182 = vector.load %arg1[%c0_75, %c0_76, %c0_77] : memref<6x8x128xf32, #tpu.memory_space<vmem>>, vector<6x8x128xf32>
      %183 = vector.shape_cast %182 : vector<6x8x128xf32> to vector<48x128xf32>
      %c0_78 = arith.constant 0 : index
      %c0_79 = arith.constant 0 : index
      %184 = vector.load %arg23[%c0_78, %c0_79] : memref<48x128xf32, #tpu.memory_space<vmem>>, vector<48x128xf32>
      tpu.vector_store %arg23[%c0_78, %c0_79], %183 {strides = array<i32>} : memref<48x128xf32, #tpu.memory_space<vmem>>, vector<48x128xf32>,
    } else {
    }
    %c0 = arith.constant 0 : index
    %c0_1 = arith.constant 0 : index
    %3 = vector.load %arg23[%c0, %c0_1] : memref<48x128xf32, #tpu.memory_space<vmem>>, vector<48x128xf32>
    %4 = tpu.iota {dimensions = array<i32: 0>} : vector<8x8xi32>
    %5 = tpu.iota {dimensions = array<i32: 1>} : vector<8x8xi32>
    %c0_2 = arith.constant 0 : index
    %c0_3 = arith.constant 0 : index
    %c0_4 = arith.constant 0 : index
    %6 = vector.load %arg2[%c0_2, %c0_3, %c0_4] : memref<6x1x8xf32, #tpu.memory_space<vmem>>, vector<6x1x8xf32>
    %cst = arith.constant 5.000000e-01 : f32
    %7 = vector.broadcast %cst : f32 to vector<6x1x8xf32>
    %8 = arith.cmpf ogt, %6, %7 : vector<6x1x8xf32>
    %9 = arith.cmpi sle, %5, %4 : vector<8x8xi32>
    %10 = vector.shape_cast %9 : vector<8x8xi1> to vector<1x8x8xi1>
    %11 = vector.broadcast %10 : vector<1x8x8xi1> to vector<6x8x8xi1>
    %12 = vector.broadcast %8 : vector<6x1x8xi1> to vector<6x8x8xi1>
    %13 = arith.andi %11, %12 : vector<6x8x8xi1>
    %cst_5 = arith.constant 0.000000e+00 : f32
    %cst_6 = arith.constant -1.000000e+09 : f32
    %14 = vector.broadcast %cst_5 : f32 to vector<6x8x8xf32>
    %15 = vector.broadcast %cst_6 : f32 to vector<6x8x8xf32>
    %16 = arith.select %13, %14, %15 : vector<6x8x8xi1>, vector<6x8x8xf32>
    %17 = tpu.concatenate %16, %16, %16, %16 in 1 : vector<6x8x8xf32>, vector<6x8x8xf32>, vector<6x8x8xf32>, vector<6x8x8xf32> -> vector<6x32x8xf32>
    %c0_7 = arith.constant 0 : index
    %c0_8 = arith.constant 0 : index
    %c0_9 = arith.constant 0 : index
    %18 = vector.load %arg3[%c0_7, %c0_8, %c0_9] : memref<1x1x128xf32, #tpu.memory_space<vmem>>, vector<1x1x128xf32>
    %19 = vector.shape_cast %18 : vector<1x1x128xf32> to vector<1x128xf32>
    %c0_10 = arith.constant 0 : index
    %c0_11 = arith.constant 0 : index
    %c0_12 = arith.constant 0 : index
    %20 = vector.load %arg4[%c0_10, %c0_11, %c0_12] : memref<1x1x128xf32, #tpu.memory_space<vmem>>, vector<1x1x128xf32>
    %21 = vector.shape_cast %20 : vector<1x1x128xf32> to vector<1x128xf32>
    %cst_13 = arith.constant dense<0.000000e+00> : vector<48xf32>
    %22 = vector.multi_reduction <add>, %3, %cst_13 [1] : vector<48x128xf32> to vector<48xf32>
    %23 = vector.shape_cast %22 : vector<48xf32> to vector<48x1xf32>
    %cst_14 = arith.constant 1.280000e+02 : f32
    %24 = vector.broadcast %cst_14 : f32 to vector<48x1xf32>
    %25 = arith.divf %23, %24 : vector<48x1xf32>
    %26 = vector.broadcast %25 : vector<48x1xf32> to vector<48x128xf32>
    %27 = arith.subf %3, %26 : vector<48x128xf32>
    %28 = vector.broadcast %25 : vector<48x1xf32> to vector<48x128xf32>
    %29 = arith.subf %3, %28 : vector<48x128xf32>
    %30 = arith.mulf %27, %29 : vector<48x128xf32>
    %cst_15 = arith.constant dense<0.000000e+00> : vector<48xf32>
    %31 = vector.multi_reduction <add>, %30, %cst_15 [1] : vector<48x128xf32> to vector<48xf32>
    %32 = vector.shape_cast %31 : vector<48xf32> to vector<48x1xf32>
    %cst_16 = arith.constant 1.280000e+02 : f32
    %33 = vector.broadcast %cst_16 : f32 to vector<48x1xf32>
    %34 = arith.divf %32, %33 : vector<48x1xf32>
    %35 = vector.broadcast %25 : vector<48x1xf32> to vector<48x128xf32>
    %36 = arith.subf %3, %35 : vector<48x128xf32>
    %cst_17 = arith.constant 9.99999974E-6 : f32
    %37 = vector.broadcast %cst_17 : f32 to vector<48x1xf32>
    %38 = arith.addf %34, %37 : vector<48x1xf32>
    %39 = math.rsqrt %38 : vector<48x1xf32>
    %40 = vector.broadcast %39 : vector<48x1xf32> to vector<48x128xf32>
    %41 = arith.mulf %36, %40 : vector<48x128xf32>
    %42 = vector.broadcast %19 : vector<1x128xf32> to vector<48x128xf32>
    %43 = arith.mulf %41, %42 : vector<48x128xf32>
    %44 = vector.broadcast %21 : vector<1x128xf32> to vector<48x128xf32>
    %45 = arith.addf %43, %44 : vector<48x128xf32>
    %46 = arith.truncf %45 : vector<48x128xf32> to vector<48x128xbf16>
    %c0_18 = arith.constant 0 : index
    %c0_19 = arith.constant 0 : index
    %c0_20 = arith.constant 0 : index
    %47 = vector.load %arg5[%c0_18, %c0_19, %c0_20] : memref<1x128x384xbf16, #tpu.memory_space<vmem>>, vector<1x128x384xbf16>
    %48 = vector.shape_cast %47 : vector<1x128x384xbf16> to vector<128x384xbf16>
    %cst_21 = arith.constant dense<0.000000e+00> : vector<48x384xf32>
    %49 = tpu.matmul %46, %48, %cst_21 {dimension_numbers = #tpu.dot_dimension_numbers<[1], [0], [0], [1], [0, 0, 1, 1], [], []>} : vector<48x128xbf16>, vector<128x384xbf16>, vector<48x384xf32> -> vector<48x384xf32>
    %c0_22 = arith.constant 0 : index
    %c0_23 = arith.constant 0 : index
    %c0_24 = arith.constant 0 : index
    %50 = vector.load %arg6[%c0_22, %c0_23, %c0_24] : memref<1x1x384xf32, #tpu.memory_space<vmem>>, vector<1x1x384xf32>
    %51 = vector.shape_cast %50 : vector<1x1x384xf32> to vector<1x384xf32>
    %52 = vector.broadcast %51 : vector<1x384xf32> to vector<48x384xf32>
    %53 = arith.addf %49, %52 : vector<48x384xf32>
    %54 = vector.shape_cast %53 : vector<48x384xf32> to vector<6x8x384xf32>
    %55 = vector.extract_strided_slice %54 {offsets = [0, 0, 0], sizes = [6, 8, 32], strides = [1, 1, 1]} : vector<6x8x384xf32> to vector<6x8x32xf32>
    %56 = arith.truncf %55 : vector<6x8x32xf32> to vector<6x8x32xbf16>
    %57 = vector.extract_strided_slice %54 {offsets = [0, 0, 128], sizes = [6, 8, 32], strides = [1, 1, 1]} : vector<6x8x384xf32> to vector<6x8x32xf32>
    %58 = arith.truncf %57 : vector<6x8x32xf32> to vector<6x8x32xbf16>
    %cst_25 = arith.constant dense<0.000000e+00> : vector<6x8x8xf32>
    %59 = tpu.matmul %56, %58, %cst_25 {dimension_numbers = #tpu.dot_dimension_numbers<[2], [2], [1], [1], [0, 0, 0, 1, 1, 1], [0], [0]>} : vector<6x8x32xbf16>, vector<6x8x32xbf16>, vector<6x8x8xf32> -> vector<6x8x8xf32>
    %60 = vector.extract_strided_slice %54 {offsets = [0, 0, 32], sizes = [6, 8, 32], strides = [1, 1, 1]} : vector<6x8x384xf32> to vector<6x8x32xf32>
    %61 = arith.truncf %60 : vector<6x8x32xf32> to vector<6x8x32xbf16>
    %62 = vector.extract_strided_slice %54 {offsets = [0, 0, 160], sizes = [6, 8, 32], strides = [1, 1, 1]} : vector<6x8x384xf32> to vector<6x8x32xf32>
    %63 = arith.truncf %62 : vector<6x8x32xf32> to vector<6x8x32xbf16>
    %cst_26 = arith.constant dense<0.000000e+00> : vector<6x8x8xf32>
    %64 = tpu.matmul %61, %63, %cst_26 {dimension_numbers = #tpu.dot_dimension_numbers<[2], [2], [1], [1], [0, 0, 0, 1, 1, 1], [0], [0]>} : vector<6x8x32xbf16>, vector<6x8x32xbf16>, vector<6x8x8xf32> -> vector<6x8x8xf32>
    %65 = vector.extract_strided_slice %54 {offsets = [0, 0, 64], sizes = [6, 8, 32], strides = [1, 1, 1]} : vector<6x8x384xf32> to vector<6x8x32xf32>
    %66 = arith.truncf %65 : vector<6x8x32xf32> to vector<6x8x32xbf16>
    %67 = vector.extract_strided_slice %54 {offsets = [0, 0, 192], sizes = [6, 8, 32], strides = [1, 1, 1]} : vector<6x8x384xf32> to vector<6x8x32xf32>
    %68 = arith.truncf %67 : vector<6x8x32xf32> to vector<6x8x32xbf16>
    %cst_27 = arith.constant dense<0.000000e+00> : vector<6x8x8xf32>
    %69 = tpu.matmul %66, %68, %cst_27 {dimension_numbers = #tpu.dot_dimension_numbers<[2], [2], [1], [1], [0, 0, 0, 1, 1, 1], [0], [0]>} : vector<6x8x32xbf16>, vector<6x8x32xbf16>, vector<6x8x8xf32> -> vector<6x8x8xf32>
    %70 = vector.extract_strided_slice %54 {offsets = [0, 0, 96], sizes = [6, 8, 32], strides = [1, 1, 1]} : vector<6x8x384xf32> to vector<6x8x32xf32>
    %71 = arith.truncf %70 : vector<6x8x32xf32> to vector<6x8x32xbf16>
    %72 = vector.extract_strided_slice %54 {offsets = [0, 0, 224], sizes = [6, 8, 32], strides = [1, 1, 1]} : vector<6x8x384xf32> to vector<6x8x32xf32>
    %73 = arith.truncf %72 : vector<6x8x32xf32> to vector<6x8x32xbf16>
    %cst_28 = arith.constant dense<0.000000e+00> : vector<6x8x8xf32>
    %74 = tpu.matmul %71, %73, %cst_28 {dimension_numbers = #tpu.dot_dimension_numbers<[2], [2], [1], [1], [0, 0, 0, 1, 1, 1], [0], [0]>} : vector<6x8x32xbf16>, vector<6x8x32xbf16>, vector<6x8x8xf32> -> vector<6x8x8xf32>
    %75 = tpu.concatenate %59, %64, %69, %74 in 1 : vector<6x8x8xf32>, vector<6x8x8xf32>, vector<6x8x8xf32>, vector<6x8x8xf32> -> vector<6x32x8xf32>
    %cst_29 = arith.constant 0.176776692 : f32
    %76 = vector.broadcast %cst_29 : f32 to vector<6x32x8xf32>
    %77 = arith.mulf %75, %76 : vector<6x32x8xf32>
    %78 = arith.addf %77, %17 : vector<6x32x8xf32>
    %cst_30 = arith.constant dense<0xFF800000> : vector<6x32xf32>
    %79 = vector.multi_reduction <maximumf>, %78, %cst_30 [2] : vector<6x32x8xf32> to vector<6x32xf32>
    %80 = vector.shape_cast %79 : vector<6x32xf32> to vector<6x32x1xf32>
    %81 = vector.broadcast %80 : vector<6x32x1xf32> to vector<6x32x8xf32>
    %82 = arith.subf %78, %81 : vector<6x32x8xf32>
    %83 = math.exp %82 : vector<6x32x8xf32>
    %cst_31 = arith.constant dense<0.000000e+00> : vector<6x32xf32>
    %84 = vector.multi_reduction <add>, %83, %cst_31 [2] : vector<6x32x8xf32> to vector<6x32xf32>
    %85 = vector.shape_cast %84 : vector<6x32xf32> to vector<6x32x1xf32>
    %86 = tpu.reciprocal %85 : vector<6x32x1xf32> -> vector<6x32x1xf32>
    %87 = vector.broadcast %86 : vector<6x32x1xf32> to vector<6x32x8xf32>
    %88 = arith.mulf %83, %87 : vector<6x32x8xf32>
    %89 = vector.extract_strided_slice %88 {offsets = [0, 0, 0], sizes = [6, 8, 8], strides = [1, 1, 1]} : vector<6x32x8xf32> to vector<6x8x8xf32>
    %90 = arith.truncf %89 : vector<6x8x8xf32> to vector<6x8x8xbf16>
    %91 = vector.extract_strided_slice %54 {offsets = [0, 0, 256], sizes = [6, 8, 32], strides = [1, 1, 1]} : vector<6x8x384xf32> to vector<6x8x32xf32>
    %92 = arith.truncf %91 : vector<6x8x32xf32> to vector<6x8x32xbf16>
    %cst_32 = arith.constant dense<0.000000e+00> : vector<6x8x32xf32>
    %93 = tpu.matmul %90, %92, %cst_32 {dimension_numbers = #tpu.dot_dimension_numbers<[2], [1], [1], [2], [0, 0, 0, 1, 1, 2], [0], [0]>} : vector<6x8x8xbf16>, vector<6x8x32xbf16>, vector<6x8x32xf32> -> vector<6x8x32xf32>
    %94 = vector.extract_strided_slice %88 {offsets = [0, 8, 0], sizes = [6, 8, 8], strides = [1, 1, 1]} : vector<6x32x8xf32> to vector<6x8x8xf32>
    %95 = arith.truncf %94 : vector<6x8x8xf32> to vector<6x8x8xbf16>
    %96 = vector.extract_strided_slice %54 {offsets = [0, 0, 288], sizes = [6, 8, 32], strides = [1, 1, 1]} : vector<6x8x384xf32> to vector<6x8x32xf32>
    %97 = arith.truncf %96 : vector<6x8x32xf32> to vector<6x8x32xbf16>
    %cst_33 = arith.constant dense<0.000000e+00> : vector<6x8x32xf32>
    %98 = tpu.matmul %95, %97, %cst_33 {dimension_numbers = #tpu.dot_dimension_numbers<[2], [1], [1], [2], [0, 0, 0, 1, 1, 2], [0], [0]>} : vector<6x8x8xbf16>, vector<6x8x32xbf16>, vector<6x8x32xf32> -> vector<6x8x32xf32>
    %99 = vector.extract_strided_slice %88 {offsets = [0, 16, 0], sizes = [6, 8, 8], strides = [1, 1, 1]} : vector<6x32x8xf32> to vector<6x8x8xf32>
    %100 = arith.truncf %99 : vector<6x8x8xf32> to vector<6x8x8xbf16>
    %101 = vector.extract_strided_slice %54 {offsets = [0, 0, 320], sizes = [6, 8, 32], strides = [1, 1, 1]} : vector<6x8x384xf32> to vector<6x8x32xf32>
    %102 = arith.truncf %101 : vector<6x8x32xf32> to vector<6x8x32xbf16>
    %cst_34 = arith.constant dense<0.000000e+00> : vector<6x8x32xf32>
    %103 = tpu.matmul %100, %102, %cst_34 {dimension_numbers = #tpu.dot_dimension_numbers<[2], [1], [1], [2], [0, 0, 0, 1, 1, 2], [0], [0]>} : vector<6x8x8xbf16>, vector<6x8x32xbf16>, vector<6x8x32xf32> -> vector<6x8x32xf32>
    %104 = vector.extract_strided_slice %88 {offsets = [0, 24, 0], sizes = [6, 8, 8], strides = [1, 1, 1]} : vector<6x32x8xf32> to vector<6x8x8xf32>
    %105 = arith.truncf %104 : vector<6x8x8xf32> to vector<6x8x8xbf16>
    %106 = vector.extract_strided_slice %54 {offsets = [0, 0, 352], sizes = [6, 8, 32], strides = [1, 1, 1]} : vector<6x8x384xf32> to vector<6x8x32xf32>
    %107 = arith.truncf %106 : vector<6x8x32xf32> to vector<6x8x32xbf16>
    %cst_35 = arith.constant dense<0.000000e+00> : vector<6x8x32xf32>
    %108 = tpu.matmul %105, %107, %cst_35 {dimension_numbers = #tpu.dot_dimension_numbers<[2], [1], [1], [2], [0, 0, 0, 1, 1, 2], [0], [0]>} : vector<6x8x8xbf16>, vector<6x8x32xbf16>, vector<6x8x32xf32> -> vector<6x8x32xf32>
    %109 = tpu.concatenate %93, %98, %103, %108 in 2 : vector<6x8x32xf32>, vector<6x8x32xf32>, vector<6x8x32xf32>, vector<6x8x32xf32> -> vector<6x8x128xf32>
    %110 = vector.shape_cast %109 : vector<6x8x128xf32> to vector<48x128xf32>
    %111 = arith.truncf %110 : vector<48x128xf32> to vector<48x128xbf16>
    %c0_36 = arith.constant 0 : index
    %c0_37 = arith.constant 0 : index
    %c0_38 = arith.constant 0 : index
    %112 = vector.load %arg7[%c0_36, %c0_37, %c0_38] : memref<1x128x128xbf16, #tpu.memory_space<vmem>>, vector<1x128x128xbf16>
    %113 = vector.shape_cast %112 : vector<1x128x128xbf16> to vector<128x128xbf16>
    %cst_39 = arith.constant dense<0.000000e+00> : vector<48x128xf32>
    %114 = tpu.matmul %111, %113, %cst_39 {dimension_numbers = #tpu.dot_dimension_numbers<[1], [0], [0], [1], [0, 0, 1, 1], [], []>} : vector<48x128xbf16>, vector<128x128xbf16>, vector<48x128xf32> -> vector<48x128xf32>
    %115 = arith.addf %3, %114 : vector<48x128xf32>
    %c0_40 = arith.constant 0 : index
    %c0_41 = arith.constant 0 : index
    %c0_42 = arith.constant 0 : index
    %116 = vector.load %arg8[%c0_40, %c0_41, %c0_42] : memref<1x1x128xf32, #tpu.memory_space<vmem>>, vector<1x1x128xf32>
    %117 = vector.shape_cast %116 : vector<1x1x128xf32> to vector<1x128xf32>
    %118 = vector.broadcast %117 : vector<1x128xf32> to vector<48x128xf32>
    %119 = arith.addf %115, %118 : vector<48x128xf32>
    %c0_43 = arith.constant 0 : index
    %c0_44 = arith.constant 0 : index
    %c0_45 = arith.constant 0 : index
    %120 = vector.load %arg9[%c0_43, %c0_44, %c0_45] : memref<1x1x128xf32, #tpu.memory_space<vmem>>, vector<1x1x128xf32>
    %121 = vector.shape_cast %120 : vector<1x1x128xf32> to vector<1x128xf32>
    %c0_46 = arith.constant 0 : index
    %c0_47 = arith.constant 0 : index
    %c0_48 = arith.constant 0 : index
    %122 = vector.load %arg10[%c0_46, %c0_47, %c0_48] : memref<1x1x128xf32, #tpu.memory_space<vmem>>, vector<1x1x128xf32>
    %123 = vector.shape_cast %122 : vector<1x1x128xf32> to vector<1x128xf32>
    %cst_49 = arith.constant dense<0.000000e+00> : vector<48xf32>
    %124 = vector.multi_reduction <add>, %119, %cst_49 [1] : vector<48x128xf32> to vector<48xf32>
    %125 = vector.shape_cast %124 : vector<48xf32> to vector<48x1xf32>
    %cst_50 = arith.constant 1.280000e+02 : f32
    %126 = vector.broadcast %cst_50 : f32 to vector<48x1xf32>
    %127 = arith.divf %125, %126 : vector<48x1xf32>
    %128 = vector.broadcast %127 : vector<48x1xf32> to vector<48x128xf32>
    %129 = arith.subf %119, %128 : vector<48x128xf32>
    %130 = vector.broadcast %127 : vector<48x1xf32> to vector<48x128xf32>
    %131 = arith.subf %119, %130 : vector<48x128xf32>
    %132 = arith.mulf %129, %131 : vector<48x128xf32>
    %cst_51 = arith.constant dense<0.000000e+00> : vector<48xf32>
    %133 = vector.multi_reduction <add>, %132, %cst_51 [1] : vector<48x128xf32> to vector<48xf32>
    %134 = vector.shape_cast %133 : vector<48xf32> to vector<48x1xf32>
    %cst_52 = arith.constant 1.280000e+02 : f32
    %135 = vector.broadcast %cst_52 : f32 to vector<48x1xf32>
    %136 = arith.divf %134, %135 : vector<48x1xf32>
    %137 = vector.broadcast %127 : vector<48x1xf32> to vector<48x128xf32>
    %138 = arith.subf %119, %137 : vector<48x128xf32>
    %cst_53 = arith.constant 9.99999974E-6 : f32
    %139 = vector.broadcast %cst_53 : f32 to vector<48x1xf32>
    %140 = arith.addf %136, %139 : vector<48x1xf32>
    %141 = math.rsqrt %140 : vector<48x1xf32>
    %142 = vector.broadcast %141 : vector<48x1xf32> to vector<48x128xf32>
    %143 = arith.mulf %138, %142 : vector<48x128xf32>
    %144 = vector.broadcast %121 : vector<1x128xf32> to vector<48x128xf32>
    %145 = arith.mulf %143, %144 : vector<48x128xf32>
    %146 = vector.broadcast %123 : vector<1x128xf32> to vector<48x128xf32>
    %147 = arith.addf %145, %146 : vector<48x128xf32>
    %148 = arith.truncf %147 : vector<48x128xf32> to vector<48x128xbf16>
    %c0_54 = arith.constant 0 : index
    %c0_55 = arith.constant 0 : index
    %c0_56 = arith.constant 0 : index
    %149 = vector.load %arg11[%c0_54, %c0_55, %c0_56] : memref<1x128x512xbf16, #tpu.memory_space<vmem>>, vector<1x128x512xbf16>
    %150 = vector.shape_cast %149 : vector<1x128x512xbf16> to vector<128x512xbf16>
    %cst_57 = arith.constant dense<0.000000e+00> : vector<48x512xf32>
    %151 = tpu.matmul %148, %150, %cst_57 {dimension_numbers = #tpu.dot_dimension_numbers<[1], [0], [0], [1], [0, 0, 1, 1], [], []>} : vector<48x128xbf16>, vector<128x512xbf16>, vector<48x512xf32> -> vector<48x512xf32>
    %c0_58 = arith.constant 0 : index
    %c0_59 = arith.constant 0 : index
    %c0_60 = arith.constant 0 : index
    %152 = vector.load %arg12[%c0_58, %c0_59, %c0_60] : memref<1x1x512xf32, #tpu.memory_space<vmem>>, vector<1x1x512xf32>
    %153 = vector.shape_cast %152 : vector<1x1x512xf32> to vector<1x512xf32>
    %154 = vector.broadcast %153 : vector<1x512xf32> to vector<48x512xf32>
    %155 = arith.addf %151, %154 : vector<48x512xf32>
    %cst_61 = arith.constant 5.000000e-01 : f32
    %156 = vector.broadcast %cst_61 : f32 to vector<48x512xf32>
    %157 = arith.mulf %156, %155 : vector<48x512xf32>
    %cst_62 = arith.constant 4.471500e-02 : f32
    %158 = vector.broadcast %cst_62 : f32 to vector<48x512xf32>
    %159 = arith.mulf %158, %155 : vector<48x512xf32>
    %160 = arith.mulf %159, %155 : vector<48x512xf32>
    %161 = arith.mulf %160, %155 : vector<48x512xf32>
    %162 = arith.addf %155, %161 : vector<48x512xf32>
    %cst_63 = arith.constant 0.797884583 : f32
    %163 = vector.broadcast %cst_63 : f32 to vector<48x512xf32>
    %164 = arith.mulf %163, %162 : vector<48x512xf32>
    %165 = math.tanh %164 : vector<48x512xf32>
    %cst_64 = arith.constant 1.000000e+00 : f32
    %166 = vector.broadcast %cst_64 : f32 to vector<48x512xf32>
    %167 = arith.addf %166, %165 : vector<48x512xf32>
    %168 = arith.mulf %157, %167 : vector<48x512xf32>
    %169 = arith.truncf %168 : vector<48x512xf32> to vector<48x512xbf16>
    %c0_65 = arith.constant 0 : index
    %c0_66 = arith.constant 0 : index
    %c0_67 = arith.constant 0 : index
    %170 = vector.load %arg13[%c0_65, %c0_66, %c0_67] : memref<1x512x128xbf16, #tpu.memory_space<vmem>>, vector<1x512x128xbf16>
    %171 = vector.shape_cast %170 : vector<1x512x128xbf16> to vector<512x128xbf16>
    %cst_68 = arith.constant dense<0.000000e+00> : vector<48x128xf32>
    %172 = tpu.matmul %169, %171, %cst_68 {dimension_numbers = #tpu.dot_dimension_numbers<[1], [0], [0], [1], [0, 0, 1, 1], [], []>} : vector<48x512xbf16>, vector<512x128xbf16>, vector<48x128xf32> -> vector<48x128xf32>
    %173 = arith.addf %119, %172 : vector<48x128xf32>
    %c0_69 = arith.constant 0 : index
    %c0_70 = arith.constant 0 : index
    %c0_71 = arith.constant 0 : index
    %174 = vector.load %arg14[%c0_69, %c0_70, %c0_71] : memref<1x1x128xf32, #tpu.memory_space<vmem>>, vector<1x1x128xf32>
    %175 = vector.shape_cast %174 : vector<1x1x128xf32> to vector<1x128xf32>
    %176 = vector.broadcast %175 : vector<1x128xf32> to vector<48x128xf32>
    %177 = arith.addf %173, %176 : vector<48x128xf32>
    %c0_72 = arith.constant 0 : index
    %c0_73 = arith.constant 0 : index
    %178 = vector.load %arg23[%c0_72, %c0_73] : memref<48x128xf32, #tpu.memory_space<vmem>>, vector<48x128xf32>
    tpu.vector_store %arg23[%c0_72, %c0_73], %177 {strides = array<i32>} : memref<48x128xf32, #tpu.memory_space<vmem>>, vector<48x128xf32>,
    %c1_i32 = arith.constant 1 : i32
    %179 = arith.cmpi eq, %arg0, %c1_i32 : i32
    %180 = arith.extui %179 : i1 to i32
    %c0_i32_74 = arith.constant 0 : i32
    %181 = arith.cmpi ne, %180, %c0_i32_74 : i32
    scf.if %181 {
      %182 = vector.shape_cast %177 : vector<48x128xf32> to vector<6x8x128xf32>
      %183 = vector.extract_strided_slice %182 {offsets = [0, 7, 0], sizes = [6, 1, 128], strides = [1, 1, 1]} : vector<6x8x128xf32> to vector<6x1x128xf32>
      %184 = vector.shape_cast %183 : vector<6x1x128xf32> to vector<6x128xf32>
      %c0_75 = arith.constant 0 : index
      %c0_76 = arith.constant 0 : index
      %185 = vector.load %arg15[%c0_75, %c0_76] : memref<1x128xf32, #tpu.memory_space<vmem>>, vector<1x128xf32>
      %c0_77 = arith.constant 0 : index
      %c0_78 = arith.constant 0 : index
      %186 = vector.load %arg16[%c0_77, %c0_78] : memref<1x128xf32, #tpu.memory_space<vmem>>, vector<1x128xf32>
      %cst_79 = arith.constant dense<0.000000e+00> : vector<6xf32>
      %187 = vector.multi_reduction <add>, %184, %cst_79 [1] : vector<6x128xf32> to vector<6xf32>
      %188 = vector.shape_cast %187 : vector<6xf32> to vector<6x1xf32>
      %cst_80 = arith.constant 1.280000e+02 : f32
      %189 = vector.broadcast %cst_80 : f32 to vector<6x1xf32>
      %190 = arith.divf %188, %189 : vector<6x1xf32>
      %191 = vector.broadcast %190 : vector<6x1xf32> to vector<6x128xf32>
      %192 = arith.subf %184, %191 : vector<6x128xf32>
      %193 = vector.broadcast %190 : vector<6x1xf32> to vector<6x128xf32>
      %194 = arith.subf %184, %193 : vector<6x128xf32>
      %195 = arith.mulf %192, %194 : vector<6x128xf32>
      %cst_81 = arith.constant dense<0.000000e+00> : vector<6xf32>
      %196 = vector.multi_reduction <add>, %195, %cst_81 [1] : vector<6x128xf32> to vector<6xf32>
      %197 = vector.shape_cast %196 : vector<6xf32> to vector<6x1xf32>
      %cst_82 = arith.constant 1.280000e+02 : f32
      %198 = vector.broadcast %cst_82 : f32 to vector<6x1xf32>
      %199 = arith.divf %197, %198 : vector<6x1xf32>
      %200 = vector.broadcast %190 : vector<6x1xf32> to vector<6x128xf32>
      %201 = arith.subf %184, %200 : vector<6x128xf32>
      %cst_83 = arith.constant 9.99999974E-6 : f32
      %202 = vector.broadcast %cst_83 : f32 to vector<6x1xf32>
      %203 = arith.addf %199, %202 : vector<6x1xf32>
      %204 = math.rsqrt %203 : vector<6x1xf32>
      %205 = vector.broadcast %204 : vector<6x1xf32> to vector<6x128xf32>
      %206 = arith.mulf %201, %205 : vector<6x128xf32>
      %207 = vector.broadcast %185 : vector<1x128xf32> to vector<6x128xf32>
      %208 = arith.mulf %206, %207 : vector<6x128xf32>
      %209 = vector.broadcast %186 : vector<1x128xf32> to vector<6x128xf32>
      %210 = arith.addf %208, %209 : vector<6x128xf32>
      %211 = arith.truncf %210 : vector<6x128xf32> to vector<6x128xbf16>
      %212 = vector.extract_strided_slice %211 {offsets = [0, 0], sizes = [2, 128], strides = [1, 1]} : vector<6x128xbf16> to vector<2x128xbf16>
      %213 = vector.extract_strided_slice %211 {offsets = [2, 0], sizes = [2, 128], strides = [1, 1]} : vector<6x128xbf16> to vector<2x128xbf16>
      %214 = vector.extract_strided_slice %211 {offsets = [4, 0], sizes = [2, 128], strides = [1, 1]} : vector<6x128xbf16> to vector<2x128xbf16>
      %c0_84 = arith.constant 0 : index
      %c0_85 = arith.constant 0 : index
      %215 = vector.load %arg17[%c0_84, %c0_85] : memref<256x16xbf16, #tpu.memory_space<vmem>>, vector<256x16xbf16>
      %c0_86 = arith.constant 0 : index
      %c0_87 = arith.constant 0 : index
      %216 = vector.load %arg19[%c0_86, %c0_87] : memref<256x16xbf16, #tpu.memory_space<vmem>>, vector<256x16xbf16>
      %217 = vector.extract_strided_slice %215 {offsets = [0, 0], sizes = [128, 16], strides = [1, 1]} : vector<256x16xbf16> to vector<128x16xbf16>
      %cst_88 = arith.constant dense<0.000000e+00> : vector<2x16xf32>
      %218 = tpu.matmul %213, %217, %cst_88 {dimension_numbers = #tpu.dot_dimension_numbers<[1], [0], [0], [1], [0, 0, 1, 1], [], []>} : vector<2x128xbf16>, vector<128x16xbf16>, vector<2x16xf32> -> vector<2x16xf32>
      %219 = vector.extract_strided_slice %215 {offsets = [128, 0], sizes = [128, 16], strides = [1, 1]} : vector<256x16xbf16> to vector<128x16xbf16>
      %cst_89 = arith.constant dense<0.000000e+00> : vector<2x16xf32>
      %220 = tpu.matmul %214, %219, %cst_89 {dimension_numbers = #tpu.dot_dimension_numbers<[1], [0], [0], [1], [0, 0, 1, 1], [], []>} : vector<2x128xbf16>, vector<128x16xbf16>, vector<2x16xf32> -> vector<2x16xf32>
      %221 = arith.addf %218, %220 : vector<2x16xf32>
      %c0_90 = arith.constant 0 : index
      %c0_91 = arith.constant 0 : index
      %222 = vector.load %arg18[%c0_90, %c0_91] : memref<1x16xf32, #tpu.memory_space<vmem>>, vector<1x16xf32>
      %223 = vector.broadcast %222 : vector<1x16xf32> to vector<2x16xf32>
      %224 = arith.addf %221, %223 : vector<2x16xf32>
      %225 = vector.extract_strided_slice %216 {offsets = [0, 0], sizes = [128, 16], strides = [1, 1]} : vector<256x16xbf16> to vector<128x16xbf16>
      %cst_92 = arith.constant dense<0.000000e+00> : vector<2x16xf32>
      %226 = tpu.matmul %212, %225, %cst_92 {dimension_numbers = #tpu.dot_dimension_numbers<[1], [0], [0], [1], [0, 0, 1, 1], [], []>} : vector<2x128xbf16>, vector<128x16xbf16>, vector<2x16xf32> -> vector<2x16xf32>
      %227 = vector.extract_strided_slice %216 {offsets = [128, 0], sizes = [128, 16], strides = [1, 1]} : vector<256x16xbf16> to vector<128x16xbf16>
      %cst_93 = arith.constant dense<0.000000e+00> : vector<2x16xf32>
      %228 = tpu.matmul %214, %227, %cst_93 {dimension_numbers = #tpu.dot_dimension_numbers<[1], [0], [0], [1], [0, 0, 1, 1], [], []>} : vector<2x128xbf16>, vector<128x16xbf16>, vector<2x16xf32> -> vector<2x16xf32>
      %229 = arith.addf %226, %228 : vector<2x16xf32>
      %c0_94 = arith.constant 0 : index
      %c0_95 = arith.constant 0 : index
      %230 = vector.load %arg20[%c0_94, %c0_95] : memref<1x16xf32, #tpu.memory_space<vmem>>, vector<1x16xf32>
      %231 = vector.broadcast %230 : vector<1x16xf32> to vector<2x16xf32>
      %232 = arith.addf %229, %231 : vector<2x16xf32>
      %cst_96 = arith.constant 0.000000e+00 : f32
      %233 = vector.broadcast %cst_96 : f32 to vector<2x16xf32>
      %234 = arith.maximumf %224, %233 : vector<2x16xf32>
      %c0_97 = arith.constant 0 : index
      %c0_98 = arith.constant 0 : index
      %235 = vector.load %arg21[%c0_97, %c0_98] : memref<2x16xf32, #tpu.memory_space<vmem>>, vector<2x16xf32>
      tpu.vector_store %arg21[%c0_97, %c0_98], %234 {strides = array<i32>} : memref<2x16xf32, #tpu.memory_space<vmem>>, vector<2x16xf32>,
      %cst_99 = arith.constant 0.000000e+00 : f32
      %236 = vector.broadcast %cst_99 : f32 to vector<2x16xf32>
      %237 = arith.maximumf %232, %236 : vector<2x16xf32>
      %c0_100 = arith.constant 0 : index
      %c0_101 = arith.constant 0 : index
      %238 = vector.load %arg22[%c0_100, %c0_101] : memref<2x16xf32, #tpu.memory_space<vmem>>, vector<2x16xf32>
      tpu.vector_store %arg22[%c0_100, %c0_101], %237 {strides = array<i32>} : memref<2x16xf32, #tpu.memory_space<vmem>>, vector<2x16xf32>,
    } else {
    }
    return
  }
  func.func @transform_0(%arg0: i32) -> (i32, i32, i32) {
    %c0_i32 = arith.constant 0 : i32
    %c0_i32_0 = arith.constant 0 : i32
    %c0_i32_1 = arith.constant 0 : i32
    %c0_i32_2 = arith.constant 0 : i32
    return %c0_i32, %c0_i32_0, %c0_i32_1 : i32, i32, i32
  }
  func.func @transform_1(%arg0: i32) -> (i32, i32, i32) {
    %c0_i32 = arith.constant 0 : i32
    %c0_i32_0 = arith.constant 0 : i32
    %c0_i32_1 = arith.constant 0 : i32
    %c0_i32_2 = arith.constant 0 : i32
    return %c0_i32, %c0_i32_0, %c0_i32_1 : i32, i32, i32
  }
  func.func @transform_2(%arg0: i32) -> (i32, i32, i32) {
    %c0_i32 = arith.constant 0 : i32
    %c0_i32_0 = arith.constant 0 : i32
    %c0_i32_1 = arith.constant 0 : i32
    return %arg0, %c0_i32, %c0_i32_0 : i32, i32, i32
  }
  func.func @transform_3(%arg0: i32) -> (i32, i32, i32) {
    %c0_i32 = arith.constant 0 : i32
    %c0_i32_0 = arith.constant 0 : i32
    %c0_i32_1 = arith.constant 0 : i32
    return %arg0, %c0_i32, %c0_i32_0 : i32, i32, i32
  }
  func.func @transform_4(%arg0: i32) -> (i32, i32, i32) {
    %c0_i32 = arith.constant 0 : i32
    %c0_i32_0 = arith.constant 0 : i32
    %c0_i32_1 = arith.constant 0 : i32
    return %arg0, %c0_i32, %c0_i32_0 : i32, i32, i32
  }
  func.func @transform_5(%arg0: i32) -> (i32, i32, i32) {
    %c0_i32 = arith.constant 0 : i32
    %c0_i32_0 = arith.constant 0 : i32
    %c0_i32_1 = arith.constant 0 : i32
    return %arg0, %c0_i32, %c0_i32_0 : i32, i32, i32
  }
  func.func @transform_6(%arg0: i32) -> (i32, i32, i32) {
    %c0_i32 = arith.constant 0 : i32
    %c0_i32_0 = arith.constant 0 : i32
    %c0_i32_1 = arith.constant 0 : i32
    return %arg0, %c0_i32, %c0_i32_0 : i32, i32, i32
  }
  func.func @transform_7(%arg0: i32) -> (i32, i32, i32) {
    %c0_i32 = arith.constant 0 : i32
    %c0_i32_0 = arith.constant 0 : i32
    %c0_i32_1 = arith.constant 0 : i32
    return %arg0, %c0_i32, %c0_i32_0 : i32, i32, i32
  }
  func.func @transform_8(%arg0: i32) -> (i32, i32, i32) {
    %c0_i32 = arith.constant 0 : i32
    %c0_i32_0 = arith.constant 0 : i32
    %c0_i32_1 = arith.constant 0 : i32
    return %arg0, %c0_i32, %c0_i32_0 : i32, i32, i32
  }
  func.func @transform_9(%arg0: i32) -> (i32, i32, i32) {
    %c0_i32 = arith.constant 0 : i32
    %c0_i32_0 = arith.constant 0 : i32
    %c0_i32_1 = arith.constant 0 : i32
    return %arg0, %c0_i32, %c0_i32_0 : i32, i32, i32
  }
  func.func @transform_10(%arg0: i32) -> (i32, i32, i32) {
    %c0_i32 = arith.constant 0 : i32
    %c0_i32_0 = arith.constant 0 : i32
    %c0_i32_1 = arith.constant 0 : i32
    return %arg0, %c0_i32, %c0_i32_0 : i32, i32, i32
  }
  func.func @transform_11(%arg0: i32) -> (i32, i32, i32) {
    %c0_i32 = arith.constant 0 : i32
    %c0_i32_0 = arith.constant 0 : i32
    %c0_i32_1 = arith.constant 0 : i32
    return %arg0, %c0_i32, %c0_i32_0 : i32, i32, i32
  }
  func.func @transform_12(%arg0: i32) -> (i32, i32, i32) {
    %c0_i32 = arith.constant 0 : i32
    %c0_i32_0 = arith.constant 0 : i32
    %c0_i32_1 = arith.constant 0 : i32
    return %arg0, %c0_i32, %c0_i32_0 : i32, i32, i32
  }
  func.func @transform_13(%arg0: i32) -> (i32, i32, i32) {
    %c0_i32 = arith.constant 0 : i32
    %c0_i32_0 = arith.constant 0 : i32
    %c0_i32_1 = arith.constant 0 : i32
    return %arg0, %c0_i32, %c0_i32_0 : i32, i32, i32
  }
  func.func @transform_14(%arg0: i32) -> (i32, i32) {
    %c0_i32 = arith.constant 0 : i32
    %c0_i32_0 = arith.constant 0 : i32
    %c0_i32_1 = arith.constant 0 : i32
    return %c0_i32, %c0_i32_0 : i32, i32
  }
  func.func @transform_15(%arg0: i32) -> (i32, i32) {
    %c0_i32 = arith.constant 0 : i32
    %c0_i32_0 = arith.constant 0 : i32
    %c0_i32_1 = arith.constant 0 : i32
    return %c0_i32, %c0_i32_0 : i32, i32
  }
  func.func @transform_16(%arg0: i32) -> (i32, i32) {
    %c0_i32 = arith.constant 0 : i32
    %c0_i32_0 = arith.constant 0 : i32
    %c0_i32_1 = arith.constant 0 : i32
    return %c0_i32, %c0_i32_0 : i32, i32
  }
  func.func @transform_17(%arg0: i32) -> (i32, i32) {
    %c0_i32 = arith.constant 0 : i32
    %c0_i32_0 = arith.constant 0 : i32
    %c0_i32_1 = arith.constant 0 : i32
    return %c0_i32, %c0_i32_0 : i32, i32
  }
  func.func @transform_18(%arg0: i32) -> (i32, i32) {
    %c0_i32 = arith.constant 0 : i32
    %c0_i32_0 = arith.constant 0 : i32
    %c0_i32_1 = arith.constant 0 : i32
    return %c0_i32, %c0_i32_0 : i32, i32
  }
  func.func @transform_19(%arg0: i32) -> (i32, i32) {
    %c0_i32 = arith.constant 0 : i32
    %c0_i32_0 = arith.constant 0 : i32
    %c0_i32_1 = arith.constant 0 : i32
    return %c0_i32, %c0_i32_0 : i32, i32
  }
  func.func @transform_20(%arg0: i32) -> (i32, i32) {
    %c0_i32 = arith.constant 0 : i32
    %c0_i32_0 = arith.constant 0 : i32
    %c0_i32_1 = arith.constant 0 : i32
    return %c0_i32, %c0_i32_0 : i32, i32
  }
  func.func @transform_21(%arg0: i32) -> (i32, i32) {
    %c0_i32 = arith.constant 0 : i32
    %c0_i32_0 = arith.constant 0 : i32
    %c0_i32_1 = arith.constant 0 : i32
    return %c0_i32, %c0_i32_0 : i32, i32
  }
}

</mosaic_0001>

<llo_original>
// kernel: gpt_classifier_forward.1
$region0: #{gpt_classifier_forward.1}
  #allocation0 [shape = 'u32[]', space=smem, size = 0x4, offset = 0x4, fixed_abs, tag = 'smem constant byte address 0x4 - core index']
  #allocation1 [shape = 'u32[144,128]{1,0:T(1,128)}', space=vmem, size = 0x12000, scoped, tag = 'internal scratch']
  #allocation2 [shape = 'f32[48,128]{1,0:T(8,128)}', space=vmem, size = 0x6000, scoped, tag = 'scratch operand']
  %s0 = inlined_call_operand.vmem [shape: f32[6,8,128], index: 0, kind: input, shape index: {}]
  %s1 = inlined_call_operand.vmem [shape: f32[6,1,8], index: 1, kind: input, shape index: {}]
  %s2 = inlined_call_operand.hbm [shape: f32[2,1,128], index: 2, kind: input, shape index: {}]
  %s3 = inlined_call_operand.hbm [shape: f32[2,1,128], index: 3, kind: input, shape index: {}]
  %s4 = inlined_call_operand.vmem [shape: bf16[2,128,384], index: 4, kind: input, shape index: {}]
  %s5 = inlined_call_operand.hbm [shape: f32[2,1,384], index: 5, kind: input, shape index: {}]
  %s6 = inlined_call_operand.hbm [shape: bf16[2,128,128], index: 6, kind: input, shape index: {}]
  %s7 = inlined_call_operand.hbm [shape: f32[2,1,128], index: 7, kind: input, shape index: {}]
  %s8 = inlined_call_operand.hbm [shape: f32[2,1,128], index: 8, kind: input, shape index: {}]
  %s9 = inlined_call_operand.hbm [shape: f32[2,1,128], index: 9, kind: input, shape index: {}]
  %s10 = inlined_call_operand.vmem [shape: bf16[2,128,512], index: 10, kind: input, shape index: {}]
  %s11 = inlined_call_operand.hbm [shape: f32[2,1,512], index: 11, kind: input, shape index: {}]
  %s12 = inlined_call_operand.hbm [shape: bf16[2,512,128], index: 12, kind: input, shape index: {}]
  %s13 = inlined_call_operand.hbm [shape: f32[2,1,128], index: 13, kind: input, shape index: {}]
  %s14 = inlined_call_operand.hbm [shape: f32[1,128], index: 14, kind: input, shape index: {}]
  %s15 = inlined_call_operand.hbm [shape: f32[1,128], index: 15, kind: input, shape index: {}]
  %s16 = inlined_call_operand.vmem [shape: bf16[256,16], index: 16, kind: input, shape index: {}]
  %s17 = inlined_call_operand.hbm [shape: f32[1,16], index: 17, kind: input, shape index: {}]
  %s18 = inlined_call_operand.vmem [shape: bf16[256,16], index: 18, kind: input, shape index: {}]
  %s19 = inlined_call_operand.hbm [shape: f32[1,16], index: 19, kind: input, shape index: {}]
  %s20 = inlined_call_operand.hbm [shape: f32[2,16], index: 20, kind: output, shape index: {0}]
  %s21 = inlined_call_operand.hbm [shape: f32[2,16], index: 21, kind: output, shape index: {1}]
  %22 = xla_tuple %s20, %s21
  %s23 = sld [smem:[#allocation0]]
  $region185: #{gpt_classifier_forward.1} parent=0
    _
  %s25 = ssub.s32 1, %s23
  %s26 = scalar_select 0, %s25, %s23
  $region1: #{gpt_classifier_forward.1} parent=0
    #allocation3 [shape = 'u8[1024]{0}', space=vmem, size = 0x400, scoped, tag = 'input window, operand 2']
    #allocation4 [shape = 's32[2]{0}', space=sflag, size = 0x8, scoped, tag = 'scoped memory for gpt_classifier_forward.1']
    #allocation5 [shape = 's32[2]{0}', space=sflag, size = 0x8, scoped, tag = 'scoped memory for gpt_classifier_forward.1']
    #allocation6 [shape = 'u8[1024]{0}', space=vmem, size = 0x400, scoped, tag = 'input window, operand 3']
    #allocation7 [shape = 's32[2]{0}', space=sflag, size = 0x8, scoped, tag = 'scoped memory for gpt_classifier_forward.1']
    #allocation8 [shape = 'u8[3072]{0}', space=vmem, size = 0xc00, scoped, tag = 'input window, operand 5']
    #allocation9 [shape = 'u8[65536]{0}', space=vmem, size = 0x10000, scoped, tag = 'input window, operand 6']
    #allocation10 [shape = 's32[2]{0}', space=sflag, size = 0x8, scoped, tag = 'scoped memory for gpt_classifier_forward.1']
    #allocation11 [shape = 'u8[1024]{0}', space=vmem, size = 0x400, scoped, tag = 'input window, operand 7']
    #allocation12 [shape = 'u8[1024]{0}', space=vmem, size = 0x400, scoped, tag = 'input window, operand 8']
    #allocation13 [shape = 's32[2]{0}', space=sflag, size = 0x8, scoped, tag = 'scoped memory for gpt_classifier_forward.1']
    #allocation14 [shape = 'u8[1024]{0}', space=vmem, size = 0x400, scoped, tag = 'input window, operand 9']
    #allocation15 [shape = 'u8[4096]{0}', space=vmem, size = 0x1000, scoped, tag = 'input window, operand 11']
    #allocation16 [shape = 's32[2]{0}', space=sflag, size = 0x8, scoped, tag = 'scoped memory for gpt_classifier_forward.1']
    #allocation17 [shape = 'u8[262144]{0}', space=vmem, size = 0x40000, scoped, tag = 'input window, operand 12']
    #allocation18 [shape = 'u8[1024]{0}', space=vmem, size = 0x400, scoped, tag = 'input window, operand 13']
    #allocation19 [shape = 's32[2]{0}', space=sflag, size = 0x8, scoped, tag = 'scoped memory for gpt_classifier_forward.1']
    #allocation20 [shape = 'u8[512]{0}', space=vmem, size = 0x400, scoped, tag = 'input window, operand 14, single buffered']
    #allocation21 [shape = 'u8[512]{0}', space=vmem, size = 0x400, scoped, tag = 'input window, operand 15, single buffered']
    #allocation22 [shape = 's32[1]{0}', space=sflag, size = 0x4, scoped, tag = 'scoped memory for gpt_classifier_forward.1']
    #allocation23 [shape = 'u8[512]{0}', space=vmem, size = 0x400, scoped, tag = 'input window, operand 17, single buffered']
    #allocation24 [shape = 'u8[512]{0}', space=vmem, size = 0x400, scoped, tag = 'input window, operand 19, single buffered']
    #allocation25 [shape = 's32[1]{0}', space=sflag, size = 0x4, scoped, tag = 'scoped memory for gpt_classifier_forward.1']
    #allocation26 [shape = 'u8[1024]{0}', space=vmem, size = 0x400, scoped, tag = 'output window, operand 0, single buffered']
    #allocation27 [shape = 'u8[1024]{0}', space=vmem, size = 0x400, scoped, tag = 'output window, operand 1, single buffered']
    #allocation28 [shape = 's32[1]{0}', space=sflag, size = 0x4, scoped, tag = 'scoped memory for gpt_classifier_forward.1']
    %27 = vsyncpa [#allocation4], 0
    %s28 = scalar_lea.sflag [#allocation4], 1
    %29 = vsyncpa %s28, 0
    %30 = vsyncpa [#allocation7], 0
    %s31 = scalar_lea.sflag [#allocation7], 1
    %32 = vsyncpa %s31, 0
    %33 = vsyncpa [#allocation10], 0
    %s34 = scalar_lea.sflag [#allocation10], 1
    %35 = vsyncpa %s34, 0
    %36 = vsyncpa [#allocation13], 0
    %s37 = scalar_lea.sflag [#allocation13], 1
    %38 = vsyncpa %s37, 0
    %39 = vsyncpa [#allocation16], 0
    %s40 = scalar_lea.sflag [#allocation16], 1
    %41 = vsyncpa %s40, 0
    %42 = vsyncpa [#allocation19], 0
    %s43 = scalar_lea.sflag [#allocation19], 1
    %44 = vsyncpa %s43, 0
    %45 = vsyncpa [#allocation22], 0
    %46 = vsyncpa [#allocation25], 0
    %47 = vsyncpa [#allocation5], 0
    %48 = vsyncpa [#allocation28], 0
    loop: start=0, step=1, limit=4
    $region2: #{gpt_classifier_forward.1} parent=1 // loop_pre_header
      _
    $region3: #{gpt_classifier_forward.1} parent=1 // loop_header
      %s50 = sphi 0, %s54
      %p51 = scmp.ge.s32.totalorder %s50, 4
      %s58 = sphi 0, %s58
      %s60 = sphi 0, %s58
      %s61 = sphi 0, %s60
      %s75 = sphi 0, %s61
      %s79 = sphi 0, %s79
      %s81 = sphi 0, %s79
      %s82 = sphi 0, %s81
      %s96 = sphi 0, %s82
      %s102 = sphi 0, %s104
      %s105 = sphi 0, %s102
      %s106 = sphi 0, %s105
      %s122 = sphi 0, %s106
      %s128 = sphi 0, %s130
      %s131 = sphi 0, %s128
      %s132 = sphi 0, %s131
      %s148 = sphi 0, %s132
      %s154 = sphi 0, %s156
      %s157 = sphi 0, %s154
      %s158 = sphi 0, %s157
      %s174 = sphi 0, %s158
      %s180 = sphi 0, %s182
      %s183 = sphi 0, %s180
      %s184 = sphi 0, %s183
      %s200 = sphi 0, %s184
      %s206 = sphi 0, %s208
      %s209 = sphi 0, %s206
      %s210 = sphi 0, %s209
      %s226 = sphi 0, %s210
      %s232 = sphi 0, %s234
      %s235 = sphi 0, %s232
      %s236 = sphi 0, %s235
      %s252 = sphi 0, %s236
      %s258 = sphi 0, %s260
      %s261 = sphi 0, %s258
      %s262 = sphi 0, %s261
      %s278 = sphi 0, %s262
      %s284 = sphi 0, %s286
      %s287 = sphi 0, %s284
      %s288 = sphi 0, %s287
      %s304 = sphi 0, %s288
      %s310 = sphi 0, %s312
      %s313 = sphi 0, %s310
      %s314 = sphi 0, %s313
      %s330 = sphi 0, %s314
      %s336 = sphi 0, %s338
      %s339 = sphi 0, %s336
      %s340 = sphi 0, %s339
      %s356 = sphi 0, %s340
      %s362 = sphi 0, %s364
      %s365 = sphi 0, %s362
      %s366 = sphi 0, %s365
      %s382 = sphi 0, %s366
      %s388 = sphi 0, %s390
      %s391 = sphi 0, %s388
      %s392 = sphi 0, %s391
      %s408 = sphi 0, %s392
      %s412 = sphi 0, %s412
      %s414 = sphi 0, %s412
      %s415 = sphi 0, %s414
      %s429 = sphi 0, %s415
      %s433 = sphi 0, %s433
      %s435 = sphi 0, %s433
      %s436 = sphi 0, %s435
      %s450 = sphi 0, %s436
      %s454 = sphi 0, %s454
      %s456 = sphi 0, %s454
      %s457 = sphi 0, %s456
      %s471 = sphi 0, %s457
      %s475 = sphi 0, %s475
      %s477 = sphi 0, %s475
      %s478 = sphi 0, %s477
      %s492 = sphi 0, %s478
      %s496 = sphi 0, %s496
      %s498 = sphi 0, %s496
      %s499 = sphi 0, %s498
      %s513 = sphi 0, %s499
      %s517 = sphi 0, %s517
      %s519 = sphi 0, %s517
      %s520 = sphi 0, %s519
      %s534 = sphi 0, %s520
      %s538 = sphi 0, %s538
      %s540 = sphi 0, %s538
      %s541 = sphi 0, %s540
      %s555 = sphi 0, %s541
      %s559 = sphi 0, %s559
      %s561 = sphi 0, %s559
      %s562 = sphi 0, %s561
      %s576 = sphi 0, %s562
    $region4: #{gpt_classifier_forward.1} parent=1 // loop_header_branch
      %53 = sbr.rel (%p51) target = $region8
    $region5: #{gpt_classifier_forward.1} parent=1 // loop_body
      %s55 = ssub.s32 %s50, 1
      %s56 = ssub.s32 %s50, 2
      %s57 = sadd.s32 %s50, 1
      %s59 = sadd.s32 %s58, 1
      %p62 = scmp.eq.s32.totalorder %s50, 1
      %p63 = scmp.ne.s32.totalorder %s58, %s60
      %p64 = scmp.eq.s32.totalorder %s50, 0
      %p65 = por %p63, %p64
      %p66 = scmp.ne.s32.totalorder %s58, %s60
      %p67 = scmp.eq.s32.totalorder %s55, 1
      %p68 = por %p66, %p67
      %p69 = scmp.ne.s32.totalorder %s60, %s61
      %p70 = scmp.eq.s32.totalorder %s55, 0
      %p71 = por %p69, %p70
      %p72 = scmp.ne.s32.totalorder %s60, %s61
      %p73 = scmp.eq.s32.totalorder %s56, 1
      %p74 = por %p72, %p73
      %p76 = scmp.ne.s32.totalorder %s61, %s75
      %p77 = scmp.eq.s32.totalorder %s56, 0
      %p78 = por %p76, %p77
      %s80 = sadd.s32 %s79, 1
      %p83 = scmp.eq.s32.totalorder %s50, 1
      %p84 = scmp.ne.s32.totalorder %s79, %s81
      %p85 = scmp.eq.s32.totalorder %s50, 0
      %p86 = por %p84, %p85
      %p87 = scmp.ne.s32.totalorder %s79, %s81
      %p88 = scmp.eq.s32.totalorder %s55, 1
      %p89 = por %p87, %p88
      %p90 = scmp.ne.s32.totalorder %s81, %s82
      %p91 = scmp.eq.s32.totalorder %s55, 0
      %p92 = por %p90, %p91
      %p93 = scmp.ne.s32.totalorder %s81, %s82
      %p94 = scmp.eq.s32.totalorder %s56, 1
      %p95 = por %p93, %p94
      %p97 = scmp.ne.s32.totalorder %s82, %s96
      %p98 = scmp.eq.s32.totalorder %s56, 0
      %p99 = por %p97, %p98
      %s100 = ssub.s32 %s50, %s57
      %p101 = scmp.eq.s32.totalorder %s100, 0
      %s103 = sadd.s32 %s102, 1
      %s104 = scalar_select %p101, %s102, %s103
      %p107 = pneg %p101
      %p108 = scmp.eq.s32.totalorder %s50, 1
      %p109 = por %p107, %p108
      %p110 = scmp.ne.s32.totalorder %s102, %s105
      %p111 = scmp.eq.s32.totalorder %s50, 0
      %p112 = por %p110, %p111
      %p113 = scmp.ne.s32.totalorder %s102, %s105
      %p114 = scmp.eq.s32.totalorder %s55, 1
      %p115 = por %p113, %p114
      %p116 = scmp.ne.s32.totalorder %s105, %s106
      %p117 = scmp.eq.s32.totalorder %s55, 0
      %p118 = por %p116, %p117
      %p119 = scmp.ne.s32.totalorder %s105, %s106
      %p120 = scmp.eq.s32.totalorder %s56, 1
      %p121 = por %p119, %p120
      %p123 = scmp.ne.s32.totalorder %s106, %s122
      %p124 = scmp.eq.s32.totalorder %s56, 0
      %p125 = por %p123, %p124
      %s126 = ssub.s32 %s50, %s57
      %p127 = scmp.eq.s32.totalorder %s126, 0
      %s129 = sadd.s32 %s128, 1
      %s130 = scalar_select %p127, %s128, %s129
      %p133 = pneg %p127
      %p134 = scmp.eq.s32.totalorder %s50, 1
      %p135 = por %p133, %p134
      %p136 = scmp.ne.s32.totalorder %s128, %s131
      %p137 = scmp.eq.s32.totalorder %s50, 0
      %p138 = por %p136, %p137
      %p139 = scmp.ne.s32.totalorder %s128, %s131
      %p140 = scmp.eq.s32.totalorder %s55, 1
      %p141 = por %p139, %p140
      %p142 = scmp.ne.s32.totalorder %s131, %s132
      %p143 = scmp.eq.s32.totalorder %s55, 0
      %p144 = por %p142, %p143
      %p145 = scmp.ne.s32.totalorder %s131, %s132
      %p146 = scmp.eq.s32.totalorder %s56, 1
      %p147 = por %p145, %p146
      %p149 = scmp.ne.s32.totalorder %s132, %s148
      %p150 = scmp.eq.s32.totalorder %s56, 0
      %p151 = por %p149, %p150
      %s152 = ssub.s32 %s50, %s57
      %p153 = scmp.eq.s32.totalorder %s152, 0
      %s155 = sadd.s32 %s154, 1
      %s156 = scalar_select %p153, %s154, %s155
      %p159 = pneg %p153
      %p160 = scmp.eq.s32.totalorder %s50, 1
      %p161 = por %p159, %p160
      %p162 = scmp.ne.s32.totalorder %s154, %s157
      %p163 = scmp.eq.s32.totalorder %s50, 0
      %p164 = por %p162, %p163
      %p165 = scmp.ne.s32.totalorder %s154, %s157
      %p166 = scmp.eq.s32.totalorder %s55, 1
      %p167 = por %p165, %p166
      %p168 = scmp.ne.s32.totalorder %s157, %s158
      %p169 = scmp.eq.s32.totalorder %s55, 0
      %p170 = por %p168, %p169
      %p171 = scmp.ne.s32.totalorder %s157, %s158
      %p172 = scmp.eq.s32.totalorder %s56, 1
      %p173 = por %p171, %p172
      %p175 = scmp.ne.s32.totalorder %s158, %s174
      %p176 = scmp.eq.s32.totalorder %s56, 0
      %p177 = por %p175, %p176
      %s178 = ssub.s32 %s50, %s57
      %p179 = scmp.eq.s32.totalorder %s178, 0
      %s181 = sadd.s32 %s180, 1
      %s182 = scalar_select %p179, %s180, %s181
      %p185 = pneg %p179
      %p186 = scmp.eq.s32.totalorder %s50, 1
      %p187 = por %p185, %p186
      %p188 = scmp.ne.s32.totalorder %s180, %s183
      %p189 = scmp.eq.s32.totalorder %s50, 0
      %p190 = por %p188, %p189
      %p191 = scmp.ne.s32.totalorder %s180, %s183
      %p192 = scmp.eq.s32.totalorder %s55, 1
      %p193 = por %p191, %p192
      %p194 = scmp.ne.s32.totalorder %s183, %s184
      %p195 = scmp.eq.s32.totalorder %s55, 0
      %p196 = por %p194, %p195
      %p197 = scmp.ne.s32.totalorder %s183, %s184
      %p198 = scmp.eq.s32.totalorder %s56, 1
      %p199 = por %p197, %p198
      %p201 = scmp.ne.s32.totalorder %s184, %s200
      %p202 = scmp.eq.s32.totalorder %s56, 0
      %p203 = por %p201, %p202
      %s204 = ssub.s32 %s50, %s57
      %p205 = scmp.eq.s32.totalorder %s204, 0
      %s207 = sadd.s32 %s206, 1
      %s208 = scalar_select %p205, %s206, %s207
      %p211 = pneg %p205
      %p212 = scmp.eq.s32.totalorder %s50, 1
      %p213 = por %p211, %p212
      %p214 = scmp.ne.s32.totalorder %s206, %s209
      %p215 = scmp.eq.s32.totalorder %s50, 0
      %p216 = por %p214, %p215
      %p217 = scmp.ne.s32.totalorder %s206, %s209
      %p218 = scmp.eq.s32.totalorder %s55, 1
      %p219 = por %p217, %p218
      %p220 = scmp.ne.s32.totalorder %s209, %s210
      %p221 = scmp.eq.s32.totalorder %s55, 0
      %p222 = por %p220, %p221
      %p223 = scmp.ne.s32.totalorder %s209, %s210
      %p224 = scmp.eq.s32.totalorder %s56, 1
      %p225 = por %p223, %p224
      %p227 = scmp.ne.s32.totalorder %s210, %s226
      %p228 = scmp.eq.s32.totalorder %s56, 0
      %p229 = por %p227, %p228
      %s230 = ssub.s32 %s50, %s57
      %p231 = scmp.eq.s32.totalorder %s230, 0
      %s233 = sadd.s32 %s232, 1
      %s234 = scalar_select %p231, %s232, %s233
      %p237 = pneg %p231
      %p238 = scmp.eq.s32.totalorder %s50, 1
      %p239 = por %p237, %p238
      %p240 = scmp.ne.s32.totalorder %s232, %s235
      %p241 = scmp.eq.s32.totalorder %s50, 0
      %p242 = por %p240, %p241
      %p243 = scmp.ne.s32.totalorder %s232, %s235
      %p244 = scmp.eq.s32.totalorder %s55, 1
      %p245 = por %p243, %p244
      %p246 = scmp.ne.s32.totalorder %s235, %s236
      %p247 = scmp.eq.s32.totalorder %s55, 0
      %p248 = por %p246, %p247
      %p249 = scmp.ne.s32.totalorder %s235, %s236
      %p250 = scmp.eq.s32.totalorder %s56, 1
      %p251 = por %p249, %p250
      %p253 = scmp.ne.s32.totalorder %s236, %s252
      %p254 = scmp.eq.s32.totalorder %s56, 0
      %p255 = por %p253, %p254
      %s256 = ssub.s32 %s50, %s57
      %p257 = scmp.eq.s32.totalorder %s256, 0
      %s259 = sadd.s32 %s258, 1
      %s260 = scalar_select %p257, %s258, %s259
      %p263 = pneg %p257
      %p264 = scmp.eq.s32.totalorder %s50, 1
      %p265 = por %p263, %p264
      %p266 = scmp.ne.s32.totalorder %s258, %s261
      %p267 = scmp.eq.s32.totalorder %s50, 0
      %p268 = por %p266, %p267
      %p269 = scmp.ne.s32.totalorder %s258, %s261
      %p270 = scmp.eq.s32.totalorder %s55, 1
      %p271 = por %p269, %p270
      %p272 = scmp.ne.s32.totalorder %s261, %s262
      %p273 = scmp.eq.s32.totalorder %s55, 0
      %p274 = por %p272, %p273
      %p275 = scmp.ne.s32.totalorder %s261, %s262
      %p276 = scmp.eq.s32.totalorder %s56, 1
      %p277 = por %p275, %p276
      %p279 = scmp.ne.s32.totalorder %s262, %s278
      %p280 = scmp.eq.s32.totalorder %s56, 0
      %p281 = por %p279, %p280
      %s282 = ssub.s32 %s50, %s57
      %p283 = scmp.eq.s32.totalorder %s282, 0
      %s285 = sadd.s32 %s284, 1
      %s286 = scalar_select %p283, %s284, %s285
      %p289 = pneg %p283
      %p290 = scmp.eq.s32.totalorder %s50, 1
      %p291 = por %p289, %p290
      %p292 = scmp.ne.s32.totalorder %s284, %s287
      %p293 = scmp.eq.s32.totalorder %s50, 0
      %p294 = por %p292, %p293
      %p295 = scmp.ne.s32.totalorder %s284, %s287
      %p296 = scmp.eq.s32.totalorder %s55, 1
      %p297 = por %p295, %p296
      %p298 = scmp.ne.s32.totalorder %s287, %s288
      %p299 = scmp.eq.s32.totalorder %s55, 0
      %p300 = por %p298, %p299
      %p301 = scmp.ne.s32.totalorder %s287, %s288
      %p302 = scmp.eq.s32.totalorder %s56, 1
      %p303 = por %p301, %p302
      %p305 = scmp.ne.s32.totalorder %s288, %s304
      %p306 = scmp.eq.s32.totalorder %s56, 0
      %p307 = por %p305, %p306
      %s308 = ssub.s32 %s50, %s57
      %p309 = scmp.eq.s32.totalorder %s308, 0
      %s311 = sadd.s32 %s310, 1
      %s312 = scalar_select %p309, %s310, %s311
      %p315 = pneg %p309
      %p316 = scmp.eq.s32.totalorder %s50, 1
      %p317 = por %p315, %p316
      %p318 = scmp.ne.s32.totalorder %s310, %s313
      %p319 = scmp.eq.s32.totalorder %s50, 0
      %p320 = por %p318, %p319
      %p321 = scmp.ne.s32.totalorder %s310, %s313
      %p322 = scmp.eq.s32.totalorder %s55, 1
      %p323 = por %p321, %p322
      %p324 = scmp.ne.s32.totalorder %s313, %s314
      %p325 = scmp.eq.s32.totalorder %s55, 0
      %p326 = por %p324, %p325
      %p327 = scmp.ne.s32.totalorder %s313, %s314
      %p328 = scmp.eq.s32.totalorder %s56, 1
      %p329 = por %p327, %p328
      %p331 = scmp.ne.s32.totalorder %s314, %s330
      %p332 = scmp.eq.s32.totalorder %s56, 0
      %p333 = por %p331, %p332
      %s334 = ssub.s32 %s50, %s57
      %p335 = scmp.eq.s32.totalorder %s334, 0
      %s337 = sadd.s32 %s336, 1
      %s338 = scalar_select %p335, %s336, %s337
      %p341 = pneg %p335
      %p342 = scmp.eq.s32.totalorder %s50, 1
      %p343 = por %p341, %p342
      %p344 = scmp.ne.s32.totalorder %s336, %s339
      %p345 = scmp.eq.s32.totalorder %s50, 0
      %p346 = por %p344, %p345
      %p347 = scmp.ne.s32.totalorder %s336, %s339
      %p348 = scmp.eq.s32.totalorder %s55, 1
      %p349 = por %p347, %p348
      %p350 = scmp.ne.s32.totalorder %s339, %s340
      %p351 = scmp.eq.s32.totalorder %s55, 0
      %p352 = por %p350, %p351
      %p353 = scmp.ne.s32.totalorder %s339, %s340
      %p354 = scmp.eq.s32.totalorder %s56, 1
      %p355 = por %p353, %p354
      %p357 = scmp.ne.s32.totalorder %s340, %s356
      %p358 = scmp.eq.s32.totalorder %s56, 0
      %p359 = por %p357, %p358
      %s360 = ssub.s32 %s50, %s57
      %p361 = scmp.eq.s32.totalorder %s360, 0
      %s363 = sadd.s32 %s362, 1
      %s364 = scalar_select %p361, %s362, %s363
      %p367 = pneg %p361
      %p368 = scmp.eq.s32.totalorder %s50, 1
      %p369 = por %p367, %p368
      %p370 = scmp.ne.s32.totalorder %s362, %s365
      %p371 = scmp.eq.s32.totalorder %s50, 0
      %p372 = por %p370, %p371
      %p373 = scmp.ne.s32.totalorder %s362, %s365
      %p374 = scmp.eq.s32.totalorder %s55, 1
      %p375 = por %p373, %p374
      %p376 = scmp.ne.s32.totalorder %s365, %s366
      %p377 = scmp.eq.s32.totalorder %s55, 0
      %p378 = por %p376, %p377
      %p379 = scmp.ne.s32.totalorder %s365, %s366
      %p380 = scmp.eq.s32.totalorder %s56, 1
      %p381 = por %p379, %p380
      %p383 = scmp.ne.s32.totalorder %s366, %s382
      %p384 = scmp.eq.s32.totalorder %s56, 0
      %p385 = por %p383, %p384
      %s386 = ssub.s32 %s50, %s57
      %p387 = scmp.eq.s32.totalorder %s386, 0
      %s389 = sadd.s32 %s388, 1
      %s390 = scalar_select %p387, %s388, %s389
      %p393 = pneg %p387
      %p394 = scmp.eq.s32.totalorder %s50, 1
      %p395 = por %p393, %p394
      %p396 = scmp.ne.s32.totalorder %s388, %s391
      %p397 = scmp.eq.s32.totalorder %s50, 0
      %p398 = por %p396, %p397
      %p399 = scmp.ne.s32.totalorder %s388, %s391
      %p400 = scmp.eq.s32.totalorder %s55, 1
      %p401 = por %p399, %p400
      %p402 = scmp.ne.s32.totalorder %s391, %s392
      %p403 = scmp.eq.s32.totalorder %s55, 0
      %p404 = por %p402, %p403
      %p405 = scmp.ne.s32.totalorder %s391, %s392
      %p406 = scmp.eq.s32.totalorder %s56, 1
      %p407 = por %p405, %p406
      %p409 = scmp.ne.s32.totalorder %s392, %s408
      %p410 = scmp.eq.s32.totalorder %s56, 0
      %p411 = por %p409, %p410
      %s413 = sadd.s32 %s412, 1
      %p416 = scmp.eq.s32.totalorder %s50, 1
      %p417 = scmp.ne.s32.totalorder %s412, %s414
      %p418 = scmp.eq.s32.totalorder %s50, 0
      %p419 = por %p417, %p418
      %p420 = scmp.ne.s32.totalorder %s412, %s414
      %p421 = scmp.eq.s32.totalorder %s55, 1
      %p422 = por %p420, %p421
      %p423 = scmp.ne.s32.totalorder %s414, %s415
      %p424 = scmp.eq.s32.totalorder %s55, 0
      %p425 = por %p423, %p424
      %p426 = scmp.ne.s32.totalorder %s414, %s415
      %p427 = scmp.eq.s32.totalorder %s56, 1
      %p428 = por %p426, %p427
      %p430 = scmp.ne.s32.totalorder %s415, %s429
      %p431 = scmp.eq.s32.totalorder %s56, 0
      %p432 = por %p430, %p431
      %s434 = sadd.s32 %s433, 1
      %p437 = scmp.eq.s32.totalorder %s50, 1
      %p438 = scmp.ne.s32.totalorder %s433, %s435
      %p439 = scmp.eq.s32.totalorder %s50, 0
      %p440 = por %p438, %p439
      %p441 = scmp.ne.s32.totalorder %s433, %s435
      %p442 = scmp.eq.s32.totalorder %s55, 1
      %p443 = por %p441, %p442
      %p444 = scmp.ne.s32.totalorder %s435, %s436
      %p445 = scmp.eq.s32.totalorder %s55, 0
      %p446 = por %p444, %p445
      %p447 = scmp.ne.s32.totalorder %s435, %s436
      %p448 = scmp.eq.s32.totalorder %s56, 1
      %p449 = por %p447, %p448
      %p451 = scmp.ne.s32.totalorder %s436, %s450
      %p452 = scmp.eq.s32.totalorder %s56, 0
      %p453 = por %p451, %p452
      %s455 = sadd.s32 %s454, 1
      %p458 = scmp.eq.s32.totalorder %s50, 1
      %p459 = scmp.ne.s32.totalorder %s454, %s456
      %p460 = scmp.eq.s32.totalorder %s50, 0
      %p461 = por %p459, %p460
      %p462 = scmp.ne.s32.totalorder %s454, %s456
      %p463 = scmp.eq.s32.totalorder %s55, 1
      %p464 = por %p462, %p463
      %p465 = scmp.ne.s32.totalorder %s456, %s457
      %p466 = scmp.eq.s32.totalorder %s55, 0
      %p467 = por %p465, %p466
      %p468 = scmp.ne.s32.totalorder %s456, %s457
      %p469 = scmp.eq.s32.totalorder %s56, 1
      %p470 = por %p468, %p469
      %p472 = scmp.ne.s32.totalorder %s457, %s471
      %p473 = scmp.eq.s32.totalorder %s56, 0
      %p474 = por %p472, %p473
      %s476 = sadd.s32 %s475, 1
      %p479 = scmp.eq.s32.totalorder %s50, 1
      %p480 = scmp.ne.s32.totalorder %s475, %s477
      %p481 = scmp.eq.s32.totalorder %s50, 0
      %p482 = por %p480, %p481
      %p483 = scmp.ne.s32.totalorder %s475, %s477
      %p484 = scmp.eq.s32.totalorder %s55, 1
      %p485 = por %p483, %p484
      %p486 = scmp.ne.s32.totalorder %s477, %s478
      %p487 = scmp.eq.s32.totalorder %s55, 0
      %p488 = por %p486, %p487
      %p489 = scmp.ne.s32.totalorder %s477, %s478
      %p490 = scmp.eq.s32.totalorder %s56, 1
      %p491 = por %p489, %p490
      %p493 = scmp.ne.s32.totalorder %s478, %s492
      %p494 = scmp.eq.s32.totalorder %s56, 0
      %p495 = por %p493, %p494
      %s497 = sadd.s32 %s496, 1
      %p500 = scmp.eq.s32.totalorder %s50, 1
      %p501 = scmp.ne.s32.totalorder %s496, %s498
      %p502 = scmp.eq.s32.totalorder %s50, 0
      %p503 = por %p501, %p502
      %p504 = scmp.ne.s32.totalorder %s496, %s498
      %p505 = scmp.eq.s32.totalorder %s55, 1
      %p506 = por %p504, %p505
      %p507 = scmp.ne.s32.totalorder %s498, %s499
      %p508 = scmp.eq.s32.totalorder %s55, 0
      %p509 = por %p507, %p508
      %p510 = scmp.ne.s32.totalorder %s498, %s499
      %p511 = scmp.eq.s32.totalorder %s56, 1
      %p512 = por %p510, %p511
      %p514 = scmp.ne.s32.totalorder %s499, %s513
      %p515 = scmp.eq.s32.totalorder %s56, 0
      %p516 = por %p514, %p515
      %s518 = sadd.s32 %s517, 1
      %p521 = scmp.eq.s32.totalorder %s50, 1
      %p522 = scmp.ne.s32.totalorder %s517, %s519
      %p523 = scmp.eq.s32.totalorder %s50, 0
      %p524 = por %p522, %p523
      %p525 = scmp.ne.s32.totalorder %s517, %s519
      %p526 = scmp.eq.s32.totalorder %s55, 1
      %p527 = por %p525, %p526
      %p528 = scmp.ne.s32.totalorder %s519, %s520
      %p529 = scmp.eq.s32.totalorder %s55, 0
      %p530 = por %p528, %p529
      %p531 = scmp.ne.s32.totalorder %s519, %s520
      %p532 = scmp.eq.s32.totalorder %s56, 1
      %p533 = por %p531, %p532
      %p535 = scmp.ne.s32.totalorder %s520, %s534
      %p536 = scmp.eq.s32.totalorder %s56, 0
      %p537 = por %p535, %p536
      %s539 = sadd.s32 %s538, 1
      %p542 = scmp.eq.s32.totalorder %s50, 1
      %p543 = scmp.ne.s32.totalorder %s538, %s540
      %p544 = scmp.eq.s32.totalorder %s50, 0
      %p545 = por %p543, %p544
      %p546 = scmp.ne.s32.totalorder %s538, %s540
      %p547 = scmp.eq.s32.totalorder %s55, 1
      %p548 = por %p546, %p547
      %p549 = scmp.ne.s32.totalorder %s540, %s541
      %p550 = scmp.eq.s32.totalorder %s55, 0
      %p551 = por %p549, %p550
      %p552 = scmp.ne.s32.totalorder %s540, %s541
      %p553 = scmp.eq.s32.totalorder %s56, 1
      %p554 = por %p552, %p553
      %p556 = scmp.ne.s32.totalorder %s541, %s555
      %p557 = scmp.eq.s32.totalorder %s56, 0
      %p558 = por %p556, %p557
      %s560 = sadd.s32 %s559, 1
      %p563 = scmp.eq.s32.totalorder %s50, 1
      %p564 = scmp.ne.s32.totalorder %s559, %s561
      %p565 = scmp.eq.s32.totalorder %s50, 0
      %p566 = por %p564, %p565
      %p567 = scmp.ne.s32.totalorder %s559, %s561
      %p568 = scmp.eq.s32.totalorder %s55, 1
      %p569 = por %p567, %p568
      %p570 = scmp.ne.s32.totalorder %s561, %s562
      %p571 = scmp.eq.s32.totalorder %s55, 0
      %p572 = por %p570, %p571
      %p573 = scmp.ne.s32.totalorder %s561, %s562
      %p574 = scmp.eq.s32.totalorder %s56, 1
      %p575 = por %p573, %p574
      %p577 = scmp.ne.s32.totalorder %s562, %s576
      %p578 = scmp.eq.s32.totalorder %s56, 0
      %p579 = por %p577, %p578
      %p580 = scmp.le.s32.totalorder 1, %s50
      %p581 = scmp.lt.s32.totalorder %s50, 3
      %p582 = pnand %p580, %p581
      %p583 = pneg %p582
      // Predicated region
      $region9: #{gpt_classifier_forward.1} parent=5 // pred_check
        _
      $region10: #{gpt_classifier_forward.1} parent=5 // pred_check_branch
        %585 = sbr.rel (%p582) target = $region12
      $region11: #{gpt_classifier_forward.1} parent=5 // pred_region
        %s586 = ssub.s32 %s50, 1
        // Predicated region
        $region13: #{gpt_classifier_forward.1} parent=11 // pred_check
          %p587 = pneg %p71
        $region14: #{gpt_classifier_forward.1} parent=11 // pred_check_branch
          %589 = sbr.rel (%p587) target = $region16
        $region15: #{gpt_classifier_forward.1} parent=11 // pred_region
          _
        $region16: #{gpt_classifier_forward.1} parent=11 // pred_fallthru
          _
        // Predicated region
        $region17: #{gpt_classifier_forward.1} parent=11 // pred_check
          %p590 = pneg %p92
        $region18: #{gpt_classifier_forward.1} parent=11 // pred_check_branch
          %592 = sbr.rel (%p590) target = $region20
        $region19: #{gpt_classifier_forward.1} parent=11 // pred_region
          _
        $region20: #{gpt_classifier_forward.1} parent=11 // pred_fallthru
          _
        // Predicated region
        $region21: #{gpt_classifier_forward.1} parent=11 // pred_check
          %p593 = pneg %p425
        $region22: #{gpt_classifier_forward.1} parent=11 // pred_check_branch
          %595 = sbr.rel (%p593) target = $region24
        $region23: #{gpt_classifier_forward.1} parent=11 // pred_region
          %s597 = ssub.s32 16, 16
          %598 = vsyncadd [#allocation19], %s597
          %s600 = sshll.u32 [#allocation20], 4
          %s601 = int_to_ptr.vmem [resolvable:$true] %s600
          %603 = dma.hbm_to_vmem [thread:$0]  %s14, 16, %s601, [#allocation19]
        $region24: #{gpt_classifier_forward.1} parent=11 // pred_fallthru
          _
        // Predicated region
        $region25: #{gpt_classifier_forward.1} parent=11 // pred_check
          %p604 = pneg %p446
        $region26: #{gpt_classifier_forward.1} parent=11 // pred_check_branch
          %606 = sbr.rel (%p604) target = $region28
        $region27: #{gpt_classifier_forward.1} parent=11 // pred_region
          %s608 = ssub.s32 16, 16
          %609 = vsyncadd [#allocation22], %s608
          %s611 = sshll.u32 [#allocation21], 4
          %s612 = int_to_ptr.vmem [resolvable:$true] %s611
          %614 = dma.hbm_to_vmem [thread:$0]  %s15, 16, %s612, [#allocation22]
        $region28: #{gpt_classifier_forward.1} parent=11 // pred_fallthru
          _
        // Predicated region
        $region29: #{gpt_classifier_forward.1} parent=11 // pred_check
          %p615 = pneg %p467
        $region30: #{gpt_classifier_forward.1} parent=11 // pred_check_branch
          %617 = sbr.rel (%p615) target = $region32
        $region31: #{gpt_classifier_forward.1} parent=11 // pred_region
          _
        $region32: #{gpt_classifier_forward.1} parent=11 // pred_fallthru
          _
        // Predicated region
        $region33: #{gpt_classifier_forward.1} parent=11 // pred_check
          %p618 = pneg %p488
        $region34: #{gpt_classifier_forward.1} parent=11 // pred_check_branch
          %620 = sbr.rel (%p618) target = $region36
        $region35: #{gpt_classifier_forward.1} parent=11 // pred_region
          %s622 = ssub.s32 16, 16
          %623 = vsyncadd [#allocation22], %s622
          %s625 = sshll.u32 [#allocation23], 4
          %s626 = int_to_ptr.vmem [resolvable:$true] %s625
          %628 = dma.hbm_to_vmem [thread:$0]  %s17, 16, %s626, [#allocation22]
        $region36: #{gpt_classifier_forward.1} parent=11 // pred_fallthru
          _
        // Predicated region
        $region37: #{gpt_classifier_forward.1} parent=11 // pred_check
          %p629 = pneg %p509
        $region38: #{gpt_classifier_forward.1} parent=11 // pred_check_branch
          %631 = sbr.rel (%p629) target = $region40
        $region39: #{gpt_classifier_forward.1} parent=11 // pred_region
          _
        $region40: #{gpt_classifier_forward.1} parent=11 // pred_fallthru
          _
        // Predicated region
        $region41: #{gpt_classifier_forward.1} parent=11 // pred_check
          %p632 = pneg %p530
        $region42: #{gpt_classifier_forward.1} parent=11 // pred_check_branch
          %634 = sbr.rel (%p632) target = $region44
        $region43: #{gpt_classifier_forward.1} parent=11 // pred_region
          %s636 = ssub.s32 16, 16
          %637 = vsyncadd [#allocation25], %s636
          %s639 = sshll.u32 [#allocation24], 4
          %s640 = int_to_ptr.vmem [resolvable:$true] %s639
          %642 = dma.hbm_to_vmem [thread:$0]  %s19, 16, %s640, [#allocation25]
        $region44: #{gpt_classifier_forward.1} parent=11 // pred_fallthru
          _
      $region12: #{gpt_classifier_forward.1} parent=5 // pred_fallthru
        _
      %p643 = scmp.lt.s32.totalorder %s50, 2
      // Predicated region
      $region45: #{gpt_classifier_forward.1} parent=5 // pred_check
        %p644 = pneg %p643
      $region46: #{gpt_classifier_forward.1} parent=5 // pred_check_branch
        %646 = sbr.rel (%p644) target = $region48
      $region47: #{gpt_classifier_forward.1} parent=5 // pred_region
        // Predicated region
        $region49: #{gpt_classifier_forward.1} parent=47 // pred_check
          %p647 = pneg %p112
        $region50: #{gpt_classifier_forward.1} parent=47 // pred_check_branch
          %649 = sbr.rel (%p647) target = $region52
        $region51: #{gpt_classifier_forward.1} parent=47 // pred_region
          %s650 = sand.u32 %s102, 1
          %s651 = scalar_lea.sflag [#allocation4], %s650
          %s652 = sand.u32 %s102, 1
          %s653 = scalar_lea.vmem [#allocation3], %s652
          %s655 = ssub.s32 16, 16
          %656 = vsyncadd %s651, %s655
          %s657 = smul.addr %s50, 16
          %s658 = scalar_lea.hbm %s2, %s657
          %s660 = sshll.u32 %s653, 4
          %s661 = int_to_ptr.vmem [resolvable:$true] %s660
          %663 = dma.hbm_to_vmem [thread:$0]  %s658, 16, %s661, %s651
        $region52: #{gpt_classifier_forward.1} parent=47 // pred_fallthru
          _
        // Predicated region
        $region53: #{gpt_classifier_forward.1} parent=47 // pred_check
          %p664 = pneg %p138
        $region54: #{gpt_classifier_forward.1} parent=47 // pred_check_branch
          %666 = sbr.rel (%p664) target = $region56
        $region55: #{gpt_classifier_forward.1} parent=47 // pred_region
          %s667 = sand.u32 %s50, 1
          %s668 = scalar_lea.sflag [#allocation7], %s667
          %s669 = sand.u32 %s128, 1
          %s670 = scalar_lea.vmem [#allocation6], %s669
          %s672 = ssub.s32 16, 16
          %673 = vsyncadd %s668, %s672
          %s674 = smul.addr %s50, 16
          %s675 = scalar_lea.hbm %s3, %s674
          %s677 = sshll.u32 %s670, 4
          %s678 = int_to_ptr.vmem [resolvable:$true] %s677
          %680 = dma.hbm_to_vmem [thread:$0]  %s675, 16, %s678, %s668
        $region56: #{gpt_classifier_forward.1} parent=47 // pred_fallthru
          _
        // Predicated region
        $region57: #{gpt_classifier_forward.1} parent=47 // pred_check
          %p681 = pneg %p164
        $region58: #{gpt_classifier_forward.1} parent=47 // pred_check_branch
          %683 = sbr.rel (%p681) target = $region60
        $region59: #{gpt_classifier_forward.1} parent=47 // pred_region
          %p684 = scmp.lt.s32.totalorder %s50, 1
          %s685 = scalar_select %p684, %s50, 1
          %s686 = smul.addr %s685, 48
          %s687 = smul.addr %s686, 4
          %s688 = scalar_lea.vmem %s4, %s687
        $region60: #{gpt_classifier_forward.1} parent=47 // pred_fallthru
          _
        // Predicated region
        $region61: #{gpt_classifier_forward.1} parent=47 // pred_check
          %p689 = pneg %p190
        $region62: #{gpt_classifier_forward.1} parent=47 // pred_check_branch
          %691 = sbr.rel (%p689) target = $region64
        $region63: #{gpt_classifier_forward.1} parent=47 // pred_region
          %s692 = sand.u32 %s50, 1
          %s693 = scalar_lea.sflag [#allocation7], %s692
          %s694 = sand.u32 %s180, 1
          %s695 = smul.addr %s694, 3
          %s696 = scalar_lea.vmem [#allocation8], %s695
          %s698 = ssub.s32 48, 48
          %699 = vsyncadd %s693, %s698
          %s700 = smul.addr %s50, 3
          %s701 = smul.addr %s700, 16
          %s702 = scalar_lea.hbm %s5, %s701
          %s704 = sshll.u32 %s696, 4
          %s705 = int_to_ptr.vmem [resolvable:$true] %s704
          %707 = dma.hbm_to_vmem [thread:$0]  %s702, 48, %s705, %s693
        $region64: #{gpt_classifier_forward.1} parent=47 // pred_fallthru
          _
        // Predicated region
        $region65: #{gpt_classifier_forward.1} parent=47 // pred_check
          %p708 = pneg %p216
        $region66: #{gpt_classifier_forward.1} parent=47 // pred_check_branch
          %710 = sbr.rel (%p708) target = $region68
        $region67: #{gpt_classifier_forward.1} parent=47 // pred_region
          %s711 = sand.u32 %s50, 1
          %s712 = scalar_lea.sflag [#allocation10], %s711
          %s713 = sand.u32 %s206, 1
          %s714 = smul.addr %s713, 64
          %s715 = scalar_lea.vmem [#allocation9], %s714
          %s717 = ssub.s32 1024, 1024
          %718 = vsyncadd %s712, %s717
          %s719 = smul.addr %s50, 16
          %s720 = smul.addr %s719, 64
          %s721 = scalar_lea.hbm %s6, %s720
          %s722 = sshll.u32 %s715, 4
          %s723 = int_to_ptr.vmem [resolvable:$true] %s722
          %728 = dma.hbm_to_vmem [thread:$0]  %s721, 1024, %s723, %s712, 64, 64, 4
        $region68: #{gpt_classifier_forward.1} parent=47 // pred_fallthru
          _
        // Predicated region
        $region69: #{gpt_classifier_forward.1} parent=47 // pred_check
          %p729 = pneg %p242
        $region70: #{gpt_classifier_forward.1} parent=47 // pred_check_branch
          %731 = sbr.rel (%p729) target = $region72
        $region71: #{gpt_classifier_forward.1} parent=47 // pred_region
          %s732 = sand.u32 %s50, 1
          %s733 = scalar_lea.sflag [#allocation10], %s732
          %s734 = sand.u32 %s232, 1
          %s735 = scalar_lea.vmem [#allocation11], %s734
          %s737 = ssub.s32 16, 16
          %738 = vsyncadd %s733, %s737
          %s739 = smul.addr %s50, 16
          %s740 = scalar_lea.hbm %s7, %s739
          %s742 = sshll.u32 %s735, 4
          %s743 = int_to_ptr.vmem [resolvable:$true] %s742
          %745 = dma.hbm_to_vmem [thread:$0]  %s740, 16, %s743, %s733
        $region72: #{gpt_classifier_forward.1} parent=47 // pred_fallthru
          _
        // Predicated region
        $region73: #{gpt_classifier_forward.1} parent=47 // pred_check
          %p746 = pneg %p268
        $region74: #{gpt_classifier_forward.1} parent=47 // pred_check_branch
          %748 = sbr.rel (%p746) target = $region76
        $region75: #{gpt_classifier_forward.1} parent=47 // pred_region
          %s749 = sand.u32 %s50, 1
          %s750 = scalar_lea.sflag [#allocation13], %s749
          %s751 = sand.u32 %s258, 1
          %s752 = scalar_lea.vmem [#allocation12], %s751
          %s754 = ssub.s32 16, 16
          %755 = vsyncadd %s750, %s754
          %s756 = smul.addr %s50, 16
          %s757 = scalar_lea.hbm %s8, %s756
          %s759 = sshll.u32 %s752, 4
          %s760 = int_to_ptr.vmem [resolvable:$true] %s759
          %762 = dma.hbm_to_vmem [thread:$0]  %s757, 16, %s760, %s750
        $region76: #{gpt_classifier_forward.1} parent=47 // pred_fallthru
          _
        // Predicated region
        $region77: #{gpt_classifier_forward.1} parent=47 // pred_check
          %p763 = pneg %p294
        $region78: #{gpt_classifier_forward.1} parent=47 // pred_check_branch
          %765 = sbr.rel (%p763) target = $region80
        $region79: #{gpt_classifier_forward.1} parent=47 // pred_region
          %s766 = sand.u32 %s50, 1
          %s767 = scalar_lea.sflag [#allocation13], %s766
          %s768 = sand.u32 %s284, 1
          %s769 = scalar_lea.vmem [#allocation14], %s768
          %s771 = ssub.s32 16, 16
          %772 = vsyncadd %s767, %s771
          %s773 = smul.addr %s50, 16
          %s774 = scalar_lea.hbm %s9, %s773
          %s776 = sshll.u32 %s769, 4
          %s777 = int_to_ptr.vmem [resolvable:$true] %s776
          %779 = dma.hbm_to_vmem [thread:$0]  %s774, 16, %s777, %s767
        $region80: #{gpt_classifier_forward.1} parent=47 // pred_fallthru
          _
        // Predicated region
        $region81: #{gpt_classifier_forward.1} parent=47 // pred_check
          %p780 = pneg %p320
        $region82: #{gpt_classifier_forward.1} parent=47 // pred_check_branch
          %782 = sbr.rel (%p780) target = $region84
        $region83: #{gpt_classifier_forward.1} parent=47 // pred_region
          %p783 = scmp.lt.s32.totalorder %s50, 1
          %s784 = scalar_select %p783, %s50, 1
          %s785 = smul.addr %s784, 64
          %s786 = smul.addr %s785, 4
          %s787 = scalar_lea.vmem %s10, %s786
        $region84: #{gpt_classifier_forward.1} parent=47 // pred_fallthru
          _
        // Predicated region
        $region85: #{gpt_classifier_forward.1} parent=47 // pred_check
          %p788 = pneg %p346
        $region86: #{gpt_classifier_forward.1} parent=47 // pred_check_branch
          %790 = sbr.rel (%p788) target = $region88
        $region87: #{gpt_classifier_forward.1} parent=47 // pred_region
          %s791 = sand.u32 %s50, 1
          %s792 = scalar_lea.sflag [#allocation16], %s791
          %s793 = sand.u32 %s336, 1
          %s794 = smul.addr %s793, 4
          %s795 = scalar_lea.vmem [#allocation15], %s794
          %s797 = ssub.s32 64, 64
          %798 = vsyncadd %s792, %s797
          %s799 = smul.addr %s50, 4
          %s800 = smul.addr %s799, 16
          %s801 = scalar_lea.hbm %s11, %s800
          %s803 = sshll.u32 %s795, 4
          %s804 = int_to_ptr.vmem [resolvable:$true] %s803
          %806 = dma.hbm_to_vmem [thread:$0]  %s801, 64, %s804, %s792
        $region88: #{gpt_classifier_forward.1} parent=47 // pred_fallthru
          _
        // Predicated region
        $region89: #{gpt_classifier_forward.1} parent=47 // pred_check
          %p807 = pneg %p372
        $region90: #{gpt_classifier_forward.1} parent=47 // pred_check_branch
          %809 = sbr.rel (%p807) target = $region92
        $region91: #{gpt_classifier_forward.1} parent=47 // pred_region
          %s810 = sand.u32 %s50, 1
          %s811 = scalar_lea.sflag [#allocation16], %s810
          %s812 = sand.u32 %s362, 1
          %s813 = smul.addr %s812, 256
          %s814 = scalar_lea.vmem [#allocation17], %s813
          %s816 = ssub.s32 4096, 4096
          %817 = vsyncadd %s811, %s816
          %s818 = smul.addr %s50, 64
          %s819 = smul.addr %s818, 64
          %s820 = scalar_lea.hbm %s12, %s819
          %s821 = sshll.u32 %s814, 4
          %s822 = int_to_ptr.vmem [resolvable:$true] %s821
          %827 = dma.hbm_to_vmem [thread:$0]  %s820, 4096, %s822, %s811, 64, 64, 4
        $region92: #{gpt_classifier_forward.1} parent=47 // pred_fallthru
          _
        // Predicated region
        $region93: #{gpt_classifier_forward.1} parent=47 // pred_check
          %p828 = pneg %p398
        $region94: #{gpt_classifier_forward.1} parent=47 // pred_check_branch
          %830 = sbr.rel (%p828) target = $region96
        $region95: #{gpt_classifier_forward.1} parent=47 // pred_region
          %s831 = sand.u32 %s50, 1
          %s832 = scalar_lea.sflag [#allocation19], %s831
          %s833 = sand.u32 %s388, 1
          %s834 = scalar_lea.vmem [#allocation18], %s833
          %s836 = ssub.s32 16, 16
          %837 = vsyncadd %s832, %s836
          %s838 = smul.addr %s50, 16
          %s839 = scalar_lea.hbm %s13, %s838
          %s841 = sshll.u32 %s834, 4
          %s842 = int_to_ptr.vmem [resolvable:$true] %s841
          %844 = dma.hbm_to_vmem [thread:$0]  %s839, 16, %s842, %s832
        $region96: #{gpt_classifier_forward.1} parent=47 // pred_fallthru
          _
      $region48: #{gpt_classifier_forward.1} parent=5 // pred_fallthru
        _
      %p845 = scmp.le.s32.totalorder 1, %s50
      %p846 = scmp.lt.s32.totalorder %s50, 3
      %p847 = pnand %p845, %p846
      %p848 = pneg %p847
      // Predicated region
      $region97: #{gpt_classifier_forward.1} parent=5 // pred_check
        _
      $region98: #{gpt_classifier_forward.1} parent=5 // pred_check_branch
        %850 = sbr.rel (%p847) target = $region100
      $region99: #{gpt_classifier_forward.1} parent=5 // pred_region
        %s851 = ssub.s32 %s50, 1
        %s852 = sand.u32 %s105, 1
        %s853 = scalar_lea.sflag [#allocation4], %s852
        %s854 = sand.u32 %s105, 1
        %s855 = scalar_lea.vmem [#allocation3], %s854
        // Predicated region
        $region101: #{gpt_classifier_forward.1} parent=99 // pred_check
          %p856 = pneg %p118
        $region102: #{gpt_classifier_forward.1} parent=99 // pred_check_branch
          %858 = sbr.rel (%p856) target = $region104
        $region103: #{gpt_classifier_forward.1} parent=99 // pred_region
          %859 = dma.done %s853, 16
        $region104: #{gpt_classifier_forward.1} parent=99 // pred_fallthru
          _
        %s860 = sand.u32 %s55, 1
        %s861 = scalar_lea.sflag [#allocation7], %s860
        %s862 = sand.u32 %s131, 1
        %s863 = scalar_lea.vmem [#allocation6], %s862
        // Predicated region
        $region105: #{gpt_classifier_forward.1} parent=99 // pred_check
          %p864 = pneg %p144
        $region106: #{gpt_classifier_forward.1} parent=99 // pred_check_branch
          %866 = sbr.rel (%p864) target = $region108
        $region107: #{gpt_classifier_forward.1} parent=99 // pred_region
          %867 = dma.done %s861, 16
        $region108: #{gpt_classifier_forward.1} parent=99 // pred_fallthru
          _
        %s868 = sand.u32 %s55, 1
        %s869 = scalar_lea.sflag [#allocation7], %s868
        %s870 = sand.u32 %s183, 1
        %s871 = smul.addr %s870, 3
        %s872 = scalar_lea.vmem [#allocation8], %s871
        // Predicated region
        $region109: #{gpt_classifier_forward.1} parent=99 // pred_check
          %p873 = pneg %p196
        $region110: #{gpt_classifier_forward.1} parent=99 // pred_check_branch
          %875 = sbr.rel (%p873) target = $region112
        $region111: #{gpt_classifier_forward.1} parent=99 // pred_region
          %876 = dma.done %s869, 48
        $region112: #{gpt_classifier_forward.1} parent=99 // pred_fallthru
          _
        %s877 = sand.u32 %s55, 1
        %s878 = scalar_lea.sflag [#allocation10], %s877
        %s879 = sand.u32 %s209, 1
        %s880 = smul.addr %s879, 64
        %s881 = scalar_lea.vmem [#allocation9], %s880
        // Predicated region
        $region113: #{gpt_classifier_forward.1} parent=99 // pred_check
          %p882 = pneg %p222
        $region114: #{gpt_classifier_forward.1} parent=99 // pred_check_branch
          %884 = sbr.rel (%p882) target = $region116
        $region115: #{gpt_classifier_forward.1} parent=99 // pred_region
          %885 = dma.done %s878, 1024
        $region116: #{gpt_classifier_forward.1} parent=99 // pred_fallthru
          _
        %s886 = sand.u32 %s55, 1
        %s887 = scalar_lea.sflag [#allocation10], %s886
        %s888 = sand.u32 %s235, 1
        %s889 = scalar_lea.vmem [#allocation11], %s888
        // Predicated region
        $region117: #{gpt_classifier_forward.1} parent=99 // pred_check
          %p890 = pneg %p248
        $region118: #{gpt_classifier_forward.1} parent=99 // pred_check_branch
          %892 = sbr.rel (%p890) target = $region120
        $region119: #{gpt_classifier_forward.1} parent=99 // pred_region
          %893 = dma.done %s887, 16
        $region120: #{gpt_classifier_forward.1} parent=99 // pred_fallthru
          _
        %s894 = sand.u32 %s55, 1
        %s895 = scalar_lea.sflag [#allocation13], %s894
        %s896 = sand.u32 %s261, 1
        %s897 = scalar_lea.vmem [#allocation12], %s896
        // Predicated region
        $region121: #{gpt_classifier_forward.1} parent=99 // pred_check
          %p898 = pneg %p274
        $region122: #{gpt_classifier_forward.1} parent=99 // pred_check_branch
          %900 = sbr.rel (%p898) target = $region124
        $region123: #{gpt_classifier_forward.1} parent=99 // pred_region
          %901 = dma.done %s895, 16
        $region124: #{gpt_classifier_forward.1} parent=99 // pred_fallthru
          _
        %s902 = sand.u32 %s55, 1
        %s903 = scalar_lea.sflag [#allocation13], %s902
        %s904 = sand.u32 %s287, 1
        %s905 = scalar_lea.vmem [#allocation14], %s904
        // Predicated region
        $region125: #{gpt_classifier_forward.1} parent=99 // pred_check
          %p906 = pneg %p300
        $region126: #{gpt_classifier_forward.1} parent=99 // pred_check_branch
          %908 = sbr.rel (%p906) target = $region128
        $region127: #{gpt_classifier_forward.1} parent=99 // pred_region
          %909 = dma.done %s903, 16
        $region128: #{gpt_classifier_forward.1} parent=99 // pred_fallthru
          _
        %s910 = sand.u32 %s55, 1
        %s911 = scalar_lea.sflag [#allocation16], %s910
        %s912 = sand.u32 %s339, 1
        %s913 = smul.addr %s912, 4
        %s914 = scalar_lea.vmem [#allocation15], %s913
        // Predicated region
        $region129: #{gpt_classifier_forward.1} parent=99 // pred_check
          %p915 = pneg %p352
        $region130: #{gpt_classifier_forward.1} parent=99 // pred_check_branch
          %917 = sbr.rel (%p915) target = $region132
        $region131: #{gpt_classifier_forward.1} parent=99 // pred_region
          %918 = dma.done %s911, 64
        $region132: #{gpt_classifier_forward.1} parent=99 // pred_fallthru
          _
        %s919 = sand.u32 %s55, 1
        %s920 = scalar_lea.sflag [#allocation16], %s919
        %s921 = sand.u32 %s365, 1
        %s922 = smul.addr %s921, 256
        %s923 = scalar_lea.vmem [#allocation17], %s922
        // Predicated region
        $region133: #{gpt_classifier_forward.1} parent=99 // pred_check
          %p924 = pneg %p378
        $region134: #{gpt_classifier_forward.1} parent=99 // pred_check_branch
          %926 = sbr.rel (%p924) target = $region136
        $region135: #{gpt_classifier_forward.1} parent=99 // pred_region
          %927 = dma.done %s920, 4096
        $region136: #{gpt_classifier_forward.1} parent=99 // pred_fallthru
          _
        %s928 = sand.u32 %s55, 1
        %s929 = scalar_lea.sflag [#allocation19], %s928
        %s930 = sand.u32 %s391, 1
        %s931 = scalar_lea.vmem [#allocation18], %s930
        // Predicated region
        $region137: #{gpt_classifier_forward.1} parent=99 // pred_check
          %p932 = pneg %p404
        $region138: #{gpt_classifier_forward.1} parent=99 // pred_check_branch
          %934 = sbr.rel (%p932) target = $region140
        $region139: #{gpt_classifier_forward.1} parent=99 // pred_region
          %935 = dma.done %s929, 16
        $region140: #{gpt_classifier_forward.1} parent=99 // pred_fallthru
          _
        // Predicated region
        $region141: #{gpt_classifier_forward.1} parent=99 // pred_check
          %p936 = pneg %p425
        $region142: #{gpt_classifier_forward.1} parent=99 // pred_check_branch
          %938 = sbr.rel (%p936) target = $region144
        $region143: #{gpt_classifier_forward.1} parent=99 // pred_region
          %939 = dma.done [#allocation19], 16
        $region144: #{gpt_classifier_forward.1} parent=99 // pred_fallthru
          _
        // Predicated region
        $region145: #{gpt_classifier_forward.1} parent=99 // pred_check
          %p940 = pneg %p446
        $region146: #{gpt_classifier_forward.1} parent=99 // pred_check_branch
          %942 = sbr.rel (%p940) target = $region148
        $region147: #{gpt_classifier_forward.1} parent=99 // pred_region
          %943 = dma.done [#allocation22], 16
        $region148: #{gpt_classifier_forward.1} parent=99 // pred_fallthru
          _
        // Predicated region
        $region149: #{gpt_classifier_forward.1} parent=99 // pred_check
          %p944 = pneg %p488
        $region150: #{gpt_classifier_forward.1} parent=99 // pred_check_branch
          %946 = sbr.rel (%p944) target = $region152
        $region151: #{gpt_classifier_forward.1} parent=99 // pred_region
          %947 = dma.done [#allocation22], 16
        $region152: #{gpt_classifier_forward.1} parent=99 // pred_fallthru
          _
        // Predicated region
        $region153: #{gpt_classifier_forward.1} parent=99 // pred_check
          %p948 = pneg %p530
        $region154: #{gpt_classifier_forward.1} parent=99 // pred_check_branch
          %950 = sbr.rel (%p948) target = $region156
        $region155: #{gpt_classifier_forward.1} parent=99 // pred_region
          %951 = dma.done [#allocation25], 16
        $region156: #{gpt_classifier_forward.1} parent=99 // pred_fallthru
          _
        %p952 = pneg %p71
        %p953 = pneg %p68
        %p954 = pneg %p92
        %p955 = pneg %p89
        %s956 = sand.u32 %s105, 1
        %s957 = scalar_lea.sflag [#allocation4], %s956
        %s958 = sand.u32 %s105, 1
        %s959 = scalar_lea.vmem [#allocation3], %s958
        %p960 = pneg %p118
        %p961 = pneg %p115
        %s962 = sand.u32 %s55, 1
        %s963 = scalar_lea.sflag [#allocation7], %s962
        %s964 = sand.u32 %s131, 1
        %s965 = scalar_lea.vmem [#allocation6], %s964
        %p966 = pneg %p144
        %p967 = pneg %p141
        %p968 = scmp.lt.s32.totalorder %s55, 1
        %s969 = scalar_select %p968, %s55, 1
        %s970 = smul.addr %s969, 48
        %s971 = smul.addr %s970, 4
        %s972 = scalar_lea.vmem %s4, %s971
        %p973 = pneg %p170
        %p974 = pneg %p167
        %s975 = sand.u32 %s55, 1
        %s976 = scalar_lea.sflag [#allocation7], %s975
        %s977 = sand.u32 %s183, 1
        %s978 = smul.addr %s977, 3
        %s979 = scalar_lea.vmem [#allocation8], %s978
        %p980 = pneg %p196
        %p981 = pneg %p193
        %s982 = sand.u32 %s55, 1
        %s983 = scalar_lea.sflag [#allocation10], %s982
        %s984 = sand.u32 %s209, 1
        %s985 = smul.addr %s984, 64
        %s986 = scalar_lea.vmem [#allocation9], %s985
        %p987 = pneg %p222
        %p988 = pneg %p219
        %s989 = sand.u32 %s55, 1
        %s990 = scalar_lea.sflag [#allocation10], %s989
        %s991 = sand.u32 %s235, 1
        %s992 = scalar_lea.vmem [#allocation11], %s991
        %p993 = pneg %p248
        %p994 = pneg %p245
        %s995 = sand.u32 %s55, 1
        %s996 = scalar_lea.sflag [#allocation13], %s995
        %s997 = sand.u32 %s261, 1
        %s998 = scalar_lea.vmem [#allocation12], %s997
        %p999 = pneg %p274
        %p1000 = pneg %p271
        %s1001 = sand.u32 %s55, 1
        %s1002 = scalar_lea.sflag [#allocation13], %s1001
        %s1003 = sand.u32 %s287, 1
        %s1004 = scalar_lea.vmem [#allocation14], %s1003
        %p1005 = pneg %p300
        %p1006 = pneg %p297
        %p1007 = scmp.lt.s32.totalorder %s55, 1
        %s1008 = scalar_select %p1007, %s55, 1
        %s1009 = smul.addr %s1008, 64
        %s1010 = smul.addr %s1009, 4
        %s1011 = scalar_lea.vmem %s10, %s1010
        %p1012 = pneg %p326
        %p1013 = pneg %p323
        %s1014 = sand.u32 %s55, 1
        %s1015 = scalar_lea.sflag [#allocation16], %s1014
        %s1016 = sand.u32 %s339, 1
        %s1017 = smul.addr %s1016, 4
        %s1018 = scalar_lea.vmem [#allocation15], %s1017
        %p1019 = pneg %p352
        %p1020 = pneg %p349
        %s1021 = sand.u32 %s55, 1
        %s1022 = scalar_lea.sflag [#allocation16], %s1021
        %s1023 = sand.u32 %s365, 1
        %s1024 = smul.addr %s1023, 256
        %s1025 = scalar_lea.vmem [#allocation17], %s1024
        %p1026 = pneg %p378
        %p1027 = pneg %p375
        %s1028 = sand.u32 %s55, 1
        %s1029 = scalar_lea.sflag [#allocation19], %s1028
        %s1030 = sand.u32 %s391, 1
        %s1031 = scalar_lea.vmem [#allocation18], %s1030
        %p1032 = pneg %p404
        %p1033 = pneg %p401
        %p1034 = pneg %p425
        %p1035 = pneg %p422
        %p1036 = pneg %p446
        %p1037 = pneg %p443
        %p1038 = pneg %p467
        %p1039 = pneg %p464
        %p1040 = pneg %p488
        %p1041 = pneg %p485
        %p1042 = pneg %p509
        %p1043 = pneg %p506
        %p1044 = pneg %p530
        %p1045 = pneg %p527
        %p1046 = pneg %p551
        %p1047 = pneg %p548
        %p1048 = pneg %p572
        %p1049 = pneg %p569
        %p1050 = scmp.lt.s32.totalorder %s55, 1
        %s1051 = scalar_select %p1050, %s55, 1
        %s1052 = smul.addr %s1051, 48
        %s1053 = smul.addr %s1052, 4
        %s1054 = scalar_lea.vmem %s4, %s1053
        %p1055 = scmp.lt.s32.totalorder %s55, 1
        %s1056 = scalar_select %p1055, %s55, 1
        %s1057 = smul.addr %s1056, 64
        %s1058 = smul.addr %s1057, 4
        %s1059 = scalar_lea.vmem %s10, %s1058
        %p1061 = scmp.eq.s32.totalorder %s55, 0
        // Predicated region
        $region157: #{gpt_classifier_forward.1} parent=99 // pred_check
          %p1062 = pneg %p1061
        $region158: #{gpt_classifier_forward.1} parent=99 // pred_check_branch
          %1064 = sbr.rel (%p1062) target = $region160
        $region159: #{gpt_classifier_forward.1} parent=99 // pred_region
          %v1065 = vld [vmem:[%s0] sm:$0xff]
          %v1066 = vld [vmem:[%s0 + $0x8] sm:$0xff]
          %v1067 = vld [vmem:[%s0 + $0x10] sm:$0xff]
          %v1068 = vld [vmem:[%s0 + $0x18] sm:$0xff]
          %v1069 = vld [vmem:[%s0 + $0x20] sm:$0xff]
          %v1070 = vld [vmem:[%s0 + $0x28] sm:$0xff]
          %1071 = vst [vmem:[#allocation2] sm:$0xff] %v1065
          %1072 = vst [vmem:[#allocation2 + $0x8] sm:$0xff] %v1066
          %1073 = vst [vmem:[#allocation2 + $0x10] sm:$0xff] %v1067
          %1074 = vst [vmem:[#allocation2 + $0x18] sm:$0xff] %v1068
          %1075 = vst [vmem:[#allocation2 + $0x20] sm:$0xff] %v1069
          %1076 = vst [vmem:[#allocation2 + $0x28] sm:$0xff] %v1070
        $region160: #{gpt_classifier_forward.1} parent=99 // pred_fallthru
          _
        %v1077 = vld [vmem:[#allocation2] sm:$0xff]
        %v1078 = vld [vmem:[#allocation2 + $0x8] sm:$0xff]
        %v1079 = vld [vmem:[#allocation2 + $0x10] sm:$0xff]
        %v1080 = vld [vmem:[#allocation2 + $0x18] sm:$0xff]
        %v1081 = vld [vmem:[#allocation2 + $0x20] sm:$0xff]
        %v1082 = vld [vmem:[#allocation2 + $0x28] sm:$0xff]
        %v1083 = vlaneseq
        %v1084 = vshrl.u32 %v1083, 7
        %v1085 = vlaneseq
        %v1086 = vand.u32 %v1085, 127
        %v1087 = vld [vmem:[%s1] sm:$0x1]
        %v1088 = vld [vmem:[%s1 + $0x1] sm:$0x1]
        %v1089 = vld [vmem:[%s1 + $0x2] sm:$0x1]
        %v1090 = vld [vmem:[%s1 + $0x3] sm:$0x1]
        %v1091 = vld [vmem:[%s1 + $0x4] sm:$0x1]
        %v1092 = vld [vmem:[%s1 + $0x5] sm:$0x1]
        %vm1093 = vcmp.gt.f32.partialorder %v1087, 0.5
        %vm1094 = vcmp.gt.f32.partialorder %v1088, 0.5
        %vm1095 = vcmp.gt.f32.partialorder %v1089, 0.5
        %vm1096 = vcmp.gt.f32.partialorder %v1090, 0.5
        %vm1097 = vcmp.gt.f32.partialorder %v1091, 0.5
        %vm1098 = vcmp.gt.f32.partialorder %v1092, 0.5
        %vm1099 = vcmp.le.s32.totalorder %v1086, %v1084
        %v1100 = vsel %vm1099, 1, 0
        %vm1101 = vcmp.eq.s32.totalorder %v1100, 1
        %v1102 = vsel %vm1093, 1, 0
        %v1103 = vsel %vm1094, 1, 0
        %v1104 = vsel %vm1095, 1, 0
        %v1105 = vsel %vm1096, 1, 0
        %v1106 = vsel %vm1097, 1, 0
        %v1107 = vsel %vm1098, 1, 0
        %v1108 = vlaneseq
        %v1109 = vshrl.u32 %v1108, 7
        %v1110 = vsub.s32 0, %v1109
        %v1111 = vrot.slane %v1102, %v1110
        %v1112 = vlaneseq
        %v1113 = vshrl.u32 %v1112, 7
        %v1114 = vsub.s32 0, %v1113
        %v1115 = vrot.slane %v1103, %v1114
        %v1116 = vlaneseq
        %v1117 = vshrl.u32 %v1116, 7
        %v1118 = vsub.s32 0, %v1117
        %v1119 = vrot.slane %v1104, %v1118
        %v1120 = vlaneseq
        %v1121 = vshrl.u32 %v1120, 7
        %v1122 = vsub.s32 0, %v1121
        %v1123 = vrot.slane %v1105, %v1122
        %v1124 = vlaneseq
        %v1125 = vshrl.u32 %v1124, 7
        %v1126 = vsub.s32 0, %v1125
        %v1127 = vrot.slane %v1106, %v1126
        %v1128 = vlaneseq
        %v1129 = vshrl.u32 %v1128, 7
        %v1130 = vsub.s32 0, %v1129
        %v1131 = vrot.slane %v1107, %v1130
        %vm1132 = vcmp.eq.s32.totalorder %v1111, 1
        %vm1133 = vcmp.eq.s32.totalorder %v1115, 1
        %vm1134 = vcmp.eq.s32.totalorder %v1119, 1
        %vm1135 = vcmp.eq.s32.totalorder %v1123, 1
        %vm1136 = vcmp.eq.s32.totalorder %v1127, 1
        %vm1137 = vcmp.eq.s32.totalorder %v1131, 1
        %vm1138 = vmand %vm1101, %vm1132
        %vm1139 = vmand %vm1101, %vm1133
        %vm1140 = vmand %vm1101, %vm1134
        %vm1141 = vmand %vm1101, %vm1135
        %vm1142 = vmand %vm1101, %vm1136
        %vm1143 = vmand %vm1101, %vm1137
        %v1144 = vsel %vm1138, 0.0, -1e+09
        %v1145 = vsel %vm1139, 0.0, -1e+09
        %v1146 = vsel %vm1140, 0.0, -1e+09
        %v1147 = vsel %vm1141, 0.0, -1e+09
        %v1148 = vsel %vm1142, 0.0, -1e+09
        %v1149 = vsel %vm1143, 0.0, -1e+09
        %v1150 = vld [vmem:[%s855] sm:$0x1]
        %v1151 = vld [vmem:[%s863] sm:$0x1]
        %1152 = vadd.xlane.f32.xlu0 %v1077
        %v1153 = vpop.xlane.xlu0 %1152
        %1154 = vadd.xlane.f32.xlu0 %v1078
        %v1155 = vpop.xlane.xlu0 %1154
        %1156 = vadd.xlane.f32.xlu0 %v1079
        %v1157 = vpop.xlane.xlu0 %1156
        %1158 = vadd.xlane.f32.xlu0 %v1080
        %v1159 = vpop.xlane.xlu0 %1158
        %1160 = vadd.xlane.f32.xlu0 %v1081
        %v1161 = vpop.xlane.xlu0 %1160
        %1162 = vadd.xlane.f32.xlu0 %v1082
        %v1163 = vpop.xlane.xlu0 %1162
        %v1164 = vrcp.pop 128.0
        %v1165 = vmul.f32 %v1153, %v1164
        %v1166 = vmul.f32 %v1155, %v1164
        %v1167 = vmul.f32 %v1157, %v1164
        %v1168 = vmul.f32 %v1159, %v1164
        %v1169 = vmul.f32 %v1161, %v1164
        %v1170 = vmul.f32 %v1163, %v1164
        %v1171 = vsub.f32 %v1077, %v1165
        %v1172 = vsub.f32 %v1078, %v1166
        %v1173 = vsub.f32 %v1079, %v1167
        %v1174 = vsub.f32 %v1080, %v1168
        %v1175 = vsub.f32 %v1081, %v1169
        %v1176 = vsub.f32 %v1082, %v1170
        %v1177 = vmul.f32 %v1171, %v1171
        %v1178 = vmul.f32 %v1172, %v1172
        %v1179 = vmul.f32 %v1173, %v1173
        %v1180 = vmul.f32 %v1174, %v1174
        %v1181 = vmul.f32 %v1175, %v1175
        %v1182 = vmul.f32 %v1176, %v1176
        %1183 = vadd.xlane.f32.xlu0 %v1177
        %v1184 = vpop.xlane.xlu0 %1183
        %1185 = vadd.xlane.f32.xlu0 %v1178
        %v1186 = vpop.xlane.xlu0 %1185
        %1187 = vadd.xlane.f32.xlu0 %v1179
        %v1188 = vpop.xlane.xlu0 %1187
        %1189 = vadd.xlane.f32.xlu0 %v1180
        %v1190 = vpop.xlane.xlu0 %1189
        %1191 = vadd.xlane.f32.xlu0 %v1181
        %v1192 = vpop.xlane.xlu0 %1191
        %1193 = vadd.xlane.f32.xlu0 %v1182
        %v1194 = vpop.xlane.xlu0 %1193
        %v1195 = vmul.f32 %v1184, %v1164
        %v1196 = vmul.f32 %v1186, %v1164
        %v1197 = vmul.f32 %v1188, %v1164
        %v1198 = vmul.f32 %v1190, %v1164
        %v1199 = vmul.f32 %v1192, %v1164
        %v1200 = vmul.f32 %v1194, %v1164
        %v1201 = vadd.f32 %v1195, 1e-05
        %v1202 = vadd.f32 %v1196, 1e-05
        %v1203 = vadd.f32 %v1197, 1e-05
        %v1204 = vadd.f32 %v1198, 1e-05
        %v1205 = vadd.f32 %v1199, 1e-05
        %v1206 = vadd.f32 %v1200, 1e-05
        %v1207 = vrsqrt.pop %v1201
        %v1208 = vrsqrt.pop %v1202
        %v1209 = vrsqrt.pop %v1203
        %v1210 = vrsqrt.pop %v1204
        %v1211 = vrsqrt.pop %v1205
        %v1212 = vrsqrt.pop %v1206
        %v1213 = vmul.f32 %v1171, %v1207
        %v1214 = vmul.f32 %v1172, %v1208
        %v1215 = vmul.f32 %v1173, %v1209
        %v1216 = vmul.f32 %v1174, %v1210
        %v1217 = vmul.f32 %v1175, %v1211
        %v1218 = vmul.f32 %v1176, %v1212
        %v1220 = vlaneseq
        %v1221 = vshrl.u32 %v1220, 7
        %v1222 = vsub.s32 0, %v1221
        %v1223 = vrot.slane %v1150, %v1222
        %v1225 = vmul.f32 %v1213, %v1223
        %v1226 = vmul.f32 %v1214, %v1223
        %v1227 = vmul.f32 %v1215, %v1223
        %v1228 = vmul.f32 %v1216, %v1223
        %v1229 = vmul.f32 %v1217, %v1223
        %v1230 = vmul.f32 %v1218, %v1223
        %v1232 = vlaneseq
        %v1233 = vshrl.u32 %v1232, 7
        %v1234 = vsub.s32 0, %v1233
        %v1235 = vrot.slane %v1151, %v1234
        %v1237 = vadd.f32 %v1225, %v1235
        %v1238 = vadd.f32 %v1226, %v1235
        %v1239 = vadd.f32 %v1227, %v1235
        %v1240 = vadd.f32 %v1228, %v1235
        %v1241 = vadd.f32 %v1229, %v1235
        %v1242 = vadd.f32 %v1230, %v1235
        %v1243 = vpack.c.bf16 %v1238, %v1237
        %v1244 = vpack.c.bf16 %v1240, %v1239
        %v1245 = vpack.c.bf16 %v1242, %v1241
        %v1246 = vld [vmem:[%s1054] sm:$0xff]
        %v1247 = vld [vmem:[%s1054 + $0x8] sm:$0xf]
        %v1248 = vld [vmem:[%s1054 + $0xc] sm:$0xff]
        %v1249 = vld [vmem:[%s1054 + $0x14] sm:$0xf]
        %v1250 = vld [vmem:[%s1054 + $0x18] sm:$0xff]
        %v1251 = vld [vmem:[%s1054 + $0x20] sm:$0xf]
        %v1252 = vld [vmem:[%s1054 + $0x24] sm:$0xff]
        %v1253 = vld [vmem:[%s1054 + $0x2c] sm:$0xf]
        %v1254 = vld [vmem:[%s1054 + $0x30] sm:$0xff]
        %v1255 = vld [vmem:[%s1054 + $0x38] sm:$0xf]
        %v1256 = vld [vmem:[%s1054 + $0x3c] sm:$0xff]
        %v1257 = vld [vmem:[%s1054 + $0x44] sm:$0xf]
        %v1258 = vld [vmem:[%s1054 + $0x48] sm:$0xff]
        %v1259 = vld [vmem:[%s1054 + $0x50] sm:$0xf]
        %v1260 = vld [vmem:[%s1054 + $0x54] sm:$0xff]
        %v1261 = vld [vmem:[%s1054 + $0x5c] sm:$0xf]
        %v1262 = vld [vmem:[%s1054 + $0x60] sm:$0xff]
        %v1263 = vld [vmem:[%s1054 + $0x68] sm:$0xf]
        %v1264 = vld [vmem:[%s1054 + $0x6c] sm:$0xff]
        %v1265 = vld [vmem:[%s1054 + $0x74] sm:$0xf]
        %v1266 = vld [vmem:[%s1054 + $0x78] sm:$0xff]
        %v1267 = vld [vmem:[%s1054 + $0x80] sm:$0xf]
        %v1268 = vld [vmem:[%s1054 + $0x84] sm:$0xff]
        %v1269 = vld [vmem:[%s1054 + $0x8c] sm:$0xf]
        %v1270 = vld [vmem:[%s1054 + $0x90] sm:$0xff]
        %v1271 = vld [vmem:[%s1054 + $0x98] sm:$0xf]
        %v1272 = vld [vmem:[%s1054 + $0x9c] sm:$0xff]
        %v1273 = vld [vmem:[%s1054 + $0xa4] sm:$0xf]
        %v1274 = vld [vmem:[%s1054 + $0xa8] sm:$0xff]
        %v1275 = vld [vmem:[%s1054 + $0xb0] sm:$0xf]
        %v1276 = vld [vmem:[%s1054 + $0xb4] sm:$0xff]
        %v1277 = vld [vmem:[%s1054 + $0xbc] sm:$0xf]
        %v1278 = vld [vmem:[%s872] sm:$0x7]
        %v1280 = vlaneseq
        %v1281 = vshrl.u32 %v1280, 7
        %v1282 = vsub.s32 0, %v1281
        %v1283 = vrot.slane %v1278, %v1282
        %v1284 = vlaneseq
        %v1285 = vshrl.u32 %v1284, 7
        %v1286 = vsub.s32 1, %v1285
        %v1287 = vrot.slane %v1278, %v1286
        %v1288 = vlaneseq
        %v1289 = vshrl.u32 %v1288, 7
        %v1290 = vsub.s32 2, %v1289
        %v1291 = vrot.slane %v1278, %v1290
        %v1327 = vunpack.c.l.b16 %v1246
        %v1328 = vunpack.c.h.b16 %v1246
        %v1329 = vunpack.c.l.b16 %v1247
        %v1330 = vunpack.c.l.b16 %v1248
        %v1331 = vunpack.c.h.b16 %v1248
        %v1332 = vunpack.c.l.b16 %v1249
        %v1333 = vunpack.c.l.b16 %v1250
        %v1334 = vunpack.c.h.b16 %v1250
        %v1335 = vunpack.c.l.b16 %v1251
        %v1336 = vunpack.c.l.b16 %v1252
        %v1337 = vunpack.c.h.b16 %v1252
        %v1338 = vunpack.c.l.b16 %v1253
        %v1339 = vunpack.c.l.b16 %v1254
        %v1340 = vunpack.c.h.b16 %v1254
        %v1341 = vunpack.c.l.b16 %v1255
        %v1342 = vunpack.c.l.b16 %v1256
        %v1343 = vunpack.c.h.b16 %v1256
        %v1344 = vunpack.c.l.b16 %v1257
        %v1345 = vunpack.c.l.b16 %v1258
        %v1346 = vunpack.c.h.b16 %v1258
        %v1347 = vunpack.c.l.b16 %v1259
        %v1348 = vunpack.c.l.b16 %v1260
        %v1349 = vunpack.c.h.b16 %v1260
        %v1350 = vunpack.c.l.b16 %v1261
        %v1351 = vunpack.c.l.b16 %v1262
        %v1352 = vunpack.c.h.b16 %v1262
        %v1353 = vunpack.c.l.b16 %v1263
        %v1354 = vunpack.c.l.b16 %v1264
        %v1355 = vunpack.c.h.b16 %v1264
        %v1356 = vunpack.c.l.b16 %v1265
        %v1357 = vunpack.c.l.b16 %v1266
        %v1358 = vunpack.c.h.b16 %v1266
        %v1359 = vunpack.c.l.b16 %v1267
        %v1360 = vunpack.c.l.b16 %v1268
        %v1361 = vunpack.c.h.b16 %v1268
        %v1362 = vunpack.c.l.b16 %v1269
        %v1363 = vunpack.c.l.b16 %v1270
        %v1364 = vunpack.c.h.b16 %v1270
        %v1365 = vunpack.c.l.b16 %v1271
        %v1366 = vunpack.c.l.b16 %v1272
        %v1367 = vunpack.c.h.b16 %v1272
        %v1368 = vunpack.c.l.b16 %v1273
        %v1369 = vunpack.c.l.b16 %v1274
        %v1370 = vunpack.c.h.b16 %v1274
        %v1371 = vunpack.c.l.b16 %v1275
        %v1372 = vunpack.c.l.b16 %v1276
        %v1373 = vunpack.c.h.b16 %v1276
        %v1374 = vunpack.c.l.b16 %v1277
        %v1375 = vpack.c.b16 %v1330, %v1327
        %v1376 = vpack.c.b16 %v1331, %v1328
        %v1377 = vpack.c.b16 %v1332, %v1329
        %v1378 = vpack.c.b16 %v1336, %v1333
        %v1379 = vpack.c.b16 %v1337, %v1334
        %v1380 = vpack.c.b16 %v1338, %v1335
        %v1381 = vpack.c.b16 %v1342, %v1339
        %v1382 = vpack.c.b16 %v1343, %v1340
        %v1383 = vpack.c.b16 %v1344, %v1341
        %v1384 = vpack.c.b16 %v1348, %v1345
        %v1385 = vpack.c.b16 %v1349, %v1346
        %v1386 = vpack.c.b16 %v1350, %v1347
        %v1387 = vpack.c.b16 %v1354, %v1351
        %v1388 = vpack.c.b16 %v1355, %v1352
        %v1389 = vpack.c.b16 %v1356, %v1353
        %v1390 = vpack.c.b16 %v1360, %v1357
        %v1391 = vpack.c.b16 %v1361, %v1358
        %v1392 = vpack.c.b16 %v1362, %v1359
        %v1393 = vpack.c.b16 %v1366, %v1363
        %v1394 = vpack.c.b16 %v1367, %v1364
        %v1395 = vpack.c.b16 %v1368, %v1365
        %v1396 = vpack.c.b16 %v1372, %v1369
        %v1397 = vpack.c.b16 %v1373, %v1370
        %v1398 = vpack.c.b16 %v1374, %v1371
        %1423 = vmatprep.subr.bf16.mxu0 %v1397
        %1424 = vmatpush1.bf16.msra.mxu0 %v1396
        %1425 = vmatprep.subr.bf16.mxu0 %v1394
        %1426 = vmatpush1.bf16.msra.mxu0 %v1393
        %1427 = vmatprep.subr.bf16.mxu0 %v1391
        %1428 = vmatpush1.bf16.msra.mxu0 %v1390
        %1429 = vmatprep.subr.bf16.mxu0 %v1388
        %1430 = vmatpush1.bf16.msra.mxu0 %v1387
        %1431 = vmatprep.subr.bf16.mxu0 %v1385
        %1432 = vmatpush1.bf16.msra.mxu0 %v1384
        %1433 = vmatprep.subr.bf16.mxu0 %v1382
        %1434 = vmatpush1.bf16.msra.mxu0 %v1381
        %1435 = vmatprep.subr.bf16.mxu0 %v1379
        %1436 = vmatpush1.bf16.msra.mxu0 %v1378
        %1437 = vmatprep.subr.bf16.mxu0 %v1376
        %1438 = vmatpush1.bf16.msra.mxu0 %v1375
        %1439 = vmatprep.subr.bf16.mxu0 0
        %1440 = vmatpush2.bf16.msra.mxu0 0
        %1441 = vmatprep.subr.bf16.mxu0 0
        %1442 = vmatpush2.bf16.msra.mxu0 0
        %1443 = vmatprep.subr.bf16.mxu0 0
        %1444 = vmatpush2.bf16.msra.mxu0 0
        %1445 = vmatprep.subr.bf16.mxu0 0
        %1446 = vmatpush2.bf16.msra.mxu0 0
        %1447 = vmatprep.subr.bf16.mxu0 0
        %1448 = vmatpush2.bf16.msra.mxu0 0
        %1449 = vmatprep.subr.bf16.mxu0 0
        %1450 = vmatpush2.bf16.msra.mxu0 0
        %1451 = vmatprep.subr.bf16.mxu0 0
        %1452 = vmatpush2.bf16.msra.mxu0 0
        %1453 = vmatprep.subr.bf16.mxu0 0
        %1454 = vmatpush2.bf16.msra.mxu0 0
        %1455 = vmatprep.mubr.bf16.mxu0 0
        %1456 = vmatmul.mubr.bf16.gmra.mxu0 %v1243
        %v1457 = vpop.f32.mrf.mxu0
        %v1458 = vadd.f32 %v1283, %v1457
        %v1459 = vpop.f32.mrf.mxu0
        %v1460 = vadd.f32 %v1287, %v1459
        %v1461 = vpop.f32.mrf.mxu0
        %v1462 = vadd.f32 %v1283, %v1461
        %v1463 = vpop.f32.mrf.mxu0
        %v1464 = vadd.f32 %v1287, %v1463
        %1465 = vmatprep.mubr.bf16.mxu0 0
        %1466 = vmatmul.mubr.bf16.gmra.mxu0 %v1244
        %v1467 = vpop.f32.mrf.mxu0
        %v1468 = vadd.f32 %v1283, %v1467
        %v1469 = vpop.f32.mrf.mxu0
        %v1470 = vadd.f32 %v1287, %v1469
        %v1471 = vpop.f32.mrf.mxu0
        %v1472 = vadd.f32 %v1283, %v1471
        %v1473 = vpop.f32.mrf.mxu0
        %v1474 = vadd.f32 %v1287, %v1473
        %1475 = vmatprep.mubr.bf16.mxu0 0
        %1476 = vmatmul.mubr.bf16.gmra.mxu0 %v1245
        %v1477 = vpop.f32.mrf.mxu0
        %v1478 = vadd.f32 %v1283, %v1477
        %v1479 = vpop.f32.mrf.mxu0
        %v1480 = vadd.f32 %v1287, %v1479
        %v1481 = vpop.f32.mrf.mxu0
        %v1482 = vadd.f32 %v1283, %v1481
        %v1483 = vpop.f32.mrf.mxu0
        %v1484 = vadd.f32 %v1287, %v1483
        %1485 = vdwg.mxu0
        %1486 = vmatprep.subr.bf16.mxu0 0
        %1487 = vmatpush1.bf16.msra.mxu0 %v1398
        %1488 = vmatprep.subr.bf16.mxu0 0
        %1489 = vmatpush1.bf16.msra.mxu0 %v1395
        %1490 = vmatprep.subr.bf16.mxu0 0
        %1491 = vmatpush1.bf16.msra.mxu0 %v1392
        %1492 = vmatprep.subr.bf16.mxu0 0
        %1493 = vmatpush1.bf16.msra.mxu0 %v1389
        %1494 = vmatprep.subr.bf16.mxu0 0
        %1495 = vmatpush1.bf16.msra.mxu0 %v1386
        %1496 = vmatprep.subr.bf16.mxu0 0
        %1497 = vmatpush1.bf16.msra.mxu0 %v1383
        %1498 = vmatprep.subr.bf16.mxu0 0
        %1499 = vmatpush1.bf16.msra.mxu0 %v1380
        %1500 = vmatprep.subr.bf16.mxu0 0
        %1501 = vmatpush1.bf16.msra.mxu0 %v1377
        %1502 = vmatprep.subr.bf16.mxu0 0
        %1503 = vmatpush2.bf16.msra.mxu0 0
        %1504 = vmatprep.subr.bf16.mxu0 0
        %1505 = vmatpush2.bf16.msra.mxu0 0
        %1506 = vmatprep.subr.bf16.mxu0 0
        %1507 = vmatpush2.bf16.msra.mxu0 0
        %1508 = vmatprep.subr.bf16.mxu0 0
        %1509 = vmatpush2.bf16.msra.mxu0 0
        %1510 = vmatprep.subr.bf16.mxu0 0
        %1511 = vmatpush2.bf16.msra.mxu0 0
        %1512 = vmatprep.subr.bf16.mxu0 0
        %1513 = vmatpush2.bf16.msra.mxu0 0
        %1514 = vmatprep.subr.bf16.mxu0 0
        %1515 = vmatpush2.bf16.msra.mxu0 0
        %1516 = vmatprep.subr.bf16.mxu0 0
        %1517 = vmatpush2.bf16.msra.mxu0 0
        %1518 = vmatprep.mubr.bf16.mxu0 0
        %1519 = vmatmul.mubr.bf16.gmra.mxu0 %v1243
        %v1520 = vpop.f32.mrf.mxu0
        %v1521 = vadd.f32 %v1291, %v1520
        %v1522 = vpop.f32.mrf.mxu0
        %v1523 = vpop.f32.mrf.mxu0
        %v1524 = vadd.f32 %v1291, %v1523
        %v1525 = vpop.f32.mrf.mxu0
        %1526 = vmatprep.mubr.bf16.mxu0 0
        %1527 = vmatmul.mubr.bf16.gmra.mxu0 %v1244
        %v1528 = vpop.f32.mrf.mxu0
        %v1529 = vadd.f32 %v1291, %v1528
        %v1530 = vpop.f32.mrf.mxu0
        %v1531 = vpop.f32.mrf.mxu0
        %v1532 = vadd.f32 %v1291, %v1531
        %v1533 = vpop.f32.mrf.mxu0
        %1534 = vmatprep.mubr.bf16.mxu0 0
        %1535 = vmatmul.mubr.bf16.gmra.mxu0 %v1245
        %v1536 = vpop.f32.mrf.mxu0
        %v1537 = vadd.f32 %v1291, %v1536
        %v1538 = vpop.f32.mrf.mxu0
        %v1539 = vpop.f32.mrf.mxu0
        %v1540 = vadd.f32 %v1291, %v1539
        %v1541 = vpop.f32.mrf.mxu0
        %1542 = vdwg.mxu0
        %v1543 = vpack.c.bf16 %v1458, %v1458
        %v1544 = vpack.c.bf16 %v1462, %v1462
        %v1545 = vpack.c.bf16 %v1468, %v1468
        %v1546 = vpack.c.bf16 %v1472, %v1472
        %v1547 = vpack.c.bf16 %v1478, %v1478
        %v1548 = vpack.c.bf16 %v1482, %v1482
        %v1549 = vpack.c.bf16 %v1460, %v1460
        %v1550 = vpack.c.bf16 %v1464, %v1464
        %v1551 = vpack.c.bf16 %v1470, %v1470
        %v1552 = vpack.c.bf16 %v1474, %v1474
        %v1553 = vpack.c.bf16 %v1480, %v1480
        %v1554 = vpack.c.bf16 %v1484, %v1484
        %vm1555 = vcmask 261120
        %v1557 = vsel %vm1555, %v1543, 0
        %v1560 = vsel %vm1555, %v1549, 0
        %1562 = vmatprep.subr.bf16.mxu0 0
        %1563 = vmatpush1.bf16.xpose.msra.mxu0 0
        %1564 = vmatprep.subr.bf16.mxu0 0
        %1565 = vmatpush1.bf16.xpose.msra.mxu0 0
        %1566 = vmatprep.subr.bf16.mxu0 0
        %1567 = vmatpush1.bf16.xpose.msra.mxu0 0
        %1568 = vmatprep.subr.bf16.mxu0 0
        %1569 = vmatpush1.bf16.xpose.msra.mxu0 0
        %1570 = vmatprep.subr.bf16.mxu0 0
        %1571 = vmatpush1.bf16.xpose.msra.mxu0 0
        %1572 = vmatprep.subr.bf16.mxu0 0
        %1573 = vmatpush1.bf16.xpose.msra.mxu0 0
        %1574 = vmatprep.subr.bf16.mxu0 0
        %1575 = vmatpush1.bf16.xpose.msra.mxu0 0
        %1576 = vmatprep.subr.bf16.mxu0 0
        %1577 = vmatpush1.bf16.xpose.msra.mxu0 %v1560
        %1578 = vmatprep.subr.bf16.mxu0 0
        %1579 = vmatpush2.bf16.xpose.msra.mxu0 0
        %1580 = vmatprep.subr.bf16.mxu0 0
        %1581 = vmatpush2.bf16.xpose.msra.mxu0 0
        %1582 = vmatprep.subr.bf16.mxu0 0
        %1583 = vmatpush2.bf16.xpose.msra.mxu0 0
        %1584 = vmatprep.subr.bf16.mxu0 0
        %1585 = vmatpush2.bf16.xpose.msra.mxu0 0
        %1586 = vmatprep.subr.bf16.mxu0 0
        %1587 = vmatpush2.bf16.xpose.msra.mxu0 0
        %1588 = vmatprep.subr.bf16.mxu0 0
        %1589 = vmatpush2.bf16.xpose.msra.mxu0 0
        %1590 = vmatprep.subr.bf16.mxu0 0
        %1591 = vmatpush2.bf16.xpose.msra.mxu0 0
        %1592 = vmatprep.subr.bf16.mxu0 0
        %1593 = vmatpush2.bf16.xpose.msra.mxu0 0
        %1594 = vmatprep.mubr.bf16.mxu0 0
        %1595 = vmatmul.mubr.bf16.gmra.mxu0 %v1557
        %v1596 = vpop.f32.mrf.mxu0
        %v1597 = vadd.f32 0.0, %v1596
        %v1598 = vpop.f32.mrf.mxu0
        %v1599 = vpop.f32.mrf.mxu0
        %v1600 = vpop.f32.mrf.mxu0
        %1601 = vdwg.mxu0
        %v1603 = vsel %vm1555, %v1544, 0
        %v1606 = vsel %vm1555, %v1550, 0
        %1608 = vmatprep.subr.bf16.mxu0 0
        %1609 = vmatpush1.bf16.xpose.msra.mxu0 0
        %1610 = vmatprep.subr.bf16.mxu0 0
        %1611 = vmatpush1.bf16.xpose.msra.mxu0 0
        %1612 = vmatprep.subr.bf16.mxu0 0
        %1613 = vmatpush1.bf16.xpose.msra.mxu0 0
        %1614 = vmatprep.subr.bf16.mxu0 0
        %1615 = vmatpush1.bf16.xpose.msra.mxu0 0
        %1616 = vmatprep.subr.bf16.mxu0 0
        %1617 = vmatpush1.bf16.xpose.msra.mxu0 0
        %1618 = vmatprep.subr.bf16.mxu0 0
        %1619 = vmatpush1.bf16.xpose.msra.mxu0 0
        %1620 = vmatprep.subr.bf16.mxu0 0
        %1621 = vmatpush1.bf16.xpose.msra.mxu0 0
        %1622 = vmatprep.subr.bf16.mxu0 0
        %1623 = vmatpush1.bf16.xpose.msra.mxu0 %v1606
        %1624 = vmatprep.subr.bf16.mxu0 0
        %1625 = vmatpush2.bf16.xpose.msra.mxu0 0
        %1626 = vmatprep.subr.bf16.mxu0 0
        %1627 = vmatpush2.bf16.xpose.msra.mxu0 0
        %1628 = vmatprep.subr.bf16.mxu0 0
        %1629 = vmatpush2.bf16.xpose.msra.mxu0 0
        %1630 = vmatprep.subr.bf16.mxu0 0
        %1631 = vmatpush2.bf16.xpose.msra.mxu0 0
        %1632 = vmatprep.subr.bf16.mxu0 0
        %1633 = vmatpush2.bf16.xpose.msra.mxu0 0
        %1634 = vmatprep.subr.bf16.mxu0 0
        %1635 = vmatpush2.bf16.xpose.msra.mxu0 0
        %1636 = vmatprep.subr.bf16.mxu0 0
        %1637 = vmatpush2.bf16.xpose.msra.mxu0 0
        %1638 = vmatprep.subr.bf16.mxu0 0
        %1639 = vmatpush2.bf16.xpose.msra.mxu0 0
        %1640 = vmatprep.mubr.bf16.mxu0 0
        %1641 = vmatmul.mubr.bf16.gmra.mxu0 %v1603
        %v1642 = vpop.f32.mrf.mxu0
        %v1643 = vadd.f32 0.0, %v1642
        %v1644 = vpop.f32.mrf.mxu0
        %v1645 = vpop.f32.mrf.mxu0
        %v1646 = vpop.f32.mrf.mxu0
        %1647 = vdwg.mxu0
        %v1649 = vsel %vm1555, %v1545, 0
        %v1652 = vsel %vm1555, %v1551, 0
        %1654 = vmatprep.subr.bf16.mxu0 0
        %1655 = vmatpush1.bf16.xpose.msra.mxu0 0
        %1656 = vmatprep.subr.bf16.mxu0 0
        %1657 = vmatpush1.bf16.xpose.msra.mxu0 0
        %1658 = vmatprep.subr.bf16.mxu0 0
        %1659 = vmatpush1.bf16.xpose.msra.mxu0 0
        %1660 = vmatprep.subr.bf16.mxu0 0
        %1661 = vmatpush1.bf16.xpose.msra.mxu0 0
        %1662 = vmatprep.subr.bf16.mxu0 0
        %1663 = vmatpush1.bf16.xpose.msra.mxu0 0
        %1664 = vmatprep.subr.bf16.mxu0 0
        %1665 = vmatpush1.bf16.xpose.msra.mxu0 0
        %1666 = vmatprep.subr.bf16.mxu0 0
        %1667 = vmatpush1.bf16.xpose.msra.mxu0 0
        %1668 = vmatprep.subr.bf16.mxu0 0
        %1669 = vmatpush1.bf16.xpose.msra.mxu0 %v1652
        %1670 = vmatprep.subr.bf16.mxu0 0
        %1671 = vmatpush2.bf16.xpose.msra.mxu0 0
        %1672 = vmatprep.subr.bf16.mxu0 0
        %1673 = vmatpush2.bf16.xpose.msra.mxu0 0
        %1674 = vmatprep.subr.bf16.mxu0 0
        %1675 = vmatpush2.bf16.xpose.msra.mxu0 0
        %1676 = vmatprep.subr.bf16.mxu0 0
        %1677 = vmatpush2.bf16.xpose.msra.mxu0 0
        %1678 = vmatprep.subr.bf16.mxu0 0
        %1679 = vmatpush2.bf16.xpose.msra.mxu0 0
        %1680 = vmatprep.subr.bf16.mxu0 0
        %1681 = vmatpush2.bf16.xpose.msra.mxu0 0
        %1682 = vmatprep.subr.bf16.mxu0 0
        %1683 = vmatpush2.bf16.xpose.msra.mxu0 0
        %1684 = vmatprep.subr.bf16.mxu0 0
        %1685 = vmatpush2.bf16.xpose.msra.mxu0 0
        %1686 = vmatprep.mubr.bf16.mxu0 0
        %1687 = vmatmul.mubr.bf16.gmra.mxu0 %v1649
        %v1688 = vpop.f32.mrf.mxu0
        %v1689 = vadd.f32 0.0, %v1688
        %v1690 = vpop.f32.mrf.mxu0
        %v1691 = vpop.f32.mrf.mxu0
        %v1692 = vpop.f32.mrf.mxu0
        %1693 = vdwg.mxu0
        %v1695 = vsel %vm1555, %v1546, 0
        %v1698 = vsel %vm1555, %v1552, 0
        %1700 = vmatprep.subr.bf16.mxu0 0
        %1701 = vmatpush1.bf16.xpose.msra.mxu0 0
        %1702 = vmatprep.subr.bf16.mxu0 0
        %1703 = vmatpush1.bf16.xpose.msra.mxu0 0
        %1704 = vmatprep.subr.bf16.mxu0 0
        %1705 = vmatpush1.bf16.xpose.msra.mxu0 0
        %1706 = vmatprep.subr.bf16.mxu0 0
        %1707 = vmatpush1.bf16.xpose.msra.mxu0 0
        %1708 = vmatprep.subr.bf16.mxu0 0
        %1709 = vmatpush1.bf16.xpose.msra.mxu0 0
        %1710 = vmatprep.subr.bf16.mxu0 0
        %1711 = vmatpush1.bf16.xpose.msra.mxu0 0
        %1712 = vmatprep.subr.bf16.mxu0 0
        %1713 = vmatpush1.bf16.xpose.msra.mxu0 0
        %1714 = vmatprep.subr.bf16.mxu0 0
        %1715 = vmatpush1.bf16.xpose.msra.mxu0 %v1698
        %1716 = vmatprep.subr.bf16.mxu0 0
        %1717 = vmatpush2.bf16.xpose.msra.mxu0 0
        %1718 = vmatprep.subr.bf16.mxu0 0
        %1719 = vmatpush2.bf16.xpose.msra.mxu0 0
        %1720 = vmatprep.subr.bf16.mxu0 0
        %1721 = vmatpush2.bf16.xpose.msra.mxu0 0
        %1722 = vmatprep.subr.bf16.mxu0 0
        %1723 = vmatpush2.bf16.xpose.msra.mxu0 0
        %1724 = vmatprep.subr.bf16.mxu0 0
        %1725 = vmatpush2.bf16.xpose.msra.mxu0 0
        %1726 = vmatprep.subr.bf16.mxu0 0
        %1727 = vmatpush2.bf16.xpose.msra.mxu0 0
        %1728 = vmatprep.subr.bf16.mxu0 0
        %1729 = vmatpush2.bf16.xpose.msra.mxu0 0
        %1730 = vmatprep.subr.bf16.mxu0 0
        %1731 = vmatpush2.bf16.xpose.msra.mxu0 0
        %1732 = vmatprep.mubr.bf16.mxu0 0
        %1733 = vmatmul.mubr.bf16.gmra.mxu0 %v1695
        %v1734 = vpop.f32.mrf.mxu0
        %v1735 = vadd.f32 0.0, %v1734
        %v1736 = vpop.f32.mrf.mxu0
        %v1737 = vpop.f32.mrf.mxu0
        %v1738 = vpop.f32.mrf.mxu0
        %1739 = vdwg.mxu0
        %v1741 = vsel %vm1555, %v1547, 0
        %v1744 = vsel %vm1555, %v1553, 0
        %1746 = vmatprep.subr.bf16.mxu0 0
        %1747 = vmatpush1.bf16.xpose.msra.mxu0 0
        %1748 = vmatprep.subr.bf16.mxu0 0
        %1749 = vmatpush1.bf16.xpose.msra.mxu0 0
        %1750 = vmatprep.subr.bf16.mxu0 0
        %1751 = vmatpush1.bf16.xpose.msra.mxu0 0
        %1752 = vmatprep.subr.bf16.mxu0 0
        %1753 = vmatpush1.bf16.xpose.msra.mxu0 0
        %1754 = vmatprep.subr.bf16.mxu0 0
        %1755 = vmatpush1.bf16.xpose.msra.mxu0 0
        %1756 = vmatprep.subr.bf16.mxu0 0
        %1757 = vmatpush1.bf16.xpose.msra.mxu0 0
        %1758 = vmatprep.subr.bf16.mxu0 0
        %1759 = vmatpush1.bf16.xpose.msra.mxu0 0
        %1760 = vmatprep.subr.bf16.mxu0 0
        %1761 = vmatpush1.bf16.xpose.msra.mxu0 %v1744
        %1762 = vmatprep.subr.bf16.mxu0 0
        %1763 = vmatpush2.bf16.xpose.msra.mxu0 0
        %1764 = vmatprep.subr.bf16.mxu0 0
        %1765 = vmatpush2.bf16.xpose.msra.mxu0 0
        %1766 = vmatprep.subr.bf16.mxu0 0
        %1767 = vmatpush2.bf16.xpose.msra.mxu0 0
        %1768 = vmatprep.subr.bf16.mxu0 0
        %1769 = vmatpush2.bf16.xpose.msra.mxu0 0
        %1770 = vmatprep.subr.bf16.mxu0 0
        %1771 = vmatpush2.bf16.xpose.msra.mxu0 0
        %1772 = vmatprep.subr.bf16.mxu0 0
        %1773 = vmatpush2.bf16.xpose.msra.mxu0 0
        %1774 = vmatprep.subr.bf16.mxu0 0
        %1775 = vmatpush2.bf16.xpose.msra.mxu0 0
        %1776 = vmatprep.subr.bf16.mxu0 0
        %1777 = vmatpush2.bf16.xpose.msra.mxu0 0
        %1778 = vmatprep.mubr.bf16.mxu0 0
        %1779 = vmatmul.mubr.bf16.gmra.mxu0 %v1741
        %v1780 = vpop.f32.mrf.mxu0
        %v1781 = vadd.f32 0.0, %v1780
        %v1782 = vpop.f32.mrf.mxu0
        %v1783 = vpop.f32.mrf.mxu0
        %v1784 = vpop.f32.mrf.mxu0
        %1785 = vdwg.mxu0
        %v1787 = vsel %vm1555, %v1548, 0
        %v1790 = vsel %vm1555, %v1554, 0
        %1792 = vmatprep.subr.bf16.mxu0 0
        %1793 = vmatpush1.bf16.xpose.msra.mxu0 0
        %1794 = vmatprep.subr.bf16.mxu0 0
        %1795 = vmatpush1.bf16.xpose.msra.mxu0 0
        %1796 = vmatprep.subr.bf16.mxu0 0
        %1797 = vmatpush1.bf16.xpose.msra.mxu0 0
        %1798 = vmatprep.subr.bf16.mxu0 0
        %1799 = vmatpush1.bf16.xpose.msra.mxu0 0
        %1800 = vmatprep.subr.bf16.mxu0 0
        %1801 = vmatpush1.bf16.xpose.msra.mxu0 0
        %1802 = vmatprep.subr.bf16.mxu0 0
        %1803 = vmatpush1.bf16.xpose.msra.mxu0 0
        %1804 = vmatprep.subr.bf16.mxu0 0
        %1805 = vmatpush1.bf16.xpose.msra.mxu0 0
        %1806 = vmatprep.subr.bf16.mxu0 0
        %1807 = vmatpush1.bf16.xpose.msra.mxu0 %v1790
        %1808 = vmatprep.subr.bf16.mxu0 0
        %1809 = vmatpush2.bf16.xpose.msra.mxu0 0
        %1810 = vmatprep.subr.bf16.mxu0 0
        %1811 = vmatpush2.bf16.xpose.msra.mxu0 0
        %1812 = vmatprep.subr.bf16.mxu0 0
        %1813 = vmatpush2.bf16.xpose.msra.mxu0 0
        %1814 = vmatprep.subr.bf16.mxu0 0
        %1815 = vmatpush2.bf16.xpose.msra.mxu0 0
        %1816 = vmatprep.subr.bf16.mxu0 0
        %1817 = vmatpush2.bf16.xpose.msra.mxu0 0
        %1818 = vmatprep.subr.bf16.mxu0 0
        %1819 = vmatpush2.bf16.xpose.msra.mxu0 0
        %1820 = vmatprep.subr.bf16.mxu0 0
        %1821 = vmatpush2.bf16.xpose.msra.mxu0 0
        %1822 = vmatprep.subr.bf16.mxu0 0
        %1823 = vmatpush2.bf16.xpose.msra.mxu0 0
        %1824 = vmatprep.mubr.bf16.mxu0 0
        %1825 = vmatmul.mubr.bf16.gmra.mxu0 %v1787
        %v1826 = vpop.f32.mrf.mxu0
        %v1827 = vadd.f32 0.0, %v1826
        %v1828 = vpop.f32.mrf.mxu0
        %v1829 = vpop.f32.mrf.mxu0
        %v1830 = vpop.f32.mrf.mxu0
        %1831 = vdwg.mxu0
        %1833 = vrot.lane.b32.xlu0 %v1543, 96
        %v1834 = vpop.permute.xlu0 %1833
        %1836 = vrot.lane.b32.xlu0 %v1549, 96
        %v1837 = vpop.permute.xlu0 %1836
        %v1839 = vsel %vm1555, %v1834, 0
        %v1842 = vsel %vm1555, %v1837, 0
        %1844 = vmatprep.subr.bf16.mxu0 0
        %1845 = vmatpush1.bf16.xpose.msra.mxu0 0
        %1846 = vmatprep.subr.bf16.mxu0 0
        %1847 = vmatpush1.bf16.xpose.msra.mxu0 0
        %1848 = vmatprep.subr.bf16.mxu0 0
        %1849 = vmatpush1.bf16.xpose.msra.mxu0 0
        %1850 = vmatprep.subr.bf16.mxu0 0
        %1851 = vmatpush1.bf16.xpose.msra.mxu0 0
        %1852 = vmatprep.subr.bf16.mxu0 0
        %1853 = vmatpush1.bf16.xpose.msra.mxu0 0
        %1854 = vmatprep.subr.bf16.mxu0 0
        %1855 = vmatpush1.bf16.xpose.msra.mxu0 0
        %1856 = vmatprep.subr.bf16.mxu0 0
        %1857 = vmatpush1.bf16.xpose.msra.mxu0 0
        %1858 = vmatprep.subr.bf16.mxu0 0
        %1859 = vmatpush1.bf16.xpose.msra.mxu0 %v1842
        %1860 = vmatprep.subr.bf16.mxu0 0
        %1861 = vmatpush2.bf16.xpose.msra.mxu0 0
        %1862 = vmatprep.subr.bf16.mxu0 0
        %1863 = vmatpush2.bf16.xpose.msra.mxu0 0
        %1864 = vmatprep.subr.bf16.mxu0 0
        %1865 = vmatpush2.bf16.xpose.msra.mxu0 0
        %1866 = vmatprep.subr.bf16.mxu0 0
        %1867 = vmatpush2.bf16.xpose.msra.mxu0 0
        %1868 = vmatprep.subr.bf16.mxu0 0
        %1869 = vmatpush2.bf16.xpose.msra.mxu0 0
        %1870 = vmatprep.subr.bf16.mxu0 0
        %1871 = vmatpush2.bf16.xpose.msra.mxu0 0
        %1872 = vmatprep.subr.bf16.mxu0 0
        %1873 = vmatpush2.bf16.xpose.msra.mxu0 0
        %1874 = vmatprep.subr.bf16.mxu0 0
        %1875 = vmatpush2.bf16.xpose.msra.mxu0 0
        %1876 = vmatprep.mubr.bf16.mxu0 0
        %1877 = vmatmul.mubr.bf16.gmra.mxu0 %v1839
        %v1878 = vpop.f32.mrf.mxu0
        %v1879 = vadd.f32 0.0, %v1878
        %v1880 = vpop.f32.mrf.mxu0
        %v1881 = vpop.f32.mrf.mxu0
        %v1882 = vpop.f32.mrf.mxu0
        %1883 = vdwg.mxu0
        %1885 = vrot.lane.b32.xlu0 %v1544, 96
        %v1886 = vpop.permute.xlu0 %1885
        %1888 = vrot.lane.b32.xlu0 %v1550, 96
        %v1889 = vpop.permute.xlu0 %1888
        %v1891 = vsel %vm1555, %v1886, 0
        %v1894 = vsel %vm1555, %v1889, 0
        %1896 = vmatprep.subr.bf16.mxu0 0
        %1897 = vmatpush1.bf16.xpose.msra.mxu0 0
        %1898 = vmatprep.subr.bf16.mxu0 0
        %1899 = vmatpush1.bf16.xpose.msra.mxu0 0
        %1900 = vmatprep.subr.bf16.mxu0 0
        %1901 = vmatpush1.bf16.xpose.msra.mxu0 0
        %1902 = vmatprep.subr.bf16.mxu0 0
        %1903 = vmatpush1.bf16.xpose.msra.mxu0 0
        %1904 = vmatprep.subr.bf16.mxu0 0
        %1905 = vmatpush1.bf16.xpose.msra.mxu0 0
        %1906 = vmatprep.subr.bf16.mxu0 0
        %1907 = vmatpush1.bf16.xpose.msra.mxu0 0
        %1908 = vmatprep.subr.bf16.mxu0 0
        %1909 = vmatpush1.bf16.xpose.msra.mxu0 0
        %1910 = vmatprep.subr.bf16.mxu0 0
        %1911 = vmatpush1.bf16.xpose.msra.mxu0 %v1894
        %1912 = vmatprep.subr.bf16.mxu0 0
        %1913 = vmatpush2.bf16.xpose.msra.mxu0 0
        %1914 = vmatprep.subr.bf16.mxu0 0
        %1915 = vmatpush2.bf16.xpose.msra.mxu0 0
        %1916 = vmatprep.subr.bf16.mxu0 0
        %1917 = vmatpush2.bf16.xpose.msra.mxu0 0
        %1918 = vmatprep.subr.bf16.mxu0 0
        %1919 = vmatpush2.bf16.xpose.msra.mxu0 0
        %1920 = vmatprep.subr.bf16.mxu0 0
        %1921 = vmatpush2.bf16.xpose.msra.mxu0 0
        %1922 = vmatprep.subr.bf16.mxu0 0
        %1923 = vmatpush2.bf16.xpose.msra.mxu0 0
        %1924 = vmatprep.subr.bf16.mxu0 0
        %1925 = vmatpush2.bf16.xpose.msra.mxu0 0
        %1926 = vmatprep.subr.bf16.mxu0 0
        %1927 = vmatpush2.bf16.xpose.msra.mxu0 0
        %1928 = vmatprep.mubr.bf16.mxu0 0
        %1929 = vmatmul.mubr.bf16.gmra.mxu0 %v1891
        %v1930 = vpop.f32.mrf.mxu0
        %v1931 = vadd.f32 0.0, %v1930
        %v1932 = vpop.f32.mrf.mxu0
        %v1933 = vpop.f32.mrf.mxu0
        %v1934 = vpop.f32.mrf.mxu0
        %1935 = vdwg.mxu0
        %1937 = vrot.lane.b32.xlu0 %v1545, 96
        %v1938 = vpop.permute.xlu0 %1937
        %1940 = vrot.lane.b32.xlu0 %v1551, 96
        %v1941 = vpop.permute.xlu0 %1940
        %v1943 = vsel %vm1555, %v1938, 0
        %v1946 = vsel %vm1555, %v1941, 0
        %1948 = vmatprep.subr.bf16.mxu0 0
        %1949 = vmatpush1.bf16.xpose.msra.mxu0 0
        %1950 = vmatprep.subr.bf16.mxu0 0
        %1951 = vmatpush1.bf16.xpose.msra.mxu0 0
        %1952 = vmatprep.subr.bf16.mxu0 0
        %1953 = vmatpush1.bf16.xpose.msra.mxu0 0
        %1954 = vmatprep.subr.bf16.mxu0 0
        %1955 = vmatpush1.bf16.xpose.msra.mxu0 0
        %1956 = vmatprep.subr.bf16.mxu0 0
        %1957 = vmatpush1.bf16.xpose.msra.mxu0 0
        %1958 = vmatprep.subr.bf16.mxu0 0
        %1959 = vmatpush1.bf16.xpose.msra.mxu0 0
        %1960 = vmatprep.subr.bf16.mxu0 0
        %1961 = vmatpush1.bf16.xpose.msra.mxu0 0
        %1962 = vmatprep.subr.bf16.mxu0 0
        %1963 = vmatpush1.bf16.xpose.msra.mxu0 %v1946
        %1964 = vmatprep.subr.bf16.mxu0 0
        %1965 = vmatpush2.bf16.xpose.msra.mxu0 0
        %1966 = vmatprep.subr.bf16.mxu0 0
        %1967 = vmatpush2.bf16.xpose.msra.mxu0 0
        %1968 = vmatprep.subr.bf16.mxu0 0
        %1969 = vmatpush2.bf16.xpose.msra.mxu0 0
        %1970 = vmatprep.subr.bf16.mxu0 0
        %1971 = vmatpush2.bf16.xpose.msra.mxu0 0
        %1972 = vmatprep.subr.bf16.mxu0 0
        %1973 = vmatpush2.bf16.xpose.msra.mxu0 0
        %1974 = vmatprep.subr.bf16.mxu0 0
        %1975 = vmatpush2.bf16.xpose.msra.mxu0 0
        %1976 = vmatprep.subr.bf16.mxu0 0
        %1977 = vmatpush2.bf16.xpose.msra.mxu0 0
        %1978 = vmatprep.subr.bf16.mxu0 0
        %1979 = vmatpush2.bf16.xpose.msra.mxu0 0
        %1980 = vmatprep.mubr.bf16.mxu0 0
        %1981 = vmatmul.mubr.bf16.gmra.mxu0 %v1943
        %v1982 = vpop.f32.mrf.mxu0
        %v1983 = vadd.f32 0.0, %v1982
        %v1984 = vpop.f32.mrf.mxu0
        %v1985 = vpop.f32.mrf.mxu0
        %v1986 = vpop.f32.mrf.mxu0
        %1987 = vdwg.mxu0
        %1989 = vrot.lane.b32.xlu0 %v1546, 96
        %v1990 = vpop.permute.xlu0 %1989
        %1992 = vrot.lane.b32.xlu0 %v1552, 96
        %v1993 = vpop.permute.xlu0 %1992
        %v1995 = vsel %vm1555, %v1990, 0
        %v1998 = vsel %vm1555, %v1993, 0
        %2000 = vmatprep.subr.bf16.mxu0 0
        %2001 = vmatpush1.bf16.xpose.msra.mxu0 0
        %2002 = vmatprep.subr.bf16.mxu0 0
        %2003 = vmatpush1.bf16.xpose.msra.mxu0 0
        %2004 = vmatprep.subr.bf16.mxu0 0
        %2005 = vmatpush1.bf16.xpose.msra.mxu0 0
        %2006 = vmatprep.subr.bf16.mxu0 0
        %2007 = vmatpush1.bf16.xpose.msra.mxu0 0
        %2008 = vmatprep.subr.bf16.mxu0 0
        %2009 = vmatpush1.bf16.xpose.msra.mxu0 0
        %2010 = vmatprep.subr.bf16.mxu0 0
        %2011 = vmatpush1.bf16.xpose.msra.mxu0 0
        %2012 = vmatprep.subr.bf16.mxu0 0
        %2013 = vmatpush1.bf16.xpose.msra.mxu0 0
        %2014 = vmatprep.subr.bf16.mxu0 0
        %2015 = vmatpush1.bf16.xpose.msra.mxu0 %v1998
        %2016 = vmatprep.subr.bf16.mxu0 0
        %2017 = vmatpush2.bf16.xpose.msra.mxu0 0
        %2018 = vmatprep.subr.bf16.mxu0 0
        %2019 = vmatpush2.bf16.xpose.msra.mxu0 0
        %2020 = vmatprep.subr.bf16.mxu0 0
        %2021 = vmatpush2.bf16.xpose.msra.mxu0 0
        %2022 = vmatprep.subr.bf16.mxu0 0
        %2023 = vmatpush2.bf16.xpose.msra.mxu0 0
        %2024 = vmatprep.subr.bf16.mxu0 0
        %2025 = vmatpush2.bf16.xpose.msra.mxu0 0
        %2026 = vmatprep.subr.bf16.mxu0 0
        %2027 = vmatpush2.bf16.xpose.msra.mxu0 0
        %2028 = vmatprep.subr.bf16.mxu0 0
        %2029 = vmatpush2.bf16.xpose.msra.mxu0 0
        %2030 = vmatprep.subr.bf16.mxu0 0
        %2031 = vmatpush2.bf16.xpose.msra.mxu0 0
        %2032 = vmatprep.mubr.bf16.mxu0 0
        %2033 = vmatmul.mubr.bf16.gmra.mxu0 %v1995
        %v2034 = vpop.f32.mrf.mxu0
        %v2035 = vadd.f32 0.0, %v2034
        %v2036 = vpop.f32.mrf.mxu0
        %v2037 = vpop.f32.mrf.mxu0
        %v2038 = vpop.f32.mrf.mxu0
        %2039 = vdwg.mxu0
        %2041 = vrot.lane.b32.xlu0 %v1547, 96
        %v2042 = vpop.permute.xlu0 %2041
        %2044 = vrot.lane.b32.xlu0 %v1553, 96
        %v2045 = vpop.permute.xlu0 %2044
        %v2047 = vsel %vm1555, %v2042, 0
        %v2050 = vsel %vm1555, %v2045, 0
        %2052 = vmatprep.subr.bf16.mxu0 0
        %2053 = vmatpush1.bf16.xpose.msra.mxu0 0
        %2054 = vmatprep.subr.bf16.mxu0 0
        %2055 = vmatpush1.bf16.xpose.msra.mxu0 0
        %2056 = vmatprep.subr.bf16.mxu0 0
        %2057 = vmatpush1.bf16.xpose.msra.mxu0 0
        %2058 = vmatprep.subr.bf16.mxu0 0
        %2059 = vmatpush1.bf16.xpose.msra.mxu0 0
        %2060 = vmatprep.subr.bf16.mxu0 0
        %2061 = vmatpush1.bf16.xpose.msra.mxu0 0
        %2062 = vmatprep.subr.bf16.mxu0 0
        %2063 = vmatpush1.bf16.xpose.msra.mxu0 0
        %2064 = vmatprep.subr.bf16.mxu0 0
        %2065 = vmatpush1.bf16.xpose.msra.mxu0 0
        %2066 = vmatprep.subr.bf16.mxu0 0
        %2067 = vmatpush1.bf16.xpose.msra.mxu0 %v2050
        %2068 = vmatprep.subr.bf16.mxu0 0
        %2069 = vmatpush2.bf16.xpose.msra.mxu0 0
        %2070 = vmatprep.subr.bf16.mxu0 0
        %2071 = vmatpush2.bf16.xpose.msra.mxu0 0
        %2072 = vmatprep.subr.bf16.mxu0 0
        %2073 = vmatpush2.bf16.xpose.msra.mxu0 0
        %2074 = vmatprep.subr.bf16.mxu0 0
        %2075 = vmatpush2.bf16.xpose.msra.mxu0 0
        %2076 = vmatprep.subr.bf16.mxu0 0
        %2077 = vmatpush2.bf16.xpose.msra.mxu0 0
        %2078 = vmatprep.subr.bf16.mxu0 0
        %2079 = vmatpush2.bf16.xpose.msra.mxu0 0
        %2080 = vmatprep.subr.bf16.mxu0 0
        %2081 = vmatpush2.bf16.xpose.msra.mxu0 0
        %2082 = vmatprep.subr.bf16.mxu0 0
        %2083 = vmatpush2.bf16.xpose.msra.mxu0 0
        %2084 = vmatprep.mubr.bf16.mxu0 0
        %2085 = vmatmul.mubr.bf16.gmra.mxu0 %v2047
        %v2086 = vpop.f32.mrf.mxu0
        %v2087 = vadd.f32 0.0, %v2086
        %v2088 = vpop.f32.mrf.mxu0
        %v2089 = vpop.f32.mrf.mxu0
        %v2090 = vpop.f32.mrf.mxu0
        %2091 = vdwg.mxu0
        %2093 = vrot.lane.b32.xlu0 %v1548, 96
        %v2094 = vpop.permute.xlu0 %2093
        %2096 = vrot.lane.b32.xlu0 %v1554, 96
        %v2097 = vpop.permute.xlu0 %2096
        %v2099 = vsel %vm1555, %v2094, 0
        %v2102 = vsel %vm1555, %v2097, 0
        %2104 = vmatprep.subr.bf16.mxu0 0
        %2105 = vmatpush1.bf16.xpose.msra.mxu0 0
        %2106 = vmatprep.subr.bf16.mxu0 0
        %2107 = vmatpush1.bf16.xpose.msra.mxu0 0
        %2108 = vmatprep.subr.bf16.mxu0 0
        %2109 = vmatpush1.bf16.xpose.msra.mxu0 0
        %2110 = vmatprep.subr.bf16.mxu0 0
        %2111 = vmatpush1.bf16.xpose.msra.mxu0 0
        %2112 = vmatprep.subr.bf16.mxu0 0
        %2113 = vmatpush1.bf16.xpose.msra.mxu0 0
        %2114 = vmatprep.subr.bf16.mxu0 0
        %2115 = vmatpush1.bf16.xpose.msra.mxu0 0
        %2116 = vmatprep.subr.bf16.mxu0 0
        %2117 = vmatpush1.bf16.xpose.msra.mxu0 0
        %2118 = vmatprep.subr.bf16.mxu0 0
        %2119 = vmatpush1.bf16.xpose.msra.mxu0 %v2102
        %2120 = vmatprep.subr.bf16.mxu0 0
        %2121 = vmatpush2.bf16.xpose.msra.mxu0 0
        %2122 = vmatprep.subr.bf16.mxu0 0
        %2123 = vmatpush2.bf16.xpose.msra.mxu0 0
        %2124 = vmatprep.subr.bf16.mxu0 0
        %2125 = vmatpush2.bf16.xpose.msra.mxu0 0
        %2126 = vmatprep.subr.bf16.mxu0 0
        %2127 = vmatpush2.bf16.xpose.msra.mxu0 0
        %2128 = vmatprep.subr.bf16.mxu0 0
        %2129 = vmatpush2.bf16.xpose.msra.mxu0 0
        %2130 = vmatprep.subr.bf16.mxu0 0
        %2131 = vmatpush2.bf16.xpose.msra.mxu0 0
        %2132 = vmatprep.subr.bf16.mxu0 0
        %2133 = vmatpush2.bf16.xpose.msra.mxu0 0
        %2134 = vmatprep.subr.bf16.mxu0 0
        %2135 = vmatpush2.bf16.xpose.msra.mxu0 0
        %2136 = vmatprep.mubr.bf16.mxu0 0
        %2137 = vmatmul.mubr.bf16.gmra.mxu0 %v2099
        %v2138 = vpop.f32.mrf.mxu0
        %v2139 = vadd.f32 0.0, %v2138
        %v2140 = vpop.f32.mrf.mxu0
        %v2141 = vpop.f32.mrf.mxu0
        %v2142 = vpop.f32.mrf.mxu0
        %2143 = vdwg.mxu0
        %2144 = vrot.lane.b32.xlu0 %v1543, 64
        %v2145 = vpop.permute.xlu0 %2144
        %2146 = vrot.lane.b32.xlu0 %v1549, 64
        %v2147 = vpop.permute.xlu0 %2146
        %v2149 = vsel %vm1555, %v2145, 0
        %v2152 = vsel %vm1555, %v2147, 0
        %2154 = vmatprep.subr.bf16.mxu0 0
        %2155 = vmatpush1.bf16.xpose.msra.mxu0 0
        %2156 = vmatprep.subr.bf16.mxu0 0
        %2157 = vmatpush1.bf16.xpose.msra.mxu0 0
        %2158 = vmatprep.subr.bf16.mxu0 0
        %2159 = vmatpush1.bf16.xpose.msra.mxu0 0
        %2160 = vmatprep.subr.bf16.mxu0 0
        %2161 = vmatpush1.bf16.xpose.msra.mxu0 0
        %2162 = vmatprep.subr.bf16.mxu0 0
        %2163 = vmatpush1.bf16.xpose.msra.mxu0 0
        %2164 = vmatprep.subr.bf16.mxu0 0
        %2165 = vmatpush1.bf16.xpose.msra.mxu0 0
        %2166 = vmatprep.subr.bf16.mxu0 0
        %2167 = vmatpush1.bf16.xpose.msra.mxu0 0
        %2168 = vmatprep.subr.bf16.mxu0 0
        %2169 = vmatpush1.bf16.xpose.msra.mxu0 %v2152
        %2170 = vmatprep.subr.bf16.mxu0 0
        %2171 = vmatpush2.bf16.xpose.msra.mxu0 0
        %2172 = vmatprep.subr.bf16.mxu0 0
        %2173 = vmatpush2.bf16.xpose.msra.mxu0 0
        %2174 = vmatprep.subr.bf16.mxu0 0
        %2175 = vmatpush2.bf16.xpose.msra.mxu0 0
        %2176 = vmatprep.subr.bf16.mxu0 0
        %2177 = vmatpush2.bf16.xpose.msra.mxu0 0
        %2178 = vmatprep.subr.bf16.mxu0 0
        %2179 = vmatpush2.bf16.xpose.msra.mxu0 0
        %2180 = vmatprep.subr.bf16.mxu0 0
        %2181 = vmatpush2.bf16.xpose.msra.mxu0 0
        %2182 = vmatprep.subr.bf16.mxu0 0
        %2183 = vmatpush2.bf16.xpose.msra.mxu0 0
        %2184 = vmatprep.subr.bf16.mxu0 0
        %2185 = vmatpush2.bf16.xpose.msra.mxu0 0
        %2186 = vmatprep.mubr.bf16.mxu0 0
        %2187 = vmatmul.mubr.bf16.gmra.mxu0 %v2149
        %v2188 = vpop.f32.mrf.mxu0
        %v2189 = vadd.f32 0.0, %v2188
        %v2190 = vpop.f32.mrf.mxu0
        %v2191 = vpop.f32.mrf.mxu0
        %v2192 = vpop.f32.mrf.mxu0
        %2193 = vdwg.mxu0
        %2194 = vrot.lane.b32.xlu0 %v1544, 64
        %v2195 = vpop.permute.xlu0 %2194
        %2196 = vrot.lane.b32.xlu0 %v1550, 64
        %v2197 = vpop.permute.xlu0 %2196
        %v2199 = vsel %vm1555, %v2195, 0
        %v2202 = vsel %vm1555, %v2197, 0
        %2204 = vmatprep.subr.bf16.mxu0 0
        %2205 = vmatpush1.bf16.xpose.msra.mxu0 0
        %2206 = vmatprep.subr.bf16.mxu0 0
        %2207 = vmatpush1.bf16.xpose.msra.mxu0 0
        %2208 = vmatprep.subr.bf16.mxu0 0
        %2209 = vmatpush1.bf16.xpose.msra.mxu0 0
        %2210 = vmatprep.subr.bf16.mxu0 0
        %2211 = vmatpush1.bf16.xpose.msra.mxu0 0
        %2212 = vmatprep.subr.bf16.mxu0 0
        %2213 = vmatpush1.bf16.xpose.msra.mxu0 0
        %2214 = vmatprep.subr.bf16.mxu0 0
        %2215 = vmatpush1.bf16.xpose.msra.mxu0 0
        %2216 = vmatprep.subr.bf16.mxu0 0
        %2217 = vmatpush1.bf16.xpose.msra.mxu0 0
        %2218 = vmatprep.subr.bf16.mxu0 0
        %2219 = vmatpush1.bf16.xpose.msra.mxu0 %v2202
        %2220 = vmatprep.subr.bf16.mxu0 0
        %2221 = vmatpush2.bf16.xpose.msra.mxu0 0
        %2222 = vmatprep.subr.bf16.mxu0 0
        %2223 = vmatpush2.bf16.xpose.msra.mxu0 0
        %2224 = vmatprep.subr.bf16.mxu0 0
        %2225 = vmatpush2.bf16.xpose.msra.mxu0 0
        %2226 = vmatprep.subr.bf16.mxu0 0
        %2227 = vmatpush2.bf16.xpose.msra.mxu0 0
        %2228 = vmatprep.subr.bf16.mxu0 0
        %2229 = vmatpush2.bf16.xpose.msra.mxu0 0
        %2230 = vmatprep.subr.bf16.mxu0 0
        %2231 = vmatpush2.bf16.xpose.msra.mxu0 0
        %2232 = vmatprep.subr.bf16.mxu0 0
        %2233 = vmatpush2.bf16.xpose.msra.mxu0 0
        %2234 = vmatprep.subr.bf16.mxu0 0
        %2235 = vmatpush2.bf16.xpose.msra.mxu0 0
        %2236 = vmatprep.mubr.bf16.mxu0 0
        %2237 = vmatmul.mubr.bf16.gmra.mxu0 %v2199
        %v2238 = vpop.f32.mrf.mxu0
        %v2239 = vadd.f32 0.0, %v2238
        %v2240 = vpop.f32.mrf.mxu0
        %v2241 = vpop.f32.mrf.mxu0
        %v2242 = vpop.f32.mrf.mxu0
        %2243 = vdwg.mxu0
        %2244 = vrot.lane.b32.xlu0 %v1545, 64
        %v2245 = vpop.permute.xlu0 %2244
        %2246 = vrot.lane.b32.xlu0 %v1551, 64
        %v2247 = vpop.permute.xlu0 %2246
        %v2249 = vsel %vm1555, %v2245, 0
        %v2252 = vsel %vm1555, %v2247, 0
        %2254 = vmatprep.subr.bf16.mxu0 0
        %2255 = vmatpush1.bf16.xpose.msra.mxu0 0
        %2256 = vmatprep.subr.bf16.mxu0 0
        %2257 = vmatpush1.bf16.xpose.msra.mxu0 0
        %2258 = vmatprep.subr.bf16.mxu0 0
        %2259 = vmatpush1.bf16.xpose.msra.mxu0 0
        %2260 = vmatprep.subr.bf16.mxu0 0
        %2261 = vmatpush1.bf16.xpose.msra.mxu0 0
        %2262 = vmatprep.subr.bf16.mxu0 0
        %2263 = vmatpush1.bf16.xpose.msra.mxu0 0
        %2264 = vmatprep.subr.bf16.mxu0 0
        %2265 = vmatpush1.bf16.xpose.msra.mxu0 0
        %2266 = vmatprep.subr.bf16.mxu0 0
        %2267 = vmatpush1.bf16.xpose.msra.mxu0 0
        %2268 = vmatprep.subr.bf16.mxu0 0
        %2269 = vmatpush1.bf16.xpose.msra.mxu0 %v2252
        %2270 = vmatprep.subr.bf16.mxu0 0
        %2271 = vmatpush2.bf16.xpose.msra.mxu0 0
        %2272 = vmatprep.subr.bf16.mxu0 0
        %2273 = vmatpush2.bf16.xpose.msra.mxu0 0
        %2274 = vmatprep.subr.bf16.mxu0 0
        %2275 = vmatpush2.bf16.xpose.msra.mxu0 0
        %2276 = vmatprep.subr.bf16.mxu0 0
        %2277 = vmatpush2.bf16.xpose.msra.mxu0 0
        %2278 = vmatprep.subr.bf16.mxu0 0
        %2279 = vmatpush2.bf16.xpose.msra.mxu0 0
        %2280 = vmatprep.subr.bf16.mxu0 0
        %2281 = vmatpush2.bf16.xpose.msra.mxu0 0
        %2282 = vmatprep.subr.bf16.mxu0 0
        %2283 = vmatpush2.bf16.xpose.msra.mxu0 0
        %2284 = vmatprep.subr.bf16.mxu0 0
        %2285 = vmatpush2.bf16.xpose.msra.mxu0 0
        %2286 = vmatprep.mubr.bf16.mxu0 0
        %2287 = vmatmul.mubr.bf16.gmra.mxu0 %v2249
        %v2288 = vpop.f32.mrf.mxu0
        %v2289 = vadd.f32 0.0, %v2288
        %v2290 = vpop.f32.mrf.mxu0
        %v2291 = vpop.f32.mrf.mxu0
        %v2292 = vpop.f32.mrf.mxu0
        %2293 = vdwg.mxu0
        %2294 = vrot.lane.b32.xlu0 %v1546, 64
        %v2295 = vpop.permute.xlu0 %2294
        %2296 = vrot.lane.b32.xlu0 %v1552, 64
        %v2297 = vpop.permute.xlu0 %2296
        %v2299 = vsel %vm1555, %v2295, 0
        %v2302 = vsel %vm1555, %v2297, 0
        %2304 = vmatprep.subr.bf16.mxu0 0
        %2305 = vmatpush1.bf16.xpose.msra.mxu0 0
        %2306 = vmatprep.subr.bf16.mxu0 0
        %2307 = vmatpush1.bf16.xpose.msra.mxu0 0
        %2308 = vmatprep.subr.bf16.mxu0 0
        %2309 = vmatpush1.bf16.xpose.msra.mxu0 0
        %2310 = vmatprep.subr.bf16.mxu0 0
        %2311 = vmatpush1.bf16.xpose.msra.mxu0 0
        %2312 = vmatprep.subr.bf16.mxu0 0
        %2313 = vmatpush1.bf16.xpose.msra.mxu0 0
        %2314 = vmatprep.subr.bf16.mxu0 0
        %2315 = vmatpush1.bf16.xpose.msra.mxu0 0
        %2316 = vmatprep.subr.bf16.mxu0 0
        %2317 = vmatpush1.bf16.xpose.msra.mxu0 0
        %2318 = vmatprep.subr.bf16.mxu0 0
        %2319 = vmatpush1.bf16.xpose.msra.mxu0 %v2302
        %2320 = vmatprep.subr.bf16.mxu0 0
        %2321 = vmatpush2.bf16.xpose.msra.mxu0 0
        %2322 = vmatprep.subr.bf16.mxu0 0
        %2323 = vmatpush2.bf16.xpose.msra.mxu0 0
        %2324 = vmatprep.subr.bf16.mxu0 0
        %2325 = vmatpush2.bf16.xpose.msra.mxu0 0
        %2326 = vmatprep.subr.bf16.mxu0 0
        %2327 = vmatpush2.bf16.xpose.msra.mxu0 0
        %2328 = vmatprep.subr.bf16.mxu0 0
        %2329 = vmatpush2.bf16.xpose.msra.mxu0 0
        %2330 = vmatprep.subr.bf16.mxu0 0
        %2331 = vmatpush2.bf16.xpose.msra.mxu0 0
        %2332 = vmatprep.subr.bf16.mxu0 0
        %2333 = vmatpush2.bf16.xpose.msra.mxu0 0
        %2334 = vmatprep.subr.bf16.mxu0 0
        %2335 = vmatpush2.bf16.xpose.msra.mxu0 0
        %2336 = vmatprep.mubr.bf16.mxu0 0
        %2337 = vmatmul.mubr.bf16.gmra.mxu0 %v2299
        %v2338 = vpop.f32.mrf.mxu0
        %v2339 = vadd.f32 0.0, %v2338
        %v2340 = vpop.f32.mrf.mxu0
        %v2341 = vpop.f32.mrf.mxu0
        %v2342 = vpop.f32.mrf.mxu0
        %2343 = vdwg.mxu0
        %2344 = vrot.lane.b32.xlu0 %v1547, 64
        %v2345 = vpop.permute.xlu0 %2344
        %2346 = vrot.lane.b32.xlu0 %v1553, 64
        %v2347 = vpop.permute.xlu0 %2346
        %v2349 = vsel %vm1555, %v2345, 0
        %v2352 = vsel %vm1555, %v2347, 0
        %2354 = vmatprep.subr.bf16.mxu0 0
        %2355 = vmatpush1.bf16.xpose.msra.mxu0 0
        %2356 = vmatprep.subr.bf16.mxu0 0
        %2357 = vmatpush1.bf16.xpose.msra.mxu0 0
        %2358 = vmatprep.subr.bf16.mxu0 0
        %2359 = vmatpush1.bf16.xpose.msra.mxu0 0
        %2360 = vmatprep.subr.bf16.mxu0 0
        %2361 = vmatpush1.bf16.xpose.msra.mxu0 0
        %2362 = vmatprep.subr.bf16.mxu0 0
        %2363 = vmatpush1.bf16.xpose.msra.mxu0 0
        %2364 = vmatprep.subr.bf16.mxu0 0
        %2365 = vmatpush1.bf16.xpose.msra.mxu0 0
        %2366 = vmatprep.subr.bf16.mxu0 0
        %2367 = vmatpush1.bf16.xpose.msra.mxu0 0
        %2368 = vmatprep.subr.bf16.mxu0 0
        %2369 = vmatpush1.bf16.xpose.msra.mxu0 %v2352
        %2370 = vmatprep.subr.bf16.mxu0 0
        %2371 = vmatpush2.bf16.xpose.msra.mxu0 0
        %2372 = vmatprep.subr.bf16.mxu0 0
        %2373 = vmatpush2.bf16.xpose.msra.mxu0 0
        %2374 = vmatprep.subr.bf16.mxu0 0
        %2375 = vmatpush2.bf16.xpose.msra.mxu0 0
        %2376 = vmatprep.subr.bf16.mxu0 0
        %2377 = vmatpush2.bf16.xpose.msra.mxu0 0
        %2378 = vmatprep.subr.bf16.mxu0 0
        %2379 = vmatpush2.bf16.xpose.msra.mxu0 0
        %2380 = vmatprep.subr.bf16.mxu0 0
        %2381 = vmatpush2.bf16.xpose.msra.mxu0 0
        %2382 = vmatprep.subr.bf16.mxu0 0
        %2383 = vmatpush2.bf16.xpose.msra.mxu0 0
        %2384 = vmatprep.subr.bf16.mxu0 0
        %2385 = vmatpush2.bf16.xpose.msra.mxu0 0
        %2386 = vmatprep.mubr.bf16.mxu0 0
        %2387 = vmatmul.mubr.bf16.gmra.mxu0 %v2349
        %v2388 = vpop.f32.mrf.mxu0
        %v2389 = vadd.f32 0.0, %v2388
        %v2390 = vpop.f32.mrf.mxu0
        %v2391 = vpop.f32.mrf.mxu0
        %v2392 = vpop.f32.mrf.mxu0
        %2393 = vdwg.mxu0
        %2394 = vrot.lane.b32.xlu0 %v1548, 64
        %v2395 = vpop.permute.xlu0 %2394
        %2396 = vrot.lane.b32.xlu0 %v1554, 64
        %v2397 = vpop.permute.xlu0 %2396
        %v2399 = vsel %vm1555, %v2395, 0
        %v2402 = vsel %vm1555, %v2397, 0
        %2404 = vmatprep.subr.bf16.mxu0 0
        %2405 = vmatpush1.bf16.xpose.msra.mxu0 0
        %2406 = vmatprep.subr.bf16.mxu0 0
        %2407 = vmatpush1.bf16.xpose.msra.mxu0 0
        %2408 = vmatprep.subr.bf16.mxu0 0
        %2409 = vmatpush1.bf16.xpose.msra.mxu0 0
        %2410 = vmatprep.subr.bf16.mxu0 0
        %2411 = vmatpush1.bf16.xpose.msra.mxu0 0
        %2412 = vmatprep.subr.bf16.mxu0 0
        %2413 = vmatpush1.bf16.xpose.msra.mxu0 0
        %2414 = vmatprep.subr.bf16.mxu0 0
        %2415 = vmatpush1.bf16.xpose.msra.mxu0 0
        %2416 = vmatprep.subr.bf16.mxu0 0
        %2417 = vmatpush1.bf16.xpose.msra.mxu0 0
        %2418 = vmatprep.subr.bf16.mxu0 0
        %2419 = vmatpush1.bf16.xpose.msra.mxu0 %v2402
        %2420 = vmatprep.subr.bf16.mxu0 0
        %2421 = vmatpush2.bf16.xpose.msra.mxu0 0
        %2422 = vmatprep.subr.bf16.mxu0 0
        %2423 = vmatpush2.bf16.xpose.msra.mxu0 0
        %2424 = vmatprep.subr.bf16.mxu0 0
        %2425 = vmatpush2.bf16.xpose.msra.mxu0 0
        %2426 = vmatprep.subr.bf16.mxu0 0
        %2427 = vmatpush2.bf16.xpose.msra.mxu0 0
        %2428 = vmatprep.subr.bf16.mxu0 0
        %2429 = vmatpush2.bf16.xpose.msra.mxu0 0
        %2430 = vmatprep.subr.bf16.mxu0 0
        %2431 = vmatpush2.bf16.xpose.msra.mxu0 0
        %2432 = vmatprep.subr.bf16.mxu0 0
        %2433 = vmatpush2.bf16.xpose.msra.mxu0 0
        %2434 = vmatprep.subr.bf16.mxu0 0
        %2435 = vmatpush2.bf16.xpose.msra.mxu0 0
        %2436 = vmatprep.mubr.bf16.mxu0 0
        %2437 = vmatmul.mubr.bf16.gmra.mxu0 %v2399
        %v2438 = vpop.f32.mrf.mxu0
        %v2439 = vadd.f32 0.0, %v2438
        %v2440 = vpop.f32.mrf.mxu0
        %v2441 = vpop.f32.mrf.mxu0
        %v2442 = vpop.f32.mrf.mxu0
        %2443 = vdwg.mxu0
        %2444 = vrot.lane.b32.xlu0 %v1543, 32
        %v2445 = vpop.permute.xlu0 %2444
        %2446 = vrot.lane.b32.xlu0 %v1549, 32
        %v2447 = vpop.permute.xlu0 %2446
        %v2449 = vsel %vm1555, %v2445, 0
        %v2452 = vsel %vm1555, %v2447, 0
        %2454 = vmatprep.subr.bf16.mxu0 0
        %2455 = vmatpush1.bf16.xpose.msra.mxu0 0
        %2456 = vmatprep.subr.bf16.mxu0 0
        %2457 = vmatpush1.bf16.xpose.msra.mxu0 0
        %2458 = vmatprep.subr.bf16.mxu0 0
        %2459 = vmatpush1.bf16.xpose.msra.mxu0 0
        %2460 = vmatprep.subr.bf16.mxu0 0
        %2461 = vmatpush1.bf16.xpose.msra.mxu0 0
        %2462 = vmatprep.subr.bf16.mxu0 0
        %2463 = vmatpush1.bf16.xpose.msra.mxu0 0
        %2464 = vmatprep.subr.bf16.mxu0 0
        %2465 = vmatpush1.bf16.xpose.msra.mxu0 0
        %2466 = vmatprep.subr.bf16.mxu0 0
        %2467 = vmatpush1.bf16.xpose.msra.mxu0 0
        %2468 = vmatprep.subr.bf16.mxu0 0
        %2469 = vmatpush1.bf16.xpose.msra.mxu0 %v2452
        %2470 = vmatprep.subr.bf16.mxu0 0
        %2471 = vmatpush2.bf16.xpose.msra.mxu0 0
        %2472 = vmatprep.subr.bf16.mxu0 0
        %2473 = vmatpush2.bf16.xpose.msra.mxu0 0
        %2474 = vmatprep.subr.bf16.mxu0 0
        %2475 = vmatpush2.bf16.xpose.msra.mxu0 0
        %2476 = vmatprep.subr.bf16.mxu0 0
        %2477 = vmatpush2.bf16.xpose.msra.mxu0 0
        %2478 = vmatprep.subr.bf16.mxu0 0
        %2479 = vmatpush2.bf16.xpose.msra.mxu0 0
        %2480 = vmatprep.subr.bf16.mxu0 0
        %2481 = vmatpush2.bf16.xpose.msra.mxu0 0
        %2482 = vmatprep.subr.bf16.mxu0 0
        %2483 = vmatpush2.bf16.xpose.msra.mxu0 0
        %2484 = vmatprep.subr.bf16.mxu0 0
        %2485 = vmatpush2.bf16.xpose.msra.mxu0 0
        %2486 = vmatprep.mubr.bf16.mxu0 0
        %2487 = vmatmul.mubr.bf16.gmra.mxu0 %v2449
        %v2488 = vpop.f32.mrf.mxu0
        %v2489 = vadd.f32 0.0, %v2488
        %v2490 = vpop.f32.mrf.mxu0
        %v2491 = vpop.f32.mrf.mxu0
        %v2492 = vpop.f32.mrf.mxu0
        %2493 = vdwg.mxu0
        %2494 = vrot.lane.b32.xlu0 %v1544, 32
        %v2495 = vpop.permute.xlu0 %2494
        %2496 = vrot.lane.b32.xlu0 %v1550, 32
        %v2497 = vpop.permute.xlu0 %2496
        %v2499 = vsel %vm1555, %v2495, 0
        %v2502 = vsel %vm1555, %v2497, 0
        %2504 = vmatprep.subr.bf16.mxu0 0
        %2505 = vmatpush1.bf16.xpose.msra.mxu0 0
        %2506 = vmatprep.subr.bf16.mxu0 0
        %2507 = vmatpush1.bf16.xpose.msra.mxu0 0
        %2508 = vmatprep.subr.bf16.mxu0 0
        %2509 = vmatpush1.bf16.xpose.msra.mxu0 0
        %2510 = vmatprep.subr.bf16.mxu0 0
        %2511 = vmatpush1.bf16.xpose.msra.mxu0 0
        %2512 = vmatprep.subr.bf16.mxu0 0
        %2513 = vmatpush1.bf16.xpose.msra.mxu0 0
        %2514 = vmatprep.subr.bf16.mxu0 0
        %2515 = vmatpush1.bf16.xpose.msra.mxu0 0
        %2516 = vmatprep.subr.bf16.mxu0 0
        %2517 = vmatpush1.bf16.xpose.msra.mxu0 0
        %2518 = vmatprep.subr.bf16.mxu0 0
        %2519 = vmatpush1.bf16.xpose.msra.mxu0 %v2502
        %2520 = vmatprep.subr.bf16.mxu0 0
        %2521 = vmatpush2.bf16.xpose.msra.mxu0 0
        %2522 = vmatprep.subr.bf16.mxu0 0
        %2523 = vmatpush2.bf16.xpose.msra.mxu0 0
        %2524 = vmatprep.subr.bf16.mxu0 0
        %2525 = vmatpush2.bf16.xpose.msra.mxu0 0
        %2526 = vmatprep.subr.bf16.mxu0 0
        %2527 = vmatpush2.bf16.xpose.msra.mxu0 0
        %2528 = vmatprep.subr.bf16.mxu0 0
        %2529 = vmatpush2.bf16.xpose.msra.mxu0 0
        %2530 = vmatprep.subr.bf16.mxu0 0
        %2531 = vmatpush2.bf16.xpose.msra.mxu0 0
        %2532 = vmatprep.subr.bf16.mxu0 0
        %2533 = vmatpush2.bf16.xpose.msra.mxu0 0
        %2534 = vmatprep.subr.bf16.mxu0 0
        %2535 = vmatpush2.bf16.xpose.msra.mxu0 0
        %2536 = vmatprep.mubr.bf16.mxu0 0
        %2537 = vmatmul.mubr.bf16.gmra.mxu0 %v2499
        %v2538 = vpop.f32.mrf.mxu0
        %v2539 = vadd.f32 0.0, %v2538
        %v2540 = vpop.f32.mrf.mxu0
        %v2541 = vpop.f32.mrf.mxu0
        %v2542 = vpop.f32.mrf.mxu0
        %2543 = vdwg.mxu0
        %2544 = vrot.lane.b32.xlu0 %v1545, 32
        %v2545 = vpop.permute.xlu0 %2544
        %2546 = vrot.lane.b32.xlu0 %v1551, 32
        %v2547 = vpop.permute.xlu0 %2546
        %v2549 = vsel %vm1555, %v2545, 0
        %v2552 = vsel %vm1555, %v2547, 0
        %2554 = vmatprep.subr.bf16.mxu0 0
        %2555 = vmatpush1.bf16.xpose.msra.mxu0 0
        %2556 = vmatprep.subr.bf16.mxu0 0
        %2557 = vmatpush1.bf16.xpose.msra.mxu0 0
        %2558 = vmatprep.subr.bf16.mxu0 0
        %2559 = vmatpush1.bf16.xpose.msra.mxu0 0
        %2560 = vmatprep.subr.bf16.mxu0 0
        %2561 = vmatpush1.bf16.xpose.msra.mxu0 0
        %2562 = vmatprep.subr.bf16.mxu0 0
        %2563 = vmatpush1.bf16.xpose.msra.mxu0 0
        %2564 = vmatprep.subr.bf16.mxu0 0
        %2565 = vmatpush1.bf16.xpose.msra.mxu0 0
        %2566 = vmatprep.subr.bf16.mxu0 0
        %2567 = vmatpush1.bf16.xpose.msra.mxu0 0
        %2568 = vmatprep.subr.bf16.mxu0 0
        %2569 = vmatpush1.bf16.xpose.msra.mxu0 %v2552
        %2570 = vmatprep.subr.bf16.mxu0 0
        %2571 = vmatpush2.bf16.xpose.msra.mxu0 0
        %2572 = vmatprep.subr.bf16.mxu0 0
        %2573 = vmatpush2.bf16.xpose.msra.mxu0 0
        %2574 = vmatprep.subr.bf16.mxu0 0
        %2575 = vmatpush2.bf16.xpose.msra.mxu0 0
        %2576 = vmatprep.subr.bf16.mxu0 0
        %2577 = vmatpush2.bf16.xpose.msra.mxu0 0
        %2578 = vmatprep.subr.bf16.mxu0 0
        %2579 = vmatpush2.bf16.xpose.msra.mxu0 0
        %2580 = vmatprep.subr.bf16.mxu0 0
        %2581 = vmatpush2.bf16.xpose.msra.mxu0 0
        %2582 = vmatprep.subr.bf16.mxu0 0
        %2583 = vmatpush2.bf16.xpose.msra.mxu0 0
        %2584 = vmatprep.subr.bf16.mxu0 0
        %2585 = vmatpush2.bf16.xpose.msra.mxu0 0
        %2586 = vmatprep.mubr.bf16.mxu0 0
        %2587 = vmatmul.mubr.bf16.gmra.mxu0 %v2549
        %v2588 = vpop.f32.mrf.mxu0
        %v2589 = vadd.f32 0.0, %v2588
        %v2590 = vpop.f32.mrf.mxu0
        %v2591 = vpop.f32.mrf.mxu0
        %v2592 = vpop.f32.mrf.mxu0
        %2593 = vdwg.mxu0
        %2594 = vrot.lane.b32.xlu0 %v1546, 32
        %v2595 = vpop.permute.xlu0 %2594
        %2596 = vrot.lane.b32.xlu0 %v1552, 32
        %v2597 = vpop.permute.xlu0 %2596
        %v2599 = vsel %vm1555, %v2595, 0
        %v2602 = vsel %vm1555, %v2597, 0
        %2604 = vmatprep.subr.bf16.mxu0 0
        %2605 = vmatpush1.bf16.xpose.msra.mxu0 0
        %2606 = vmatprep.subr.bf16.mxu0 0
        %2607 = vmatpush1.bf16.xpose.msra.mxu0 0
        %2608 = vmatprep.subr.bf16.mxu0 0
        %2609 = vmatpush1.bf16.xpose.msra.mxu0 0
        %2610 = vmatprep.subr.bf16.mxu0 0
        %2611 = vmatpush1.bf16.xpose.msra.mxu0 0
        %2612 = vmatprep.subr.bf16.mxu0 0
        %2613 = vmatpush1.bf16.xpose.msra.mxu0 0
        %2614 = vmatprep.subr.bf16.mxu0 0
        %2615 = vmatpush1.bf16.xpose.msra.mxu0 0
        %2616 = vmatprep.subr.bf16.mxu0 0
        %2617 = vmatpush1.bf16.xpose.msra.mxu0 0
        %2618 = vmatprep.subr.bf16.mxu0 0
        %2619 = vmatpush1.bf16.xpose.msra.mxu0 %v2602
        %2620 = vmatprep.subr.bf16.mxu0 0
        %2621 = vmatpush2.bf16.xpose.msra.mxu0 0
        %2622 = vmatprep.subr.bf16.mxu0 0
        %2623 = vmatpush2.bf16.xpose.msra.mxu0 0
        %2624 = vmatprep.subr.bf16.mxu0 0
        %2625 = vmatpush2.bf16.xpose.msra.mxu0 0
        %2626 = vmatprep.subr.bf16.mxu0 0
        %2627 = vmatpush2.bf16.xpose.msra.mxu0 0
        %2628 = vmatprep.subr.bf16.mxu0 0
        %2629 = vmatpush2.bf16.xpose.msra.mxu0 0
        %2630 = vmatprep.subr.bf16.mxu0 0
        %2631 = vmatpush2.bf16.xpose.msra.mxu0 0
        %2632 = vmatprep.subr.bf16.mxu0 0
        %2633 = vmatpush2.bf16.xpose.msra.mxu0 0
        %2634 = vmatprep.subr.bf16.mxu0 0
        %2635 = vmatpush2.bf16.xpose.msra.mxu0 0
        %2636 = vmatprep.mubr.bf16.mxu0 0
        %2637 = vmatmul.mubr.bf16.gmra.mxu0 %v2599
        %v2638 = vpop.f32.mrf.mxu0
        %v2639 = vadd.f32 0.0, %v2638
        %v2640 = vpop.f32.mrf.mxu0
        %v2641 = vpop.f32.mrf.mxu0
        %v2642 = vpop.f32.mrf.mxu0
        %2643 = vdwg.mxu0
        %2644 = vrot.lane.b32.xlu0 %v1547, 32
        %v2645 = vpop.permute.xlu0 %2644
        %2646 = vrot.lane.b32.xlu0 %v1553, 32
        %v2647 = vpop.permute.xlu0 %2646
        %v2649 = vsel %vm1555, %v2645, 0
        %v2652 = vsel %vm1555, %v2647, 0
        %2654 = vmatprep.subr.bf16.mxu0 0
        %2655 = vmatpush1.bf16.xpose.msra.mxu0 0
        %2656 = vmatprep.subr.bf16.mxu0 0
        %2657 = vmatpush1.bf16.xpose.msra.mxu0 0
        %2658 = vmatprep.subr.bf16.mxu0 0
        %2659 = vmatpush1.bf16.xpose.msra.mxu0 0
        %2660 = vmatprep.subr.bf16.mxu0 0
        %2661 = vmatpush1.bf16.xpose.msra.mxu0 0
        %2662 = vmatprep.subr.bf16.mxu0 0
        %2663 = vmatpush1.bf16.xpose.msra.mxu0 0
        %2664 = vmatprep.subr.bf16.mxu0 0
        %2665 = vmatpush1.bf16.xpose.msra.mxu0 0
        %2666 = vmatprep.subr.bf16.mxu0 0
        %2667 = vmatpush1.bf16.xpose.msra.mxu0 0
        %2668 = vmatprep.subr.bf16.mxu0 0
        %2669 = vmatpush1.bf16.xpose.msra.mxu0 %v2652
        %2670 = vmatprep.subr.bf16.mxu0 0
        %2671 = vmatpush2.bf16.xpose.msra.mxu0 0
        %2672 = vmatprep.subr.bf16.mxu0 0
        %2673 = vmatpush2.bf16.xpose.msra.mxu0 0
        %2674 = vmatprep.subr.bf16.mxu0 0
        %2675 = vmatpush2.bf16.xpose.msra.mxu0 0
        %2676 = vmatprep.subr.bf16.mxu0 0
        %2677 = vmatpush2.bf16.xpose.msra.mxu0 0
        %2678 = vmatprep.subr.bf16.mxu0 0
        %2679 = vmatpush2.bf16.xpose.msra.mxu0 0
        %2680 = vmatprep.subr.bf16.mxu0 0
        %2681 = vmatpush2.bf16.xpose.msra.mxu0 0
        %2682 = vmatprep.subr.bf16.mxu0 0
        %2683 = vmatpush2.bf16.xpose.msra.mxu0 0
        %2684 = vmatprep.subr.bf16.mxu0 0
        %2685 = vmatpush2.bf16.xpose.msra.mxu0 0
        %2686 = vmatprep.mubr.bf16.mxu0 0
        %2687 = vmatmul.mubr.bf16.gmra.mxu0 %v2649
        %v2688 = vpop.f32.mrf.mxu0
        %v2689 = vadd.f32 0.0, %v2688
        %v2690 = vpop.f32.mrf.mxu0
        %v2691 = vpop.f32.mrf.mxu0
        %v2692 = vpop.f32.mrf.mxu0
        %2693 = vdwg.mxu0
        %2694 = vrot.lane.b32.xlu0 %v1548, 32
        %v2695 = vpop.permute.xlu0 %2694
        %2696 = vrot.lane.b32.xlu0 %v1554, 32
        %v2697 = vpop.permute.xlu0 %2696
        %v2699 = vsel %vm1555, %v2695, 0
        %v2702 = vsel %vm1555, %v2697, 0
        %2704 = vmatprep.subr.bf16.mxu0 0
        %2705 = vmatpush1.bf16.xpose.msra.mxu0 0
        %2706 = vmatprep.subr.bf16.mxu0 0
        %2707 = vmatpush1.bf16.xpose.msra.mxu0 0
        %2708 = vmatprep.subr.bf16.mxu0 0
        %2709 = vmatpush1.bf16.xpose.msra.mxu0 0
        %2710 = vmatprep.subr.bf16.mxu0 0
        %2711 = vmatpush1.bf16.xpose.msra.mxu0 0
        %2712 = vmatprep.subr.bf16.mxu0 0
        %2713 = vmatpush1.bf16.xpose.msra.mxu0 0
        %2714 = vmatprep.subr.bf16.mxu0 0
        %2715 = vmatpush1.bf16.xpose.msra.mxu0 0
        %2716 = vmatprep.subr.bf16.mxu0 0
        %2717 = vmatpush1.bf16.xpose.msra.mxu0 0
        %2718 = vmatprep.subr.bf16.mxu0 0
        %2719 = vmatpush1.bf16.xpose.msra.mxu0 %v2702
        %2720 = vmatprep.subr.bf16.mxu0 0
        %2721 = vmatpush2.bf16.xpose.msra.mxu0 0
        %2722 = vmatprep.subr.bf16.mxu0 0
        %2723 = vmatpush2.bf16.xpose.msra.mxu0 0
        %2724 = vmatprep.subr.bf16.mxu0 0
        %2725 = vmatpush2.bf16.xpose.msra.mxu0 0
        %2726 = vmatprep.subr.bf16.mxu0 0
        %2727 = vmatpush2.bf16.xpose.msra.mxu0 0
        %2728 = vmatprep.subr.bf16.mxu0 0
        %2729 = vmatpush2.bf16.xpose.msra.mxu0 0
        %2730 = vmatprep.subr.bf16.mxu0 0
        %2731 = vmatpush2.bf16.xpose.msra.mxu0 0
        %2732 = vmatprep.subr.bf16.mxu0 0
        %2733 = vmatpush2.bf16.xpose.msra.mxu0 0
        %2734 = vmatprep.subr.bf16.mxu0 0
        %2735 = vmatpush2.bf16.xpose.msra.mxu0 0
        %2736 = vmatprep.mubr.bf16.mxu0 0
        %2737 = vmatmul.mubr.bf16.gmra.mxu0 %v2699
        %v2738 = vpop.f32.mrf.mxu0
        %v2739 = vadd.f32 0.0, %v2738
        %v2740 = vpop.f32.mrf.mxu0
        %v2741 = vpop.f32.mrf.mxu0
        %v2742 = vpop.f32.mrf.mxu0
        %2743 = vdwg.mxu0
        %v2744 = vmul.f32 %v1597, 0.17677669
        %v2745 = vmul.f32 %v1879, 0.17677669
        %v2746 = vmul.f32 %v2189, 0.17677669
        %v2747 = vmul.f32 %v2489, 0.17677669
        %v2748 = vmul.f32 %v1643, 0.17677669
        %v2749 = vmul.f32 %v1931, 0.17677669
        %v2750 = vmul.f32 %v2239, 0.17677669
        %v2751 = vmul.f32 %v2539, 0.17677669
        %v2752 = vmul.f32 %v1689, 0.17677669
        %v2753 = vmul.f32 %v1983, 0.17677669
        %v2754 = vmul.f32 %v2289, 0.17677669
        %v2755 = vmul.f32 %v2589, 0.17677669
        %v2756 = vmul.f32 %v1735, 0.17677669
        %v2757 = vmul.f32 %v2035, 0.17677669
        %v2758 = vmul.f32 %v2339, 0.17677669
        %v2759 = vmul.f32 %v2639, 0.17677669
        %v2760 = vmul.f32 %v1781, 0.17677669
        %v2761 = vmul.f32 %v2087, 0.17677669
        %v2762 = vmul.f32 %v2389, 0.17677669
        %v2763 = vmul.f32 %v2689, 0.17677669
        %v2764 = vmul.f32 %v1827, 0.17677669
        %v2765 = vmul.f32 %v2139, 0.17677669
        %v2766 = vmul.f32 %v2439, 0.17677669
        %v2767 = vmul.f32 %v2739, 0.17677669
        %v2768 = vadd.f32 %v2744, %v1144
        %v2769 = vadd.f32 %v2745, %v1144
        %v2770 = vadd.f32 %v2746, %v1144
        %v2771 = vadd.f32 %v2747, %v1144
        %v2772 = vadd.f32 %v2748, %v1145
        %v2773 = vadd.f32 %v2749, %v1145
        %v2774 = vadd.f32 %v2750, %v1145
        %v2775 = vadd.f32 %v2751, %v1145
        %v2776 = vadd.f32 %v2752, %v1146
        %v2777 = vadd.f32 %v2753, %v1146
        %v2778 = vadd.f32 %v2754, %v1146
        %v2779 = vadd.f32 %v2755, %v1146
        %v2780 = vadd.f32 %v2756, %v1147
        %v2781 = vadd.f32 %v2757, %v1147
        %v2782 = vadd.f32 %v2758, %v1147
        %v2783 = vadd.f32 %v2759, %v1147
        %v2784 = vadd.f32 %v2760, %v1148
        %v2785 = vadd.f32 %v2761, %v1148
        %v2786 = vadd.f32 %v2762, %v1148
        %v2787 = vadd.f32 %v2763, %v1148
        %v2788 = vadd.f32 %v2764, %v1149
        %v2789 = vadd.f32 %v2765, %v1149
        %v2790 = vadd.f32 %v2766, %v1149
        %v2791 = vadd.f32 %v2767, %v1149
        %vm2792 = vcmask 64512
        %v2793 = vsel %vm2792, %v2768, -inf
        %2794 = vmax.xlane.f32.xlu0 %v2793
        %v2795 = vpop.xlane.xlu0 %2794
        %v2796 = vsel %vm2792, %v2769, -inf
        %2797 = vmax.xlane.f32.xlu0 %v2796
        %v2798 = vpop.xlane.xlu0 %2797
        %v2799 = vsel %vm2792, %v2770, -inf
        %2800 = vmax.xlane.f32.xlu0 %v2799
        %v2801 = vpop.xlane.xlu0 %2800
        %v2802 = vsel %vm2792, %v2771, -inf
        %2803 = vmax.xlane.f32.xlu0 %v2802
        %v2804 = vpop.xlane.xlu0 %2803
        %v2805 = vsel %vm2792, %v2772, -inf
        %2806 = vmax.xlane.f32.xlu0 %v2805
        %v2807 = vpop.xlane.xlu0 %2806
        %v2808 = vsel %vm2792, %v2773, -inf
        %2809 = vmax.xlane.f32.xlu0 %v2808
        %v2810 = vpop.xlane.xlu0 %2809
        %v2811 = vsel %vm2792, %v2774, -inf
        %2812 = vmax.xlane.f32.xlu0 %v2811
        %v2813 = vpop.xlane.xlu0 %2812
        %v2814 = vsel %vm2792, %v2775, -inf
        %2815 = vmax.xlane.f32.xlu0 %v2814
        %v2816 = vpop.xlane.xlu0 %2815
        %v2817 = vsel %vm2792, %v2776, -inf
        %2818 = vmax.xlane.f32.xlu0 %v2817
        %v2819 = vpop.xlane.xlu0 %2818
        %v2820 = vsel %vm2792, %v2777, -inf
        %2821 = vmax.xlane.f32.xlu0 %v2820
        %v2822 = vpop.xlane.xlu0 %2821
        %v2823 = vsel %vm2792, %v2778, -inf
        %2824 = vmax.xlane.f32.xlu0 %v2823
        %v2825 = vpop.xlane.xlu0 %2824
        %v2826 = vsel %vm2792, %v2779, -inf
        %2827 = vmax.xlane.f32.xlu0 %v2826
        %v2828 = vpop.xlane.xlu0 %2827
        %v2829 = vsel %vm2792, %v2780, -inf
        %2830 = vmax.xlane.f32.xlu0 %v2829
        %v2831 = vpop.xlane.xlu0 %2830
        %v2832 = vsel %vm2792, %v2781, -inf
        %2833 = vmax.xlane.f32.xlu0 %v2832
        %v2834 = vpop.xlane.xlu0 %2833
        %v2835 = vsel %vm2792, %v2782, -inf
        %2836 = vmax.xlane.f32.xlu0 %v2835
        %v2837 = vpop.xlane.xlu0 %2836
        %v2838 = vsel %vm2792, %v2783, -inf
        %2839 = vmax.xlane.f32.xlu0 %v2838
        %v2840 = vpop.xlane.xlu0 %2839
        %v2841 = vsel %vm2792, %v2784, -inf
        %2842 = vmax.xlane.f32.xlu0 %v2841
        %v2843 = vpop.xlane.xlu0 %2842
        %v2844 = vsel %vm2792, %v2785, -inf
        %2845 = vmax.xlane.f32.xlu0 %v2844
        %v2846 = vpop.xlane.xlu0 %2845
        %v2847 = vsel %vm2792, %v2786, -inf
        %2848 = vmax.xlane.f32.xlu0 %v2847
        %v2849 = vpop.xlane.xlu0 %2848
        %v2850 = vsel %vm2792, %v2787, -inf
        %2851 = vmax.xlane.f32.xlu0 %v2850
        %v2852 = vpop.xlane.xlu0 %2851
        %v2853 = vsel %vm2792, %v2788, -inf
        %2854 = vmax.xlane.f32.xlu0 %v2853
        %v2855 = vpop.xlane.xlu0 %2854
        %v2856 = vsel %vm2792, %v2789, -inf
        %2857 = vmax.xlane.f32.xlu0 %v2856
        %v2858 = vpop.xlane.xlu0 %2857
        %v2859 = vsel %vm2792, %v2790, -inf
        %2860 = vmax.xlane.f32.xlu0 %v2859
        %v2861 = vpop.xlane.xlu0 %2860
        %v2862 = vsel %vm2792, %v2791, -inf
        %2863 = vmax.xlane.f32.xlu0 %v2862
        %v2864 = vpop.xlane.xlu0 %2863
        %v2865 = vsub.f32 %v2768, %v2795
        %v2866 = vsub.f32 %v2769, %v2798
        %v2867 = vsub.f32 %v2770, %v2801
        %v2868 = vsub.f32 %v2771, %v2804
        %v2869 = vsub.f32 %v2772, %v2807
        %v2870 = vsub.f32 %v2773, %v2810
        %v2871 = vsub.f32 %v2774, %v2813
        %v2872 = vsub.f32 %v2775, %v2816
        %v2873 = vsub.f32 %v2776, %v2819
        %v2874 = vsub.f32 %v2777, %v2822
        %v2875 = vsub.f32 %v2778, %v2825
        %v2876 = vsub.f32 %v2779, %v2828
        %v2877 = vsub.f32 %v2780, %v2831
        %v2878 = vsub.f32 %v2781, %v2834
        %v2879 = vsub.f32 %v2782, %v2837
        %v2880 = vsub.f32 %v2783, %v2840
        %v2881 = vsub.f32 %v2784, %v2843
        %v2882 = vsub.f32 %v2785, %v2846
        %v2883 = vsub.f32 %v2786, %v2849
        %v2884 = vsub.f32 %v2787, %v2852
        %v2885 = vsub.f32 %v2788, %v2855
        %v2886 = vsub.f32 %v2789, %v2858
        %v2887 = vsub.f32 %v2790, %v2861
        %v2888 = vsub.f32 %v2791, %v2864
        %v2889 = vmul.f32 %v2865, 1.442695
        %v2890 = vpow.pop %v2889
        %v2891 = vmul.f32 %v2866, 1.442695
        %v2892 = vpow.pop %v2891
        %v2893 = vmul.f32 %v2867, 1.442695
        %v2894 = vpow.pop %v2893
        %v2895 = vmul.f32 %v2868, 1.442695
        %v2896 = vpow.pop %v2895
        %v2897 = vmul.f32 %v2869, 1.442695
        %v2898 = vpow.pop %v2897
        %v2899 = vmul.f32 %v2870, 1.442695
        %v2900 = vpow.pop %v2899
        %v2901 = vmul.f32 %v2871, 1.442695
        %v2902 = vpow.pop %v2901
        %v2903 = vmul.f32 %v2872, 1.442695
        %v2904 = vpow.pop %v2903
        %v2905 = vmul.f32 %v2873, 1.442695
        %v2906 = vpow.pop %v2905
        %v2907 = vmul.f32 %v2874, 1.442695
        %v2908 = vpow.pop %v2907
        %v2909 = vmul.f32 %v2875, 1.442695
        %v2910 = vpow.pop %v2909
        %v2911 = vmul.f32 %v2876, 1.442695
        %v2912 = vpow.pop %v2911
        %v2913 = vmul.f32 %v2877, 1.442695
        %v2914 = vpow.pop %v2913
        %v2915 = vmul.f32 %v2878, 1.442695
        %v2916 = vpow.pop %v2915
        %v2917 = vmul.f32 %v2879, 1.442695
        %v2918 = vpow.pop %v2917
        %v2919 = vmul.f32 %v2880, 1.442695
        %v2920 = vpow.pop %v2919
        %v2921 = vmul.f32 %v2881, 1.442695
        %v2922 = vpow.pop %v2921
        %v2923 = vmul.f32 %v2882, 1.442695
        %v2924 = vpow.pop %v2923
        %v2925 = vmul.f32 %v2883, 1.442695
        %v2926 = vpow.pop %v2925
        %v2927 = vmul.f32 %v2884, 1.442695
        %v2928 = vpow.pop %v2927
        %v2929 = vmul.f32 %v2885, 1.442695
        %v2930 = vpow.pop %v2929
        %v2931 = vmul.f32 %v2886, 1.442695
        %v2932 = vpow.pop %v2931
        %v2933 = vmul.f32 %v2887, 1.442695
        %v2934 = vpow.pop %v2933
        %v2935 = vmul.f32 %v2888, 1.442695
        %v2936 = vpow.pop %v2935
        %v2937 = vsel %vm2792, %v2890, 0.0
        %2938 = vadd.xlane.f32.xlu0 %v2937
        %v2939 = vpop.xlane.xlu0 %2938
        %v2940 = vsel %vm2792, %v2892, 0.0
        %2941 = vadd.xlane.f32.xlu0 %v2940
        %v2942 = vpop.xlane.xlu0 %2941
        %v2943 = vsel %vm2792, %v2894, 0.0
        %2944 = vadd.xlane.f32.xlu0 %v2943
        %v2945 = vpop.xlane.xlu0 %2944
        %v2946 = vsel %vm2792, %v2896, 0.0
        %2947 = vadd.xlane.f32.xlu0 %v2946
        %v2948 = vpop.xlane.xlu0 %2947
        %v2949 = vsel %vm2792, %v2898, 0.0
        %2950 = vadd.xlane.f32.xlu0 %v2949
        %v2951 = vpop.xlane.xlu0 %2950
        %v2952 = vsel %vm2792, %v2900, 0.0
        %2953 = vadd.xlane.f32.xlu0 %v2952
        %v2954 = vpop.xlane.xlu0 %2953
        %v2955 = vsel %vm2792, %v2902, 0.0
        %2956 = vadd.xlane.f32.xlu0 %v2955
        %v2957 = vpop.xlane.xlu0 %2956
        %v2958 = vsel %vm2792, %v2904, 0.0
        %2959 = vadd.xlane.f32.xlu0 %v2958
        %v2960 = vpop.xlane.xlu0 %2959
        %v2961 = vsel %vm2792, %v2906, 0.0
        %2962 = vadd.xlane.f32.xlu0 %v2961
        %v2963 = vpop.xlane.xlu0 %2962
        %v2964 = vsel %vm2792, %v2908, 0.0
        %2965 = vadd.xlane.f32.xlu0 %v2964
        %v2966 = vpop.xlane.xlu0 %2965
        %v2967 = vsel %vm2792, %v2910, 0.0
        %2968 = vadd.xlane.f32.xlu0 %v2967
        %v2969 = vpop.xlane.xlu0 %2968
        %v2970 = vsel %vm2792, %v2912, 0.0
        %2971 = vadd.xlane.f32.xlu0 %v2970
        %v2972 = vpop.xlane.xlu0 %2971
        %v2973 = vsel %vm2792, %v2914, 0.0
        %2974 = vadd.xlane.f32.xlu0 %v2973
        %v2975 = vpop.xlane.xlu0 %2974
        %v2976 = vsel %vm2792, %v2916, 0.0
        %2977 = vadd.xlane.f32.xlu0 %v2976
        %v2978 = vpop.xlane.xlu0 %2977
        %v2979 = vsel %vm2792, %v2918, 0.0
        %2980 = vadd.xlane.f32.xlu0 %v2979
        %v2981 = vpop.xlane.xlu0 %2980
        %v2982 = vsel %vm2792, %v2920, 0.0
        %2983 = vadd.xlane.f32.xlu0 %v2982
        %v2984 = vpop.xlane.xlu0 %2983
        %v2985 = vsel %vm2792, %v2922, 0.0
        %2986 = vadd.xlane.f32.xlu0 %v2985
        %v2987 = vpop.xlane.xlu0 %2986
        %v2988 = vsel %vm2792, %v2924, 0.0
        %2989 = vadd.xlane.f32.xlu0 %v2988
        %v2990 = vpop.xlane.xlu0 %2989
        %v2991 = vsel %vm2792, %v2926, 0.0
        %2992 = vadd.xlane.f32.xlu0 %v2991
        %v2993 = vpop.xlane.xlu0 %2992
        %v2994 = vsel %vm2792, %v2928, 0.0
        %2995 = vadd.xlane.f32.xlu0 %v2994
        %v2996 = vpop.xlane.xlu0 %2995
        %v2997 = vsel %vm2792, %v2930, 0.0
        %2998 = vadd.xlane.f32.xlu0 %v2997
        %v2999 = vpop.xlane.xlu0 %2998
        %v3000 = vsel %vm2792, %v2932, 0.0
        %3001 = vadd.xlane.f32.xlu0 %v3000
        %v3002 = vpop.xlane.xlu0 %3001
        %v3003 = vsel %vm2792, %v2934, 0.0
        %3004 = vadd.xlane.f32.xlu0 %v3003
        %v3005 = vpop.xlane.xlu0 %3004
        %v3006 = vsel %vm2792, %v2936, 0.0
        %3007 = vadd.xlane.f32.xlu0 %v3006
        %v3008 = vpop.xlane.xlu0 %3007
        %v3009 = vrcp.pop %v2939
        %v3010 = vrcp.pop %v2942
        %v3011 = vrcp.pop %v2945
        %v3012 = vrcp.pop %v2948
        %v3013 = vrcp.pop %v2951
        %v3014 = vrcp.pop %v2954
        %v3015 = vrcp.pop %v2957
        %v3016 = vrcp.pop %v2960
        %v3017 = vrcp.pop %v2963
        %v3018 = vrcp.pop %v2966
        %v3019 = vrcp.pop %v2969
        %v3020 = vrcp.pop %v2972
        %v3021 = vrcp.pop %v2975
        %v3022 = vrcp.pop %v2978
        %v3023 = vrcp.pop %v2981
        %v3024 = vrcp.pop %v2984
        %v3025 = vrcp.pop %v2987
        %v3026 = vrcp.pop %v2990
        %v3027 = vrcp.pop %v2993
        %v3028 = vrcp.pop %v2996
        %v3029 = vrcp.pop %v2999
        %v3030 = vrcp.pop %v3002
        %v3031 = vrcp.pop %v3005
        %v3032 = vrcp.pop %v3008
        %v3033 = vmul.f32 %v2890, %v3009
        %v3034 = vmul.f32 %v2892, %v3010
        %v3035 = vmul.f32 %v2894, %v3011
        %v3036 = vmul.f32 %v2896, %v3012
        %v3037 = vmul.f32 %v2898, %v3013
        %v3038 = vmul.f32 %v2900, %v3014
        %v3039 = vmul.f32 %v2902, %v3015
        %v3040 = vmul.f32 %v2904, %v3016
        %v3041 = vmul.f32 %v2906, %v3017
        %v3042 = vmul.f32 %v2908, %v3018
        %v3043 = vmul.f32 %v2910, %v3019
        %v3044 = vmul.f32 %v2912, %v3020
        %v3045 = vmul.f32 %v2914, %v3021
        %v3046 = vmul.f32 %v2916, %v3022
        %v3047 = vmul.f32 %v2918, %v3023
        %v3048 = vmul.f32 %v2920, %v3024
        %v3049 = vmul.f32 %v2922, %v3025
        %v3050 = vmul.f32 %v2924, %v3026
        %v3051 = vmul.f32 %v2926, %v3027
        %v3052 = vmul.f32 %v2928, %v3028
        %v3053 = vmul.f32 %v2930, %v3029
        %v3054 = vmul.f32 %v2932, %v3030
        %v3055 = vmul.f32 %v2934, %v3031
        %v3056 = vmul.f32 %v2936, %v3032
        %v3057 = vpack.c.bf16 %v3033, %v3033
        %v3058 = vpack.c.bf16 %v3037, %v3037
        %v3059 = vpack.c.bf16 %v3041, %v3041
        %v3060 = vpack.c.bf16 %v3045, %v3045
        %v3061 = vpack.c.bf16 %v3049, %v3049
        %v3062 = vpack.c.bf16 %v3053, %v3053
        %v3063 = vpack.c.bf16 %v1521, %v1521
        %v3064 = vpack.c.bf16 %v1524, %v1524
        %v3065 = vpack.c.bf16 %v1529, %v1529
        %v3066 = vpack.c.bf16 %v1532, %v1532
        %v3067 = vpack.c.bf16 %v1537, %v1537
        %v3068 = vpack.c.bf16 %v1540, %v1540
        %v3070 = vsel %vm2792, %v3057, 0
        %vm3072 = vcmask 1043456
        %v3074 = vsel %vm3072, %v3063, 0
        %3076 = vmatprep.subr.bf16.mxu0 0
        %3077 = vmatpush1.bf16.msra.mxu0 0
        %3078 = vmatprep.subr.bf16.mxu0 0
        %3079 = vmatpush1.bf16.msra.mxu0 0
        %3080 = vmatprep.subr.bf16.mxu0 0
        %3081 = vmatpush1.bf16.msra.mxu0 0
        %3082 = vmatprep.subr.bf16.mxu0 0
        %3083 = vmatpush1.bf16.msra.mxu0 0
        %3084 = vmatprep.subr.bf16.mxu0 0
        %3085 = vmatpush1.bf16.msra.mxu0 0
        %3086 = vmatprep.subr.bf16.mxu0 0
        %3087 = vmatpush1.bf16.msra.mxu0 0
        %3088 = vmatprep.subr.bf16.mxu0 0
        %3089 = vmatpush1.bf16.msra.mxu0 0
        %3090 = vmatprep.subr.bf16.mxu0 0
        %3091 = vmatpush1.bf16.msra.mxu0 %v3074
        %3092 = vmatprep.subr.bf16.mxu0 0
        %3093 = vmatpush2.bf16.msra.mxu0 0
        %3094 = vmatprep.subr.bf16.mxu0 0
        %3095 = vmatpush2.bf16.msra.mxu0 0
        %3096 = vmatprep.subr.bf16.mxu0 0
        %3097 = vmatpush2.bf16.msra.mxu0 0
        %3098 = vmatprep.subr.bf16.mxu0 0
        %3099 = vmatpush2.bf16.msra.mxu0 0
        %3100 = vmatprep.subr.bf16.mxu0 0
        %3101 = vmatpush2.bf16.msra.mxu0 0
        %3102 = vmatprep.subr.bf16.mxu0 0
        %3103 = vmatpush2.bf16.msra.mxu0 0
        %3104 = vmatprep.subr.bf16.mxu0 0
        %3105 = vmatpush2.bf16.msra.mxu0 0
        %3106 = vmatprep.subr.bf16.mxu0 0
        %3107 = vmatpush2.bf16.msra.mxu0 0
        %3108 = vmatprep.mubr.bf16.mxu0 0
        %3109 = vmatmul.mubr.bf16.gmra.mxu0 %v3070
        %v3110 = vpop.f32.mrf.mxu0
        %v3111 = vadd.f32 0.0, %v3110
        %v3112 = vpop.f32.mrf.mxu0
        %v3113 = vpop.f32.mrf.mxu0
        %v3114 = vpop.f32.mrf.mxu0
        %3115 = vdwg.mxu0
        %v3117 = vsel %vm2792, %v3058, 0
        %v3120 = vsel %vm3072, %v3064, 0
        %3122 = vmatprep.subr.bf16.mxu0 0
        %3123 = vmatpush1.bf16.msra.mxu0 0
        %3124 = vmatprep.subr.bf16.mxu0 0
        %3125 = vmatpush1.bf16.msra.mxu0 0
        %3126 = vmatprep.subr.bf16.mxu0 0
        %3127 = vmatpush1.bf16.msra.mxu0 0
        %3128 = vmatprep.subr.bf16.mxu0 0
        %3129 = vmatpush1.bf16.msra.mxu0 0
        %3130 = vmatprep.subr.bf16.mxu0 0
        %3131 = vmatpush1.bf16.msra.mxu0 0
        %3132 = vmatprep.subr.bf16.mxu0 0
        %3133 = vmatpush1.bf16.msra.mxu0 0
        %3134 = vmatprep.subr.bf16.mxu0 0
        %3135 = vmatpush1.bf16.msra.mxu0 0
        %3136 = vmatprep.subr.bf16.mxu0 0
        %3137 = vmatpush1.bf16.msra.mxu0 %v3120
        %3138 = vmatprep.subr.bf16.mxu0 0
        %3139 = vmatpush2.bf16.msra.mxu0 0
        %3140 = vmatprep.subr.bf16.mxu0 0
        %3141 = vmatpush2.bf16.msra.mxu0 0
        %3142 = vmatprep.subr.bf16.mxu0 0
        %3143 = vmatpush2.bf16.msra.mxu0 0
        %3144 = vmatprep.subr.bf16.mxu0 0
        %3145 = vmatpush2.bf16.msra.mxu0 0
        %3146 = vmatprep.subr.bf16.mxu0 0
        %3147 = vmatpush2.bf16.msra.mxu0 0
        %3148 = vmatprep.subr.bf16.mxu0 0
        %3149 = vmatpush2.bf16.msra.mxu0 0
        %3150 = vmatprep.subr.bf16.mxu0 0
        %3151 = vmatpush2.bf16.msra.mxu0 0
        %3152 = vmatprep.subr.bf16.mxu0 0
        %3153 = vmatpush2.bf16.msra.mxu0 0
        %3154 = vmatprep.mubr.bf16.mxu0 0
        %3155 = vmatmul.mubr.bf16.gmra.mxu0 %v3117
        %v3156 = vpop.f32.mrf.mxu0
        %v3157 = vadd.f32 0.0, %v3156
        %v3158 = vpop.f32.mrf.mxu0
        %v3159 = vpop.f32.mrf.mxu0
        %v3160 = vpop.f32.mrf.mxu0
        %3161 = vdwg.mxu0
        %v3163 = vsel %vm2792, %v3059, 0
        %v3166 = vsel %vm3072, %v3065, 0
        %3168 = vmatprep.subr.bf16.mxu0 0
        %3169 = vmatpush1.bf16.msra.mxu0 0
        %3170 = vmatprep.subr.bf16.mxu0 0
        %3171 = vmatpush1.bf16.msra.mxu0 0
        %3172 = vmatprep.subr.bf16.mxu0 0
        %3173 = vmatpush1.bf16.msra.mxu0 0
        %3174 = vmatprep.subr.bf16.mxu0 0
        %3175 = vmatpush1.bf16.msra.mxu0 0
        %3176 = vmatprep.subr.bf16.mxu0 0
        %3177 = vmatpush1.bf16.msra.mxu0 0
        %3178 = vmatprep.subr.bf16.mxu0 0
        %3179 = vmatpush1.bf16.msra.mxu0 0
        %3180 = vmatprep.subr.bf16.mxu0 0
        %3181 = vmatpush1.bf16.msra.mxu0 0
        %3182 = vmatprep.subr.bf16.mxu0 0
        %3183 = vmatpush1.bf16.msra.mxu0 %v3166
        %3184 = vmatprep.subr.bf16.mxu0 0
        %3185 = vmatpush2.bf16.msra.mxu0 0
        %3186 = vmatprep.subr.bf16.mxu0 0
        %3187 = vmatpush2.bf16.msra.mxu0 0
        %3188 = vmatprep.subr.bf16.mxu0 0
        %3189 = vmatpush2.bf16.msra.mxu0 0
        %3190 = vmatprep.subr.bf16.mxu0 0
        %3191 = vmatpush2.bf16.msra.mxu0 0
        %3192 = vmatprep.subr.bf16.mxu0 0
        %3193 = vmatpush2.bf16.msra.mxu0 0
        %3194 = vmatprep.subr.bf16.mxu0 0
        %3195 = vmatpush2.bf16.msra.mxu0 0
        %3196 = vmatprep.subr.bf16.mxu0 0
        %3197 = vmatpush2.bf16.msra.mxu0 0
        %3198 = vmatprep.subr.bf16.mxu0 0
        %3199 = vmatpush2.bf16.msra.mxu0 0
        %3200 = vmatprep.mubr.bf16.mxu0 0
        %3201 = vmatmul.mubr.bf16.gmra.mxu0 %v3163
        %v3202 = vpop.f32.mrf.mxu0
        %v3203 = vadd.f32 0.0, %v3202
        %v3204 = vpop.f32.mrf.mxu0
        %v3205 = vpop.f32.mrf.mxu0
        %v3206 = vpop.f32.mrf.mxu0
        %3207 = vdwg.mxu0
        %v3209 = vsel %vm2792, %v3060, 0
        %v3212 = vsel %vm3072, %v3066, 0
        %3214 = vmatprep.subr.bf16.mxu0 0
        %3215 = vmatpush1.bf16.msra.mxu0 0
        %3216 = vmatprep.subr.bf16.mxu0 0
        %3217 = vmatpush1.bf16.msra.mxu0 0
        %3218 = vmatprep.subr.bf16.mxu0 0
        %3219 = vmatpush1.bf16.msra.mxu0 0
        %3220 = vmatprep.subr.bf16.mxu0 0
        %3221 = vmatpush1.bf16.msra.mxu0 0
        %3222 = vmatprep.subr.bf16.mxu0 0
        %3223 = vmatpush1.bf16.msra.mxu0 0
        %3224 = vmatprep.subr.bf16.mxu0 0
        %3225 = vmatpush1.bf16.msra.mxu0 0
        %3226 = vmatprep.subr.bf16.mxu0 0
        %3227 = vmatpush1.bf16.msra.mxu0 0
        %3228 = vmatprep.subr.bf16.mxu0 0
        %3229 = vmatpush1.bf16.msra.mxu0 %v3212
        %3230 = vmatprep.subr.bf16.mxu0 0
        %3231 = vmatpush2.bf16.msra.mxu0 0
        %3232 = vmatprep.subr.bf16.mxu0 0
        %3233 = vmatpush2.bf16.msra.mxu0 0
        %3234 = vmatprep.subr.bf16.mxu0 0
        %3235 = vmatpush2.bf16.msra.mxu0 0
        %3236 = vmatprep.subr.bf16.mxu0 0
        %3237 = vmatpush2.bf16.msra.mxu0 0
        %3238 = vmatprep.subr.bf16.mxu0 0
        %3239 = vmatpush2.bf16.msra.mxu0 0
        %3240 = vmatprep.subr.bf16.mxu0 0
        %3241 = vmatpush2.bf16.msra.mxu0 0
        %3242 = vmatprep.subr.bf16.mxu0 0
        %3243 = vmatpush2.bf16.msra.mxu0 0
        %3244 = vmatprep.subr.bf16.mxu0 0
        %3245 = vmatpush2.bf16.msra.mxu0 0
        %3246 = vmatprep.mubr.bf16.mxu0 0
        %3247 = vmatmul.mubr.bf16.gmra.mxu0 %v3209
        %v3248 = vpop.f32.mrf.mxu0
        %v3249 = vadd.f32 0.0, %v3248
        %v3250 = vpop.f32.mrf.mxu0
        %v3251 = vpop.f32.mrf.mxu0
        %v3252 = vpop.f32.mrf.mxu0
        %3253 = vdwg.mxu0
        %v3255 = vsel %vm2792, %v3061, 0
        %v3258 = vsel %vm3072, %v3067, 0
        %3260 = vmatprep.subr.bf16.mxu0 0
        %3261 = vmatpush1.bf16.msra.mxu0 0
        %3262 = vmatprep.subr.bf16.mxu0 0
        %3263 = vmatpush1.bf16.msra.mxu0 0
        %3264 = vmatprep.subr.bf16.mxu0 0
        %3265 = vmatpush1.bf16.msra.mxu0 0
        %3266 = vmatprep.subr.bf16.mxu0 0
        %3267 = vmatpush1.bf16.msra.mxu0 0
        %3268 = vmatprep.subr.bf16.mxu0 0
        %3269 = vmatpush1.bf16.msra.mxu0 0
        %3270 = vmatprep.subr.bf16.mxu0 0
        %3271 = vmatpush1.bf16.msra.mxu0 0
        %3272 = vmatprep.subr.bf16.mxu0 0
        %3273 = vmatpush1.bf16.msra.mxu0 0
        %3274 = vmatprep.subr.bf16.mxu0 0
        %3275 = vmatpush1.bf16.msra.mxu0 %v3258
        %3276 = vmatprep.subr.bf16.mxu0 0
        %3277 = vmatpush2.bf16.msra.mxu0 0
        %3278 = vmatprep.subr.bf16.mxu0 0
        %3279 = vmatpush2.bf16.msra.mxu0 0
        %3280 = vmatprep.subr.bf16.mxu0 0
        %3281 = vmatpush2.bf16.msra.mxu0 0
        %3282 = vmatprep.subr.bf16.mxu0 0
        %3283 = vmatpush2.bf16.msra.mxu0 0
        %3284 = vmatprep.subr.bf16.mxu0 0
        %3285 = vmatpush2.bf16.msra.mxu0 0
        %3286 = vmatprep.subr.bf16.mxu0 0
        %3287 = vmatpush2.bf16.msra.mxu0 0
        %3288 = vmatprep.subr.bf16.mxu0 0
        %3289 = vmatpush2.bf16.msra.mxu0 0
        %3290 = vmatprep.subr.bf16.mxu0 0
        %3291 = vmatpush2.bf16.msra.mxu0 0
        %3292 = vmatprep.mubr.bf16.mxu0 0
        %3293 = vmatmul.mubr.bf16.gmra.mxu0 %v3255
        %v3294 = vpop.f32.mrf.mxu0
        %v3295 = vadd.f32 0.0, %v3294
        %v3296 = vpop.f32.mrf.mxu0
        %v3297 = vpop.f32.mrf.mxu0
        %v3298 = vpop.f32.mrf.mxu0
        %3299 = vdwg.mxu0
        %v3301 = vsel %vm2792, %v3062, 0
        %v3304 = vsel %vm3072, %v3068, 0
        %3306 = vmatprep.subr.bf16.mxu0 0
        %3307 = vmatpush1.bf16.msra.mxu0 0
        %3308 = vmatprep.subr.bf16.mxu0 0
        %3309 = vmatpush1.bf16.msra.mxu0 0
        %3310 = vmatprep.subr.bf16.mxu0 0
        %3311 = vmatpush1.bf16.msra.mxu0 0
        %3312 = vmatprep.subr.bf16.mxu0 0
        %3313 = vmatpush1.bf16.msra.mxu0 0
        %3314 = vmatprep.subr.bf16.mxu0 0
        %3315 = vmatpush1.bf16.msra.mxu0 0
        %3316 = vmatprep.subr.bf16.mxu0 0
        %3317 = vmatpush1.bf16.msra.mxu0 0
        %3318 = vmatprep.subr.bf16.mxu0 0
        %3319 = vmatpush1.bf16.msra.mxu0 0
        %3320 = vmatprep.subr.bf16.mxu0 0
        %3321 = vmatpush1.bf16.msra.mxu0 %v3304
        %3322 = vmatprep.subr.bf16.mxu0 0
        %3323 = vmatpush2.bf16.msra.mxu0 0
        %3324 = vmatprep.subr.bf16.mxu0 0
        %3325 = vmatpush2.bf16.msra.mxu0 0
        %3326 = vmatprep.subr.bf16.mxu0 0
        %3327 = vmatpush2.bf16.msra.mxu0 0
        %3328 = vmatprep.subr.bf16.mxu0 0
        %3329 = vmatpush2.bf16.msra.mxu0 0
        %3330 = vmatprep.subr.bf16.mxu0 0
        %3331 = vmatpush2.bf16.msra.mxu0 0
        %3332 = vmatprep.subr.bf16.mxu0 0
        %3333 = vmatpush2.bf16.msra.mxu0 0
        %3334 = vmatprep.subr.bf16.mxu0 0
        %3335 = vmatpush2.bf16.msra.mxu0 0
        %3336 = vmatprep.subr.bf16.mxu0 0
        %3337 = vmatpush2.bf16.msra.mxu0 0
        %3338 = vmatprep.mubr.bf16.mxu0 0
        %3339 = vmatmul.mubr.bf16.gmra.mxu0 %v3301
        %v3340 = vpop.f32.mrf.mxu0
        %v3341 = vadd.f32 0.0, %v3340
        %v3342 = vpop.f32.mrf.mxu0
        %v3343 = vpop.f32.mrf.mxu0
        %v3344 = vpop.f32.mrf.mxu0
        %3345 = vdwg.mxu0
        %v3346 = vpack.c.bf16 %v3034, %v3034
        %v3347 = vpack.c.bf16 %v3038, %v3038
        %v3348 = vpack.c.bf16 %v3042, %v3042
        %v3349 = vpack.c.bf16 %v3046, %v3046
        %v3350 = vpack.c.bf16 %v3050, %v3050
        %v3351 = vpack.c.bf16 %v3054, %v3054
        %3353 = vrot.lane.b32.xlu0 %v3063, 96
        %v3354 = vpop.permute.xlu0 %3353
        %v3356 = vsel %vm2792, %v3346, 0
        %v3359 = vsel %vm3072, %v3354, 0
        %3361 = vmatprep.subr.bf16.mxu0 0
        %3362 = vmatpush1.bf16.msra.mxu0 0
        %3363 = vmatprep.subr.bf16.mxu0 0
        %3364 = vmatpush1.bf16.msra.mxu0 0
        %3365 = vmatprep.subr.bf16.mxu0 0
        %3366 = vmatpush1.bf16.msra.mxu0 0
        %3367 = vmatprep.subr.bf16.mxu0 0
        %3368 = vmatpush1.bf16.msra.mxu0 0
        %3369 = vmatprep.subr.bf16.mxu0 0
        %3370 = vmatpush1.bf16.msra.mxu0 0
        %3371 = vmatprep.subr.bf16.mxu0 0
        %3372 = vmatpush1.bf16.msra.mxu0 0
        %3373 = vmatprep.subr.bf16.mxu0 0
        %3374 = vmatpush1.bf16.msra.mxu0 0
        %3375 = vmatprep.subr.bf16.mxu0 0
        %3376 = vmatpush1.bf16.msra.mxu0 %v3359
        %3377 = vmatprep.subr.bf16.mxu0 0
        %3378 = vmatpush2.bf16.msra.mxu0 0
        %3379 = vmatprep.subr.bf16.mxu0 0
        %3380 = vmatpush2.bf16.msra.mxu0 0
        %3381 = vmatprep.subr.bf16.mxu0 0
        %3382 = vmatpush2.bf16.msra.mxu0 0
        %3383 = vmatprep.subr.bf16.mxu0 0
        %3384 = vmatpush2.bf16.msra.mxu0 0
        %3385 = vmatprep.subr.bf16.mxu0 0
        %3386 = vmatpush2.bf16.msra.mxu0 0
        %3387 = vmatprep.subr.bf16.mxu0 0
        %3388 = vmatpush2.bf16.msra.mxu0 0
        %3389 = vmatprep.subr.bf16.mxu0 0
        %3390 = vmatpush2.bf16.msra.mxu0 0
        %3391 = vmatprep.subr.bf16.mxu0 0
        %3392 = vmatpush2.bf16.msra.mxu0 0
        %3393 = vmatprep.mubr.bf16.mxu0 0
        %3394 = vmatmul.mubr.bf16.gmra.mxu0 %v3356
        %v3395 = vpop.f32.mrf.mxu0
        %v3396 = vadd.f32 0.0, %v3395
        %v3397 = vpop.f32.mrf.mxu0
        %v3398 = vpop.f32.mrf.mxu0
        %v3399 = vpop.f32.mrf.mxu0
        %3400 = vdwg.mxu0
        %3402 = vrot.lane.b32.xlu0 %v3064, 96
        %v3403 = vpop.permute.xlu0 %3402
        %v3405 = vsel %vm2792, %v3347, 0
        %v3408 = vsel %vm3072, %v3403, 0
        %3410 = vmatprep.subr.bf16.mxu0 0
        %3411 = vmatpush1.bf16.msra.mxu0 0
        %3412 = vmatprep.subr.bf16.mxu0 0
        %3413 = vmatpush1.bf16.msra.mxu0 0
        %3414 = vmatprep.subr.bf16.mxu0 0
        %3415 = vmatpush1.bf16.msra.mxu0 0
        %3416 = vmatprep.subr.bf16.mxu0 0
        %3417 = vmatpush1.bf16.msra.mxu0 0
        %3418 = vmatprep.subr.bf16.mxu0 0
        %3419 = vmatpush1.bf16.msra.mxu0 0
        %3420 = vmatprep.subr.bf16.mxu0 0
        %3421 = vmatpush1.bf16.msra.mxu0 0
        %3422 = vmatprep.subr.bf16.mxu0 0
        %3423 = vmatpush1.bf16.msra.mxu0 0
        %3424 = vmatprep.subr.bf16.mxu0 0
        %3425 = vmatpush1.bf16.msra.mxu0 %v3408
        %3426 = vmatprep.subr.bf16.mxu0 0
        %3427 = vmatpush2.bf16.msra.mxu0 0
        %3428 = vmatprep.subr.bf16.mxu0 0
        %3429 = vmatpush2.bf16.msra.mxu0 0
        %3430 = vmatprep.subr.bf16.mxu0 0
        %3431 = vmatpush2.bf16.msra.mxu0 0
        %3432 = vmatprep.subr.bf16.mxu0 0
        %3433 = vmatpush2.bf16.msra.mxu0 0
        %3434 = vmatprep.subr.bf16.mxu0 0
        %3435 = vmatpush2.bf16.msra.mxu0 0
        %3436 = vmatprep.subr.bf16.mxu0 0
        %3437 = vmatpush2.bf16.msra.mxu0 0
        %3438 = vmatprep.subr.bf16.mxu0 0
        %3439 = vmatpush2.bf16.msra.mxu0 0
        %3440 = vmatprep.subr.bf16.mxu0 0
        %3441 = vmatpush2.bf16.msra.mxu0 0
        %3442 = vmatprep.mubr.bf16.mxu0 0
        %3443 = vmatmul.mubr.bf16.gmra.mxu0 %v3405
        %v3444 = vpop.f32.mrf.mxu0
        %v3445 = vadd.f32 0.0, %v3444
        %v3446 = vpop.f32.mrf.mxu0
        %v3447 = vpop.f32.mrf.mxu0
        %v3448 = vpop.f32.mrf.mxu0
        %3449 = vdwg.mxu0
        %3451 = vrot.lane.b32.xlu0 %v3065, 96
        %v3452 = vpop.permute.xlu0 %3451
        %v3454 = vsel %vm2792, %v3348, 0
        %v3457 = vsel %vm3072, %v3452, 0
        %3459 = vmatprep.subr.bf16.mxu0 0
        %3460 = vmatpush1.bf16.msra.mxu0 0
        %3461 = vmatprep.subr.bf16.mxu0 0
        %3462 = vmatpush1.bf16.msra.mxu0 0
        %3463 = vmatprep.subr.bf16.mxu0 0
        %3464 = vmatpush1.bf16.msra.mxu0 0
        %3465 = vmatprep.subr.bf16.mxu0 0
        %3466 = vmatpush1.bf16.msra.mxu0 0
        %3467 = vmatprep.subr.bf16.mxu0 0
        %3468 = vmatpush1.bf16.msra.mxu0 0
        %3469 = vmatprep.subr.bf16.mxu0 0
        %3470 = vmatpush1.bf16.msra.mxu0 0
        %3471 = vmatprep.subr.bf16.mxu0 0
        %3472 = vmatpush1.bf16.msra.mxu0 0
        %3473 = vmatprep.subr.bf16.mxu0 0
        %3474 = vmatpush1.bf16.msra.mxu0 %v3457
        %3475 = vmatprep.subr.bf16.mxu0 0
        %3476 = vmatpush2.bf16.msra.mxu0 0
        %3477 = vmatprep.subr.bf16.mxu0 0
        %3478 = vmatpush2.bf16.msra.mxu0 0
        %3479 = vmatprep.subr.bf16.mxu0 0
        %3480 = vmatpush2.bf16.msra.mxu0 0
        %3481 = vmatprep.subr.bf16.mxu0 0
        %3482 = vmatpush2.bf16.msra.mxu0 0
        %3483 = vmatprep.subr.bf16.mxu0 0
        %3484 = vmatpush2.bf16.msra.mxu0 0
        %3485 = vmatprep.subr.bf16.mxu0 0
        %3486 = vmatpush2.bf16.msra.mxu0 0
        %3487 = vmatprep.subr.bf16.mxu0 0
        %3488 = vmatpush2.bf16.msra.mxu0 0
        %3489 = vmatprep.subr.bf16.mxu0 0
        %3490 = vmatpush2.bf16.msra.mxu0 0
        %3491 = vmatprep.mubr.bf16.mxu0 0
        %3492 = vmatmul.mubr.bf16.gmra.mxu0 %v3454
        %v3493 = vpop.f32.mrf.mxu0
        %v3494 = vadd.f32 0.0, %v3493
        %v3495 = vpop.f32.mrf.mxu0
        %v3496 = vpop.f32.mrf.mxu0
        %v3497 = vpop.f32.mrf.mxu0
        %3498 = vdwg.mxu0
        %3500 = vrot.lane.b32.xlu0 %v3066, 96
        %v3501 = vpop.permute.xlu0 %3500
        %v3503 = vsel %vm2792, %v3349, 0
        %v3506 = vsel %vm3072, %v3501, 0
        %3508 = vmatprep.subr.bf16.mxu0 0
        %3509 = vmatpush1.bf16.msra.mxu0 0
        %3510 = vmatprep.subr.bf16.mxu0 0
        %3511 = vmatpush1.bf16.msra.mxu0 0
        %3512 = vmatprep.subr.bf16.mxu0 0
        %3513 = vmatpush1.bf16.msra.mxu0 0
        %3514 = vmatprep.subr.bf16.mxu0 0
        %3515 = vmatpush1.bf16.msra.mxu0 0
        %3516 = vmatprep.subr.bf16.mxu0 0
        %3517 = vmatpush1.bf16.msra.mxu0 0
        %3518 = vmatprep.subr.bf16.mxu0 0
        %3519 = vmatpush1.bf16.msra.mxu0 0
        %3520 = vmatprep.subr.bf16.mxu0 0
        %3521 = vmatpush1.bf16.msra.mxu0 0
        %3522 = vmatprep.subr.bf16.mxu0 0
        %3523 = vmatpush1.bf16.msra.mxu0 %v3506
        %3524 = vmatprep.subr.bf16.mxu0 0
        %3525 = vmatpush2.bf16.msra.mxu0 0
        %3526 = vmatprep.subr.bf16.mxu0 0
        %3527 = vmatpush2.bf16.msra.mxu0 0
        %3528 = vmatprep.subr.bf16.mxu0 0
        %3529 = vmatpush2.bf16.msra.mxu0 0
        %3530 = vmatprep.subr.bf16.mxu0 0
        %3531 = vmatpush2.bf16.msra.mxu0 0
        %3532 = vmatprep.subr.bf16.mxu0 0
        %3533 = vmatpush2.bf16.msra.mxu0 0
        %3534 = vmatprep.subr.bf16.mxu0 0
        %3535 = vmatpush2.bf16.msra.mxu0 0
        %3536 = vmatprep.subr.bf16.mxu0 0
        %3537 = vmatpush2.bf16.msra.mxu0 0
        %3538 = vmatprep.subr.bf16.mxu0 0
        %3539 = vmatpush2.bf16.msra.mxu0 0
        %3540 = vmatprep.mubr.bf16.mxu0 0
        %3541 = vmatmul.mubr.bf16.gmra.mxu0 %v3503
        %v3542 = vpop.f32.mrf.mxu0
        %v3543 = vadd.f32 0.0, %v3542
        %v3544 = vpop.f32.mrf.mxu0
        %v3545 = vpop.f32.mrf.mxu0
        %v3546 = vpop.f32.mrf.mxu0
        %3547 = vdwg.mxu0
        %3549 = vrot.lane.b32.xlu0 %v3067, 96
        %v3550 = vpop.permute.xlu0 %3549
        %v3552 = vsel %vm2792, %v3350, 0
        %v3555 = vsel %vm3072, %v3550, 0
        %3557 = vmatprep.subr.bf16.mxu0 0
        %3558 = vmatpush1.bf16.msra.mxu0 0
        %3559 = vmatprep.subr.bf16.mxu0 0
        %3560 = vmatpush1.bf16.msra.mxu0 0
        %3561 = vmatprep.subr.bf16.mxu0 0
        %3562 = vmatpush1.bf16.msra.mxu0 0
        %3563 = vmatprep.subr.bf16.mxu0 0
        %3564 = vmatpush1.bf16.msra.mxu0 0
        %3565 = vmatprep.subr.bf16.mxu0 0
        %3566 = vmatpush1.bf16.msra.mxu0 0
        %3567 = vmatprep.subr.bf16.mxu0 0
        %3568 = vmatpush1.bf16.msra.mxu0 0
        %3569 = vmatprep.subr.bf16.mxu0 0
        %3570 = vmatpush1.bf16.msra.mxu0 0
        %3571 = vmatprep.subr.bf16.mxu0 0
        %3572 = vmatpush1.bf16.msra.mxu0 %v3555
        %3573 = vmatprep.subr.bf16.mxu0 0
        %3574 = vmatpush2.bf16.msra.mxu0 0
        %3575 = vmatprep.subr.bf16.mxu0 0
        %3576 = vmatpush2.bf16.msra.mxu0 0
        %3577 = vmatprep.subr.bf16.mxu0 0
        %3578 = vmatpush2.bf16.msra.mxu0 0
        %3579 = vmatprep.subr.bf16.mxu0 0
        %3580 = vmatpush2.bf16.msra.mxu0 0
        %3581 = vmatprep.subr.bf16.mxu0 0
        %3582 = vmatpush2.bf16.msra.mxu0 0
        %3583 = vmatprep.subr.bf16.mxu0 0
        %3584 = vmatpush2.bf16.msra.mxu0 0
        %3585 = vmatprep.subr.bf16.mxu0 0
        %3586 = vmatpush2.bf16.msra.mxu0 0
        %3587 = vmatprep.subr.bf16.mxu0 0
        %3588 = vmatpush2.bf16.msra.mxu0 0
        %3589 = vmatprep.mubr.bf16.mxu0 0
        %3590 = vmatmul.mubr.bf16.gmra.mxu0 %v3552
        %v3591 = vpop.f32.mrf.mxu0
        %v3592 = vadd.f32 0.0, %v3591
        %v3593 = vpop.f32.mrf.mxu0
        %v3594 = vpop.f32.mrf.mxu0
        %v3595 = vpop.f32.mrf.mxu0
        %3596 = vdwg.mxu0
        %3598 = vrot.lane.b32.xlu0 %v3068, 96
        %v3599 = vpop.permute.xlu0 %3598
        %v3601 = vsel %vm2792, %v3351, 0
        %v3604 = vsel %vm3072, %v3599, 0
        %3606 = vmatprep.subr.bf16.mxu0 0
        %3607 = vmatpush1.bf16.msra.mxu0 0
        %3608 = vmatprep.subr.bf16.mxu0 0
        %3609 = vmatpush1.bf16.msra.mxu0 0
        %3610 = vmatprep.subr.bf16.mxu0 0
        %3611 = vmatpush1.bf16.msra.mxu0 0
        %3612 = vmatprep.subr.bf16.mxu0 0
        %3613 = vmatpush1.bf16.msra.mxu0 0
        %3614 = vmatprep.subr.bf16.mxu0 0
        %3615 = vmatpush1.bf16.msra.mxu0 0
        %3616 = vmatprep.subr.bf16.mxu0 0
        %3617 = vmatpush1.bf16.msra.mxu0 0
        %3618 = vmatprep.subr.bf16.mxu0 0
        %3619 = vmatpush1.bf16.msra.mxu0 0
        %3620 = vmatprep.subr.bf16.mxu0 0
        %3621 = vmatpush1.bf16.msra.mxu0 %v3604
        %3622 = vmatprep.subr.bf16.mxu0 0
        %3623 = vmatpush2.bf16.msra.mxu0 0
        %3624 = vmatprep.subr.bf16.mxu0 0
        %3625 = vmatpush2.bf16.msra.mxu0 0
        %3626 = vmatprep.subr.bf16.mxu0 0
        %3627 = vmatpush2.bf16.msra.mxu0 0
        %3628 = vmatprep.subr.bf16.mxu0 0
        %3629 = vmatpush2.bf16.msra.mxu0 0
        %3630 = vmatprep.subr.bf16.mxu0 0
        %3631 = vmatpush2.bf16.msra.mxu0 0
        %3632 = vmatprep.subr.bf16.mxu0 0
        %3633 = vmatpush2.bf16.msra.mxu0 0
        %3634 = vmatprep.subr.bf16.mxu0 0
        %3635 = vmatpush2.bf16.msra.mxu0 0
        %3636 = vmatprep.subr.bf16.mxu0 0
        %3637 = vmatpush2.bf16.msra.mxu0 0
        %3638 = vmatprep.mubr.bf16.mxu0 0
        %3639 = vmatmul.mubr.bf16.gmra.mxu0 %v3601
        %v3640 = vpop.f32.mrf.mxu0
        %v3641 = vadd.f32 0.0, %v3640
        %v3642 = vpop.f32.mrf.mxu0
        %v3643 = vpop.f32.mrf.mxu0
        %v3644 = vpop.f32.mrf.mxu0
        %3645 = vdwg.mxu0
        %v3646 = vpack.c.bf16 %v3035, %v3035
        %v3647 = vpack.c.bf16 %v3039, %v3039
        %v3648 = vpack.c.bf16 %v3043, %v3043
        %v3649 = vpack.c.bf16 %v3047, %v3047
        %v3650 = vpack.c.bf16 %v3051, %v3051
        %v3651 = vpack.c.bf16 %v3055, %v3055
        %3652 = vrot.lane.b32.xlu0 %v3063, 64
        %v3653 = vpop.permute.xlu0 %3652
        %v3655 = vsel %vm2792, %v3646, 0
        %v3658 = vsel %vm3072, %v3653, 0
        %3660 = vmatprep.subr.bf16.mxu0 0
        %3661 = vmatpush1.bf16.msra.mxu0 0
        %3662 = vmatprep.subr.bf16.mxu0 0
        %3663 = vmatpush1.bf16.msra.mxu0 0
        %3664 = vmatprep.subr.bf16.mxu0 0
        %3665 = vmatpush1.bf16.msra.mxu0 0
        %3666 = vmatprep.subr.bf16.mxu0 0
        %3667 = vmatpush1.bf16.msra.mxu0 0
        %3668 = vmatprep.subr.bf16.mxu0 0
        %3669 = vmatpush1.bf16.msra.mxu0 0
        %3670 = vmatprep.subr.bf16.mxu0 0
        %3671 = vmatpush1.bf16.msra.mxu0 0
        %3672 = vmatprep.subr.bf16.mxu0 0
        %3673 = vmatpush1.bf16.msra.mxu0 0
        %3674 = vmatprep.subr.bf16.mxu0 0
        %3675 = vmatpush1.bf16.msra.mxu0 %v3658
        %3676 = vmatprep.subr.bf16.mxu0 0
        %3677 = vmatpush2.bf16.msra.mxu0 0
        %3678 = vmatprep.subr.bf16.mxu0 0
        %3679 = vmatpush2.bf16.msra.mxu0 0
        %3680 = vmatprep.subr.bf16.mxu0 0
        %3681 = vmatpush2.bf16.msra.mxu0 0
        %3682 = vmatprep.subr.bf16.mxu0 0
        %3683 = vmatpush2.bf16.msra.mxu0 0
        %3684 = vmatprep.subr.bf16.mxu0 0
        %3685 = vmatpush2.bf16.msra.mxu0 0
        %3686 = vmatprep.subr.bf16.mxu0 0
        %3687 = vmatpush2.bf16.msra.mxu0 0
        %3688 = vmatprep.subr.bf16.mxu0 0
        %3689 = vmatpush2.bf16.msra.mxu0 0
        %3690 = vmatprep.subr.bf16.mxu0 0
        %3691 = vmatpush2.bf16.msra.mxu0 0
        %3692 = vmatprep.mubr.bf16.mxu0 0
        %3693 = vmatmul.mubr.bf16.gmra.mxu0 %v3655
        %v3694 = vpop.f32.mrf.mxu0
        %v3695 = vadd.f32 0.0, %v3694
        %v3696 = vpop.f32.mrf.mxu0
        %v3697 = vpop.f32.mrf.mxu0
        %v3698 = vpop.f32.mrf.mxu0
        %3699 = vdwg.mxu0
        %3700 = vrot.lane.b32.xlu0 %v3064, 64
        %v3701 = vpop.permute.xlu0 %3700
        %v3703 = vsel %vm2792, %v3647, 0
        %v3706 = vsel %vm3072, %v3701, 0
        %3708 = vmatprep.subr.bf16.mxu0 0
        %3709 = vmatpush1.bf16.msra.mxu0 0
        %3710 = vmatprep.subr.bf16.mxu0 0
        %3711 = vmatpush1.bf16.msra.mxu0 0
        %3712 = vmatprep.subr.bf16.mxu0 0
        %3713 = vmatpush1.bf16.msra.mxu0 0
        %3714 = vmatprep.subr.bf16.mxu0 0
        %3715 = vmatpush1.bf16.msra.mxu0 0
        %3716 = vmatprep.subr.bf16.mxu0 0
        %3717 = vmatpush1.bf16.msra.mxu0 0
        %3718 = vmatprep.subr.bf16.mxu0 0
        %3719 = vmatpush1.bf16.msra.mxu0 0
        %3720 = vmatprep.subr.bf16.mxu0 0
        %3721 = vmatpush1.bf16.msra.mxu0 0
        %3722 = vmatprep.subr.bf16.mxu0 0
        %3723 = vmatpush1.bf16.msra.mxu0 %v3706
        %3724 = vmatprep.subr.bf16.mxu0 0
        %3725 = vmatpush2.bf16.msra.mxu0 0
        %3726 = vmatprep.subr.bf16.mxu0 0
        %3727 = vmatpush2.bf16.msra.mxu0 0
        %3728 = vmatprep.subr.bf16.mxu0 0
        %3729 = vmatpush2.bf16.msra.mxu0 0
        %3730 = vmatprep.subr.bf16.mxu0 0
        %3731 = vmatpush2.bf16.msra.mxu0 0
        %3732 = vmatprep.subr.bf16.mxu0 0
        %3733 = vmatpush2.bf16.msra.mxu0 0
        %3734 = vmatprep.subr.bf16.mxu0 0
        %3735 = vmatpush2.bf16.msra.mxu0 0
        %3736 = vmatprep.subr.bf16.mxu0 0
        %3737 = vmatpush2.bf16.msra.mxu0 0
        %3738 = vmatprep.subr.bf16.mxu0 0
        %3739 = vmatpush2.bf16.msra.mxu0 0
        %3740 = vmatprep.mubr.bf16.mxu0 0
        %3741 = vmatmul.mubr.bf16.gmra.mxu0 %v3703
        %v3742 = vpop.f32.mrf.mxu0
        %v3743 = vadd.f32 0.0, %v3742
        %v3744 = vpop.f32.mrf.mxu0
        %v3745 = vpop.f32.mrf.mxu0
        %v3746 = vpop.f32.mrf.mxu0
        %3747 = vdwg.mxu0
        %3748 = vrot.lane.b32.xlu0 %v3065, 64
        %v3749 = vpop.permute.xlu0 %3748
        %v3751 = vsel %vm2792, %v3648, 0
        %v3754 = vsel %vm3072, %v3749, 0
        %3756 = vmatprep.subr.bf16.mxu0 0
        %3757 = vmatpush1.bf16.msra.mxu0 0
        %3758 = vmatprep.subr.bf16.mxu0 0
        %3759 = vmatpush1.bf16.msra.mxu0 0
        %3760 = vmatprep.subr.bf16.mxu0 0
        %3761 = vmatpush1.bf16.msra.mxu0 0
        %3762 = vmatprep.subr.bf16.mxu0 0
        %3763 = vmatpush1.bf16.msra.mxu0 0
        %3764 = vmatprep.subr.bf16.mxu0 0
        %3765 = vmatpush1.bf16.msra.mxu0 0
        %3766 = vmatprep.subr.bf16.mxu0 0
        %3767 = vmatpush1.bf16.msra.mxu0 0
        %3768 = vmatprep.subr.bf16.mxu0 0
        %3769 = vmatpush1.bf16.msra.mxu0 0
        %3770 = vmatprep.subr.bf16.mxu0 0
        %3771 = vmatpush1.bf16.msra.mxu0 %v3754
        %3772 = vmatprep.subr.bf16.mxu0 0
        %3773 = vmatpush2.bf16.msra.mxu0 0
        %3774 = vmatprep.subr.bf16.mxu0 0
        %3775 = vmatpush2.bf16.msra.mxu0 0
        %3776 = vmatprep.subr.bf16.mxu0 0
        %3777 = vmatpush2.bf16.msra.mxu0 0
        %3778 = vmatprep.subr.bf16.mxu0 0
        %3779 = vmatpush2.bf16.msra.mxu0 0
        %3780 = vmatprep.subr.bf16.mxu0 0
        %3781 = vmatpush2.bf16.msra.mxu0 0
        %3782 = vmatprep.subr.bf16.mxu0 0
        %3783 = vmatpush2.bf16.msra.mxu0 0
        %3784 = vmatprep.subr.bf16.mxu0 0
        %3785 = vmatpush2.bf16.msra.mxu0 0
        %3786 = vmatprep.subr.bf16.mxu0 0
        %3787 = vmatpush2.bf16.msra.mxu0 0
        %3788 = vmatprep.mubr.bf16.mxu0 0
        %3789 = vmatmul.mubr.bf16.gmra.mxu0 %v3751
        %v3790 = vpop.f32.mrf.mxu0
        %v3791 = vadd.f32 0.0, %v3790
        %v3792 = vpop.f32.mrf.mxu0
        %v3793 = vpop.f32.mrf.mxu0
        %v3794 = vpop.f32.mrf.mxu0
        %3795 = vdwg.mxu0
        %3796 = vrot.lane.b32.xlu0 %v3066, 64
        %v3797 = vpop.permute.xlu0 %3796
        %v3799 = vsel %vm2792, %v3649, 0
        %v3802 = vsel %vm3072, %v3797, 0
        %3804 = vmatprep.subr.bf16.mxu0 0
        %3805 = vmatpush1.bf16.msra.mxu0 0
        %3806 = vmatprep.subr.bf16.mxu0 0
        %3807 = vmatpush1.bf16.msra.mxu0 0
        %3808 = vmatprep.subr.bf16.mxu0 0
        %3809 = vmatpush1.bf16.msra.mxu0 0
        %3810 = vmatprep.subr.bf16.mxu0 0
        %3811 = vmatpush1.bf16.msra.mxu0 0
        %3812 = vmatprep.subr.bf16.mxu0 0
        %3813 = vmatpush1.bf16.msra.mxu0 0
        %3814 = vmatprep.subr.bf16.mxu0 0
        %3815 = vmatpush1.bf16.msra.mxu0 0
        %3816 = vmatprep.subr.bf16.mxu0 0
        %3817 = vmatpush1.bf16.msra.mxu0 0
        %3818 = vmatprep.subr.bf16.mxu0 0
        %3819 = vmatpush1.bf16.msra.mxu0 %v3802
        %3820 = vmatprep.subr.bf16.mxu0 0
        %3821 = vmatpush2.bf16.msra.mxu0 0
        %3822 = vmatprep.subr.bf16.mxu0 0
        %3823 = vmatpush2.bf16.msra.mxu0 0
        %3824 = vmatprep.subr.bf16.mxu0 0
        %3825 = vmatpush2.bf16.msra.mxu0 0
        %3826 = vmatprep.subr.bf16.mxu0 0
        %3827 = vmatpush2.bf16.msra.mxu0 0
        %3828 = vmatprep.subr.bf16.mxu0 0
        %3829 = vmatpush2.bf16.msra.mxu0 0
        %3830 = vmatprep.subr.bf16.mxu0 0
        %3831 = vmatpush2.bf16.msra.mxu0 0
        %3832 = vmatprep.subr.bf16.mxu0 0
        %3833 = vmatpush2.bf16.msra.mxu0 0
        %3834 = vmatprep.subr.bf16.mxu0 0
        %3835 = vmatpush2.bf16.msra.mxu0 0
        %3836 = vmatprep.mubr.bf16.mxu0 0
        %3837 = vmatmul.mubr.bf16.gmra.mxu0 %v3799
        %v3838 = vpop.f32.mrf.mxu0
        %v3839 = vadd.f32 0.0, %v3838
        %v3840 = vpop.f32.mrf.mxu0
        %v3841 = vpop.f32.mrf.mxu0
        %v3842 = vpop.f32.mrf.mxu0
        %3843 = vdwg.mxu0
        %3844 = vrot.lane.b32.xlu0 %v3067, 64
        %v3845 = vpop.permute.xlu0 %3844
        %v3847 = vsel %vm2792, %v3650, 0
        %v3850 = vsel %vm3072, %v3845, 0
        %3852 = vmatprep.subr.bf16.mxu0 0
        %3853 = vmatpush1.bf16.msra.mxu0 0
        %3854 = vmatprep.subr.bf16.mxu0 0
        %3855 = vmatpush1.bf16.msra.mxu0 0
        %3856 = vmatprep.subr.bf16.mxu0 0
        %3857 = vmatpush1.bf16.msra.mxu0 0
        %3858 = vmatprep.subr.bf16.mxu0 0
        %3859 = vmatpush1.bf16.msra.mxu0 0
        %3860 = vmatprep.subr.bf16.mxu0 0
        %3861 = vmatpush1.bf16.msra.mxu0 0
        %3862 = vmatprep.subr.bf16.mxu0 0
        %3863 = vmatpush1.bf16.msra.mxu0 0
        %3864 = vmatprep.subr.bf16.mxu0 0
        %3865 = vmatpush1.bf16.msra.mxu0 0
        %3866 = vmatprep.subr.bf16.mxu0 0
        %3867 = vmatpush1.bf16.msra.mxu0 %v3850
        %3868 = vmatprep.subr.bf16.mxu0 0
        %3869 = vmatpush2.bf16.msra.mxu0 0
        %3870 = vmatprep.subr.bf16.mxu0 0
        %3871 = vmatpush2.bf16.msra.mxu0 0
        %3872 = vmatprep.subr.bf16.mxu0 0
        %3873 = vmatpush2.bf16.msra.mxu0 0
        %3874 = vmatprep.subr.bf16.mxu0 0
        %3875 = vmatpush2.bf16.msra.mxu0 0
        %3876 = vmatprep.subr.bf16.mxu0 0
        %3877 = vmatpush2.bf16.msra.mxu0 0
        %3878 = vmatprep.subr.bf16.mxu0 0
        %3879 = vmatpush2.bf16.msra.mxu0 0
        %3880 = vmatprep.subr.bf16.mxu0 0
        %3881 = vmatpush2.bf16.msra.mxu0 0
        %3882 = vmatprep.subr.bf16.mxu0 0
        %3883 = vmatpush2.bf16.msra.mxu0 0
        %3884 = vmatprep.mubr.bf16.mxu0 0
        %3885 = vmatmul.mubr.bf16.gmra.mxu0 %v3847
        %v3886 = vpop.f32.mrf.mxu0
        %v3887 = vadd.f32 0.0, %v3886
        %v3888 = vpop.f32.mrf.mxu0
        %v3889 = vpop.f32.mrf.mxu0
        %v3890 = vpop.f32.mrf.mxu0
        %3891 = vdwg.mxu0
        %3892 = vrot.lane.b32.xlu0 %v3068, 64
        %v3893 = vpop.permute.xlu0 %3892
        %v3895 = vsel %vm2792, %v3651, 0
        %v3898 = vsel %vm3072, %v3893, 0
        %3900 = vmatprep.subr.bf16.mxu0 0
        %3901 = vmatpush1.bf16.msra.mxu0 0
        %3902 = vmatprep.subr.bf16.mxu0 0
        %3903 = vmatpush1.bf16.msra.mxu0 0
        %3904 = vmatprep.subr.bf16.mxu0 0
        %3905 = vmatpush1.bf16.msra.mxu0 0
        %3906 = vmatprep.subr.bf16.mxu0 0
        %3907 = vmatpush1.bf16.msra.mxu0 0
        %3908 = vmatprep.subr.bf16.mxu0 0
        %3909 = vmatpush1.bf16.msra.mxu0 0
        %3910 = vmatprep.subr.bf16.mxu0 0
        %3911 = vmatpush1.bf16.msra.mxu0 0
        %3912 = vmatprep.subr.bf16.mxu0 0
        %3913 = vmatpush1.bf16.msra.mxu0 0
        %3914 = vmatprep.subr.bf16.mxu0 0
        %3915 = vmatpush1.bf16.msra.mxu0 %v3898
        %3916 = vmatprep.subr.bf16.mxu0 0
        %3917 = vmatpush2.bf16.msra.mxu0 0
        %3918 = vmatprep.subr.bf16.mxu0 0
        %3919 = vmatpush2.bf16.msra.mxu0 0
        %3920 = vmatprep.subr.bf16.mxu0 0
        %3921 = vmatpush2.bf16.msra.mxu0 0
        %3922 = vmatprep.subr.bf16.mxu0 0
        %3923 = vmatpush2.bf16.msra.mxu0 0
        %3924 = vmatprep.subr.bf16.mxu0 0
        %3925 = vmatpush2.bf16.msra.mxu0 0
        %3926 = vmatprep.subr.bf16.mxu0 0
        %3927 = vmatpush2.bf16.msra.mxu0 0
        %3928 = vmatprep.subr.bf16.mxu0 0
        %3929 = vmatpush2.bf16.msra.mxu0 0
        %3930 = vmatprep.subr.bf16.mxu0 0
        %3931 = vmatpush2.bf16.msra.mxu0 0
        %3932 = vmatprep.mubr.bf16.mxu0 0
        %3933 = vmatmul.mubr.bf16.gmra.mxu0 %v3895
        %v3934 = vpop.f32.mrf.mxu0
        %v3935 = vadd.f32 0.0, %v3934
        %v3936 = vpop.f32.mrf.mxu0
        %v3937 = vpop.f32.mrf.mxu0
        %v3938 = vpop.f32.mrf.mxu0
        %3939 = vdwg.mxu0
        %v3940 = vpack.c.bf16 %v3036, %v3036
        %v3941 = vpack.c.bf16 %v3040, %v3040
        %v3942 = vpack.c.bf16 %v3044, %v3044
        %v3943 = vpack.c.bf16 %v3048, %v3048
        %v3944 = vpack.c.bf16 %v3052, %v3052
        %v3945 = vpack.c.bf16 %v3056, %v3056
        %3946 = vrot.lane.b32.xlu0 %v3063, 32
        %v3947 = vpop.permute.xlu0 %3946
        %v3949 = vsel %vm2792, %v3940, 0
        %v3952 = vsel %vm3072, %v3947, 0
        %3954 = vmatprep.subr.bf16.mxu0 0
        %3955 = vmatpush1.bf16.msra.mxu0 0
        %3956 = vmatprep.subr.bf16.mxu0 0
        %3957 = vmatpush1.bf16.msra.mxu0 0
        %3958 = vmatprep.subr.bf16.mxu0 0
        %3959 = vmatpush1.bf16.msra.mxu0 0
        %3960 = vmatprep.subr.bf16.mxu0 0
        %3961 = vmatpush1.bf16.msra.mxu0 0
        %3962 = vmatprep.subr.bf16.mxu0 0
        %3963 = vmatpush1.bf16.msra.mxu0 0
        %3964 = vmatprep.subr.bf16.mxu0 0
        %3965 = vmatpush1.bf16.msra.mxu0 0
        %3966 = vmatprep.subr.bf16.mxu0 0
        %3967 = vmatpush1.bf16.msra.mxu0 0
        %3968 = vmatprep.subr.bf16.mxu0 0
        %3969 = vmatpush1.bf16.msra.mxu0 %v3952
        %3970 = vmatprep.subr.bf16.mxu0 0
        %3971 = vmatpush2.bf16.msra.mxu0 0
        %3972 = vmatprep.subr.bf16.mxu0 0
        %3973 = vmatpush2.bf16.msra.mxu0 0
        %3974 = vmatprep.subr.bf16.mxu0 0
        %3975 = vmatpush2.bf16.msra.mxu0 0
        %3976 = vmatprep.subr.bf16.mxu0 0
        %3977 = vmatpush2.bf16.msra.mxu0 0
        %3978 = vmatprep.subr.bf16.mxu0 0
        %3979 = vmatpush2.bf16.msra.mxu0 0
        %3980 = vmatprep.subr.bf16.mxu0 0
        %3981 = vmatpush2.bf16.msra.mxu0 0
        %3982 = vmatprep.subr.bf16.mxu0 0
        %3983 = vmatpush2.bf16.msra.mxu0 0
        %3984 = vmatprep.subr.bf16.mxu0 0
        %3985 = vmatpush2.bf16.msra.mxu0 0
        %3986 = vmatprep.mubr.bf16.mxu0 0
        %3987 = vmatmul.mubr.bf16.gmra.mxu0 %v3949
        %v3988 = vpop.f32.mrf.mxu0
        %v3989 = vadd.f32 0.0, %v3988
        %v3990 = vpop.f32.mrf.mxu0
        %v3991 = vpop.f32.mrf.mxu0
        %v3992 = vpop.f32.mrf.mxu0
        %3993 = vdwg.mxu0
        %3994 = vrot.lane.b32.xlu0 %v3064, 32
        %v3995 = vpop.permute.xlu0 %3994
        %v3997 = vsel %vm2792, %v3941, 0
        %v4000 = vsel %vm3072, %v3995, 0
        %4002 = vmatprep.subr.bf16.mxu0 0
        %4003 = vmatpush1.bf16.msra.mxu0 0
        %4004 = vmatprep.subr.bf16.mxu0 0
        %4005 = vmatpush1.bf16.msra.mxu0 0
        %4006 = vmatprep.subr.bf16.mxu0 0
        %4007 = vmatpush1.bf16.msra.mxu0 0
        %4008 = vmatprep.subr.bf16.mxu0 0
        %4009 = vmatpush1.bf16.msra.mxu0 0
        %4010 = vmatprep.subr.bf16.mxu0 0
        %4011 = vmatpush1.bf16.msra.mxu0 0
        %4012 = vmatprep.subr.bf16.mxu0 0
        %4013 = vmatpush1.bf16.msra.mxu0 0
        %4014 = vmatprep.subr.bf16.mxu0 0
        %4015 = vmatpush1.bf16.msra.mxu0 0
        %4016 = vmatprep.subr.bf16.mxu0 0
        %4017 = vmatpush1.bf16.msra.mxu0 %v4000
        %4018 = vmatprep.subr.bf16.mxu0 0
        %4019 = vmatpush2.bf16.msra.mxu0 0
        %4020 = vmatprep.subr.bf16.mxu0 0
        %4021 = vmatpush2.bf16.msra.mxu0 0
        %4022 = vmatprep.subr.bf16.mxu0 0
        %4023 = vmatpush2.bf16.msra.mxu0 0
        %4024 = vmatprep.subr.bf16.mxu0 0
        %4025 = vmatpush2.bf16.msra.mxu0 0
        %4026 = vmatprep.subr.bf16.mxu0 0
        %4027 = vmatpush2.bf16.msra.mxu0 0
        %4028 = vmatprep.subr.bf16.mxu0 0
        %4029 = vmatpush2.bf16.msra.mxu0 0
        %4030 = vmatprep.subr.bf16.mxu0 0
        %4031 = vmatpush2.bf16.msra.mxu0 0
        %4032 = vmatprep.subr.bf16.mxu0 0
        %4033 = vmatpush2.bf16.msra.mxu0 0
        %4034 = vmatprep.mubr.bf16.mxu0 0
        %4035 = vmatmul.mubr.bf16.gmra.mxu0 %v3997
        %v4036 = vpop.f32.mrf.mxu0
        %v4037 = vadd.f32 0.0, %v4036
        %v4038 = vpop.f32.mrf.mxu0
        %v4039 = vpop.f32.mrf.mxu0
        %v4040 = vpop.f32.mrf.mxu0
        %4041 = vdwg.mxu0
        %4042 = vrot.lane.b32.xlu0 %v3065, 32
        %v4043 = vpop.permute.xlu0 %4042
        %v4045 = vsel %vm2792, %v3942, 0
        %v4048 = vsel %vm3072, %v4043, 0
        %4050 = vmatprep.subr.bf16.mxu0 0
        %4051 = vmatpush1.bf16.msra.mxu0 0
        %4052 = vmatprep.subr.bf16.mxu0 0
        %4053 = vmatpush1.bf16.msra.mxu0 0
        %4054 = vmatprep.subr.bf16.mxu0 0
        %4055 = vmatpush1.bf16.msra.mxu0 0
        %4056 = vmatprep.subr.bf16.mxu0 0
        %4057 = vmatpush1.bf16.msra.mxu0 0
        %4058 = vmatprep.subr.bf16.mxu0 0
        %4059 = vmatpush1.bf16.msra.mxu0 0
        %4060 = vmatprep.subr.bf16.mxu0 0
        %4061 = vmatpush1.bf16.msra.mxu0 0
        %4062 = vmatprep.subr.bf16.mxu0 0
        %4063 = vmatpush1.bf16.msra.mxu0 0
        %4064 = vmatprep.subr.bf16.mxu0 0
        %4065 = vmatpush1.bf16.msra.mxu0 %v4048
        %4066 = vmatprep.subr.bf16.mxu0 0
        %4067 = vmatpush2.bf16.msra.mxu0 0
        %4068 = vmatprep.subr.bf16.mxu0 0
        %4069 = vmatpush2.bf16.msra.mxu0 0
        %4070 = vmatprep.subr.bf16.mxu0 0
        %4071 = vmatpush2.bf16.msra.mxu0 0
        %4072 = vmatprep.subr.bf16.mxu0 0
        %4073 = vmatpush2.bf16.msra.mxu0 0
        %4074 = vmatprep.subr.bf16.mxu0 0
        %4075 = vmatpush2.bf16.msra.mxu0 0
        %4076 = vmatprep.subr.bf16.mxu0 0
        %4077 = vmatpush2.bf16.msra.mxu0 0
        %4078 = vmatprep.subr.bf16.mxu0 0
        %4079 = vmatpush2.bf16.msra.mxu0 0
        %4080 = vmatprep.subr.bf16.mxu0 0
        %4081 = vmatpush2.bf16.msra.mxu0 0
        %4082 = vmatprep.mubr.bf16.mxu0 0
        %4083 = vmatmul.mubr.bf16.gmra.mxu0 %v4045
        %v4084 = vpop.f32.mrf.mxu0
        %v4085 = vadd.f32 0.0, %v4084
        %v4086 = vpop.f32.mrf.mxu0
        %v4087 = vpop.f32.mrf.mxu0
        %v4088 = vpop.f32.mrf.mxu0
        %4089 = vdwg.mxu0
        %4090 = vrot.lane.b32.xlu0 %v3066, 32
        %v4091 = vpop.permute.xlu0 %4090
        %v4093 = vsel %vm2792, %v3943, 0
        %v4096 = vsel %vm3072, %v4091, 0
        %4098 = vmatprep.subr.bf16.mxu0 0
        %4099 = vmatpush1.bf16.msra.mxu0 0
        %4100 = vmatprep.subr.bf16.mxu0 0
        %4101 = vmatpush1.bf16.msra.mxu0 0
        %4102 = vmatprep.subr.bf16.mxu0 0
        %4103 = vmatpush1.bf16.msra.mxu0 0
        %4104 = vmatprep.subr.bf16.mxu0 0
        %4105 = vmatpush1.bf16.msra.mxu0 0
        %4106 = vmatprep.subr.bf16.mxu0 0
        %4107 = vmatpush1.bf16.msra.mxu0 0
        %4108 = vmatprep.subr.bf16.mxu0 0
        %4109 = vmatpush1.bf16.msra.mxu0 0
        %4110 = vmatprep.subr.bf16.mxu0 0
        %4111 = vmatpush1.bf16.msra.mxu0 0
        %4112 = vmatprep.subr.bf16.mxu0 0
        %4113 = vmatpush1.bf16.msra.mxu0 %v4096
        %4114 = vmatprep.subr.bf16.mxu0 0
        %4115 = vmatpush2.bf16.msra.mxu0 0
        %4116 = vmatprep.subr.bf16.mxu0 0
        %4117 = vmatpush2.bf16.msra.mxu0 0
        %4118 = vmatprep.subr.bf16.mxu0 0
        %4119 = vmatpush2.bf16.msra.mxu0 0
        %4120 = vmatprep.subr.bf16.mxu0 0
        %4121 = vmatpush2.bf16.msra.mxu0 0
        %4122 = vmatprep.subr.bf16.mxu0 0
        %4123 = vmatpush2.bf16.msra.mxu0 0
        %4124 = vmatprep.subr.bf16.mxu0 0
        %4125 = vmatpush2.bf16.msra.mxu0 0
        %4126 = vmatprep.subr.bf16.mxu0 0
        %4127 = vmatpush2.bf16.msra.mxu0 0
        %4128 = vmatprep.subr.bf16.mxu0 0
        %4129 = vmatpush2.bf16.msra.mxu0 0
        %4130 = vmatprep.mubr.bf16.mxu0 0
        %4131 = vmatmul.mubr.bf16.gmra.mxu0 %v4093
        %v4132 = vpop.f32.mrf.mxu0
        %v4133 = vadd.f32 0.0, %v4132
        %v4134 = vpop.f32.mrf.mxu0
        %v4135 = vpop.f32.mrf.mxu0
        %v4136 = vpop.f32.mrf.mxu0
        %4137 = vdwg.mxu0
        %4138 = vrot.lane.b32.xlu0 %v3067, 32
        %v4139 = vpop.permute.xlu0 %4138
        %v4141 = vsel %vm2792, %v3944, 0
        %v4144 = vsel %vm3072, %v4139, 0
        %4146 = vmatprep.subr.bf16.mxu0 0
        %4147 = vmatpush1.bf16.msra.mxu0 0
        %4148 = vmatprep.subr.bf16.mxu0 0
        %4149 = vmatpush1.bf16.msra.mxu0 0
        %4150 = vmatprep.subr.bf16.mxu0 0
        %4151 = vmatpush1.bf16.msra.mxu0 0
        %4152 = vmatprep.subr.bf16.mxu0 0
        %4153 = vmatpush1.bf16.msra.mxu0 0
        %4154 = vmatprep.subr.bf16.mxu0 0
        %4155 = vmatpush1.bf16.msra.mxu0 0
        %4156 = vmatprep.subr.bf16.mxu0 0
        %4157 = vmatpush1.bf16.msra.mxu0 0
        %4158 = vmatprep.subr.bf16.mxu0 0
        %4159 = vmatpush1.bf16.msra.mxu0 0
        %4160 = vmatprep.subr.bf16.mxu0 0
        %4161 = vmatpush1.bf16.msra.mxu0 %v4144
        %4162 = vmatprep.subr.bf16.mxu0 0
        %4163 = vmatpush2.bf16.msra.mxu0 0
        %4164 = vmatprep.subr.bf16.mxu0 0
        %4165 = vmatpush2.bf16.msra.mxu0 0
        %4166 = vmatprep.subr.bf16.mxu0 0
        %4167 = vmatpush2.bf16.msra.mxu0 0
        %4168 = vmatprep.subr.bf16.mxu0 0
        %4169 = vmatpush2.bf16.msra.mxu0 0
        %4170 = vmatprep.subr.bf16.mxu0 0
        %4171 = vmatpush2.bf16.msra.mxu0 0
        %4172 = vmatprep.subr.bf16.mxu0 0
        %4173 = vmatpush2.bf16.msra.mxu0 0
        %4174 = vmatprep.subr.bf16.mxu0 0
        %4175 = vmatpush2.bf16.msra.mxu0 0
        %4176 = vmatprep.subr.bf16.mxu0 0
        %4177 = vmatpush2.bf16.msra.mxu0 0
        %4178 = vmatprep.mubr.bf16.mxu0 0
        %4179 = vmatmul.mubr.bf16.gmra.mxu0 %v4141
        %v4180 = vpop.f32.mrf.mxu0
        %v4181 = vadd.f32 0.0, %v4180
        %v4182 = vpop.f32.mrf.mxu0
        %v4183 = vpop.f32.mrf.mxu0
        %v4184 = vpop.f32.mrf.mxu0
        %4185 = vdwg.mxu0
        %4186 = vrot.lane.b32.xlu0 %v3068, 32
        %v4187 = vpop.permute.xlu0 %4186
        %v4189 = vsel %vm2792, %v3945, 0
        %v4192 = vsel %vm3072, %v4187, 0
        %4194 = vmatprep.subr.bf16.mxu0 0
        %4195 = vmatpush1.bf16.msra.mxu0 0
        %4196 = vmatprep.subr.bf16.mxu0 0
        %4197 = vmatpush1.bf16.msra.mxu0 0
        %4198 = vmatprep.subr.bf16.mxu0 0
        %4199 = vmatpush1.bf16.msra.mxu0 0
        %4200 = vmatprep.subr.bf16.mxu0 0
        %4201 = vmatpush1.bf16.msra.mxu0 0
        %4202 = vmatprep.subr.bf16.mxu0 0
        %4203 = vmatpush1.bf16.msra.mxu0 0
        %4204 = vmatprep.subr.bf16.mxu0 0
        %4205 = vmatpush1.bf16.msra.mxu0 0
        %4206 = vmatprep.subr.bf16.mxu0 0
        %4207 = vmatpush1.bf16.msra.mxu0 0
        %4208 = vmatprep.subr.bf16.mxu0 0
        %4209 = vmatpush1.bf16.msra.mxu0 %v4192
        %4210 = vmatprep.subr.bf16.mxu0 0
        %4211 = vmatpush2.bf16.msra.mxu0 0
        %4212 = vmatprep.subr.bf16.mxu0 0
        %4213 = vmatpush2.bf16.msra.mxu0 0
        %4214 = vmatprep.subr.bf16.mxu0 0
        %4215 = vmatpush2.bf16.msra.mxu0 0
        %4216 = vmatprep.subr.bf16.mxu0 0
        %4217 = vmatpush2.bf16.msra.mxu0 0
        %4218 = vmatprep.subr.bf16.mxu0 0
        %4219 = vmatpush2.bf16.msra.mxu0 0
        %4220 = vmatprep.subr.bf16.mxu0 0
        %4221 = vmatpush2.bf16.msra.mxu0 0
        %4222 = vmatprep.subr.bf16.mxu0 0
        %4223 = vmatpush2.bf16.msra.mxu0 0
        %4224 = vmatprep.subr.bf16.mxu0 0
        %4225 = vmatpush2.bf16.msra.mxu0 0
        %4226 = vmatprep.mubr.bf16.mxu0 0
        %4227 = vmatmul.mubr.bf16.gmra.mxu0 %v4189
        %v4228 = vpop.f32.mrf.mxu0
        %v4229 = vadd.f32 0.0, %v4228
        %v4230 = vpop.f32.mrf.mxu0
        %v4231 = vpop.f32.mrf.mxu0
        %v4232 = vpop.f32.mrf.mxu0
        %4233 = vdwg.mxu0
        %4240 = vrot.lane.b32.xlu0 %v3396, 32
        %v4241 = vpop.permute.xlu0 %4240
        %4242 = vrot.lane.b32.xlu0 %v3445, 32
        %v4243 = vpop.permute.xlu0 %4242
        %4244 = vrot.lane.b32.xlu0 %v3494, 32
        %v4245 = vpop.permute.xlu0 %4244
        %4246 = vrot.lane.b32.xlu0 %v3543, 32
        %v4247 = vpop.permute.xlu0 %4246
        %4248 = vrot.lane.b32.xlu0 %v3592, 32
        %v4249 = vpop.permute.xlu0 %4248
        %4250 = vrot.lane.b32.xlu0 %v3641, 32
        %v4251 = vpop.permute.xlu0 %4250
        %4264 = vrot.lane.b32.xlu0 %v3695, 64
        %v4265 = vpop.permute.xlu0 %4264
        %4266 = vrot.lane.b32.xlu0 %v3743, 64
        %v4267 = vpop.permute.xlu0 %4266
        %4268 = vrot.lane.b32.xlu0 %v3791, 64
        %v4269 = vpop.permute.xlu0 %4268
        %4270 = vrot.lane.b32.xlu0 %v3839, 64
        %v4271 = vpop.permute.xlu0 %4270
        %4272 = vrot.lane.b32.xlu0 %v3887, 64
        %v4273 = vpop.permute.xlu0 %4272
        %4274 = vrot.lane.b32.xlu0 %v3935, 64
        %v4275 = vpop.permute.xlu0 %4274
        %4288 = vrot.lane.b32.xlu0 %v3989, 96
        %v4289 = vpop.permute.xlu0 %4288
        %4290 = vrot.lane.b32.xlu0 %v4037, 96
        %v4291 = vpop.permute.xlu0 %4290
        %4292 = vrot.lane.b32.xlu0 %v4085, 96
        %v4293 = vpop.permute.xlu0 %4292
        %4294 = vrot.lane.b32.xlu0 %v4133, 96
        %v4295 = vpop.permute.xlu0 %4294
        %4296 = vrot.lane.b32.xlu0 %v4181, 96
        %v4297 = vpop.permute.xlu0 %4296
        %4298 = vrot.lane.b32.xlu0 %v4229, 96
        %v4299 = vpop.permute.xlu0 %4298
        %v4306 = vsel %vm1555, %v3111, %v4241
        %v4307 = vsel %vm1555, %v3157, %v4243
        %v4308 = vsel %vm1555, %v3203, %v4245
        %v4309 = vsel %vm1555, %v3249, %v4247
        %v4310 = vsel %vm1555, %v3295, %v4249
        %v4311 = vsel %vm1555, %v3341, %v4251
        %vm4312 = vcmask 523264
        %v4313 = vsel %vm4312, %v4306, %v4265
        %v4314 = vsel %vm4312, %v4307, %v4267
        %v4315 = vsel %vm4312, %v4308, %v4269
        %v4316 = vsel %vm4312, %v4309, %v4271
        %v4317 = vsel %vm4312, %v4310, %v4273
        %v4318 = vsel %vm4312, %v4311, %v4275
        %vm4319 = vcmask 785408
        %v4320 = vsel %vm4319, %v4313, %v4289
        %v4321 = vsel %vm4319, %v4314, %v4291
        %v4322 = vsel %vm4319, %v4315, %v4293
        %v4323 = vsel %vm4319, %v4316, %v4295
        %v4324 = vsel %vm4319, %v4317, %v4297
        %v4325 = vsel %vm4319, %v4318, %v4299
        %v4326 = vpack.c.bf16 %v4321, %v4320
        %v4327 = vpack.c.bf16 %v4323, %v4322
        %v4328 = vpack.c.bf16 %v4325, %v4324
        %v4329 = vld [vmem:[%s881] sm:$0xf]
        %v4330 = vld [vmem:[%s881 + $0x4] sm:$0xf]
        %v4331 = vld [vmem:[%s881 + $0x8] sm:$0xf]
        %v4332 = vld [vmem:[%s881 + $0xc] sm:$0xf]
        %v4333 = vld [vmem:[%s881 + $0x10] sm:$0xf]
        %v4334 = vld [vmem:[%s881 + $0x14] sm:$0xf]
        %v4335 = vld [vmem:[%s881 + $0x18] sm:$0xf]
        %v4336 = vld [vmem:[%s881 + $0x1c] sm:$0xf]
        %v4337 = vld [vmem:[%s881 + $0x20] sm:$0xf]
        %v4338 = vld [vmem:[%s881 + $0x24] sm:$0xf]
        %v4339 = vld [vmem:[%s881 + $0x28] sm:$0xf]
        %v4340 = vld [vmem:[%s881 + $0x2c] sm:$0xf]
        %v4341 = vld [vmem:[%s881 + $0x30] sm:$0xf]
        %v4342 = vld [vmem:[%s881 + $0x34] sm:$0xf]
        %v4343 = vld [vmem:[%s881 + $0x38] sm:$0xf]
        %v4344 = vld [vmem:[%s881 + $0x3c] sm:$0xf]
        %v4361 = vunpack.c.l.b16 %v4329
        %v4362 = vunpack.c.l.b16 %v4330
        %v4363 = vunpack.c.l.b16 %v4331
        %v4364 = vunpack.c.l.b16 %v4332
        %v4365 = vunpack.c.l.b16 %v4333
        %v4366 = vunpack.c.l.b16 %v4334
        %v4367 = vunpack.c.l.b16 %v4335
        %v4368 = vunpack.c.l.b16 %v4336
        %v4369 = vunpack.c.l.b16 %v4337
        %v4370 = vunpack.c.l.b16 %v4338
        %v4371 = vunpack.c.l.b16 %v4339
        %v4372 = vunpack.c.l.b16 %v4340
        %v4373 = vunpack.c.l.b16 %v4341
        %v4374 = vunpack.c.l.b16 %v4342
        %v4375 = vunpack.c.l.b16 %v4343
        %v4376 = vunpack.c.l.b16 %v4344
        %v4377 = vpack.c.b16 %v4362, %v4361
        %v4378 = vpack.c.b16 %v4364, %v4363
        %v4379 = vpack.c.b16 %v4366, %v4365
        %v4380 = vpack.c.b16 %v4368, %v4367
        %v4381 = vpack.c.b16 %v4370, %v4369
        %v4382 = vpack.c.b16 %v4372, %v4371
        %v4383 = vpack.c.b16 %v4374, %v4373
        %v4384 = vpack.c.b16 %v4376, %v4375
        %4393 = vmatprep.subr.bf16.mxu0 0
        %4394 = vmatpush1.bf16.msra.mxu0 %v4384
        %4395 = vmatprep.subr.bf16.mxu0 0
        %4396 = vmatpush1.bf16.msra.mxu0 %v4383
        %4397 = vmatprep.subr.bf16.mxu0 0
        %4398 = vmatpush1.bf16.msra.mxu0 %v4382
        %4399 = vmatprep.subr.bf16.mxu0 0
        %4400 = vmatpush1.bf16.msra.mxu0 %v4381
        %4401 = vmatprep.subr.bf16.mxu0 0
        %4402 = vmatpush1.bf16.msra.mxu0 %v4380
        %4403 = vmatprep.subr.bf16.mxu0 0
        %4404 = vmatpush1.bf16.msra.mxu0 %v4379
        %4405 = vmatprep.subr.bf16.mxu0 0
        %4406 = vmatpush1.bf16.msra.mxu0 %v4378
        %4407 = vmatprep.subr.bf16.mxu0 0
        %4408 = vmatpush1.bf16.msra.mxu0 %v4377
        %4409 = vmatprep.subr.bf16.mxu0 0
        %4410 = vmatpush2.bf16.msra.mxu0 0
        %4411 = vmatprep.subr.bf16.mxu0 0
        %4412 = vmatpush2.bf16.msra.mxu0 0
        %4413 = vmatprep.subr.bf16.mxu0 0
        %4414 = vmatpush2.bf16.msra.mxu0 0
        %4415 = vmatprep.subr.bf16.mxu0 0
        %4416 = vmatpush2.bf16.msra.mxu0 0
        %4417 = vmatprep.subr.bf16.mxu0 0
        %4418 = vmatpush2.bf16.msra.mxu0 0
        %4419 = vmatprep.subr.bf16.mxu0 0
        %4420 = vmatpush2.bf16.msra.mxu0 0
        %4421 = vmatprep.subr.bf16.mxu0 0
        %4422 = vmatpush2.bf16.msra.mxu0 0
        %4423 = vmatprep.subr.bf16.mxu0 0
        %4424 = vmatpush2.bf16.msra.mxu0 0
        %4425 = vmatprep.mubr.bf16.mxu0 0
        %4426 = vmatmul.mubr.bf16.gmra.mxu0 %v4326
        %v4427 = vpop.f32.mrf.mxu0
        %v4428 = vadd.f32 0.0, %v4427
        %v4429 = vpop.f32.mrf.mxu0
        %v4430 = vpop.f32.mrf.mxu0
        %v4431 = vadd.f32 0.0, %v4430
        %v4432 = vpop.f32.mrf.mxu0
        %4433 = vmatprep.mubr.bf16.mxu0 0
        %4434 = vmatmul.mubr.bf16.gmra.mxu0 %v4327
        %v4435 = vpop.f32.mrf.mxu0
        %v4436 = vadd.f32 0.0, %v4435
        %v4437 = vpop.f32.mrf.mxu0
        %v4438 = vpop.f32.mrf.mxu0
        %v4439 = vadd.f32 0.0, %v4438
        %v4440 = vpop.f32.mrf.mxu0
        %4441 = vmatprep.mubr.bf16.mxu0 0
        %4442 = vmatmul.mubr.bf16.gmra.mxu0 %v4328
        %v4443 = vpop.f32.mrf.mxu0
        %v4444 = vadd.f32 0.0, %v4443
        %v4445 = vpop.f32.mrf.mxu0
        %v4446 = vpop.f32.mrf.mxu0
        %v4447 = vadd.f32 0.0, %v4446
        %v4448 = vpop.f32.mrf.mxu0
        %4449 = vdwg.mxu0
        %v4450 = vadd.f32 %v1077, %v4428
        %v4451 = vadd.f32 %v1078, %v4431
        %v4452 = vadd.f32 %v1079, %v4436
        %v4453 = vadd.f32 %v1080, %v4439
        %v4454 = vadd.f32 %v1081, %v4444
        %v4455 = vadd.f32 %v1082, %v4447
        %v4456 = vld [vmem:[%s889] sm:$0x1]
        %v4458 = vlaneseq
        %v4459 = vshrl.u32 %v4458, 7
        %v4460 = vsub.s32 0, %v4459
        %v4461 = vrot.slane %v4456, %v4460
        %v4463 = vadd.f32 %v4450, %v4461
        %v4464 = vadd.f32 %v4451, %v4461
        %v4465 = vadd.f32 %v4452, %v4461
        %v4466 = vadd.f32 %v4453, %v4461
        %v4467 = vadd.f32 %v4454, %v4461
        %v4468 = vadd.f32 %v4455, %v4461
        %v4469 = vld [vmem:[%s897] sm:$0x1]
        %v4470 = vld [vmem:[%s905] sm:$0x1]
        %4471 = vadd.xlane.f32.xlu0 %v4463
        %v4472 = vpop.xlane.xlu0 %4471
        %4473 = vadd.xlane.f32.xlu0 %v4464
        %v4474 = vpop.xlane.xlu0 %4473
        %4475 = vadd.xlane.f32.xlu0 %v4465
        %v4476 = vpop.xlane.xlu0 %4475
        %4477 = vadd.xlane.f32.xlu0 %v4466
        %v4478 = vpop.xlane.xlu0 %4477
        %4479 = vadd.xlane.f32.xlu0 %v4467
        %v4480 = vpop.xlane.xlu0 %4479
        %4481 = vadd.xlane.f32.xlu0 %v4468
        %v4482 = vpop.xlane.xlu0 %4481
        %v4483 = vmul.f32 %v4472, %v1164
        %v4484 = vmul.f32 %v4474, %v1164
        %v4485 = vmul.f32 %v4476, %v1164
        %v4486 = vmul.f32 %v4478, %v1164
        %v4487 = vmul.f32 %v4480, %v1164
        %v4488 = vmul.f32 %v4482, %v1164
        %v4489 = vsub.f32 %v4463, %v4483
        %v4490 = vsub.f32 %v4464, %v4484
        %v4491 = vsub.f32 %v4465, %v4485
        %v4492 = vsub.f32 %v4466, %v4486
        %v4493 = vsub.f32 %v4467, %v4487
        %v4494 = vsub.f32 %v4468, %v4488
        %v4495 = vmul.f32 %v4489, %v4489
        %v4496 = vmul.f32 %v4490, %v4490
        %v4497 = vmul.f32 %v4491, %v4491
        %v4498 = vmul.f32 %v4492, %v4492
        %v4499 = vmul.f32 %v4493, %v4493
        %v4500 = vmul.f32 %v4494, %v4494
        %4501 = vadd.xlane.f32.xlu0 %v4495
        %v4502 = vpop.xlane.xlu0 %4501
        %4503 = vadd.xlane.f32.xlu0 %v4496
        %v4504 = vpop.xlane.xlu0 %4503
        %4505 = vadd.xlane.f32.xlu0 %v4497
        %v4506 = vpop.xlane.xlu0 %4505
        %4507 = vadd.xlane.f32.xlu0 %v4498
        %v4508 = vpop.xlane.xlu0 %4507
        %4509 = vadd.xlane.f32.xlu0 %v4499
        %v4510 = vpop.xlane.xlu0 %4509
        %4511 = vadd.xlane.f32.xlu0 %v4500
        %v4512 = vpop.xlane.xlu0 %4511
        %v4513 = vmul.f32 %v4502, %v1164
        %v4514 = vmul.f32 %v4504, %v1164
        %v4515 = vmul.f32 %v4506, %v1164
        %v4516 = vmul.f32 %v4508, %v1164
        %v4517 = vmul.f32 %v4510, %v1164
        %v4518 = vmul.f32 %v4512, %v1164
        %v4519 = vadd.f32 %v4513, 1e-05
        %v4520 = vadd.f32 %v4514, 1e-05
        %v4521 = vadd.f32 %v4515, 1e-05
        %v4522 = vadd.f32 %v4516, 1e-05
        %v4523 = vadd.f32 %v4517, 1e-05
        %v4524 = vadd.f32 %v4518, 1e-05
        %v4525 = vrsqrt.pop %v4519
        %v4526 = vrsqrt.pop %v4520
        %v4527 = vrsqrt.pop %v4521
        %v4528 = vrsqrt.pop %v4522
        %v4529 = vrsqrt.pop %v4523
        %v4530 = vrsqrt.pop %v4524
        %v4531 = vmul.f32 %v4489, %v4525
        %v4532 = vmul.f32 %v4490, %v4526
        %v4533 = vmul.f32 %v4491, %v4527
        %v4534 = vmul.f32 %v4492, %v4528
        %v4535 = vmul.f32 %v4493, %v4529
        %v4536 = vmul.f32 %v4494, %v4530
        %v4538 = vlaneseq
        %v4539 = vshrl.u32 %v4538, 7
        %v4540 = vsub.s32 0, %v4539
        %v4541 = vrot.slane %v4469, %v4540
        %v4543 = vmul.f32 %v4531, %v4541
        %v4544 = vmul.f32 %v4532, %v4541
        %v4545 = vmul.f32 %v4533, %v4541
        %v4546 = vmul.f32 %v4534, %v4541
        %v4547 = vmul.f32 %v4535, %v4541
        %v4548 = vmul.f32 %v4536, %v4541
        %v4550 = vlaneseq
        %v4551 = vshrl.u32 %v4550, 7
        %v4552 = vsub.s32 0, %v4551
        %v4553 = vrot.slane %v4470, %v4552
        %v4555 = vadd.f32 %v4543, %v4553
        %v4556 = vadd.f32 %v4544, %v4553
        %v4557 = vadd.f32 %v4545, %v4553
        %v4558 = vadd.f32 %v4546, %v4553
        %v4559 = vadd.f32 %v4547, %v4553
        %v4560 = vadd.f32 %v4548, %v4553
        %v4561 = vpack.c.bf16 %v4556, %v4555
        %v4562 = vpack.c.bf16 %v4558, %v4557
        %v4563 = vpack.c.bf16 %v4560, %v4559
        %v4564 = vld [vmem:[%s1059] sm:$0xff]
        %v4565 = vld [vmem:[%s1059 + $0x8] sm:$0xff]
        %v4566 = vld [vmem:[%s1059 + $0x10] sm:$0xff]
        %v4567 = vld [vmem:[%s1059 + $0x18] sm:$0xff]
        %v4568 = vld [vmem:[%s1059 + $0x20] sm:$0xff]
        %v4569 = vld [vmem:[%s1059 + $0x28] sm:$0xff]
        %v4570 = vld [vmem:[%s1059 + $0x30] sm:$0xff]
        %v4571 = vld [vmem:[%s1059 + $0x38] sm:$0xff]
        %v4572 = vld [vmem:[%s1059 + $0x40] sm:$0xff]
        %v4573 = vld [vmem:[%s1059 + $0x48] sm:$0xff]
        %v4574 = vld [vmem:[%s1059 + $0x50] sm:$0xff]
        %v4575 = vld [vmem:[%s1059 + $0x58] sm:$0xff]
        %v4576 = vld [vmem:[%s1059 + $0x60] sm:$0xff]
        %v4577 = vld [vmem:[%s1059 + $0x68] sm:$0xff]
        %v4578 = vld [vmem:[%s1059 + $0x70] sm:$0xff]
        %v4579 = vld [vmem:[%s1059 + $0x78] sm:$0xff]
        %v4580 = vld [vmem:[%s1059 + $0x80] sm:$0xff]
        %v4581 = vld [vmem:[%s1059 + $0x88] sm:$0xff]
        %v4582 = vld [vmem:[%s1059 + $0x90] sm:$0xff]
        %v4583 = vld [vmem:[%s1059 + $0x98] sm:$0xff]
        %v4584 = vld [vmem:[%s1059 + $0xa0] sm:$0xff]
        %v4585 = vld [vmem:[%s1059 + $0xa8] sm:$0xff]
        %v4586 = vld [vmem:[%s1059 + $0xb0] sm:$0xff]
        %v4587 = vld [vmem:[%s1059 + $0xb8] sm:$0xff]
        %v4588 = vld [vmem:[%s1059 + $0xc0] sm:$0xff]
        %v4589 = vld [vmem:[%s1059 + $0xc8] sm:$0xff]
        %v4590 = vld [vmem:[%s1059 + $0xd0] sm:$0xff]
        %v4591 = vld [vmem:[%s1059 + $0xd8] sm:$0xff]
        %v4592 = vld [vmem:[%s1059 + $0xe0] sm:$0xff]
        %v4593 = vld [vmem:[%s1059 + $0xe8] sm:$0xff]
        %v4594 = vld [vmem:[%s1059 + $0xf0] sm:$0xff]
        %v4595 = vld [vmem:[%s1059 + $0xf8] sm:$0xff]
        %v4596 = vld [vmem:[%s914] sm:$0xf]
        %v4598 = vlaneseq
        %v4599 = vshrl.u32 %v4598, 7
        %v4600 = vsub.s32 0, %v4599
        %v4601 = vrot.slane %v4596, %v4600
        %v4602 = vlaneseq
        %v4603 = vshrl.u32 %v4602, 7
        %v4604 = vsub.s32 1, %v4603
        %v4605 = vrot.slane %v4596, %v4604
        %v4606 = vlaneseq
        %v4607 = vshrl.u32 %v4606, 7
        %v4608 = vsub.s32 2, %v4607
        %v4609 = vrot.slane %v4596, %v4608
        %v4610 = vlaneseq
        %v4611 = vshrl.u32 %v4610, 7
        %v4612 = vsub.s32 3, %v4611
        %v4613 = vrot.slane %v4596, %v4612
        %v4650 = vunpack.c.l.b16 %v4564
        %v4651 = vunpack.c.h.b16 %v4564
        %v4652 = vunpack.c.l.b16 %v4565
        %v4653 = vunpack.c.h.b16 %v4565
        %v4654 = vunpack.c.l.b16 %v4566
        %v4655 = vunpack.c.h.b16 %v4566
        %v4656 = vunpack.c.l.b16 %v4567
        %v4657 = vunpack.c.h.b16 %v4567
        %v4658 = vunpack.c.l.b16 %v4568
        %v4659 = vunpack.c.h.b16 %v4568
        %v4660 = vunpack.c.l.b16 %v4569
        %v4661 = vunpack.c.h.b16 %v4569
        %v4662 = vunpack.c.l.b16 %v4570
        %v4663 = vunpack.c.h.b16 %v4570
        %v4664 = vunpack.c.l.b16 %v4571
        %v4665 = vunpack.c.h.b16 %v4571
        %v4666 = vunpack.c.l.b16 %v4572
        %v4667 = vunpack.c.h.b16 %v4572
        %v4668 = vunpack.c.l.b16 %v4573
        %v4669 = vunpack.c.h.b16 %v4573
        %v4670 = vunpack.c.l.b16 %v4574
        %v4671 = vunpack.c.h.b16 %v4574
        %v4672 = vunpack.c.l.b16 %v4575
        %v4673 = vunpack.c.h.b16 %v4575
        %v4674 = vunpack.c.l.b16 %v4576
        %v4675 = vunpack.c.h.b16 %v4576
        %v4676 = vunpack.c.l.b16 %v4577
        %v4677 = vunpack.c.h.b16 %v4577
        %v4678 = vunpack.c.l.b16 %v4578
        %v4679 = vunpack.c.h.b16 %v4578
        %v4680 = vunpack.c.l.b16 %v4579
        %v4681 = vunpack.c.h.b16 %v4579
        %v4682 = vunpack.c.l.b16 %v4580
        %v4683 = vunpack.c.h.b16 %v4580
        %v4684 = vunpack.c.l.b16 %v4581
        %v4685 = vunpack.c.h.b16 %v4581
        %v4686 = vunpack.c.l.b16 %v4582
        %v4687 = vunpack.c.h.b16 %v4582
        %v4688 = vunpack.c.l.b16 %v4583
        %v4689 = vunpack.c.h.b16 %v4583
        %v4690 = vunpack.c.l.b16 %v4584
        %v4691 = vunpack.c.h.b16 %v4584
        %v4692 = vunpack.c.l.b16 %v4585
        %v4693 = vunpack.c.h.b16 %v4585
        %v4694 = vunpack.c.l.b16 %v4586
        %v4695 = vunpack.c.h.b16 %v4586
        %v4696 = vunpack.c.l.b16 %v4587
        %v4697 = vunpack.c.h.b16 %v4587
        %v4698 = vunpack.c.l.b16 %v4588
        %v4699 = vunpack.c.h.b16 %v4588
        %v4700 = vunpack.c.l.b16 %v4589
        %v4701 = vunpack.c.h.b16 %v4589
        %v4702 = vunpack.c.l.b16 %v4590
        %v4703 = vunpack.c.h.b16 %v4590
        %v4704 = vunpack.c.l.b16 %v4591
        %v4705 = vunpack.c.h.b16 %v4591
        %v4706 = vunpack.c.l.b16 %v4592
        %v4707 = vunpack.c.h.b16 %v4592
        %v4708 = vunpack.c.l.b16 %v4593
        %v4709 = vunpack.c.h.b16 %v4593
        %v4710 = vunpack.c.l.b16 %v4594
        %v4711 = vunpack.c.h.b16 %v4594
        %v4712 = vunpack.c.l.b16 %v4595
        %v4713 = vunpack.c.h.b16 %v4595
        %v4714 = vpack.c.b16 %v4654, %v4650
        %v4715 = vpack.c.b16 %v4655, %v4651
        %v4716 = vpack.c.b16 %v4656, %v4652
        %v4717 = vpack.c.b16 %v4657, %v4653
        %v4718 = vpack.c.b16 %v4662, %v4658
        %v4719 = vpack.c.b16 %v4663, %v4659
        %v4720 = vpack.c.b16 %v4664, %v4660
        %v4721 = vpack.c.b16 %v4665, %v4661
        %v4722 = vpack.c.b16 %v4670, %v4666
        %v4723 = vpack.c.b16 %v4671, %v4667
        %v4724 = vpack.c.b16 %v4672, %v4668
        %v4725 = vpack.c.b16 %v4673, %v4669
        %v4726 = vpack.c.b16 %v4678, %v4674
        %v4727 = vpack.c.b16 %v4679, %v4675
        %v4728 = vpack.c.b16 %v4680, %v4676
        %v4729 = vpack.c.b16 %v4681, %v4677
        %v4730 = vpack.c.b16 %v4686, %v4682
        %v4731 = vpack.c.b16 %v4687, %v4683
        %v4732 = vpack.c.b16 %v4688, %v4684
        %v4733 = vpack.c.b16 %v4689, %v4685
        %v4734 = vpack.c.b16 %v4694, %v4690
        %v4735 = vpack.c.b16 %v4695, %v4691
        %v4736 = vpack.c.b16 %v4696, %v4692
        %v4737 = vpack.c.b16 %v4697, %v4693
        %v4738 = vpack.c.b16 %v4702, %v4698
        %v4739 = vpack.c.b16 %v4703, %v4699
        %v4740 = vpack.c.b16 %v4704, %v4700
        %v4741 = vpack.c.b16 %v4705, %v4701
        %v4742 = vpack.c.b16 %v4710, %v4706
        %v4743 = vpack.c.b16 %v4711, %v4707
        %v4744 = vpack.c.b16 %v4712, %v4708
        %v4745 = vpack.c.b16 %v4713, %v4709
        %4778 = vmatprep.subr.bf16.mxu0 %v4743
        %4779 = vmatpush1.bf16.msra.mxu0 %v4742
        %4780 = vmatprep.subr.bf16.mxu0 %v4739
        %4781 = vmatpush1.bf16.msra.mxu0 %v4738
        %4782 = vmatprep.subr.bf16.mxu0 %v4735
        %4783 = vmatpush1.bf16.msra.mxu0 %v4734
        %4784 = vmatprep.subr.bf16.mxu0 %v4731
        %4785 = vmatpush1.bf16.msra.mxu0 %v4730
        %4786 = vmatprep.subr.bf16.mxu0 %v4727
        %4787 = vmatpush1.bf16.msra.mxu0 %v4726
        %4788 = vmatprep.subr.bf16.mxu0 %v4723
        %4789 = vmatpush1.bf16.msra.mxu0 %v4722
        %4790 = vmatprep.subr.bf16.mxu0 %v4719
        %4791 = vmatpush1.bf16.msra.mxu0 %v4718
        %4792 = vmatprep.subr.bf16.mxu0 %v4715
        %4793 = vmatpush1.bf16.msra.mxu0 %v4714
        %4794 = vmatprep.subr.bf16.mxu0 0
        %4795 = vmatpush2.bf16.msra.mxu0 0
        %4796 = vmatprep.subr.bf16.mxu0 0
        %4797 = vmatpush2.bf16.msra.mxu0 0
        %4798 = vmatprep.subr.bf16.mxu0 0
        %4799 = vmatpush2.bf16.msra.mxu0 0
        %4800 = vmatprep.subr.bf16.mxu0 0
        %4801 = vmatpush2.bf16.msra.mxu0 0
        %4802 = vmatprep.subr.bf16.mxu0 0
        %4803 = vmatpush2.bf16.msra.mxu0 0
        %4804 = vmatprep.subr.bf16.mxu0 0
        %4805 = vmatpush2.bf16.msra.mxu0 0
        %4806 = vmatprep.subr.bf16.mxu0 0
        %4807 = vmatpush2.bf16.msra.mxu0 0
        %4808 = vmatprep.subr.bf16.mxu0 0
        %4809 = vmatpush2.bf16.msra.mxu0 0
        %4810 = vmatprep.mubr.bf16.mxu0 0
        %4811 = vmatmul.mubr.bf16.gmra.mxu0 %v4561
        %v4812 = vpop.f32.mrf.mxu0
        %v4813 = vadd.f32 %v4601, %v4812
        %v4814 = vpop.f32.mrf.mxu0
        %v4815 = vadd.f32 %v4605, %v4814
        %v4816 = vpop.f32.mrf.mxu0
        %v4817 = vadd.f32 %v4601, %v4816
        %v4818 = vpop.f32.mrf.mxu0
        %v4819 = vadd.f32 %v4605, %v4818
        %4820 = vmatprep.mubr.bf16.mxu0 0
        %4821 = vmatmul.mubr.bf16.gmra.mxu0 %v4562
        %v4822 = vpop.f32.mrf.mxu0
        %v4823 = vadd.f32 %v4601, %v4822
        %v4824 = vpop.f32.mrf.mxu0
        %v4825 = vadd.f32 %v4605, %v4824
        %v4826 = vpop.f32.mrf.mxu0
        %v4827 = vadd.f32 %v4601, %v4826
        %v4828 = vpop.f32.mrf.mxu0
        %v4829 = vadd.f32 %v4605, %v4828
        %4830 = vmatprep.mubr.bf16.mxu0 0
        %4831 = vmatmul.mubr.bf16.gmra.mxu0 %v4563
        %v4832 = vpop.f32.mrf.mxu0
        %v4833 = vadd.f32 %v4601, %v4832
        %v4834 = vpop.f32.mrf.mxu0
        %v4835 = vadd.f32 %v4605, %v4834
        %v4836 = vpop.f32.mrf.mxu0
        %v4837 = vadd.f32 %v4601, %v4836
        %v4838 = vpop.f32.mrf.mxu0
        %v4839 = vadd.f32 %v4605, %v4838
        %4840 = vdwg.mxu0
        %4841 = vmatprep.subr.bf16.mxu0 %v4745
        %4842 = vmatpush1.bf16.msra.mxu0 %v4744
        %4843 = vmatprep.subr.bf16.mxu0 %v4741
        %4844 = vmatpush1.bf16.msra.mxu0 %v4740
        %4845 = vmatprep.subr.bf16.mxu0 %v4737
        %4846 = vmatpush1.bf16.msra.mxu0 %v4736
        %4847 = vmatprep.subr.bf16.mxu0 %v4733
        %4848 = vmatpush1.bf16.msra.mxu0 %v4732
        %4849 = vmatprep.subr.bf16.mxu0 %v4729
        %4850 = vmatpush1.bf16.msra.mxu0 %v4728
        %4851 = vmatprep.subr.bf16.mxu0 %v4725
        %4852 = vmatpush1.bf16.msra.mxu0 %v4724
        %4853 = vmatprep.subr.bf16.mxu0 %v4721
        %4854 = vmatpush1.bf16.msra.mxu0 %v4720
        %4855 = vmatprep.subr.bf16.mxu0 %v4717
        %4856 = vmatpush1.bf16.msra.mxu0 %v4716
        %4857 = vmatprep.subr.bf16.mxu0 0
        %4858 = vmatpush2.bf16.msra.mxu0 0
        %4859 = vmatprep.subr.bf16.mxu0 0
        %4860 = vmatpush2.bf16.msra.mxu0 0
        %4861 = vmatprep.subr.bf16.mxu0 0
        %4862 = vmatpush2.bf16.msra.mxu0 0
        %4863 = vmatprep.subr.bf16.mxu0 0
        %4864 = vmatpush2.bf16.msra.mxu0 0
        %4865 = vmatprep.subr.bf16.mxu0 0
        %4866 = vmatpush2.bf16.msra.mxu0 0
        %4867 = vmatprep.subr.bf16.mxu0 0
        %4868 = vmatpush2.bf16.msra.mxu0 0
        %4869 = vmatprep.subr.bf16.mxu0 0
        %4870 = vmatpush2.bf16.msra.mxu0 0
        %4871 = vmatprep.subr.bf16.mxu0 0
        %4872 = vmatpush2.bf16.msra.mxu0 0
        %4873 = vmatprep.mubr.bf16.mxu0 0
        %4874 = vmatmul.mubr.bf16.gmra.mxu0 %v4561
        %v4875 = vpop.f32.mrf.mxu0
        %v4876 = vadd.f32 %v4609, %v4875
        %v4877 = vpop.f32.mrf.mxu0
        %v4878 = vadd.f32 %v4613, %v4877
        %v4879 = vpop.f32.mrf.mxu0
        %v4880 = vadd.f32 %v4609, %v4879
        %v4881 = vpop.f32.mrf.mxu0
        %v4882 = vadd.f32 %v4613, %v4881
        %4883 = vmatprep.mubr.bf16.mxu0 0
        %4884 = vmatmul.mubr.bf16.gmra.mxu0 %v4562
        %v4885 = vpop.f32.mrf.mxu0
        %v4886 = vadd.f32 %v4609, %v4885
        %v4887 = vpop.f32.mrf.mxu0
        %v4888 = vadd.f32 %v4613, %v4887
        %v4889 = vpop.f32.mrf.mxu0
        %v4890 = vadd.f32 %v4609, %v4889
        %v4891 = vpop.f32.mrf.mxu0
        %v4892 = vadd.f32 %v4613, %v4891
        %4893 = vmatprep.mubr.bf16.mxu0 0
        %4894 = vmatmul.mubr.bf16.gmra.mxu0 %v4563
        %v4895 = vpop.f32.mrf.mxu0
        %v4896 = vadd.f32 %v4609, %v4895
        %v4897 = vpop.f32.mrf.mxu0
        %v4898 = vadd.f32 %v4613, %v4897
        %v4899 = vpop.f32.mrf.mxu0
        %v4900 = vadd.f32 %v4609, %v4899
        %v4901 = vpop.f32.mrf.mxu0
        %v4902 = vadd.f32 %v4613, %v4901
        %4903 = vdwg.mxu0
        %v4904 = vmul.f32 %v4813, 0.5
        %v4905 = vmul.f32 %v4815, 0.5
        %v4906 = vmul.f32 %v4876, 0.5
        %v4907 = vmul.f32 %v4878, 0.5
        %v4908 = vmul.f32 %v4817, 0.5
        %v4909 = vmul.f32 %v4819, 0.5
        %v4910 = vmul.f32 %v4880, 0.5
        %v4911 = vmul.f32 %v4882, 0.5
        %v4912 = vmul.f32 %v4823, 0.5
        %v4913 = vmul.f32 %v4825, 0.5
        %v4914 = vmul.f32 %v4886, 0.5
        %v4915 = vmul.f32 %v4888, 0.5
        %v4916 = vmul.f32 %v4827, 0.5
        %v4917 = vmul.f32 %v4829, 0.5
        %v4918 = vmul.f32 %v4890, 0.5
        %v4919 = vmul.f32 %v4892, 0.5
        %v4920 = vmul.f32 %v4833, 0.5
        %v4921 = vmul.f32 %v4835, 0.5
        %v4922 = vmul.f32 %v4896, 0.5
        %v4923 = vmul.f32 %v4898, 0.5
        %v4924 = vmul.f32 %v4837, 0.5
        %v4925 = vmul.f32 %v4839, 0.5
        %v4926 = vmul.f32 %v4900, 0.5
        %v4927 = vmul.f32 %v4902, 0.5
        %v4928 = vmul.f32 %v4813, 0.044715
        %v4929 = vmul.f32 %v4815, 0.044715
        %v4930 = vmul.f32 %v4876, 0.044715
        %v4931 = vmul.f32 %v4878, 0.044715
        %v4932 = vmul.f32 %v4817, 0.044715
        %v4933 = vmul.f32 %v4819, 0.044715
        %v4934 = vmul.f32 %v4880, 0.044715
        %v4935 = vmul.f32 %v4882, 0.044715
        %v4936 = vmul.f32 %v4823, 0.044715
        %v4937 = vmul.f32 %v4825, 0.044715
        %v4938 = vmul.f32 %v4886, 0.044715
        %v4939 = vmul.f32 %v4888, 0.044715
        %v4940 = vmul.f32 %v4827, 0.044715
        %v4941 = vmul.f32 %v4829, 0.044715
        %v4942 = vmul.f32 %v4890, 0.044715
        %v4943 = vmul.f32 %v4892, 0.044715
        %v4944 = vmul.f32 %v4833, 0.044715
        %v4945 = vmul.f32 %v4835, 0.044715
        %v4946 = vmul.f32 %v4896, 0.044715
        %v4947 = vmul.f32 %v4898, 0.044715
        %v4948 = vmul.f32 %v4837, 0.044715
        %v4949 = vmul.f32 %v4839, 0.044715
        %v4950 = vmul.f32 %v4900, 0.044715
        %v4951 = vmul.f32 %v4902, 0.044715
        %v4952 = vmul.f32 %v4928, %v4813
        %v4953 = vmul.f32 %v4929, %v4815
        %v4954 = vmul.f32 %v4930, %v4876
        %v4955 = vmul.f32 %v4931, %v4878
        %v4956 = vmul.f32 %v4932, %v4817
        %v4957 = vmul.f32 %v4933, %v4819
        %v4958 = vmul.f32 %v4934, %v4880
        %v4959 = vmul.f32 %v4935, %v4882
        %v4960 = vmul.f32 %v4936, %v4823
        %v4961 = vmul.f32 %v4937, %v4825
        %v4962 = vmul.f32 %v4938, %v4886
        %v4963 = vmul.f32 %v4939, %v4888
        %v4964 = vmul.f32 %v4940, %v4827
        %v4965 = vmul.f32 %v4941, %v4829
        %v4966 = vmul.f32 %v4942, %v4890
        %v4967 = vmul.f32 %v4943, %v4892
        %v4968 = vmul.f32 %v4944, %v4833
        %v4969 = vmul.f32 %v4945, %v4835
        %v4970 = vmul.f32 %v4946, %v4896
        %v4971 = vmul.f32 %v4947, %v4898
        %v4972 = vmul.f32 %v4948, %v4837
        %v4973 = vmul.f32 %v4949, %v4839
        %v4974 = vmul.f32 %v4950, %v4900
        %v4975 = vmul.f32 %v4951, %v4902
        %v4976 = vmul.f32 %v4952, %v4813
        %v4977 = vmul.f32 %v4953, %v4815
        %v4978 = vmul.f32 %v4954, %v4876
        %v4979 = vmul.f32 %v4955, %v4878
        %v4980 = vmul.f32 %v4956, %v4817
        %v4981 = vmul.f32 %v4957, %v4819
        %v4982 = vmul.f32 %v4958, %v4880
        %v4983 = vmul.f32 %v4959, %v4882
        %v4984 = vmul.f32 %v4960, %v4823
        %v4985 = vmul.f32 %v4961, %v4825
        %v4986 = vmul.f32 %v4962, %v4886
        %v4987 = vmul.f32 %v4963, %v4888
        %v4988 = vmul.f32 %v4964, %v4827
        %v4989 = vmul.f32 %v4965, %v4829
        %v4990 = vmul.f32 %v4966, %v4890
        %v4991 = vmul.f32 %v4967, %v4892
        %v4992 = vmul.f32 %v4968, %v4833
        %v4993 = vmul.f32 %v4969, %v4835
        %v4994 = vmul.f32 %v4970, %v4896
        %v4995 = vmul.f32 %v4971, %v4898
        %v4996 = vmul.f32 %v4972, %v4837
        %v4997 = vmul.f32 %v4973, %v4839
        %v4998 = vmul.f32 %v4974, %v4900
        %v4999 = vmul.f32 %v4975, %v4902
        %v5000 = vadd.f32 %v4813, %v4976
        %v5001 = vadd.f32 %v4815, %v4977
        %v5002 = vadd.f32 %v4876, %v4978
        %v5003 = vadd.f32 %v4878, %v4979
        %v5004 = vadd.f32 %v4817, %v4980
        %v5005 = vadd.f32 %v4819, %v4981
        %v5006 = vadd.f32 %v4880, %v4982
        %v5007 = vadd.f32 %v4882, %v4983
        %v5008 = vadd.f32 %v4823, %v4984
        %v5009 = vadd.f32 %v4825, %v4985
        %v5010 = vadd.f32 %v4886, %v4986
        %v5011 = vadd.f32 %v4888, %v4987
        %v5012 = vadd.f32 %v4827, %v4988
        %v5013 = vadd.f32 %v4829, %v4989
        %v5014 = vadd.f32 %v4890, %v4990
        %v5015 = vadd.f32 %v4892, %v4991
        %v5016 = vadd.f32 %v4833, %v4992
        %v5017 = vadd.f32 %v4835, %v4993
        %v5018 = vadd.f32 %v4896, %v4994
        %v5019 = vadd.f32 %v4898, %v4995
        %v5020 = vadd.f32 %v4837, %v4996
        %v5021 = vadd.f32 %v4839, %v4997
        %v5022 = vadd.f32 %v4900, %v4998
        %v5023 = vadd.f32 %v4902, %v4999
        %v5024 = vmul.f32 %v5000, 0.7978846
        %v5025 = vmul.f32 %v5001, 0.7978846
        %v5026 = vmul.f32 %v5002, 0.7978846
        %v5027 = vmul.f32 %v5003, 0.7978846
        %v5028 = vmul.f32 %v5004, 0.7978846
        %v5029 = vmul.f32 %v5005, 0.7978846
        %v5030 = vmul.f32 %v5006, 0.7978846
        %v5031 = vmul.f32 %v5007, 0.7978846
        %v5032 = vmul.f32 %v5008, 0.7978846
        %v5033 = vmul.f32 %v5009, 0.7978846
        %v5034 = vmul.f32 %v5010, 0.7978846
        %v5035 = vmul.f32 %v5011, 0.7978846
        %v5036 = vmul.f32 %v5012, 0.7978846
        %v5037 = vmul.f32 %v5013, 0.7978846
        %v5038 = vmul.f32 %v5014, 0.7978846
        %v5039 = vmul.f32 %v5015, 0.7978846
        %v5040 = vmul.f32 %v5016, 0.7978846
        %v5041 = vmul.f32 %v5017, 0.7978846
        %v5042 = vmul.f32 %v5018, 0.7978846
        %v5043 = vmul.f32 %v5019, 0.7978846
        %v5044 = vmul.f32 %v5020, 0.7978846
        %v5045 = vmul.f32 %v5021, 0.7978846
        %v5046 = vmul.f32 %v5022, 0.7978846
        %v5047 = vmul.f32 %v5023, 0.7978846
        %v5048 = vtanh.pop %v5024
        %v5049 = vtanh.pop %v5025
        %v5050 = vtanh.pop %v5026
        %v5051 = vtanh.pop %v5027
        %v5052 = vtanh.pop %v5028
        %v5053 = vtanh.pop %v5029
        %v5054 = vtanh.pop %v5030
        %v5055 = vtanh.pop %v5031
        %v5056 = vtanh.pop %v5032
        %v5057 = vtanh.pop %v5033
        %v5058 = vtanh.pop %v5034
        %v5059 = vtanh.pop %v5035
        %v5060 = vtanh.pop %v5036
        %v5061 = vtanh.pop %v5037
        %v5062 = vtanh.pop %v5038
        %v5063 = vtanh.pop %v5039
        %v5064 = vtanh.pop %v5040
        %v5065 = vtanh.pop %v5041
        %v5066 = vtanh.pop %v5042
        %v5067 = vtanh.pop %v5043
        %v5068 = vtanh.pop %v5044
        %v5069 = vtanh.pop %v5045
        %v5070 = vtanh.pop %v5046
        %v5071 = vtanh.pop %v5047
        %v5072 = vadd.f32 %v5048, 1.0
        %v5073 = vadd.f32 %v5049, 1.0
        %v5074 = vadd.f32 %v5050, 1.0
        %v5075 = vadd.f32 %v5051, 1.0
        %v5076 = vadd.f32 %v5052, 1.0
        %v5077 = vadd.f32 %v5053, 1.0
        %v5078 = vadd.f32 %v5054, 1.0
        %v5079 = vadd.f32 %v5055, 1.0
        %v5080 = vadd.f32 %v5056, 1.0
        %v5081 = vadd.f32 %v5057, 1.0
        %v5082 = vadd.f32 %v5058, 1.0
        %v5083 = vadd.f32 %v5059, 1.0
        %v5084 = vadd.f32 %v5060, 1.0
        %v5085 = vadd.f32 %v5061, 1.0
        %v5086 = vadd.f32 %v5062, 1.0
        %v5087 = vadd.f32 %v5063, 1.0
        %v5088 = vadd.f32 %v5064, 1.0
        %v5089 = vadd.f32 %v5065, 1.0
        %v5090 = vadd.f32 %v5066, 1.0
        %v5091 = vadd.f32 %v5067, 1.0
        %v5092 = vadd.f32 %v5068, 1.0
        %v5093 = vadd.f32 %v5069, 1.0
        %v5094 = vadd.f32 %v5070, 1.0
        %v5095 = vadd.f32 %v5071, 1.0
        %v5096 = vmul.f32 %v4904, %v5072
        %v5097 = vmul.f32 %v4905, %v5073
        %v5098 = vmul.f32 %v4906, %v5074
        %v5099 = vmul.f32 %v4907, %v5075
        %v5100 = vmul.f32 %v4908, %v5076
        %v5101 = vmul.f32 %v4909, %v5077
        %v5102 = vmul.f32 %v4910, %v5078
        %v5103 = vmul.f32 %v4911, %v5079
        %v5104 = vmul.f32 %v4912, %v5080
        %v5105 = vmul.f32 %v4913, %v5081
        %v5106 = vmul.f32 %v4914, %v5082
        %v5107 = vmul.f32 %v4915, %v5083
        %v5108 = vmul.f32 %v4916, %v5084
        %v5109 = vmul.f32 %v4917, %v5085
        %v5110 = vmul.f32 %v4918, %v5086
        %v5111 = vmul.f32 %v4919, %v5087
        %v5112 = vmul.f32 %v4920, %v5088
        %v5113 = vmul.f32 %v4921, %v5089
        %v5114 = vmul.f32 %v4922, %v5090
        %v5115 = vmul.f32 %v4923, %v5091
        %v5116 = vmul.f32 %v4924, %v5092
        %v5117 = vmul.f32 %v4925, %v5093
        %v5118 = vmul.f32 %v4926, %v5094
        %v5119 = vmul.f32 %v4927, %v5095
        %v5120 = vpack.c.bf16 %v5100, %v5096
        %v5121 = vpack.c.bf16 %v5101, %v5097
        %v5122 = vpack.c.bf16 %v5102, %v5098
        %v5123 = vpack.c.bf16 %v5103, %v5099
        %v5124 = vpack.c.bf16 %v5108, %v5104
        %v5125 = vpack.c.bf16 %v5109, %v5105
        %v5126 = vpack.c.bf16 %v5110, %v5106
        %v5127 = vpack.c.bf16 %v5111, %v5107
        %v5128 = vpack.c.bf16 %v5116, %v5112
        %v5129 = vpack.c.bf16 %v5117, %v5113
        %v5130 = vpack.c.bf16 %v5118, %v5114
        %v5131 = vpack.c.bf16 %v5119, %v5115
        %v5132 = vld [vmem:[%s923] sm:$0xf]
        %v5133 = vld [vmem:[%s923 + $0x4] sm:$0xf]
        %v5134 = vld [vmem:[%s923 + $0x8] sm:$0xf]
        %v5135 = vld [vmem:[%s923 + $0xc] sm:$0xf]
        %v5136 = vld [vmem:[%s923 + $0x10] sm:$0xf]
        %v5137 = vld [vmem:[%s923 + $0x14] sm:$0xf]
        %v5138 = vld [vmem:[%s923 + $0x18] sm:$0xf]
        %v5139 = vld [vmem:[%s923 + $0x1c] sm:$0xf]
        %v5140 = vld [vmem:[%s923 + $0x20] sm:$0xf]
        %v5141 = vld [vmem:[%s923 + $0x24] sm:$0xf]
        %v5142 = vld [vmem:[%s923 + $0x28] sm:$0xf]
        %v5143 = vld [vmem:[%s923 + $0x2c] sm:$0xf]
        %v5144 = vld [vmem:[%s923 + $0x30] sm:$0xf]
        %v5145 = vld [vmem:[%s923 + $0x34] sm:$0xf]
        %v5146 = vld [vmem:[%s923 + $0x38] sm:$0xf]
        %v5147 = vld [vmem:[%s923 + $0x3c] sm:$0xf]
        %v5148 = vld [vmem:[%s923 + $0x40] sm:$0xf]
        %v5149 = vld [vmem:[%s923 + $0x44] sm:$0xf]
        %v5150 = vld [vmem:[%s923 + $0x48] sm:$0xf]
        %v5151 = vld [vmem:[%s923 + $0x4c] sm:$0xf]
        %v5152 = vld [vmem:[%s923 + $0x50] sm:$0xf]
        %v5153 = vld [vmem:[%s923 + $0x54] sm:$0xf]
        %v5154 = vld [vmem:[%s923 + $0x58] sm:$0xf]
        %v5155 = vld [vmem:[%s923 + $0x5c] sm:$0xf]
        %v5156 = vld [vmem:[%s923 + $0x60] sm:$0xf]
        %v5157 = vld [vmem:[%s923 + $0x64] sm:$0xf]
        %v5158 = vld [vmem:[%s923 + $0x68] sm:$0xf]
        %v5159 = vld [vmem:[%s923 + $0x6c] sm:$0xf]
        %v5160 = vld [vmem:[%s923 + $0x70] sm:$0xf]
        %v5161 = vld [vmem:[%s923 + $0x74] sm:$0xf]
        %v5162 = vld [vmem:[%s923 + $0x78] sm:$0xf]
        %v5163 = vld [vmem:[%s923 + $0x7c] sm:$0xf]
        %v5164 = vld [vmem:[%s923 + $0x80] sm:$0xf]
        %v5165 = vld [vmem:[%s923 + $0x84] sm:$0xf]
        %v5166 = vld [vmem:[%s923 + $0x88] sm:$0xf]
        %v5167 = vld [vmem:[%s923 + $0x8c] sm:$0xf]
        %v5168 = vld [vmem:[%s923 + $0x90] sm:$0xf]
        %v5169 = vld [vmem:[%s923 + $0x94] sm:$0xf]
        %v5170 = vld [vmem:[%s923 + $0x98] sm:$0xf]
        %v5171 = vld [vmem:[%s923 + $0x9c] sm:$0xf]
        %v5172 = vld [vmem:[%s923 + $0xa0] sm:$0xf]
        %v5173 = vld [vmem:[%s923 + $0xa4] sm:$0xf]
        %v5174 = vld [vmem:[%s923 + $0xa8] sm:$0xf]
        %v5175 = vld [vmem:[%s923 + $0xac] sm:$0xf]
        %v5176 = vld [vmem:[%s923 + $0xb0] sm:$0xf]
        %v5177 = vld [vmem:[%s923 + $0xb4] sm:$0xf]
        %v5178 = vld [vmem:[%s923 + $0xb8] sm:$0xf]
        %v5179 = vld [vmem:[%s923 + $0xbc] sm:$0xf]
        %v5180 = vld [vmem:[%s923 + $0xc0] sm:$0xf]
        %v5181 = vld [vmem:[%s923 + $0xc4] sm:$0xf]
        %v5182 = vld [vmem:[%s923 + $0xc8] sm:$0xf]
        %v5183 = vld [vmem:[%s923 + $0xcc] sm:$0xf]
        %v5184 = vld [vmem:[%s923 + $0xd0] sm:$0xf]
        %v5185 = vld [vmem:[%s923 + $0xd4] sm:$0xf]
        %v5186 = vld [vmem:[%s923 + $0xd8] sm:$0xf]
        %v5187 = vld [vmem:[%s923 + $0xdc] sm:$0xf]
        %v5188 = vld [vmem:[%s923 + $0xe0] sm:$0xf]
        %v5189 = vld [vmem:[%s923 + $0xe4] sm:$0xf]
        %v5190 = vld [vmem:[%s923 + $0xe8] sm:$0xf]
        %v5191 = vld [vmem:[%s923 + $0xec] sm:$0xf]
        %v5192 = vld [vmem:[%s923 + $0xf0] sm:$0xf]
        %v5193 = vld [vmem:[%s923 + $0xf4] sm:$0xf]
        %v5194 = vld [vmem:[%s923 + $0xf8] sm:$0xf]
        %v5195 = vld [vmem:[%s923 + $0xfc] sm:$0xf]
        %v5260 = vunpack.c.l.b16 %v5132
        %v5261 = vunpack.c.l.b16 %v5133
        %v5262 = vunpack.c.l.b16 %v5134
        %v5263 = vunpack.c.l.b16 %v5135
        %v5264 = vunpack.c.l.b16 %v5136
        %v5265 = vunpack.c.l.b16 %v5137
        %v5266 = vunpack.c.l.b16 %v5138
        %v5267 = vunpack.c.l.b16 %v5139
        %v5268 = vunpack.c.l.b16 %v5140
        %v5269 = vunpack.c.l.b16 %v5141
        %v5270 = vunpack.c.l.b16 %v5142
        %v5271 = vunpack.c.l.b16 %v5143
        %v5272 = vunpack.c.l.b16 %v5144
        %v5273 = vunpack.c.l.b16 %v5145
        %v5274 = vunpack.c.l.b16 %v5146
        %v5275 = vunpack.c.l.b16 %v5147
        %v5276 = vunpack.c.l.b16 %v5148
        %v5277 = vunpack.c.l.b16 %v5149
        %v5278 = vunpack.c.l.b16 %v5150
        %v5279 = vunpack.c.l.b16 %v5151
        %v5280 = vunpack.c.l.b16 %v5152
        %v5281 = vunpack.c.l.b16 %v5153
        %v5282 = vunpack.c.l.b16 %v5154
        %v5283 = vunpack.c.l.b16 %v5155
        %v5284 = vunpack.c.l.b16 %v5156
        %v5285 = vunpack.c.l.b16 %v5157
        %v5286 = vunpack.c.l.b16 %v5158
        %v5287 = vunpack.c.l.b16 %v5159
        %v5288 = vunpack.c.l.b16 %v5160
        %v5289 = vunpack.c.l.b16 %v5161
        %v5290 = vunpack.c.l.b16 %v5162
        %v5291 = vunpack.c.l.b16 %v5163
        %v5292 = vunpack.c.l.b16 %v5164
        %v5293 = vunpack.c.l.b16 %v5165
        %v5294 = vunpack.c.l.b16 %v5166
        %v5295 = vunpack.c.l.b16 %v5167
        %v5296 = vunpack.c.l.b16 %v5168
        %v5297 = vunpack.c.l.b16 %v5169
        %v5298 = vunpack.c.l.b16 %v5170
        %v5299 = vunpack.c.l.b16 %v5171
        %v5300 = vunpack.c.l.b16 %v5172
        %v5301 = vunpack.c.l.b16 %v5173
        %v5302 = vunpack.c.l.b16 %v5174
        %v5303 = vunpack.c.l.b16 %v5175
        %v5304 = vunpack.c.l.b16 %v5176
        %v5305 = vunpack.c.l.b16 %v5177
        %v5306 = vunpack.c.l.b16 %v5178
        %v5307 = vunpack.c.l.b16 %v5179
        %v5308 = vunpack.c.l.b16 %v5180
        %v5309 = vunpack.c.l.b16 %v5181
        %v5310 = vunpack.c.l.b16 %v5182
        %v5311 = vunpack.c.l.b16 %v5183
        %v5312 = vunpack.c.l.b16 %v5184
        %v5313 = vunpack.c.l.b16 %v5185
        %v5314 = vunpack.c.l.b16 %v5186
        %v5315 = vunpack.c.l.b16 %v5187
        %v5316 = vunpack.c.l.b16 %v5188
        %v5317 = vunpack.c.l.b16 %v5189
        %v5318 = vunpack.c.l.b16 %v5190
        %v5319 = vunpack.c.l.b16 %v5191
        %v5320 = vunpack.c.l.b16 %v5192
        %v5321 = vunpack.c.l.b16 %v5193
        %v5322 = vunpack.c.l.b16 %v5194
        %v5323 = vunpack.c.l.b16 %v5195
        %v5324 = vpack.c.b16 %v5261, %v5260
        %v5325 = vpack.c.b16 %v5263, %v5262
        %v5326 = vpack.c.b16 %v5265, %v5264
        %v5327 = vpack.c.b16 %v5267, %v5266
        %v5328 = vpack.c.b16 %v5269, %v5268
        %v5329 = vpack.c.b16 %v5271, %v5270
        %v5330 = vpack.c.b16 %v5273, %v5272
        %v5331 = vpack.c.b16 %v5275, %v5274
        %v5332 = vpack.c.b16 %v5277, %v5276
        %v5333 = vpack.c.b16 %v5279, %v5278
        %v5334 = vpack.c.b16 %v5281, %v5280
        %v5335 = vpack.c.b16 %v5283, %v5282
        %v5336 = vpack.c.b16 %v5285, %v5284
        %v5337 = vpack.c.b16 %v5287, %v5286
        %v5338 = vpack.c.b16 %v5289, %v5288
        %v5339 = vpack.c.b16 %v5291, %v5290
        %v5340 = vpack.c.b16 %v5293, %v5292
        %v5341 = vpack.c.b16 %v5295, %v5294
        %v5342 = vpack.c.b16 %v5297, %v5296
        %v5343 = vpack.c.b16 %v5299, %v5298
        %v5344 = vpack.c.b16 %v5301, %v5300
        %v5345 = vpack.c.b16 %v5303, %v5302
        %v5346 = vpack.c.b16 %v5305, %v5304
        %v5347 = vpack.c.b16 %v5307, %v5306
        %v5348 = vpack.c.b16 %v5309, %v5308
        %v5349 = vpack.c.b16 %v5311, %v5310
        %v5350 = vpack.c.b16 %v5313, %v5312
        %v5351 = vpack.c.b16 %v5315, %v5314
        %v5352 = vpack.c.b16 %v5317, %v5316
        %v5353 = vpack.c.b16 %v5319, %v5318
        %v5354 = vpack.c.b16 %v5321, %v5320
        %v5355 = vpack.c.b16 %v5323, %v5322
        %5388 = vmatprep.subr.bf16.mxu0 0
        %5389 = vmatpush1.bf16.msra.mxu0 %v5331
        %5390 = vmatprep.subr.bf16.mxu0 0
        %5391 = vmatpush1.bf16.msra.mxu0 %v5330
        %5392 = vmatprep.subr.bf16.mxu0 0
        %5393 = vmatpush1.bf16.msra.mxu0 %v5329
        %5394 = vmatprep.subr.bf16.mxu0 0
        %5395 = vmatpush1.bf16.msra.mxu0 %v5328
        %5396 = vmatprep.subr.bf16.mxu0 0
        %5397 = vmatpush1.bf16.msra.mxu0 %v5327
        %5398 = vmatprep.subr.bf16.mxu0 0
        %5399 = vmatpush1.bf16.msra.mxu0 %v5326
        %5400 = vmatprep.subr.bf16.mxu0 0
        %5401 = vmatpush1.bf16.msra.mxu0 %v5325
        %5402 = vmatprep.subr.bf16.mxu0 0
        %5403 = vmatpush1.bf16.msra.mxu0 %v5324
        %5404 = vmatprep.subr.bf16.mxu0 0
        %5405 = vmatpush2.bf16.msra.mxu0 %v5339
        %5406 = vmatprep.subr.bf16.mxu0 0
        %5407 = vmatpush2.bf16.msra.mxu0 %v5338
        %5408 = vmatprep.subr.bf16.mxu0 0
        %5409 = vmatpush2.bf16.msra.mxu0 %v5337
        %5410 = vmatprep.subr.bf16.mxu0 0
        %5411 = vmatpush2.bf16.msra.mxu0 %v5336
        %5412 = vmatprep.subr.bf16.mxu0 0
        %5413 = vmatpush2.bf16.msra.mxu0 %v5335
        %5414 = vmatprep.subr.bf16.mxu0 0
        %5415 = vmatpush2.bf16.msra.mxu0 %v5334
        %5416 = vmatprep.subr.bf16.mxu0 0
        %5417 = vmatpush2.bf16.msra.mxu0 %v5333
        %5418 = vmatprep.subr.bf16.mxu0 0
        %5419 = vmatpush2.bf16.msra.mxu0 %v5332
        %5420 = vmatprep.mubr.bf16.mxu0 %v5121
        %5421 = vmatmul.mubr.bf16.gmra.mxu0 %v5120
        %v5422 = vpop.f32.mrf.mxu0
        %v5423 = vadd.f32 0.0, %v5422
        %v5424 = vpop.f32.mrf.mxu0
        %v5425 = vpop.f32.mrf.mxu0
        %v5426 = vadd.f32 0.0, %v5425
        %v5427 = vpop.f32.mrf.mxu0
        %5428 = vmatprep.mubr.bf16.mxu0 %v5125
        %5429 = vmatmul.mubr.bf16.gmra.mxu0 %v5124
        %v5430 = vpop.f32.mrf.mxu0
        %v5431 = vadd.f32 0.0, %v5430
        %v5432 = vpop.f32.mrf.mxu0
        %v5433 = vpop.f32.mrf.mxu0
        %v5434 = vadd.f32 0.0, %v5433
        %v5435 = vpop.f32.mrf.mxu0
        %5436 = vmatprep.mubr.bf16.mxu0 %v5129
        %5437 = vmatmul.mubr.bf16.gmra.mxu0 %v5128
        %v5438 = vpop.f32.mrf.mxu0
        %v5439 = vadd.f32 0.0, %v5438
        %v5440 = vpop.f32.mrf.mxu0
        %v5441 = vpop.f32.mrf.mxu0
        %v5442 = vadd.f32 0.0, %v5441
        %v5443 = vpop.f32.mrf.mxu0
        %5444 = vdwg.mxu0
        %5445 = vmatprep.subr.bf16.mxu0 0
        %5446 = vmatpush1.bf16.msra.mxu0 %v5347
        %5447 = vmatprep.subr.bf16.mxu0 0
        %5448 = vmatpush1.bf16.msra.mxu0 %v5346
        %5449 = vmatprep.subr.bf16.mxu0 0
        %5450 = vmatpush1.bf16.msra.mxu0 %v5345
        %5451 = vmatprep.subr.bf16.mxu0 0
        %5452 = vmatpush1.bf16.msra.mxu0 %v5344
        %5453 = vmatprep.subr.bf16.mxu0 0
        %5454 = vmatpush1.bf16.msra.mxu0 %v5343
        %5455 = vmatprep.subr.bf16.mxu0 0
        %5456 = vmatpush1.bf16.msra.mxu0 %v5342
        %5457 = vmatprep.subr.bf16.mxu0 0
        %5458 = vmatpush1.bf16.msra.mxu0 %v5341
        %5459 = vmatprep.subr.bf16.mxu0 0
        %5460 = vmatpush1.bf16.msra.mxu0 %v5340
        %5461 = vmatprep.subr.bf16.mxu0 0
        %5462 = vmatpush2.bf16.msra.mxu0 %v5355
        %5463 = vmatprep.subr.bf16.mxu0 0
        %5464 = vmatpush2.bf16.msra.mxu0 %v5354
        %5465 = vmatprep.subr.bf16.mxu0 0
        %5466 = vmatpush2.bf16.msra.mxu0 %v5353
        %5467 = vmatprep.subr.bf16.mxu0 0
        %5468 = vmatpush2.bf16.msra.mxu0 %v5352
        %5469 = vmatprep.subr.bf16.mxu0 0
        %5470 = vmatpush2.bf16.msra.mxu0 %v5351
        %5471 = vmatprep.subr.bf16.mxu0 0
        %5472 = vmatpush2.bf16.msra.mxu0 %v5350
        %5473 = vmatprep.subr.bf16.mxu0 0
        %5474 = vmatpush2.bf16.msra.mxu0 %v5349
        %5475 = vmatprep.subr.bf16.mxu0 0
        %5476 = vmatpush2.bf16.msra.mxu0 %v5348
        %5477 = vmatprep.mubr.bf16.mxu0 %v5123
        %5478 = vmatmul.mubr.bf16.gmra.mxu0 %v5122
        %v5479 = vpop.f32.mrf.mxu0
        %v5480 = vadd.f32 %v5423, %v5479
        %v5481 = vpop.f32.mrf.mxu0
        %v5482 = vpop.f32.mrf.mxu0
        %v5483 = vadd.f32 %v5426, %v5482
        %v5484 = vpop.f32.mrf.mxu0
        %5485 = vmatprep.mubr.bf16.mxu0 %v5127
        %5486 = vmatmul.mubr.bf16.gmra.mxu0 %v5126
        %v5487 = vpop.f32.mrf.mxu0
        %v5488 = vadd.f32 %v5431, %v5487
        %v5489 = vpop.f32.mrf.mxu0
        %v5490 = vpop.f32.mrf.mxu0
        %v5491 = vadd.f32 %v5434, %v5490
        %v5492 = vpop.f32.mrf.mxu0
        %5493 = vmatprep.mubr.bf16.mxu0 %v5131
        %5494 = vmatmul.mubr.bf16.gmra.mxu0 %v5130
        %v5495 = vpop.f32.mrf.mxu0
        %v5496 = vadd.f32 %v5439, %v5495
        %v5497 = vpop.f32.mrf.mxu0
        %v5498 = vpop.f32.mrf.mxu0
        %v5499 = vadd.f32 %v5442, %v5498
        %v5500 = vpop.f32.mrf.mxu0
        %5501 = vdwg.mxu0
        %v5502 = vadd.f32 %v4463, %v5480
        %v5503 = vadd.f32 %v4464, %v5483
        %v5504 = vadd.f32 %v4465, %v5488
        %v5505 = vadd.f32 %v4466, %v5491
        %v5506 = vadd.f32 %v4467, %v5496
        %v5507 = vadd.f32 %v4468, %v5499
        %v5508 = vld [vmem:[%s931] sm:$0x1]
        %v5510 = vlaneseq
        %v5511 = vshrl.u32 %v5510, 7
        %v5512 = vsub.s32 0, %v5511
        %v5513 = vrot.slane %v5508, %v5512
        %v5515 = vadd.f32 %v5502, %v5513
        %v5516 = vadd.f32 %v5503, %v5513
        %v5517 = vadd.f32 %v5504, %v5513
        %v5518 = vadd.f32 %v5505, %v5513
        %v5519 = vadd.f32 %v5506, %v5513
        %v5520 = vadd.f32 %v5507, %v5513
        %5521 = vst [vmem:[#allocation2] sm:$0xff] %v5515
        %5522 = vst [vmem:[#allocation2 + $0x8] sm:$0xff] %v5516
        %5523 = vst [vmem:[#allocation2 + $0x10] sm:$0xff] %v5517
        %5524 = vst [vmem:[#allocation2 + $0x18] sm:$0xff] %v5518
        %5525 = vst [vmem:[#allocation2 + $0x20] sm:$0xff] %v5519
        %5526 = vst [vmem:[#allocation2 + $0x28] sm:$0xff] %v5520
        %p5527 = scmp.eq.s32.totalorder %s55, 1
        // Predicated region
        $region161: #{gpt_classifier_forward.1} parent=99 // pred_check
          %p5528 = pneg %p5527
        $region162: #{gpt_classifier_forward.1} parent=99 // pred_check_branch
          %5530 = sbr.rel (%p5528) target = $region164
        $region163: #{gpt_classifier_forward.1} parent=99 // pred_region
          %v5531 = vld [vmem:[#allocation20] sm:$0x1]
          %v5532 = vld [vmem:[#allocation21] sm:$0x1]
          %v5539 = vrot.slane %v5516, 7
          %v5540 = vrot.slane %v5517, 6
          %vm5541 = vcmask 1041409
          %v5542 = vsel %vm5541, %v5540, %v5539
          %v5543 = vrot.slane %v5518, 5
          %vm5544 = vcmask 1042434
          %v5545 = vsel %vm5544, %v5543, %v5542
          %v5546 = vrot.slane %v5519, 4
          %vm5547 = vcmask 1043459
          %v5548 = vsel %vm5547, %v5546, %v5545
          %v5549 = vrot.slane %v5520, 3
          %vm5550 = vcmask 1044484
          %v5551 = vsel %vm5550, %v5549, %v5548
          %vm5554 = vcmask 1047559
          %v5555 = vsel %vm5554, %v5515, 0.0
          %5556 = vadd.xlane.f32.xlu0 %v5555
          %v5557 = vpop.xlane.xlu0 %5556
          %vm5558 = vcmask 1044480
          %v5559 = vsel %vm5558, %v5551, 0.0
          %5560 = vadd.xlane.f32.xlu0 %v5559
          %v5561 = vpop.xlane.xlu0 %5560
          %v5562 = vmul.f32 %v5557, %v1164
          %v5563 = vmul.f32 %v5561, %v1164
          %v5566 = vrot.slane %v5563, 1
          %v5567 = vrot.slane %v5563, 2
          %v5568 = vrot.slane %v5563, 3
          %v5569 = vrot.slane %v5563, 4
          %v5570 = vrot.slane %v5563, 5
          %v5577 = vsub.f32 %v5515, %v5562
          %v5578 = vsub.f32 %v5516, %v5566
          %v5579 = vsub.f32 %v5517, %v5567
          %v5580 = vsub.f32 %v5518, %v5568
          %v5581 = vsub.f32 %v5519, %v5569
          %v5582 = vsub.f32 %v5520, %v5570
          %v5583 = vmul.f32 %v5577, %v5577
          %v5584 = vmul.f32 %v5578, %v5578
          %v5585 = vmul.f32 %v5579, %v5579
          %v5586 = vmul.f32 %v5580, %v5580
          %v5587 = vmul.f32 %v5581, %v5581
          %v5588 = vmul.f32 %v5582, %v5582
          %v5595 = vrot.slane %v5584, 7
          %v5596 = vrot.slane %v5585, 6
          %v5597 = vsel %vm5541, %v5596, %v5595
          %v5598 = vrot.slane %v5586, 5
          %v5599 = vsel %vm5544, %v5598, %v5597
          %v5600 = vrot.slane %v5587, 4
          %v5601 = vsel %vm5547, %v5600, %v5599
          %v5602 = vrot.slane %v5588, 3
          %v5603 = vsel %vm5550, %v5602, %v5601
          %v5606 = vsel %vm5554, %v5583, 0.0
          %5607 = vadd.xlane.f32.xlu0 %v5606
          %v5608 = vpop.xlane.xlu0 %5607
          %v5609 = vsel %vm5558, %v5603, 0.0
          %5610 = vadd.xlane.f32.xlu0 %v5609
          %v5611 = vpop.xlane.xlu0 %5610
          %v5612 = vmul.f32 %v5608, %v1164
          %v5613 = vmul.f32 %v5611, %v1164
          %v5614 = vadd.f32 %v5612, 1e-05
          %v5615 = vadd.f32 %v5613, 1e-05
          %v5616 = vrsqrt.pop %v5614
          %v5617 = vrsqrt.pop %v5615
          %v5620 = vrot.slane %v5617, 1
          %v5621 = vrot.slane %v5617, 2
          %v5622 = vrot.slane %v5617, 3
          %v5623 = vrot.slane %v5617, 4
          %v5624 = vrot.slane %v5617, 5
          %v5631 = vmul.f32 %v5577, %v5616
          %v5632 = vmul.f32 %v5578, %v5620
          %v5633 = vmul.f32 %v5579, %v5621
          %v5634 = vmul.f32 %v5580, %v5622
          %v5635 = vmul.f32 %v5581, %v5623
          %v5636 = vmul.f32 %v5582, %v5624
          %v5638 = vlaneseq
          %v5639 = vshrl.u32 %v5638, 7
          %v5640 = vsub.s32 0, %v5639
          %v5641 = vrot.slane %v5531, %v5640
          %v5643 = vmul.f32 %v5631, %v5641
          %v5644 = vmul.f32 %v5632, %v5641
          %v5645 = vmul.f32 %v5633, %v5641
          %v5646 = vmul.f32 %v5634, %v5641
          %v5647 = vmul.f32 %v5635, %v5641
          %v5648 = vmul.f32 %v5636, %v5641
          %v5650 = vlaneseq
          %v5651 = vshrl.u32 %v5650, 7
          %v5652 = vsub.s32 0, %v5651
          %v5653 = vrot.slane %v5532, %v5652
          %v5655 = vadd.f32 %v5643, %v5653
          %v5656 = vadd.f32 %v5644, %v5653
          %v5657 = vadd.f32 %v5645, %v5653
          %v5658 = vadd.f32 %v5646, %v5653
          %v5659 = vadd.f32 %v5647, %v5653
          %v5660 = vadd.f32 %v5648, %v5653
          %v5661 = vpack.c.bf16 %v5655, %v5655
          %v5662 = vpack.c.bf16 %v5656, %v5656
          %v5663 = vpack.c.bf16 %v5657, %v5657
          %v5664 = vpack.c.bf16 %v5658, %v5658
          %v5665 = vpack.c.bf16 %v5659, %v5659
          %v5666 = vpack.c.bf16 %v5660, %v5660
          %v5667 = vld [vmem:[%s16] sm:$0xf]
          %v5668 = vld [vmem:[%s16 + $0x4] sm:$0xf]
          %v5669 = vld [vmem:[%s16 + $0x8] sm:$0xf]
          %v5670 = vld [vmem:[%s16 + $0xc] sm:$0xf]
          %v5671 = vld [vmem:[%s16 + $0x10] sm:$0xf]
          %v5672 = vld [vmem:[%s16 + $0x14] sm:$0xf]
          %v5673 = vld [vmem:[%s16 + $0x18] sm:$0xf]
          %v5674 = vld [vmem:[%s16 + $0x1c] sm:$0xf]
          %v5675 = vld [vmem:[%s16 + $0x20] sm:$0xf]
          %v5676 = vld [vmem:[%s16 + $0x24] sm:$0xf]
          %v5677 = vld [vmem:[%s16 + $0x28] sm:$0xf]
          %v5678 = vld [vmem:[%s16 + $0x2c] sm:$0xf]
          %v5679 = vld [vmem:[%s16 + $0x30] sm:$0xf]
          %v5680 = vld [vmem:[%s16 + $0x34] sm:$0xf]
          %v5681 = vld [vmem:[%s16 + $0x38] sm:$0xf]
          %v5682 = vld [vmem:[%s16 + $0x3c] sm:$0xf]
          %v5683 = vld [vmem:[%s16 + $0x40] sm:$0xf]
          %v5684 = vld [vmem:[%s16 + $0x44] sm:$0xf]
          %v5685 = vld [vmem:[%s16 + $0x48] sm:$0xf]
          %v5686 = vld [vmem:[%s16 + $0x4c] sm:$0xf]
          %v5687 = vld [vmem:[%s16 + $0x50] sm:$0xf]
          %v5688 = vld [vmem:[%s16 + $0x54] sm:$0xf]
          %v5689 = vld [vmem:[%s16 + $0x58] sm:$0xf]
          %v5690 = vld [vmem:[%s16 + $0x5c] sm:$0xf]
          %v5691 = vld [vmem:[%s16 + $0x60] sm:$0xf]
          %v5692 = vld [vmem:[%s16 + $0x64] sm:$0xf]
          %v5693 = vld [vmem:[%s16 + $0x68] sm:$0xf]
          %v5694 = vld [vmem:[%s16 + $0x6c] sm:$0xf]
          %v5695 = vld [vmem:[%s16 + $0x70] sm:$0xf]
          %v5696 = vld [vmem:[%s16 + $0x74] sm:$0xf]
          %v5697 = vld [vmem:[%s16 + $0x78] sm:$0xf]
          %v5698 = vld [vmem:[%s16 + $0x7c] sm:$0xf]
          %v5699 = vld [vmem:[%s18] sm:$0xf]
          %v5700 = vld [vmem:[%s18 + $0x4] sm:$0xf]
          %v5701 = vld [vmem:[%s18 + $0x8] sm:$0xf]
          %v5702 = vld [vmem:[%s18 + $0xc] sm:$0xf]
          %v5703 = vld [vmem:[%s18 + $0x10] sm:$0xf]
          %v5704 = vld [vmem:[%s18 + $0x14] sm:$0xf]
          %v5705 = vld [vmem:[%s18 + $0x18] sm:$0xf]
          %v5706 = vld [vmem:[%s18 + $0x1c] sm:$0xf]
          %v5707 = vld [vmem:[%s18 + $0x20] sm:$0xf]
          %v5708 = vld [vmem:[%s18 + $0x24] sm:$0xf]
          %v5709 = vld [vmem:[%s18 + $0x28] sm:$0xf]
          %v5710 = vld [vmem:[%s18 + $0x2c] sm:$0xf]
          %v5711 = vld [vmem:[%s18 + $0x30] sm:$0xf]
          %v5712 = vld [vmem:[%s18 + $0x34] sm:$0xf]
          %v5713 = vld [vmem:[%s18 + $0x38] sm:$0xf]
          %v5714 = vld [vmem:[%s18 + $0x3c] sm:$0xf]
          %v5715 = vld [vmem:[%s18 + $0x40] sm:$0xf]
          %v5716 = vld [vmem:[%s18 + $0x44] sm:$0xf]
          %v5717 = vld [vmem:[%s18 + $0x48] sm:$0xf]
          %v5718 = vld [vmem:[%s18 + $0x4c] sm:$0xf]
          %v5719 = vld [vmem:[%s18 + $0x50] sm:$0xf]
          %v5720 = vld [vmem:[%s18 + $0x54] sm:$0xf]
          %v5721 = vld [vmem:[%s18 + $0x58] sm:$0xf]
          %v5722 = vld [vmem:[%s18 + $0x5c] sm:$0xf]
          %v5723 = vld [vmem:[%s18 + $0x60] sm:$0xf]
          %v5724 = vld [vmem:[%s18 + $0x64] sm:$0xf]
          %v5725 = vld [vmem:[%s18 + $0x68] sm:$0xf]
          %v5726 = vld [vmem:[%s18 + $0x6c] sm:$0xf]
          %v5727 = vld [vmem:[%s18 + $0x70] sm:$0xf]
          %v5728 = vld [vmem:[%s18 + $0x74] sm:$0xf]
          %v5729 = vld [vmem:[%s18 + $0x78] sm:$0xf]
          %v5730 = vld [vmem:[%s18 + $0x7c] sm:$0xf]
          %v5733 = vunpack.c.l.b16 %v5665
          %v5734 = vunpack.c.l.b16 %v5666
          %v5735 = vrot.slane %v5733, 7
          %v5736 = vrot.slane %v5734, 6
          %v5737 = vsel %vm5541, %v5736, %v5735
          %v5738 = vpack.c.b16 %v5737, %v5737
          %v5756 = vunpack.c.l.b16 %v5683
          %v5757 = vunpack.c.l.b16 %v5684
          %v5758 = vunpack.c.l.b16 %v5685
          %v5759 = vunpack.c.l.b16 %v5686
          %v5760 = vunpack.c.l.b16 %v5687
          %v5761 = vunpack.c.l.b16 %v5688
          %v5762 = vunpack.c.l.b16 %v5689
          %v5763 = vunpack.c.l.b16 %v5690
          %v5764 = vunpack.c.l.b16 %v5691
          %v5765 = vunpack.c.l.b16 %v5692
          %v5766 = vunpack.c.l.b16 %v5693
          %v5767 = vunpack.c.l.b16 %v5694
          %v5768 = vunpack.c.l.b16 %v5695
          %v5769 = vunpack.c.l.b16 %v5696
          %v5770 = vunpack.c.l.b16 %v5697
          %v5771 = vunpack.c.l.b16 %v5698
          %v5772 = vpack.c.b16 %v5757, %v5756
          %v5773 = vpack.c.b16 %v5759, %v5758
          %v5774 = vpack.c.b16 %v5761, %v5760
          %v5775 = vpack.c.b16 %v5763, %v5762
          %v5776 = vpack.c.b16 %v5765, %v5764
          %v5777 = vpack.c.b16 %v5767, %v5766
          %v5778 = vpack.c.b16 %v5769, %v5768
          %v5779 = vpack.c.b16 %v5771, %v5770
          %5788 = vmatprep.subr.bf16.mxu0 0
          %5789 = vmatpush1.bf16.msra.mxu0 %v5779
          %5790 = vmatprep.subr.bf16.mxu0 0
          %5791 = vmatpush1.bf16.msra.mxu0 %v5778
          %5792 = vmatprep.subr.bf16.mxu0 0
          %5793 = vmatpush1.bf16.msra.mxu0 %v5777
          %5794 = vmatprep.subr.bf16.mxu0 0
          %5795 = vmatpush1.bf16.msra.mxu0 %v5776
          %5796 = vmatprep.subr.bf16.mxu0 0
          %5797 = vmatpush1.bf16.msra.mxu0 %v5775
          %5798 = vmatprep.subr.bf16.mxu0 0
          %5799 = vmatpush1.bf16.msra.mxu0 %v5774
          %5800 = vmatprep.subr.bf16.mxu0 0
          %5801 = vmatpush1.bf16.msra.mxu0 %v5773
          %5802 = vmatprep.subr.bf16.mxu0 0
          %5803 = vmatpush1.bf16.msra.mxu0 %v5772
          %5804 = vmatprep.subr.bf16.mxu0 0
          %5805 = vmatpush2.bf16.msra.mxu0 0
          %5806 = vmatprep.subr.bf16.mxu0 0
          %5807 = vmatpush2.bf16.msra.mxu0 0
          %5808 = vmatprep.subr.bf16.mxu0 0
          %5809 = vmatpush2.bf16.msra.mxu0 0
          %5810 = vmatprep.subr.bf16.mxu0 0
          %5811 = vmatpush2.bf16.msra.mxu0 0
          %5812 = vmatprep.subr.bf16.mxu0 0
          %5813 = vmatpush2.bf16.msra.mxu0 0
          %5814 = vmatprep.subr.bf16.mxu0 0
          %5815 = vmatpush2.bf16.msra.mxu0 0
          %5816 = vmatprep.subr.bf16.mxu0 0
          %5817 = vmatpush2.bf16.msra.mxu0 0
          %5818 = vmatprep.subr.bf16.mxu0 0
          %5819 = vmatpush2.bf16.msra.mxu0 0
          %5820 = vmatprep.mubr.bf16.mxu0 0
          %5821 = vmatmul.mubr.bf16.gmra.mxu0 %v5738
          %v5822 = vpop.f32.mrf.mxu0
          %v5823 = vadd.f32 0.0, %v5822
          %v5824 = vpop.f32.mrf.mxu0
          %v5825 = vpop.f32.mrf.mxu0
          %v5826 = vpop.f32.mrf.mxu0
          %5827 = vdwg.mxu0
          %v5830 = vunpack.c.l.b16 %v5663
          %v5831 = vunpack.c.l.b16 %v5664
          %v5832 = vrot.slane %v5830, 7
          %v5833 = vrot.slane %v5831, 6
          %v5834 = vsel %vm5541, %v5833, %v5832
          %v5835 = vpack.c.b16 %v5834, %v5834
          %v5853 = vunpack.c.l.b16 %v5667
          %v5854 = vunpack.c.l.b16 %v5668
          %v5855 = vunpack.c.l.b16 %v5669
          %v5856 = vunpack.c.l.b16 %v5670
          %v5857 = vunpack.c.l.b16 %v5671
          %v5858 = vunpack.c.l.b16 %v5672
          %v5859 = vunpack.c.l.b16 %v5673
          %v5860 = vunpack.c.l.b16 %v5674
          %v5861 = vunpack.c.l.b16 %v5675
          %v5862 = vunpack.c.l.b16 %v5676
          %v5863 = vunpack.c.l.b16 %v5677
          %v5864 = vunpack.c.l.b16 %v5678
          %v5865 = vunpack.c.l.b16 %v5679
          %v5866 = vunpack.c.l.b16 %v5680
          %v5867 = vunpack.c.l.b16 %v5681
          %v5868 = vunpack.c.l.b16 %v5682
          %v5869 = vpack.c.b16 %v5854, %v5853
          %v5870 = vpack.c.b16 %v5856, %v5855
          %v5871 = vpack.c.b16 %v5858, %v5857
          %v5872 = vpack.c.b16 %v5860, %v5859
          %v5873 = vpack.c.b16 %v5862, %v5861
          %v5874 = vpack.c.b16 %v5864, %v5863
          %v5875 = vpack.c.b16 %v5866, %v5865
          %v5876 = vpack.c.b16 %v5868, %v5867
          %5885 = vmatprep.subr.bf16.mxu0 0
          %5886 = vmatpush1.bf16.msra.mxu0 %v5876
          %5887 = vmatprep.subr.bf16.mxu0 0
          %5888 = vmatpush1.bf16.msra.mxu0 %v5875
          %5889 = vmatprep.subr.bf16.mxu0 0
          %5890 = vmatpush1.bf16.msra.mxu0 %v5874
          %5891 = vmatprep.subr.bf16.mxu0 0
          %5892 = vmatpush1.bf16.msra.mxu0 %v5873
          %5893 = vmatprep.subr.bf16.mxu0 0
          %5894 = vmatpush1.bf16.msra.mxu0 %v5872
          %5895 = vmatprep.subr.bf16.mxu0 0
          %5896 = vmatpush1.bf16.msra.mxu0 %v5871
          %5897 = vmatprep.subr.bf16.mxu0 0
          %5898 = vmatpush1.bf16.msra.mxu0 %v5870
          %5899 = vmatprep.subr.bf16.mxu0 0
          %5900 = vmatpush1.bf16.msra.mxu0 %v5869
          %5901 = vmatprep.subr.bf16.mxu0 0
          %5902 = vmatpush2.bf16.msra.mxu0 0
          %5903 = vmatprep.subr.bf16.mxu0 0
          %5904 = vmatpush2.bf16.msra.mxu0 0
          %5905 = vmatprep.subr.bf16.mxu0 0
          %5906 = vmatpush2.bf16.msra.mxu0 0
          %5907 = vmatprep.subr.bf16.mxu0 0
          %5908 = vmatpush2.bf16.msra.mxu0 0
          %5909 = vmatprep.subr.bf16.mxu0 0
          %5910 = vmatpush2.bf16.msra.mxu0 0
          %5911 = vmatprep.subr.bf16.mxu0 0
          %5912 = vmatpush2.bf16.msra.mxu0 0
          %5913 = vmatprep.subr.bf16.mxu0 0
          %5914 = vmatpush2.bf16.msra.mxu0 0
          %5915 = vmatprep.subr.bf16.mxu0 0
          %5916 = vmatpush2.bf16.msra.mxu0 0
          %5917 = vmatprep.mubr.bf16.mxu0 0
          %5918 = vmatmul.mubr.bf16.gmra.mxu0 %v5835
          %v5919 = vpop.f32.mrf.mxu0
          %v5920 = vadd.f32 %v5823, %v5919
          %v5921 = vpop.f32.mrf.mxu0
          %v5922 = vpop.f32.mrf.mxu0
          %v5923 = vpop.f32.mrf.mxu0
          %5924 = vdwg.mxu0
          %v5925 = vld [vmem:[#allocation23] sm:$0x1]
          %v5927 = vlaneseq
          %v5928 = vshrl.u32 %v5927, 7
          %v5929 = vsub.s32 0, %v5928
          %v5930 = vrot.slane %v5925, %v5929
          %v5932 = vadd.f32 %v5920, %v5930
          %v5949 = vunpack.c.l.b16 %v5715
          %v5950 = vunpack.c.l.b16 %v5716
          %v5951 = vunpack.c.l.b16 %v5717
          %v5952 = vunpack.c.l.b16 %v5718
          %v5953 = vunpack.c.l.b16 %v5719
          %v5954 = vunpack.c.l.b16 %v5720
          %v5955 = vunpack.c.l.b16 %v5721
          %v5956 = vunpack.c.l.b16 %v5722
          %v5957 = vunpack.c.l.b16 %v5723
          %v5958 = vunpack.c.l.b16 %v5724
          %v5959 = vunpack.c.l.b16 %v5725
          %v5960 = vunpack.c.l.b16 %v5726
          %v5961 = vunpack.c.l.b16 %v5727
          %v5962 = vunpack.c.l.b16 %v5728
          %v5963 = vunpack.c.l.b16 %v5729
          %v5964 = vunpack.c.l.b16 %v5730
          %v5965 = vpack.c.b16 %v5950, %v5949
          %v5966 = vpack.c.b16 %v5952, %v5951
          %v5967 = vpack.c.b16 %v5954, %v5953
          %v5968 = vpack.c.b16 %v5956, %v5955
          %v5969 = vpack.c.b16 %v5958, %v5957
          %v5970 = vpack.c.b16 %v5960, %v5959
          %v5971 = vpack.c.b16 %v5962, %v5961
          %v5972 = vpack.c.b16 %v5964, %v5963
          %5981 = vmatprep.subr.bf16.mxu0 0
          %5982 = vmatpush1.bf16.msra.mxu0 %v5972
          %5983 = vmatprep.subr.bf16.mxu0 0
          %5984 = vmatpush1.bf16.msra.mxu0 %v5971
          %5985 = vmatprep.subr.bf16.mxu0 0
          %5986 = vmatpush1.bf16.msra.mxu0 %v5970
          %5987 = vmatprep.subr.bf16.mxu0 0
          %5988 = vmatpush1.bf16.msra.mxu0 %v5969
          %5989 = vmatprep.subr.bf16.mxu0 0
          %5990 = vmatpush1.bf16.msra.mxu0 %v5968
          %5991 = vmatprep.subr.bf16.mxu0 0
          %5992 = vmatpush1.bf16.msra.mxu0 %v5967
          %5993 = vmatprep.subr.bf16.mxu0 0
          %5994 = vmatpush1.bf16.msra.mxu0 %v5966
          %5995 = vmatprep.subr.bf16.mxu0 0
          %5996 = vmatpush1.bf16.msra.mxu0 %v5965
          %5997 = vmatprep.subr.bf16.mxu0 0
          %5998 = vmatpush2.bf16.msra.mxu0 0
          %5999 = vmatprep.subr.bf16.mxu0 0
          %6000 = vmatpush2.bf16.msra.mxu0 0
          %6001 = vmatprep.subr.bf16.mxu0 0
          %6002 = vmatpush2.bf16.msra.mxu0 0
          %6003 = vmatprep.subr.bf16.mxu0 0
          %6004 = vmatpush2.bf16.msra.mxu0 0
          %6005 = vmatprep.subr.bf16.mxu0 0
          %6006 = vmatpush2.bf16.msra.mxu0 0
          %6007 = vmatprep.subr.bf16.mxu0 0
          %6008 = vmatpush2.bf16.msra.mxu0 0
          %6009 = vmatprep.subr.bf16.mxu0 0
          %6010 = vmatpush2.bf16.msra.mxu0 0
          %6011 = vmatprep.subr.bf16.mxu0 0
          %6012 = vmatpush2.bf16.msra.mxu0 0
          %6013 = vmatprep.mubr.bf16.mxu0 0
          %6014 = vmatmul.mubr.bf16.gmra.mxu0 %v5738
          %v6015 = vpop.f32.mrf.mxu0
          %v6016 = vadd.f32 0.0, %v6015
          %v6017 = vpop.f32.mrf.mxu0
          %v6018 = vpop.f32.mrf.mxu0
          %v6019 = vpop.f32.mrf.mxu0
          %6020 = vdwg.mxu0
          %v6023 = vunpack.c.l.b16 %v5661
          %v6024 = vunpack.c.l.b16 %v5662
          %v6025 = vrot.slane %v6023, 7
          %v6026 = vrot.slane %v6024, 6
          %v6027 = vsel %vm5541, %v6026, %v6025
          %v6028 = vpack.c.b16 %v6027, %v6027
          %v6046 = vunpack.c.l.b16 %v5699
          %v6047 = vunpack.c.l.b16 %v5700
          %v6048 = vunpack.c.l.b16 %v5701
          %v6049 = vunpack.c.l.b16 %v5702
          %v6050 = vunpack.c.l.b16 %v5703
          %v6051 = vunpack.c.l.b16 %v5704
          %v6052 = vunpack.c.l.b16 %v5705
          %v6053 = vunpack.c.l.b16 %v5706
          %v6054 = vunpack.c.l.b16 %v5707
          %v6055 = vunpack.c.l.b16 %v5708
          %v6056 = vunpack.c.l.b16 %v5709
          %v6057 = vunpack.c.l.b16 %v5710
          %v6058 = vunpack.c.l.b16 %v5711
          %v6059 = vunpack.c.l.b16 %v5712
          %v6060 = vunpack.c.l.b16 %v5713
          %v6061 = vunpack.c.l.b16 %v5714
          %v6062 = vpack.c.b16 %v6047, %v6046
          %v6063 = vpack.c.b16 %v6049, %v6048
          %v6064 = vpack.c.b16 %v6051, %v6050
          %v6065 = vpack.c.b16 %v6053, %v6052
          %v6066 = vpack.c.b16 %v6055, %v6054
          %v6067 = vpack.c.b16 %v6057, %v6056
          %v6068 = vpack.c.b16 %v6059, %v6058
          %v6069 = vpack.c.b16 %v6061, %v6060
          %6078 = vmatprep.subr.bf16.mxu0 0
          %6079 = vmatpush1.bf16.msra.mxu0 %v6069
          %6080 = vmatprep.subr.bf16.mxu0 0
          %6081 = vmatpush1.bf16.msra.mxu0 %v6068
          %6082 = vmatprep.subr.bf16.mxu0 0
          %6083 = vmatpush1.bf16.msra.mxu0 %v6067
          %6084 = vmatprep.subr.bf16.mxu0 0
          %6085 = vmatpush1.bf16.msra.mxu0 %v6066
          %6086 = vmatprep.subr.bf16.mxu0 0
          %6087 = vmatpush1.bf16.msra.mxu0 %v6065
          %6088 = vmatprep.subr.bf16.mxu0 0
          %6089 = vmatpush1.bf16.msra.mxu0 %v6064
          %6090 = vmatprep.subr.bf16.mxu0 0
          %6091 = vmatpush1.bf16.msra.mxu0 %v6063
          %6092 = vmatprep.subr.bf16.mxu0 0
          %6093 = vmatpush1.bf16.msra.mxu0 %v6062
          %6094 = vmatprep.subr.bf16.mxu0 0
          %6095 = vmatpush2.bf16.msra.mxu0 0
          %6096 = vmatprep.subr.bf16.mxu0 0
          %6097 = vmatpush2.bf16.msra.mxu0 0
          %6098 = vmatprep.subr.bf16.mxu0 0
          %6099 = vmatpush2.bf16.msra.mxu0 0
          %6100 = vmatprep.subr.bf16.mxu0 0
          %6101 = vmatpush2.bf16.msra.mxu0 0
          %6102 = vmatprep.subr.bf16.mxu0 0
          %6103 = vmatpush2.bf16.msra.mxu0 0
          %6104 = vmatprep.subr.bf16.mxu0 0
          %6105 = vmatpush2.bf16.msra.mxu0 0
          %6106 = vmatprep.subr.bf16.mxu0 0
          %6107 = vmatpush2.bf16.msra.mxu0 0
          %6108 = vmatprep.subr.bf16.mxu0 0
          %6109 = vmatpush2.bf16.msra.mxu0 0
          %6110 = vmatprep.mubr.bf16.mxu0 0
          %6111 = vmatmul.mubr.bf16.gmra.mxu0 %v6028
          %v6112 = vpop.f32.mrf.mxu0
          %v6113 = vadd.f32 %v6016, %v6112
          %v6114 = vpop.f32.mrf.mxu0
          %v6115 = vpop.f32.mrf.mxu0
          %v6116 = vpop.f32.mrf.mxu0
          %6117 = vdwg.mxu0
          %v6118 = vld [vmem:[#allocation24] sm:$0x1]
          %v6120 = vlaneseq
          %v6121 = vshrl.u32 %v6120, 7
          %v6122 = vsub.s32 0, %v6121
          %v6123 = vrot.slane %v6118, %v6122
          %v6125 = vadd.f32 %v6113, %v6123
          %v6126 = vmax.f32 %v5932, 0.0
          %vm6127 = vcmask 123904
          %6128 = vst.msk [vmem:[#allocation26] sm:$0x3] %vm6127, %v6126
          %v6129 = vmax.f32 %v6125, 0.0
          %6130 = vst.msk [vmem:[#allocation27] sm:$0x3] %vm6127, %v6129
        $region164: #{gpt_classifier_forward.1} parent=99 // pred_fallthru
          _
        // Predicated region
        $region165: #{gpt_classifier_forward.1} parent=99 // pred_check
          %p6131 = pneg %p548
        $region166: #{gpt_classifier_forward.1} parent=99 // pred_check_branch
          %6133 = sbr.rel (%p6131) target = $region168
        $region167: #{gpt_classifier_forward.1} parent=99 // pred_region
          %s6135 = ssub.s32 32, 32
          %6136 = vsyncadd [#allocation5], %s6135
          %s6138 = sshll.u32 [#allocation26], 4
          %s6139 = int_to_ptr.vmem [resolvable:$true] %s6138
          %6141 = dma.vmem_to_hbm [thread:$0]  %s6139, 32, %s20, [#allocation5]
        $region168: #{gpt_classifier_forward.1} parent=99 // pred_fallthru
          _
        // Predicated region
        $region169: #{gpt_classifier_forward.1} parent=99 // pred_check
          %p6142 = pneg %p569
        $region170: #{gpt_classifier_forward.1} parent=99 // pred_check_branch
          %6144 = sbr.rel (%p6142) target = $region172
        $region171: #{gpt_classifier_forward.1} parent=99 // pred_region
          %s6146 = ssub.s32 32, 32
          %6147 = vsyncadd [#allocation28], %s6146
          %s6149 = sshll.u32 [#allocation27], 4
          %s6150 = int_to_ptr.vmem [resolvable:$true] %s6149
          %6152 = dma.vmem_to_hbm [thread:$0]  %s6150, 32, %s21, [#allocation28]
        $region172: #{gpt_classifier_forward.1} parent=99 // pred_fallthru
          _
        // Predicated region
        $region173: #{gpt_classifier_forward.1} parent=99 // pred_check
          %p6153 = pneg %p548
        $region174: #{gpt_classifier_forward.1} parent=99 // pred_check_branch
          %6155 = sbr.rel (%p6153) target = $region176
        $region175: #{gpt_classifier_forward.1} parent=99 // pred_region
          %6156 = dma.done [#allocation5], 32
        $region176: #{gpt_classifier_forward.1} parent=99 // pred_fallthru
          _
        // Predicated region
        $region177: #{gpt_classifier_forward.1} parent=99 // pred_check
          %p6157 = pneg %p569
        $region178: #{gpt_classifier_forward.1} parent=99 // pred_check_branch
          %6159 = sbr.rel (%p6157) target = $region180
        $region179: #{gpt_classifier_forward.1} parent=99 // pred_region
          %6160 = dma.done [#allocation28], 32
        $region180: #{gpt_classifier_forward.1} parent=99 // pred_fallthru
          _
      $region100: #{gpt_classifier_forward.1} parent=5 // pred_fallthru
        _
      %p6161 = scmp.le.s32.totalorder 2, %s50
      // Predicated region
      $region181: #{gpt_classifier_forward.1} parent=5 // pred_check
        %p6162 = pneg %p6161
      $region182: #{gpt_classifier_forward.1} parent=5 // pred_check_branch
        %6164 = sbr.rel (%p6162) target = $region184
      $region183: #{gpt_classifier_forward.1} parent=5 // pred_region
        %s6165 = ssub.s32 %s50, 2
      $region184: #{gpt_classifier_forward.1} parent=5 // pred_fallthru
        _
    $region6: #{gpt_classifier_forward.1} parent=1 // loop_footer
      %s54 = sadd.s32 1, %s50
    $region7: #{gpt_classifier_forward.1} parent=1 // loop_footer_branch
      %49 = sbr.rel target = $region3
    $region8: #{gpt_classifier_forward.1} parent=1 // loop_exit
      _
    %6166 = vsyncpa [#allocation4], 1
    %s6167 = scalar_lea.sflag [#allocation4], 1
    %6168 = vsyncpa %s6167, 1
    %6169 = vsyncpa [#allocation7], 1
    %s6170 = scalar_lea.sflag [#allocation7], 1
    %6171 = vsyncpa %s6170, 1
    %6172 = vsyncpa [#allocation10], 1
    %s6173 = scalar_lea.sflag [#allocation10], 1
    %6174 = vsyncpa %s6173, 1
    %6175 = vsyncpa [#allocation13], 1
    %s6176 = scalar_lea.sflag [#allocation13], 1
    %6177 = vsyncpa %s6176, 1
    %6178 = vsyncpa [#allocation16], 1
    %s6179 = scalar_lea.sflag [#allocation16], 1
    %6180 = vsyncpa %s6179, 1
    %6181 = vsyncpa [#allocation19], 1
    %s6182 = scalar_lea.sflag [#allocation19], 1
    %6183 = vsyncpa %s6182, 1
    %6184 = vsyncpa [#allocation22], 1
    %6185 = vsyncpa [#allocation25], 1
    %6186 = vsyncpa [#allocation5], 1
    %s6187 = scalar_lea.sflag [#allocation5], 1
    %6188 = vsyncpa %s6187, 1
    %6189 = vsyncpa [#allocation28], 1

</llo_original>
